<compile_context>
chip_gen: v6e
topology: v6e:2x2x1
jax: 0.10.0
libtpu: 0.0.40
codegen_flags: <defaults>
</compile_context>

<pallas_src>
import numpy as np
import jax
import jax.numpy as jnp
from jax import lax
from jax.experimental import pallas as pl
from jax.experimental.pallas import tpu as pltpu

# Set to jnp.bfloat16 on v6e/v7x for ~2x MXU throughput (keep f32 accumulation);
# relax the tolerance in __main__ accordingly (handled automatically below).
MXU_DTYPE = jnp.float32

_TB_CAP = 32                       # batch-tile cap (VMEM-safe on v7x's 64 MiB)
_VMEM_LIMIT = 48 * 1024 * 1024     # per perf review: ~48 MiB scoped VMEM


def _pick_batch_tile(batch):
    """Largest divisor of `batch` that is <= 32 and leaves >= 2 grid steps."""
    cap = min(_TB_CAP, batch // 2) if batch > 1 else 1
    tb = 1
    for t in range(1, cap + 1):
        if batch % t == 0:
            tb = t
    return tb


# ---------------------------------------------------------------------------
# Fused kernel: one grid step == TB images.
# ---------------------------------------------------------------------------
def _lenet_kernel(x_ref, w1_ref, b1_ref, w2_ref, b2_ref,
                  w3_ref, b3_ref, w4_ref, b4_ref, o_ref):
    f32 = jnp.float32
    cdt = w1_ref.dtype                      # MXU operand dtype (f32 or bf16)
    tb = x_ref.shape[0]

    # ---- conv1 + ReLU ------------------------------------------------------
    # x rows are host-reordered [even H | odd H], each parity block padded to
    # 18 rows, so the 6 distinct input slabs are contiguous 16-row windows
    # (rows 12..15 of each slab are junk and never consumed downstream).
    slabs = []
    for r in range(6):
        s0 = (r % 2) * 18 + r // 2
        slabs.append(x_ref[:, s0:s0 + 16, :].reshape(tb * 16, 28).astype(cdt))

    relu1 = []
    for par in range(2):                    # par=0 -> even output rows, 1 -> odd
        acc = jnp.dot(slabs[par], w1_ref[0], preferred_element_type=f32)
        for kh in range(1, 5):
            acc = acc + jnp.dot(slabs[par + kh], w1_ref[kh],
                                preferred_element_type=f32)
        relu1.append(jnp.maximum(acc + b1_ref[...], 0.0))    # (TB*16, 512)

    # ---- avg_pool2d(2,2): W-pairs = adjacent 256-lane halves, H-pairs = parity
    p1 = 0.25 * (relu1[0][:, 0:256] + relu1[0][:, 256:512]
                 + relu1[1][:, 0:256] + relu1[1][:, 256:512])
    p1 = p1.reshape(tb, 16, 256)            # rows 0..11 valid per image

    # ---- conv2 + ReLU (Toeplitz along pooled W) -----------------------------
    acc2 = None
    for kh in range(5):
        slab = p1[:, kh:kh + 8, :].reshape(tb * 8, 256).astype(cdt)
        d = jnp.dot(slab, w2_ref[kh], preferred_element_type=f32)
        acc2 = d if acc2 is None else acc2 + d
    relu2 = jnp.maximum(acc2 + b2_ref[...], 0.0)              # (TB*8, 512)

    # ---- avg_pool2d(2,2): W-pairs here; H-pairs folded into the fc1 weights.
    s = relu2[:, 0:256] + relu2[:, 256:512]                   # (TB*8, 256)
    s3 = s.reshape(tb, 8, 256)

    # ---- fc1 + ReLU (pool2 H-sum and the 1/4 factor absorbed in w3) ---------
    acc3 = jnp.dot(s3[:, 0, :].astype(cdt), w3_ref[0], preferred_element_type=f32)
    for y in range(1, 8):
        acc3 = acc3 + jnp.dot(s3[:, y, :].astype(cdt), w3_ref[y],
                              preferred_element_type=f32)
    h1 = jnp.maximum(acc3 + b3_ref[...], 0.0)                 # (TB, 500)

    # ---- fc2 (classes zero-padded to 128 lanes -> unmasked stores) ----------
    out = jnp.dot(h1.astype(cdt), w4_ref[...], preferred_element_type=f32)
    o_ref[0] = out + b4_ref[...]


# ---------------------------------------------------------------------------
# One-time (eager) weight re-layout -- hoisted out of the jitted forward.
# ---------------------------------------------------------------------------
def prepare_params(params):
    w1 = np.asarray(params['conv1_w'], np.float32)   # (20, 1, 5, 5)  (O,I,kh,kw)
    b1 = np.asarray(params['conv1_b'], np.float32)   # (20,)
    w2 = np.asarray(params['conv2_w'], np.float32)   # (50, 20, 5, 5)
    b2 = np.asarray(params['conv2_b'], np.float32)   # (50,)
    w3 = np.asarray(params['fc1_w'], np.float32)     # (800, 500)  (in, out)
    b3 = np.asarray(params['fc1_b'], np.float32)     # (500,)
    w4 = np.asarray(params['fc2_w'], np.float32)     # (500, nc)
    b4 = np.asarray(params['fc2_b'], np.float32)     # (nc,)

    c1, c2, nc = 20, 50, w4.shape[1]
    ncp = ((nc + 127) // 128) * 128

    # conv1 -> Toeplitz along W.  Output column = (j%2)*256 + (j//2)*20 + c, so
    # the pool-W sum is simply a[:, :256] + a[:, 256:].
    w1t = np.zeros((5, 28, 512), np.float32)
    b1w = np.zeros((1, 512), np.float32)
    for j in range(24):
        col = (j % 2) * 256 + (j // 2) * c1
        b1w[0, col:col + c1] = b1
        for kh in range(5):
            for kw in range(5):
                w1t[kh, j + kw, col:col + c1] = w1[:, 0, kh, kw]

    # conv2 -> Toeplitz along pooled W (p1 lanes are j2*20 + ci).
    # Output column = (x%2)*256 + (x//2)*50 + co.
    w2t = np.zeros((5, 256, 512), np.float32)
    b2w = np.zeros((1, 512), np.float32)
    for x in range(8):
        col = (x % 2) * 256 + (x // 2) * c2
        b2w[0, col:col + c2] = b2
        for kh in range(5):
            for kw in range(5):
                j2 = x + kw
                w2t[kh, j2 * c1:(j2 + 1) * c1, col:col + c2] = w2[:, :, kh, kw].T

    # fc1 -> per-y (un-H-pooled conv2 row) weight slabs; PyTorch flatten order
    # of the fc1 input is co*16 + h*4 + w, and pool2's H-sum + 1/4 are folded in.
    w3y = np.zeros((8, 256, 500), np.float32)
    for y in range(8):
        h = y // 2
        for x2 in range(4):
            rows = x2 * c2 + np.arange(c2)
            src = np.arange(c2) * 16 + h * 4 + x2
            w3y[y, rows, :] = 0.25 * w3[src, :]

    # fc2 -> zero-pad classes to a full 128-lane block.
    w4p = np.zeros((500, ncp), np.float32)
    w4p[:, :nc] = w4
    b4p = np.zeros((1, ncp), np.float32)
    b4p[0, :nc] = b4

    mdt = MXU_DTYPE
    return {
        'w1t': jnp.asarray(w1t, mdt), 'b1w': jnp.asarray(b1w),
        'w2t': jnp.asarray(w2t, mdt), 'b2w': jnp.asarray(b2w),
        'w3y': jnp.asarray(w3y, mdt), 'b3': jnp.asarray(b3.reshape(1, 500)),
        'w4p': jnp.asarray(w4p, mdt), 'b4p': jnp.asarray(b4p),
    }


# ---------------------------------------------------------------------------
# Forward wrapper (jit-able): tiny host-side input prep + one pallas_call.
# ---------------------------------------------------------------------------
def lenet_forward(prep, x, num_classes=10):
    """x: (B, 1, 28, 28) float32 -> logits (B, num_classes)."""
    b = x.shape[0]
    tb = _pick_batch_tile(b)
    nsteps = b // tb
    ncp = prep['w4p'].shape[1]

    # Drop the C=1 dim, reorder H rows even|odd and pad each parity block
    # 14 -> 18 rows so the kernel only ever reads contiguous 8-aligned windows.
    x2 = x.reshape(b, 28, 28).astype(jnp.float32)
    zpad = jnp.zeros((b, 4, 28), jnp.float32)
    xre = jnp.concatenate([x2[:, 0::2, :], zpad, x2[:, 1::2, :], zpad], axis=1)

    out = pl.pallas_call(
        _lenet_kernel,
        out_shape=jax.ShapeDtypeStruct((nsteps, tb, ncp), jnp.float32),
        grid=(nsteps,),
        in_specs=[
            pl.BlockSpec((tb, 36, 28), lambda i: (i, 0, 0)),
            pl.BlockSpec((5, 28, 512), lambda i: (0, 0, 0)),
            pl.BlockSpec((1, 512), lambda i: (0, 0)),
            pl.BlockSpec((5, 256, 512), lambda i: (0, 0, 0)),
            pl.BlockSpec((1, 512), lambda i: (0, 0)),
            pl.BlockSpec((8, 256, 500), lambda i: (0, 0, 0)),
            pl.BlockSpec((1, 500), lambda i: (0, 0)),
            pl.BlockSpec((500, ncp), lambda i: (0, 0)),
            pl.BlockSpec((1, ncp), lambda i: (0, 0)),
        ],
        out_specs=pl.BlockSpec((1, tb, ncp), lambda i: (i, 0, 0)),
        compiler_params=pltpu.CompilerParams(
            dimension_semantics=("parallel",),
            vmem_limit_bytes=_VMEM_LIMIT),
    )(xre, prep['w1t'], prep['b1w'], prep['w2t'], prep['b2w'],
      prep['w3y'], prep['b3'], prep['w4p'], prep['b4p'])

    return out.reshape(b, ncp)[:, :num_classes]


# ---------------------------------------------------------------------------
# Params in the PyTorch module's conventions (conv (O,I,kh,kw), fc (in,out)).
# ---------------------------------------------------------------------------
def init_params(key, num_classes=10):
    ks = jax.random.split(key, 8)
    s = 0.05
    return {
        'conv1_w': jax.random.normal(ks[0], (20, 1, 5, 5), jnp.float32) * s,
        'conv1_b': jax.random.normal(ks[1], (20,), jnp.float32) * s,
        'conv2_w': jax.random.normal(ks[2], (50, 20, 5, 5), jnp.float32) * s,
        'conv2_b': jax.random.normal(ks[3], (50,), jnp.float32) * s,
        'fc1_w': jax.random.normal(ks[4], (800, 500), jnp.float32) * s,
        'fc1_b': jax.random.normal(ks[5], (500,), jnp.float32) * s,
        'fc2_w': jax.random.normal(ks[6], (500, num_classes), jnp.float32) * s,
        'fc2_b': jax.random.normal(ks[7], (num_classes,), jnp.float32) * s,
    }


# Pure-JAX reference of the PyTorch module for the numerical check.
def lenet_reference(params, x):
    dn = ('NCHW', 'OIHW', 'NCHW')
    o = lax.conv_general_dilated(x, params['conv1_w'], (1, 1), 'VALID',
                                 dimension_numbers=dn)
    o = jnp.maximum(o + params['conv1_b'][None, :, None, None], 0.0)
    o = o.reshape(o.shape[0], 20, 12, 2, 12, 2).mean(axis=(3, 5))
    o = lax.conv_general_dilated(o, params['conv2_w'], (1, 1), 'VALID',
                                 dimension_numbers=dn)
    o = jnp.maximum(o + params['conv2_b'][None, :, None, None], 0.0)
    o = o.reshape(o.shape[0], 50, 4, 2, 4, 2).mean(axis=(3, 5))
    o = o.reshape(o.shape[0], 800)
    o = jnp.maximum(o @ params['fc1_w'] + params['fc1_b'], 0.0)
    return o @ params['fc2_w'] + params['fc2_b']


if __name__ == "__main__":
    key = jax.random.PRNGKey(0)
    pkey, xkey = jax.random.split(key)
    params = init_params(pkey)
    # LeNet's fc1 (50*4*4 inputs) pins the input to 1x28x28; batch = 2.
    x = jax.random.normal(xkey, (2, 1, 28, 28), jnp.float32)

    prep = prepare_params(params)            # one-time, eager weight re-layout
    fwd = jax.jit(lenet_forward, static_argnames=('num_classes',))
    out = jax.block_until_ready(fwd(prep, x, num_classes=10))
    assert out.shape == (2, 10), out.shape

    ref = jax.block_until_ready(jax.jit(lenet_reference)(params, x))
    tol = 2e-3 if MXU_DTYPE == jnp.float32 else 3e-2
    assert jnp.allclose(out, ref, atol=tol, rtol=tol), \
        float(jnp.max(jnp.abs(out - ref)))
    print("KERNEL_OK")
</pallas_src>

<mosaic_0001>
module attributes {stable_mosaic.version = 11 : i64} {
  func.func @_lenet_kernel(%arg0: i32, %arg1: memref<1x36x28xf32, #tpu.memory_space<vmem>>, %arg2: memref<5x28x512xf32, #tpu.memory_space<vmem>>, %arg3: memref<1x512xf32, #tpu.memory_space<vmem>>, %arg4: memref<5x256x512xf32, #tpu.memory_space<vmem>>, %arg5: memref<1x512xf32, #tpu.memory_space<vmem>>, %arg6: memref<8x256x500xf32, #tpu.memory_space<vmem>>, %arg7: memref<1x500xf32, #tpu.memory_space<vmem>>, %arg8: memref<500x128xf32, #tpu.memory_space<vmem>>, %arg9: memref<1x128xf32, #tpu.memory_space<vmem>>, %arg10: memref<1x1x128xf32, #tpu.memory_space<vmem>>) attributes {dimension_semantics = [#tpu.dimension_semantics<parallel>], iteration_bounds = array<i64: 2>, scalar_prefetch = 0 : i64, scratch_operands = 0 : i64, tpu.core_type = #tpu.core_type<tc>, window_params = [{transform_indices = @transform_0, window_bounds = array<i64: 1, 36, 28>}, {pipeline_mode = #tpu.pipeline_mode<synchronous>, transform_indices = @transform_1, window_bounds = array<i64: 5, 28, 512>}, {pipeline_mode = #tpu.pipeline_mode<synchronous>, transform_indices = @transform_2, window_bounds = array<i64: 1, 512>}, {pipeline_mode = #tpu.pipeline_mode<synchronous>, transform_indices = @transform_3, window_bounds = array<i64: 5, 256, 512>}, {pipeline_mode = #tpu.pipeline_mode<synchronous>, transform_indices = @transform_4, window_bounds = array<i64: 1, 512>}, {pipeline_mode = #tpu.pipeline_mode<synchronous>, transform_indices = @transform_5, window_bounds = array<i64: 8, 256, 500>}, {pipeline_mode = #tpu.pipeline_mode<synchronous>, transform_indices = @transform_6, window_bounds = array<i64: 1, 500>}, {pipeline_mode = #tpu.pipeline_mode<synchronous>, transform_indices = @transform_7, window_bounds = array<i64: 500, 128>}, {pipeline_mode = #tpu.pipeline_mode<synchronous>, transform_indices = @transform_8, window_bounds = array<i64: 1, 128>}, {transform_indices = @transform_9, window_bounds = array<i64: 1, 1, 128>}]} {
    %c0 = arith.constant 0 : index
    %c0_0 = arith.constant 0 : index
    %c0_1 = arith.constant 0 : index
    %0 = vector.load %arg1[%c0, %c0_0, %c0_1] : memref<1x36x28xf32, #tpu.memory_space<vmem>>, vector<1x16x28xf32>
    %1 = vector.shape_cast %0 : vector<1x16x28xf32> to vector<16x28xf32>
    %c0_2 = arith.constant 0 : index
    %c18 = arith.constant 18 : index
    %c0_3 = arith.constant 0 : index
    %2 = vector.load %arg1[%c0_2, %c18, %c0_3] : memref<1x36x28xf32, #tpu.memory_space<vmem>>, vector<1x16x28xf32>
    %3 = vector.shape_cast %2 : vector<1x16x28xf32> to vector<16x28xf32>
    %c0_4 = arith.constant 0 : index
    %c1 = arith.constant 1 : index
    %c0_5 = arith.constant 0 : index
    %4 = vector.load %arg1[%c0_4, %c1, %c0_5] : memref<1x36x28xf32, #tpu.memory_space<vmem>>, vector<1x16x28xf32>
    %5 = vector.shape_cast %4 : vector<1x16x28xf32> to vector<16x28xf32>
    %c0_6 = arith.constant 0 : index
    %c19 = arith.constant 19 : index
    %c0_7 = arith.constant 0 : index
    %6 = vector.load %arg1[%c0_6, %c19, %c0_7] : memref<1x36x28xf32, #tpu.memory_space<vmem>>, vector<1x16x28xf32>
    %7 = vector.shape_cast %6 : vector<1x16x28xf32> to vector<16x28xf32>
    %c0_8 = arith.constant 0 : index
    %c2 = arith.constant 2 : index
    %c0_9 = arith.constant 0 : index
    %8 = vector.load %arg1[%c0_8, %c2, %c0_9] : memref<1x36x28xf32, #tpu.memory_space<vmem>>, vector<1x16x28xf32>
    %9 = vector.shape_cast %8 : vector<1x16x28xf32> to vector<16x28xf32>
    %c0_10 = arith.constant 0 : index
    %c20 = arith.constant 20 : index
    %c0_11 = arith.constant 0 : index
    %10 = vector.load %arg1[%c0_10, %c20, %c0_11] : memref<1x36x28xf32, #tpu.memory_space<vmem>>, vector<1x16x28xf32>
    %11 = vector.shape_cast %10 : vector<1x16x28xf32> to vector<16x28xf32>
    %c0_12 = arith.constant 0 : index
    %c0_13 = arith.constant 0 : index
    %c0_14 = arith.constant 0 : index
    %12 = vector.load %arg2[%c0_12, %c0_13, %c0_14] : memref<5x28x512xf32, #tpu.memory_space<vmem>>, vector<1x28x512xf32>
    %13 = vector.shape_cast %12 : vector<1x28x512xf32> to vector<28x512xf32>
    %cst = arith.constant dense<0.000000e+00> : vector<16x512xf32>
    %14 = tpu.matmul %1, %13, %cst {dimension_numbers = #tpu.dot_dimension_numbers<[1], [0], [0], [1], [0, 0, 1, 1], [], []>} : vector<16x28xf32>, vector<28x512xf32>, vector<16x512xf32> -> vector<16x512xf32>
    %c1_15 = arith.constant 1 : index
    %c0_16 = arith.constant 0 : index
    %c0_17 = arith.constant 0 : index
    %15 = vector.load %arg2[%c1_15, %c0_16, %c0_17] : memref<5x28x512xf32, #tpu.memory_space<vmem>>, vector<1x28x512xf32>
    %16 = vector.shape_cast %15 : vector<1x28x512xf32> to vector<28x512xf32>
    %cst_18 = arith.constant dense<0.000000e+00> : vector<16x512xf32>
    %17 = tpu.matmul %3, %16, %cst_18 {dimension_numbers = #tpu.dot_dimension_numbers<[1], [0], [0], [1], [0, 0, 1, 1], [], []>} : vector<16x28xf32>, vector<28x512xf32>, vector<16x512xf32> -> vector<16x512xf32>
    %18 = arith.addf %14, %17 : vector<16x512xf32>
    %c2_19 = arith.constant 2 : index
    %c0_20 = arith.constant 0 : index
    %c0_21 = arith.constant 0 : index
    %19 = vector.load %arg2[%c2_19, %c0_20, %c0_21] : memref<5x28x512xf32, #tpu.memory_space<vmem>>, vector<1x28x512xf32>
    %20 = vector.shape_cast %19 : vector<1x28x512xf32> to vector<28x512xf32>
    %cst_22 = arith.constant dense<0.000000e+00> : vector<16x512xf32>
    %21 = tpu.matmul %5, %20, %cst_22 {dimension_numbers = #tpu.dot_dimension_numbers<[1], [0], [0], [1], [0, 0, 1, 1], [], []>} : vector<16x28xf32>, vector<28x512xf32>, vector<16x512xf32> -> vector<16x512xf32>
    %22 = arith.addf %18, %21 : vector<16x512xf32>
    %c3 = arith.constant 3 : index
    %c0_23 = arith.constant 0 : index
    %c0_24 = arith.constant 0 : index
    %23 = vector.load %arg2[%c3, %c0_23, %c0_24] : memref<5x28x512xf32, #tpu.memory_space<vmem>>, vector<1x28x512xf32>
    %24 = vector.shape_cast %23 : vector<1x28x512xf32> to vector<28x512xf32>
    %cst_25 = arith.constant dense<0.000000e+00> : vector<16x512xf32>
    %25 = tpu.matmul %7, %24, %cst_25 {dimension_numbers = #tpu.dot_dimension_numbers<[1], [0], [0], [1], [0, 0, 1, 1], [], []>} : vector<16x28xf32>, vector<28x512xf32>, vector<16x512xf32> -> vector<16x512xf32>
    %26 = arith.addf %22, %25 : vector<16x512xf32>
    %c4 = arith.constant 4 : index
    %c0_26 = arith.constant 0 : index
    %c0_27 = arith.constant 0 : index
    %27 = vector.load %arg2[%c4, %c0_26, %c0_27] : memref<5x28x512xf32, #tpu.memory_space<vmem>>, vector<1x28x512xf32>
    %28 = vector.shape_cast %27 : vector<1x28x512xf32> to vector<28x512xf32>
    %cst_28 = arith.constant dense<0.000000e+00> : vector<16x512xf32>
    %29 = tpu.matmul %9, %28, %cst_28 {dimension_numbers = #tpu.dot_dimension_numbers<[1], [0], [0], [1], [0, 0, 1, 1], [], []>} : vector<16x28xf32>, vector<28x512xf32>, vector<16x512xf32> -> vector<16x512xf32>
    %30 = arith.addf %26, %29 : vector<16x512xf32>
    %c0_29 = arith.constant 0 : index
    %c0_30 = arith.constant 0 : index
    %31 = vector.load %arg3[%c0_29, %c0_30] : memref<1x512xf32, #tpu.memory_space<vmem>>, vector<1x512xf32>
    %32 = vector.broadcast %31 : vector<1x512xf32> to vector<16x512xf32>
    %33 = arith.addf %30, %32 : vector<16x512xf32>
    %cst_31 = arith.constant 0.000000e+00 : f32
    %34 = vector.broadcast %cst_31 : f32 to vector<16x512xf32>
    %35 = arith.maximumf %33, %34 : vector<16x512xf32>
    %c0_32 = arith.constant 0 : index
    %c0_33 = arith.constant 0 : index
    %c0_34 = arith.constant 0 : index
    %36 = vector.load %arg2[%c0_32, %c0_33, %c0_34] : memref<5x28x512xf32, #tpu.memory_space<vmem>>, vector<1x28x512xf32>
    %37 = vector.shape_cast %36 : vector<1x28x512xf32> to vector<28x512xf32>
    %cst_35 = arith.constant dense<0.000000e+00> : vector<16x512xf32>
    %38 = tpu.matmul %3, %37, %cst_35 {dimension_numbers = #tpu.dot_dimension_numbers<[1], [0], [0], [1], [0, 0, 1, 1], [], []>} : vector<16x28xf32>, vector<28x512xf32>, vector<16x512xf32> -> vector<16x512xf32>
    %c1_36 = arith.constant 1 : index
    %c0_37 = arith.constant 0 : index
    %c0_38 = arith.constant 0 : index
    %39 = vector.load %arg2[%c1_36, %c0_37, %c0_38] : memref<5x28x512xf32, #tpu.memory_space<vmem>>, vector<1x28x512xf32>
    %40 = vector.shape_cast %39 : vector<1x28x512xf32> to vector<28x512xf32>
    %cst_39 = arith.constant dense<0.000000e+00> : vector<16x512xf32>
    %41 = tpu.matmul %5, %40, %cst_39 {dimension_numbers = #tpu.dot_dimension_numbers<[1], [0], [0], [1], [0, 0, 1, 1], [], []>} : vector<16x28xf32>, vector<28x512xf32>, vector<16x512xf32> -> vector<16x512xf32>
    %42 = arith.addf %38, %41 : vector<16x512xf32>
    %c2_40 = arith.constant 2 : index
    %c0_41 = arith.constant 0 : index
    %c0_42 = arith.constant 0 : index
    %43 = vector.load %arg2[%c2_40, %c0_41, %c0_42] : memref<5x28x512xf32, #tpu.memory_space<vmem>>, vector<1x28x512xf32>
    %44 = vector.shape_cast %43 : vector<1x28x512xf32> to vector<28x512xf32>
    %cst_43 = arith.constant dense<0.000000e+00> : vector<16x512xf32>
    %45 = tpu.matmul %7, %44, %cst_43 {dimension_numbers = #tpu.dot_dimension_numbers<[1], [0], [0], [1], [0, 0, 1, 1], [], []>} : vector<16x28xf32>, vector<28x512xf32>, vector<16x512xf32> -> vector<16x512xf32>
    %46 = arith.addf %42, %45 : vector<16x512xf32>
    %c3_44 = arith.constant 3 : index
    %c0_45 = arith.constant 0 : index
    %c0_46 = arith.constant 0 : index
    %47 = vector.load %arg2[%c3_44, %c0_45, %c0_46] : memref<5x28x512xf32, #tpu.memory_space<vmem>>, vector<1x28x512xf32>
    %48 = vector.shape_cast %47 : vector<1x28x512xf32> to vector<28x512xf32>
    %cst_47 = arith.constant dense<0.000000e+00> : vector<16x512xf32>
    %49 = tpu.matmul %9, %48, %cst_47 {dimension_numbers = #tpu.dot_dimension_numbers<[1], [0], [0], [1], [0, 0, 1, 1], [], []>} : vector<16x28xf32>, vector<28x512xf32>, vector<16x512xf32> -> vector<16x512xf32>
    %50 = arith.addf %46, %49 : vector<16x512xf32>
    %c4_48 = arith.constant 4 : index
    %c0_49 = arith.constant 0 : index
    %c0_50 = arith.constant 0 : index
    %51 = vector.load %arg2[%c4_48, %c0_49, %c0_50] : memref<5x28x512xf32, #tpu.memory_space<vmem>>, vector<1x28x512xf32>
    %52 = vector.shape_cast %51 : vector<1x28x512xf32> to vector<28x512xf32>
    %cst_51 = arith.constant dense<0.000000e+00> : vector<16x512xf32>
    %53 = tpu.matmul %11, %52, %cst_51 {dimension_numbers = #tpu.dot_dimension_numbers<[1], [0], [0], [1], [0, 0, 1, 1], [], []>} : vector<16x28xf32>, vector<28x512xf32>, vector<16x512xf32> -> vector<16x512xf32>
    %54 = arith.addf %50, %53 : vector<16x512xf32>
    %c0_52 = arith.constant 0 : index
    %c0_53 = arith.constant 0 : index
    %55 = vector.load %arg3[%c0_52, %c0_53] : memref<1x512xf32, #tpu.memory_space<vmem>>, vector<1x512xf32>
    %56 = vector.broadcast %55 : vector<1x512xf32> to vector<16x512xf32>
    %57 = arith.addf %54, %56 : vector<16x512xf32>
    %cst_54 = arith.constant 0.000000e+00 : f32
    %58 = vector.broadcast %cst_54 : f32 to vector<16x512xf32>
    %59 = arith.maximumf %57, %58 : vector<16x512xf32>
    %60 = vector.extract_strided_slice %35 {offsets = [0, 0], sizes = [16, 256], strides = [1, 1]} : vector<16x512xf32> to vector<16x256xf32>
    %61 = vector.extract_strided_slice %35 {offsets = [0, 256], sizes = [16, 256], strides = [1, 1]} : vector<16x512xf32> to vector<16x256xf32>
    %62 = arith.addf %60, %61 : vector<16x256xf32>
    %63 = vector.extract_strided_slice %59 {offsets = [0, 0], sizes = [16, 256], strides = [1, 1]} : vector<16x512xf32> to vector<16x256xf32>
    %64 = arith.addf %62, %63 : vector<16x256xf32>
    %65 = vector.extract_strided_slice %59 {offsets = [0, 256], sizes = [16, 256], strides = [1, 1]} : vector<16x512xf32> to vector<16x256xf32>
    %66 = arith.addf %64, %65 : vector<16x256xf32>
    %cst_55 = arith.constant 2.500000e-01 : f32
    %67 = vector.broadcast %cst_55 : f32 to vector<16x256xf32>
    %68 = arith.mulf %67, %66 : vector<16x256xf32>
    %69 = vector.shape_cast %68 : vector<16x256xf32> to vector<1x16x256xf32>
    %70 = vector.extract_strided_slice %69 {offsets = [0, 0, 0], sizes = [1, 8, 256], strides = [1, 1, 1]} : vector<1x16x256xf32> to vector<1x8x256xf32>
    %71 = vector.shape_cast %70 : vector<1x8x256xf32> to vector<8x256xf32>
    %c0_56 = arith.constant 0 : index
    %c0_57 = arith.constant 0 : index
    %c0_58 = arith.constant 0 : index
    %72 = vector.load %arg4[%c0_56, %c0_57, %c0_58] : memref<5x256x512xf32, #tpu.memory_space<vmem>>, vector<1x256x512xf32>
    %73 = vector.shape_cast %72 : vector<1x256x512xf32> to vector<256x512xf32>
    %cst_59 = arith.constant dense<0.000000e+00> : vector<8x512xf32>
    %74 = tpu.matmul %71, %73, %cst_59 {dimension_numbers = #tpu.dot_dimension_numbers<[1], [0], [0], [1], [0, 0, 1, 1], [], []>} : vector<8x256xf32>, vector<256x512xf32>, vector<8x512xf32> -> vector<8x512xf32>
    %75 = vector.extract_strided_slice %69 {offsets = [0, 1, 0], sizes = [1, 8, 256], strides = [1, 1, 1]} : vector<1x16x256xf32> to vector<1x8x256xf32>
    %76 = vector.shape_cast %75 : vector<1x8x256xf32> to vector<8x256xf32>
    %c1_60 = arith.constant 1 : index
    %c0_61 = arith.constant 0 : index
    %c0_62 = arith.constant 0 : index
    %77 = vector.load %arg4[%c1_60, %c0_61, %c0_62] : memref<5x256x512xf32, #tpu.memory_space<vmem>>, vector<1x256x512xf32>
    %78 = vector.shape_cast %77 : vector<1x256x512xf32> to vector<256x512xf32>
    %cst_63 = arith.constant dense<0.000000e+00> : vector<8x512xf32>
    %79 = tpu.matmul %76, %78, %cst_63 {dimension_numbers = #tpu.dot_dimension_numbers<[1], [0], [0], [1], [0, 0, 1, 1], [], []>} : vector<8x256xf32>, vector<256x512xf32>, vector<8x512xf32> -> vector<8x512xf32>
    %80 = arith.addf %74, %79 : vector<8x512xf32>
    %81 = vector.extract_strided_slice %69 {offsets = [0, 2, 0], sizes = [1, 8, 256], strides = [1, 1, 1]} : vector<1x16x256xf32> to vector<1x8x256xf32>
    %82 = vector.shape_cast %81 : vector<1x8x256xf32> to vector<8x256xf32>
    %c2_64 = arith.constant 2 : index
    %c0_65 = arith.constant 0 : index
    %c0_66 = arith.constant 0 : index
    %83 = vector.load %arg4[%c2_64, %c0_65, %c0_66] : memref<5x256x512xf32, #tpu.memory_space<vmem>>, vector<1x256x512xf32>
    %84 = vector.shape_cast %83 : vector<1x256x512xf32> to vector<256x512xf32>
    %cst_67 = arith.constant dense<0.000000e+00> : vector<8x512xf32>
    %85 = tpu.matmul %82, %84, %cst_67 {dimension_numbers = #tpu.dot_dimension_numbers<[1], [0], [0], [1], [0, 0, 1, 1], [], []>} : vector<8x256xf32>, vector<256x512xf32>, vector<8x512xf32> -> vector<8x512xf32>
    %86 = arith.addf %80, %85 : vector<8x512xf32>
    %87 = vector.extract_strided_slice %69 {offsets = [0, 3, 0], sizes = [1, 8, 256], strides = [1, 1, 1]} : vector<1x16x256xf32> to vector<1x8x256xf32>
    %88 = vector.shape_cast %87 : vector<1x8x256xf32> to vector<8x256xf32>
    %c3_68 = arith.constant 3 : index
    %c0_69 = arith.constant 0 : index
    %c0_70 = arith.constant 0 : index
    %89 = vector.load %arg4[%c3_68, %c0_69, %c0_70] : memref<5x256x512xf32, #tpu.memory_space<vmem>>, vector<1x256x512xf32>
    %90 = vector.shape_cast %89 : vector<1x256x512xf32> to vector<256x512xf32>
    %cst_71 = arith.constant dense<0.000000e+00> : vector<8x512xf32>
    %91 = tpu.matmul %88, %90, %cst_71 {dimension_numbers = #tpu.dot_dimension_numbers<[1], [0], [0], [1], [0, 0, 1, 1], [], []>} : vector<8x256xf32>, vector<256x512xf32>, vector<8x512xf32> -> vector<8x512xf32>
    %92 = arith.addf %86, %91 : vector<8x512xf32>
    %93 = vector.extract_strided_slice %69 {offsets = [0, 4, 0], sizes = [1, 8, 256], strides = [1, 1, 1]} : vector<1x16x256xf32> to vector<1x8x256xf32>
    %94 = vector.shape_cast %93 : vector<1x8x256xf32> to vector<8x256xf32>
    %c4_72 = arith.constant 4 : index
    %c0_73 = arith.constant 0 : index
    %c0_74 = arith.constant 0 : index
    %95 = vector.load %arg4[%c4_72, %c0_73, %c0_74] : memref<5x256x512xf32, #tpu.memory_space<vmem>>, vector<1x256x512xf32>
    %96 = vector.shape_cast %95 : vector<1x256x512xf32> to vector<256x512xf32>
    %cst_75 = arith.constant dense<0.000000e+00> : vector<8x512xf32>
    %97 = tpu.matmul %94, %96, %cst_75 {dimension_numbers = #tpu.dot_dimension_numbers<[1], [0], [0], [1], [0, 0, 1, 1], [], []>} : vector<8x256xf32>, vector<256x512xf32>, vector<8x512xf32> -> vector<8x512xf32>
    %98 = arith.addf %92, %97 : vector<8x512xf32>
    %c0_76 = arith.constant 0 : index
    %c0_77 = arith.constant 0 : index
    %99 = vector.load %arg5[%c0_76, %c0_77] : memref<1x512xf32, #tpu.memory_space<vmem>>, vector<1x512xf32>
    %100 = vector.broadcast %99 : vector<1x512xf32> to vector<8x512xf32>
    %101 = arith.addf %98, %100 : vector<8x512xf32>
    %cst_78 = arith.constant 0.000000e+00 : f32
    %102 = vector.broadcast %cst_78 : f32 to vector<8x512xf32>
    %103 = arith.maximumf %101, %102 : vector<8x512xf32>
    %104 = vector.extract_strided_slice %103 {offsets = [0, 0], sizes = [8, 256], strides = [1, 1]} : vector<8x512xf32> to vector<8x256xf32>
    %105 = vector.extract_strided_slice %103 {offsets = [0, 256], sizes = [8, 256], strides = [1, 1]} : vector<8x512xf32> to vector<8x256xf32>
    %106 = arith.addf %104, %105 : vector<8x256xf32>
    %107 = vector.shape_cast %106 : vector<8x256xf32> to vector<1x8x256xf32>
    %108 = vector.extract_strided_slice %107 {offsets = [0, 0, 0], sizes = [1, 1, 256], strides = [1, 1, 1]} : vector<1x8x256xf32> to vector<1x1x256xf32>
    %109 = vector.shape_cast %108 : vector<1x1x256xf32> to vector<1x256xf32>
    %c0_79 = arith.constant 0 : index
    %c0_80 = arith.constant 0 : index
    %c0_81 = arith.constant 0 : index
    %110 = vector.load %arg6[%c0_79, %c0_80, %c0_81] : memref<8x256x500xf32, #tpu.memory_space<vmem>>, vector<1x256x500xf32>
    %111 = vector.shape_cast %110 : vector<1x256x500xf32> to vector<256x500xf32>
    %cst_82 = arith.constant dense<0.000000e+00> : vector<1x500xf32>
    %112 = tpu.matmul %109, %111, %cst_82 {dimension_numbers = #tpu.dot_dimension_numbers<[1], [0], [0], [1], [0, 0, 1, 1], [], []>} : vector<1x256xf32>, vector<256x500xf32>, vector<1x500xf32> -> vector<1x500xf32>
    %113 = vector.extract_strided_slice %107 {offsets = [0, 1, 0], sizes = [1, 1, 256], strides = [1, 1, 1]} : vector<1x8x256xf32> to vector<1x1x256xf32>
    %114 = vector.shape_cast %113 : vector<1x1x256xf32> to vector<1x256xf32>
    %c1_83 = arith.constant 1 : index
    %c0_84 = arith.constant 0 : index
    %c0_85 = arith.constant 0 : index
    %115 = vector.load %arg6[%c1_83, %c0_84, %c0_85] : memref<8x256x500xf32, #tpu.memory_space<vmem>>, vector<1x256x500xf32>
    %116 = vector.shape_cast %115 : vector<1x256x500xf32> to vector<256x500xf32>
    %cst_86 = arith.constant dense<0.000000e+00> : vector<1x500xf32>
    %117 = tpu.matmul %114, %116, %cst_86 {dimension_numbers = #tpu.dot_dimension_numbers<[1], [0], [0], [1], [0, 0, 1, 1], [], []>} : vector<1x256xf32>, vector<256x500xf32>, vector<1x500xf32> -> vector<1x500xf32>
    %118 = arith.addf %112, %117 : vector<1x500xf32>
    %119 = vector.extract_strided_slice %107 {offsets = [0, 2, 0], sizes = [1, 1, 256], strides = [1, 1, 1]} : vector<1x8x256xf32> to vector<1x1x256xf32>
    %120 = vector.shape_cast %119 : vector<1x1x256xf32> to vector<1x256xf32>
    %c2_87 = arith.constant 2 : index
    %c0_88 = arith.constant 0 : index
    %c0_89 = arith.constant 0 : index
    %121 = vector.load %arg6[%c2_87, %c0_88, %c0_89] : memref<8x256x500xf32, #tpu.memory_space<vmem>>, vector<1x256x500xf32>
    %122 = vector.shape_cast %121 : vector<1x256x500xf32> to vector<256x500xf32>
    %cst_90 = arith.constant dense<0.000000e+00> : vector<1x500xf32>
    %123 = tpu.matmul %120, %122, %cst_90 {dimension_numbers = #tpu.dot_dimension_numbers<[1], [0], [0], [1], [0, 0, 1, 1], [], []>} : vector<1x256xf32>, vector<256x500xf32>, vector<1x500xf32> -> vector<1x500xf32>
    %124 = arith.addf %118, %123 : vector<1x500xf32>
    %125 = vector.extract_strided_slice %107 {offsets = [0, 3, 0], sizes = [1, 1, 256], strides = [1, 1, 1]} : vector<1x8x256xf32> to vector<1x1x256xf32>
    %126 = vector.shape_cast %125 : vector<1x1x256xf32> to vector<1x256xf32>
    %c3_91 = arith.constant 3 : index
    %c0_92 = arith.constant 0 : index
    %c0_93 = arith.constant 0 : index
    %127 = vector.load %arg6[%c3_91, %c0_92, %c0_93] : memref<8x256x500xf32, #tpu.memory_space<vmem>>, vector<1x256x500xf32>
    %128 = vector.shape_cast %127 : vector<1x256x500xf32> to vector<256x500xf32>
    %cst_94 = arith.constant dense<0.000000e+00> : vector<1x500xf32>
    %129 = tpu.matmul %126, %128, %cst_94 {dimension_numbers = #tpu.dot_dimension_numbers<[1], [0], [0], [1], [0, 0, 1, 1], [], []>} : vector<1x256xf32>, vector<256x500xf32>, vector<1x500xf32> -> vector<1x500xf32>
    %130 = arith.addf %124, %129 : vector<1x500xf32>
    %131 = vector.extract_strided_slice %107 {offsets = [0, 4, 0], sizes = [1, 1, 256], strides = [1, 1, 1]} : vector<1x8x256xf32> to vector<1x1x256xf32>
    %132 = vector.shape_cast %131 : vector<1x1x256xf32> to vector<1x256xf32>
    %c4_95 = arith.constant 4 : index
    %c0_96 = arith.constant 0 : index
    %c0_97 = arith.constant 0 : index
    %133 = vector.load %arg6[%c4_95, %c0_96, %c0_97] : memref<8x256x500xf32, #tpu.memory_space<vmem>>, vector<1x256x500xf32>
    %134 = vector.shape_cast %133 : vector<1x256x500xf32> to vector<256x500xf32>
    %cst_98 = arith.constant dense<0.000000e+00> : vector<1x500xf32>
    %135 = tpu.matmul %132, %134, %cst_98 {dimension_numbers = #tpu.dot_dimension_numbers<[1], [0], [0], [1], [0, 0, 1, 1], [], []>} : vector<1x256xf32>, vector<256x500xf32>, vector<1x500xf32> -> vector<1x500xf32>
    %136 = arith.addf %130, %135 : vector<1x500xf32>
    %137 = vector.extract_strided_slice %107 {offsets = [0, 5, 0], sizes = [1, 1, 256], strides = [1, 1, 1]} : vector<1x8x256xf32> to vector<1x1x256xf32>
    %138 = vector.shape_cast %137 : vector<1x1x256xf32> to vector<1x256xf32>
    %c5 = arith.constant 5 : index
    %c0_99 = arith.constant 0 : index
    %c0_100 = arith.constant 0 : index
    %139 = vector.load %arg6[%c5, %c0_99, %c0_100] : memref<8x256x500xf32, #tpu.memory_space<vmem>>, vector<1x256x500xf32>
    %140 = vector.shape_cast %139 : vector<1x256x500xf32> to vector<256x500xf32>
    %cst_101 = arith.constant dense<0.000000e+00> : vector<1x500xf32>
    %141 = tpu.matmul %138, %140, %cst_101 {dimension_numbers = #tpu.dot_dimension_numbers<[1], [0], [0], [1], [0, 0, 1, 1], [], []>} : vector<1x256xf32>, vector<256x500xf32>, vector<1x500xf32> -> vector<1x500xf32>
    %142 = arith.addf %136, %141 : vector<1x500xf32>
    %143 = vector.extract_strided_slice %107 {offsets = [0, 6, 0], sizes = [1, 1, 256], strides = [1, 1, 1]} : vector<1x8x256xf32> to vector<1x1x256xf32>
    %144 = vector.shape_cast %143 : vector<1x1x256xf32> to vector<1x256xf32>
    %c6 = arith.constant 6 : index
    %c0_102 = arith.constant 0 : index
    %c0_103 = arith.constant 0 : index
    %145 = vector.load %arg6[%c6, %c0_102, %c0_103] : memref<8x256x500xf32, #tpu.memory_space<vmem>>, vector<1x256x500xf32>
    %146 = vector.shape_cast %145 : vector<1x256x500xf32> to vector<256x500xf32>
    %cst_104 = arith.constant dense<0.000000e+00> : vector<1x500xf32>
    %147 = tpu.matmul %144, %146, %cst_104 {dimension_numbers = #tpu.dot_dimension_numbers<[1], [0], [0], [1], [0, 0, 1, 1], [], []>} : vector<1x256xf32>, vector<256x500xf32>, vector<1x500xf32> -> vector<1x500xf32>
    %148 = arith.addf %142, %147 : vector<1x500xf32>
    %149 = vector.extract_strided_slice %107 {offsets = [0, 7, 0], sizes = [1, 1, 256], strides = [1, 1, 1]} : vector<1x8x256xf32> to vector<1x1x256xf32>
    %150 = vector.shape_cast %149 : vector<1x1x256xf32> to vector<1x256xf32>
    %c7 = arith.constant 7 : index
    %c0_105 = arith.constant 0 : index
    %c0_106 = arith.constant 0 : index
    %151 = vector.load %arg6[%c7, %c0_105, %c0_106] : memref<8x256x500xf32, #tpu.memory_space<vmem>>, vector<1x256x500xf32>
    %152 = vector.shape_cast %151 : vector<1x256x500xf32> to vector<256x500xf32>
    %cst_107 = arith.constant dense<0.000000e+00> : vector<1x500xf32>
    %153 = tpu.matmul %150, %152, %cst_107 {dimension_numbers = #tpu.dot_dimension_numbers<[1], [0], [0], [1], [0, 0, 1, 1], [], []>} : vector<1x256xf32>, vector<256x500xf32>, vector<1x500xf32> -> vector<1x500xf32>
    %154 = arith.addf %148, %153 : vector<1x500xf32>
    %c0_108 = arith.constant 0 : index
    %c0_109 = arith.constant 0 : index
    %155 = vector.load %arg7[%c0_108, %c0_109] : memref<1x500xf32, #tpu.memory_space<vmem>>, vector<1x500xf32>
    %156 = arith.addf %154, %155 : vector<1x500xf32>
    %cst_110 = arith.constant 0.000000e+00 : f32
    %157 = vector.broadcast %cst_110 : f32 to vector<1x500xf32>
    %158 = arith.maximumf %156, %157 : vector<1x500xf32>
    %c0_111 = arith.constant 0 : index
    %c0_112 = arith.constant 0 : index
    %159 = vector.load %arg8[%c0_111, %c0_112] : memref<500x128xf32, #tpu.memory_space<vmem>>, vector<500x128xf32>
    %cst_113 = arith.constant dense<0.000000e+00> : vector<1x128xf32>
    %160 = tpu.matmul %158, %159, %cst_113 {dimension_numbers = #tpu.dot_dimension_numbers<[1], [0], [0], [1], [0, 0, 1, 1], [], []>} : vector<1x500xf32>, vector<500x128xf32>, vector<1x128xf32> -> vector<1x128xf32>
    %c0_114 = arith.constant 0 : index
    %c0_115 = arith.constant 0 : index
    %161 = vector.load %arg9[%c0_114, %c0_115] : memref<1x128xf32, #tpu.memory_space<vmem>>, vector<1x128xf32>
    %162 = arith.addf %160, %161 : vector<1x128xf32>
    %c0_116 = arith.constant 0 : index
    %c0_117 = arith.constant 0 : index
    %c0_118 = arith.constant 0 : index
    %163 = vector.load %arg10[%c0_116, %c0_117, %c0_118] : memref<1x1x128xf32, #tpu.memory_space<vmem>>, vector<1x1x128xf32>
    %164 = vector.shape_cast %163 : vector<1x1x128xf32> to vector<1x128xf32>
    %165 = vector.shape_cast %162 : vector<1x128xf32> to vector<1x1x128xf32>
    tpu.vector_store %arg10[%c0_116, %c0_117, %c0_118], %165 {strides = array<i32>} : memref<1x1x128xf32, #tpu.memory_space<vmem>>, vector<1x1x128xf32>,
    return
  }
  func.func @transform_0(%arg0: i32) -> (i32, i32, i32) {
    %c0_i32 = arith.constant 0 : i32
    %c0_i32_0 = arith.constant 0 : i32
    %c0_i32_1 = arith.constant 0 : i32
    return %arg0, %c0_i32, %c0_i32_0 : i32, i32, i32
  }
  func.func @transform_1(%arg0: i32) -> (i32, i32, i32) {
    %c0_i32 = arith.constant 0 : i32
    %c0_i32_0 = arith.constant 0 : i32
    %c0_i32_1 = arith.constant 0 : i32
    %c0_i32_2 = arith.constant 0 : i32
    return %c0_i32, %c0_i32_0, %c0_i32_1 : i32, i32, i32
  }
  func.func @transform_2(%arg0: i32) -> (i32, i32) {
    %c0_i32 = arith.constant 0 : i32
    %c0_i32_0 = arith.constant 0 : i32
    %c0_i32_1 = arith.constant 0 : i32
    return %c0_i32, %c0_i32_0 : i32, i32
  }
  func.func @transform_3(%arg0: i32) -> (i32, i32, i32) {
    %c0_i32 = arith.constant 0 : i32
    %c0_i32_0 = arith.constant 0 : i32
    %c0_i32_1 = arith.constant 0 : i32
    %c0_i32_2 = arith.constant 0 : i32
    return %c0_i32, %c0_i32_0, %c0_i32_1 : i32, i32, i32
  }
  func.func @transform_4(%arg0: i32) -> (i32, i32) {
    %c0_i32 = arith.constant 0 : i32
    %c0_i32_0 = arith.constant 0 : i32
    %c0_i32_1 = arith.constant 0 : i32
    return %c0_i32, %c0_i32_0 : i32, i32
  }
  func.func @transform_5(%arg0: i32) -> (i32, i32, i32) {
    %c0_i32 = arith.constant 0 : i32
    %c0_i32_0 = arith.constant 0 : i32
    %c0_i32_1 = arith.constant 0 : i32
    %c0_i32_2 = arith.constant 0 : i32
    return %c0_i32, %c0_i32_0, %c0_i32_1 : i32, i32, i32
  }
  func.func @transform_6(%arg0: i32) -> (i32, i32) {
    %c0_i32 = arith.constant 0 : i32
    %c0_i32_0 = arith.constant 0 : i32
    %c0_i32_1 = arith.constant 0 : i32
    return %c0_i32, %c0_i32_0 : i32, i32
  }
  func.func @transform_7(%arg0: i32) -> (i32, i32) {
    %c0_i32 = arith.constant 0 : i32
    %c0_i32_0 = arith.constant 0 : i32
    %c0_i32_1 = arith.constant 0 : i32
    return %c0_i32, %c0_i32_0 : i32, i32
  }
  func.func @transform_8(%arg0: i32) -> (i32, i32) {
    %c0_i32 = arith.constant 0 : i32
    %c0_i32_0 = arith.constant 0 : i32
    %c0_i32_1 = arith.constant 0 : i32
    return %c0_i32, %c0_i32_0 : i32, i32
  }
  func.func @transform_9(%arg0: i32) -> (i32, i32, i32) {
    %c0_i32 = arith.constant 0 : i32
    %c0_i32_0 = arith.constant 0 : i32
    %c0_i32_1 = arith.constant 0 : i32
    return %arg0, %c0_i32, %c0_i32_0 : i32, i32, i32
  }
}

</mosaic_0001>

<llo_original>
// kernel: lenet_forward.1
$region0: #{lenet_forward.1}
  #allocation0 [shape = 'u32[]', space=smem, size = 0x4, offset = 0x4, fixed_abs, tag = 'smem constant byte address 0x4 - core index']
  #allocation1 [shape = 'u32[144,128]{1,0:T(1,128)}', space=vmem, size = 0x12000, scoped, tag = 'internal scratch']
  %s0 = inlined_call_operand.vmem [shape: f32[2,36,28], index: 0, kind: input, shape index: {}]
  %s1 = inlined_call_operand.vmem [shape: f32[5,28,512], index: 1, kind: input, shape index: {}]
  %s2 = inlined_call_operand.vmem [shape: f32[1,512], index: 2, kind: input, shape index: {}]
  %s3 = inlined_call_operand.vmem [shape: f32[5,256,512], index: 3, kind: input, shape index: {}]
  %s4 = inlined_call_operand.vmem [shape: f32[1,512], index: 4, kind: input, shape index: {}]
  %s5 = inlined_call_operand.vmem [shape: f32[8,256,500], index: 5, kind: input, shape index: {}]
  %s6 = inlined_call_operand.vmem [shape: f32[1,500], index: 6, kind: input, shape index: {}]
  %s7 = inlined_call_operand.vmem [shape: f32[500,128], index: 7, kind: input, shape index: {}]
  %s8 = inlined_call_operand.vmem [shape: f32[1,128], index: 8, kind: input, shape index: {}]
  %s9 = inlined_call_operand.hbm [shape: f32[2,1,128], index: 9, kind: output, shape index: {}]
  %s10 = sld [smem:[#allocation0]]
  $region69: #{lenet_forward.1} parent=0
    _
  %s12 = ssub.s32 1, %s10
  %s13 = scalar_select 0, %s12, %s10
  $region1: #{lenet_forward.1} parent=0
    #allocation2 [shape = 'u8[1024]{0}', space=vmem, size = 0x400, scoped, tag = 'output window, operand 0']
    #allocation3 [shape = 's32[2]{0}', space=sflag, size = 0x8, scoped, tag = 'scoped memory for lenet_forward.1']
    %14 = vsyncpa [#allocation3], 0
    %s15 = scalar_lea.sflag [#allocation3], 1
    %16 = vsyncpa %s15, 0
    loop: start=0, step=1, limit=4
    $region2: #{lenet_forward.1} parent=1 // loop_pre_header
      _
    $region3: #{lenet_forward.1} parent=1 // loop_header
      %s18 = sphi 0, %s22
      %p19 = scmp.ge.s32.totalorder %s18, 4
      %s28 = sphi 0, %s30
      %s31 = sphi 0, %s28
      %s32 = sphi 0, %s31
      %s48 = sphi 0, %s32
      %s52 = sphi 0, %s52
      %s54 = sphi 0, %s52
      %s55 = sphi 0, %s54
      %s69 = sphi 0, %s55
      %s73 = sphi 0, %s73
      %s75 = sphi 0, %s73
      %s76 = sphi 0, %s75
      %s90 = sphi 0, %s76
      %s94 = sphi 0, %s94
      %s96 = sphi 0, %s94
      %s97 = sphi 0, %s96
      %s111 = sphi 0, %s97
      %s115 = sphi 0, %s115
      %s117 = sphi 0, %s115
      %s118 = sphi 0, %s117
      %s132 = sphi 0, %s118
      %s136 = sphi 0, %s136
      %s138 = sphi 0, %s136
      %s139 = sphi 0, %s138
      %s153 = sphi 0, %s139
      %s157 = sphi 0, %s157
      %s159 = sphi 0, %s157
      %s160 = sphi 0, %s159
      %s174 = sphi 0, %s160
      %s178 = sphi 0, %s178
      %s180 = sphi 0, %s178
      %s181 = sphi 0, %s180
      %s195 = sphi 0, %s181
      %s199 = sphi 0, %s199
      %s201 = sphi 0, %s199
      %s202 = sphi 0, %s201
      %s216 = sphi 0, %s202
      %s222 = sphi 0, %s224
      %s225 = sphi 0, %s222
      %s226 = sphi 0, %s225
      %s242 = sphi 0, %s226
    $region4: #{lenet_forward.1} parent=1 // loop_header_branch
      %21 = sbr.rel (%p19) target = $region8
    $region5: #{lenet_forward.1} parent=1 // loop_body
      %s23 = ssub.s32 %s18, 1
      %s24 = ssub.s32 %s18, 2
      %s25 = sadd.s32 %s18, 1
      %s26 = ssub.s32 %s18, %s25
      %p27 = scmp.eq.s32.totalorder %s26, 0
      %s29 = sadd.s32 %s28, 1
      %s30 = scalar_select %p27, %s28, %s29
      %p33 = pneg %p27
      %p34 = scmp.eq.s32.totalorder %s18, 1
      %p35 = por %p33, %p34
      %p36 = scmp.ne.s32.totalorder %s28, %s31
      %p37 = scmp.eq.s32.totalorder %s18, 0
      %p38 = por %p36, %p37
      %p39 = scmp.ne.s32.totalorder %s28, %s31
      %p40 = scmp.eq.s32.totalorder %s23, 1
      %p41 = por %p39, %p40
      %p42 = scmp.ne.s32.totalorder %s31, %s32
      %p43 = scmp.eq.s32.totalorder %s23, 0
      %p44 = por %p42, %p43
      %p45 = scmp.ne.s32.totalorder %s31, %s32
      %p46 = scmp.eq.s32.totalorder %s24, 1
      %p47 = por %p45, %p46
      %p49 = scmp.ne.s32.totalorder %s32, %s48
      %p50 = scmp.eq.s32.totalorder %s24, 0
      %p51 = por %p49, %p50
      %s53 = sadd.s32 %s52, 1
      %p56 = scmp.eq.s32.totalorder %s18, 1
      %p57 = scmp.ne.s32.totalorder %s52, %s54
      %p58 = scmp.eq.s32.totalorder %s18, 0
      %p59 = por %p57, %p58
      %p60 = scmp.ne.s32.totalorder %s52, %s54
      %p61 = scmp.eq.s32.totalorder %s23, 1
      %p62 = por %p60, %p61
      %p63 = scmp.ne.s32.totalorder %s54, %s55
      %p64 = scmp.eq.s32.totalorder %s23, 0
      %p65 = por %p63, %p64
      %p66 = scmp.ne.s32.totalorder %s54, %s55
      %p67 = scmp.eq.s32.totalorder %s24, 1
      %p68 = por %p66, %p67
      %p70 = scmp.ne.s32.totalorder %s55, %s69
      %p71 = scmp.eq.s32.totalorder %s24, 0
      %p72 = por %p70, %p71
      %s74 = sadd.s32 %s73, 1
      %p77 = scmp.eq.s32.totalorder %s18, 1
      %p78 = scmp.ne.s32.totalorder %s73, %s75
      %p79 = scmp.eq.s32.totalorder %s18, 0
      %p80 = por %p78, %p79
      %p81 = scmp.ne.s32.totalorder %s73, %s75
      %p82 = scmp.eq.s32.totalorder %s23, 1
      %p83 = por %p81, %p82
      %p84 = scmp.ne.s32.totalorder %s75, %s76
      %p85 = scmp.eq.s32.totalorder %s23, 0
      %p86 = por %p84, %p85
      %p87 = scmp.ne.s32.totalorder %s75, %s76
      %p88 = scmp.eq.s32.totalorder %s24, 1
      %p89 = por %p87, %p88
      %p91 = scmp.ne.s32.totalorder %s76, %s90
      %p92 = scmp.eq.s32.totalorder %s24, 0
      %p93 = por %p91, %p92
      %s95 = sadd.s32 %s94, 1
      %p98 = scmp.eq.s32.totalorder %s18, 1
      %p99 = scmp.ne.s32.totalorder %s94, %s96
      %p100 = scmp.eq.s32.totalorder %s18, 0
      %p101 = por %p99, %p100
      %p102 = scmp.ne.s32.totalorder %s94, %s96
      %p103 = scmp.eq.s32.totalorder %s23, 1
      %p104 = por %p102, %p103
      %p105 = scmp.ne.s32.totalorder %s96, %s97
      %p106 = scmp.eq.s32.totalorder %s23, 0
      %p107 = por %p105, %p106
      %p108 = scmp.ne.s32.totalorder %s96, %s97
      %p109 = scmp.eq.s32.totalorder %s24, 1
      %p110 = por %p108, %p109
      %p112 = scmp.ne.s32.totalorder %s97, %s111
      %p113 = scmp.eq.s32.totalorder %s24, 0
      %p114 = por %p112, %p113
      %s116 = sadd.s32 %s115, 1
      %p119 = scmp.eq.s32.totalorder %s18, 1
      %p120 = scmp.ne.s32.totalorder %s115, %s117
      %p121 = scmp.eq.s32.totalorder %s18, 0
      %p122 = por %p120, %p121
      %p123 = scmp.ne.s32.totalorder %s115, %s117
      %p124 = scmp.eq.s32.totalorder %s23, 1
      %p125 = por %p123, %p124
      %p126 = scmp.ne.s32.totalorder %s117, %s118
      %p127 = scmp.eq.s32.totalorder %s23, 0
      %p128 = por %p126, %p127
      %p129 = scmp.ne.s32.totalorder %s117, %s118
      %p130 = scmp.eq.s32.totalorder %s24, 1
      %p131 = por %p129, %p130
      %p133 = scmp.ne.s32.totalorder %s118, %s132
      %p134 = scmp.eq.s32.totalorder %s24, 0
      %p135 = por %p133, %p134
      %s137 = sadd.s32 %s136, 1
      %p140 = scmp.eq.s32.totalorder %s18, 1
      %p141 = scmp.ne.s32.totalorder %s136, %s138
      %p142 = scmp.eq.s32.totalorder %s18, 0
      %p143 = por %p141, %p142
      %p144 = scmp.ne.s32.totalorder %s136, %s138
      %p145 = scmp.eq.s32.totalorder %s23, 1
      %p146 = por %p144, %p145
      %p147 = scmp.ne.s32.totalorder %s138, %s139
      %p148 = scmp.eq.s32.totalorder %s23, 0
      %p149 = por %p147, %p148
      %p150 = scmp.ne.s32.totalorder %s138, %s139
      %p151 = scmp.eq.s32.totalorder %s24, 1
      %p152 = por %p150, %p151
      %p154 = scmp.ne.s32.totalorder %s139, %s153
      %p155 = scmp.eq.s32.totalorder %s24, 0
      %p156 = por %p154, %p155
      %s158 = sadd.s32 %s157, 1
      %p161 = scmp.eq.s32.totalorder %s18, 1
      %p162 = scmp.ne.s32.totalorder %s157, %s159
      %p163 = scmp.eq.s32.totalorder %s18, 0
      %p164 = por %p162, %p163
      %p165 = scmp.ne.s32.totalorder %s157, %s159
      %p166 = scmp.eq.s32.totalorder %s23, 1
      %p167 = por %p165, %p166
      %p168 = scmp.ne.s32.totalorder %s159, %s160
      %p169 = scmp.eq.s32.totalorder %s23, 0
      %p170 = por %p168, %p169
      %p171 = scmp.ne.s32.totalorder %s159, %s160
      %p172 = scmp.eq.s32.totalorder %s24, 1
      %p173 = por %p171, %p172
      %p175 = scmp.ne.s32.totalorder %s160, %s174
      %p176 = scmp.eq.s32.totalorder %s24, 0
      %p177 = por %p175, %p176
      %s179 = sadd.s32 %s178, 1
      %p182 = scmp.eq.s32.totalorder %s18, 1
      %p183 = scmp.ne.s32.totalorder %s178, %s180
      %p184 = scmp.eq.s32.totalorder %s18, 0
      %p185 = por %p183, %p184
      %p186 = scmp.ne.s32.totalorder %s178, %s180
      %p187 = scmp.eq.s32.totalorder %s23, 1
      %p188 = por %p186, %p187
      %p189 = scmp.ne.s32.totalorder %s180, %s181
      %p190 = scmp.eq.s32.totalorder %s23, 0
      %p191 = por %p189, %p190
      %p192 = scmp.ne.s32.totalorder %s180, %s181
      %p193 = scmp.eq.s32.totalorder %s24, 1
      %p194 = por %p192, %p193
      %p196 = scmp.ne.s32.totalorder %s181, %s195
      %p197 = scmp.eq.s32.totalorder %s24, 0
      %p198 = por %p196, %p197
      %s200 = sadd.s32 %s199, 1
      %p203 = scmp.eq.s32.totalorder %s18, 1
      %p204 = scmp.ne.s32.totalorder %s199, %s201
      %p205 = scmp.eq.s32.totalorder %s18, 0
      %p206 = por %p204, %p205
      %p207 = scmp.ne.s32.totalorder %s199, %s201
      %p208 = scmp.eq.s32.totalorder %s23, 1
      %p209 = por %p207, %p208
      %p210 = scmp.ne.s32.totalorder %s201, %s202
      %p211 = scmp.eq.s32.totalorder %s23, 0
      %p212 = por %p210, %p211
      %p213 = scmp.ne.s32.totalorder %s201, %s202
      %p214 = scmp.eq.s32.totalorder %s24, 1
      %p215 = por %p213, %p214
      %p217 = scmp.ne.s32.totalorder %s202, %s216
      %p218 = scmp.eq.s32.totalorder %s24, 0
      %p219 = por %p217, %p218
      %s220 = ssub.s32 %s18, %s25
      %p221 = scmp.eq.s32.totalorder %s220, 0
      %s223 = sadd.s32 %s222, 1
      %s224 = scalar_select %p221, %s222, %s223
      %p227 = pneg %p221
      %p228 = scmp.eq.s32.totalorder %s18, 1
      %p229 = por %p227, %p228
      %p230 = scmp.ne.s32.totalorder %s222, %s225
      %p231 = scmp.eq.s32.totalorder %s18, 0
      %p232 = por %p230, %p231
      %p233 = scmp.ne.s32.totalorder %s222, %s225
      %p234 = scmp.eq.s32.totalorder %s23, 1
      %p235 = por %p233, %p234
      %p236 = scmp.ne.s32.totalorder %s225, %s226
      %p237 = scmp.eq.s32.totalorder %s23, 0
      %p238 = por %p236, %p237
      %p239 = scmp.ne.s32.totalorder %s225, %s226
      %p240 = scmp.eq.s32.totalorder %s24, 1
      %p241 = por %p239, %p240
      %p243 = scmp.ne.s32.totalorder %s226, %s242
      %p244 = scmp.eq.s32.totalorder %s24, 0
      %p245 = por %p243, %p244
      %p246 = scmp.le.s32.totalorder 1, %s18
      %p247 = scmp.lt.s32.totalorder %s18, 3
      %p248 = pnand %p246, %p247
      %p249 = pneg %p248
      // Predicated region
      $region9: #{lenet_forward.1} parent=5 // pred_check
        _
      $region10: #{lenet_forward.1} parent=5 // pred_check_branch
        %251 = sbr.rel (%p248) target = $region12
      $region11: #{lenet_forward.1} parent=5 // pred_region
        %s252 = ssub.s32 %s18, 1
        // Predicated region
        $region13: #{lenet_forward.1} parent=11 // pred_check
          %p253 = pneg %p65
        $region14: #{lenet_forward.1} parent=11 // pred_check_branch
          %255 = sbr.rel (%p253) target = $region16
        $region15: #{lenet_forward.1} parent=11 // pred_region
          _
        $region16: #{lenet_forward.1} parent=11 // pred_fallthru
          _
        // Predicated region
        $region17: #{lenet_forward.1} parent=11 // pred_check
          %p256 = pneg %p86
        $region18: #{lenet_forward.1} parent=11 // pred_check_branch
          %258 = sbr.rel (%p256) target = $region20
        $region19: #{lenet_forward.1} parent=11 // pred_region
          _
        $region20: #{lenet_forward.1} parent=11 // pred_fallthru
          _
        // Predicated region
        $region21: #{lenet_forward.1} parent=11 // pred_check
          %p259 = pneg %p107
        $region22: #{lenet_forward.1} parent=11 // pred_check_branch
          %261 = sbr.rel (%p259) target = $region24
        $region23: #{lenet_forward.1} parent=11 // pred_region
          _
        $region24: #{lenet_forward.1} parent=11 // pred_fallthru
          _
        // Predicated region
        $region25: #{lenet_forward.1} parent=11 // pred_check
          %p262 = pneg %p128
        $region26: #{lenet_forward.1} parent=11 // pred_check_branch
          %264 = sbr.rel (%p262) target = $region28
        $region27: #{lenet_forward.1} parent=11 // pred_region
          _
        $region28: #{lenet_forward.1} parent=11 // pred_fallthru
          _
        // Predicated region
        $region29: #{lenet_forward.1} parent=11 // pred_check
          %p265 = pneg %p149
        $region30: #{lenet_forward.1} parent=11 // pred_check_branch
          %267 = sbr.rel (%p265) target = $region32
        $region31: #{lenet_forward.1} parent=11 // pred_region
          _
        $region32: #{lenet_forward.1} parent=11 // pred_fallthru
          _
        // Predicated region
        $region33: #{lenet_forward.1} parent=11 // pred_check
          %p268 = pneg %p170
        $region34: #{lenet_forward.1} parent=11 // pred_check_branch
          %270 = sbr.rel (%p268) target = $region36
        $region35: #{lenet_forward.1} parent=11 // pred_region
          _
        $region36: #{lenet_forward.1} parent=11 // pred_fallthru
          _
        // Predicated region
        $region37: #{lenet_forward.1} parent=11 // pred_check
          %p271 = pneg %p191
        $region38: #{lenet_forward.1} parent=11 // pred_check_branch
          %273 = sbr.rel (%p271) target = $region40
        $region39: #{lenet_forward.1} parent=11 // pred_region
          _
        $region40: #{lenet_forward.1} parent=11 // pred_fallthru
          _
        // Predicated region
        $region41: #{lenet_forward.1} parent=11 // pred_check
          %p274 = pneg %p212
        $region42: #{lenet_forward.1} parent=11 // pred_check_branch
          %276 = sbr.rel (%p274) target = $region44
        $region43: #{lenet_forward.1} parent=11 // pred_region
          _
        $region44: #{lenet_forward.1} parent=11 // pred_fallthru
          _
      $region12: #{lenet_forward.1} parent=5 // pred_fallthru
        _
      %p277 = scmp.lt.s32.totalorder %s18, 2
      // Predicated region
      $region45: #{lenet_forward.1} parent=5 // pred_check
        %p278 = pneg %p277
      $region46: #{lenet_forward.1} parent=5 // pred_check_branch
        %280 = sbr.rel (%p278) target = $region48
      $region47: #{lenet_forward.1} parent=5 // pred_region
        // Predicated region
        $region49: #{lenet_forward.1} parent=47 // pred_check
          %p281 = pneg %p38
        $region50: #{lenet_forward.1} parent=47 // pred_check_branch
          %283 = sbr.rel (%p281) target = $region52
        $region51: #{lenet_forward.1} parent=47 // pred_region
          %p284 = scmp.lt.s32.totalorder %s18, 1
          %s285 = scalar_select %p284, %s18, 1
          %s286 = smul.addr %s285, 5
          %s287 = smul.addr %s286, 8
          %s288 = scalar_lea.vmem %s0, %s287
        $region52: #{lenet_forward.1} parent=47 // pred_fallthru
          _
      $region48: #{lenet_forward.1} parent=5 // pred_fallthru
        _
      %p289 = scmp.le.s32.totalorder 1, %s18
      %p290 = scmp.lt.s32.totalorder %s18, 3
      %p291 = pnand %p289, %p290
      %p292 = pneg %p291
      // Predicated region
      $region53: #{lenet_forward.1} parent=5 // pred_check
        _
      $region54: #{lenet_forward.1} parent=5 // pred_check_branch
        %294 = sbr.rel (%p291) target = $region56
      $region55: #{lenet_forward.1} parent=5 // pred_region
        %s295 = ssub.s32 %s18, 1
        %p296 = scmp.lt.s32.totalorder %s23, 1
        %s297 = scalar_select %p296, %s23, 1
        %s298 = smul.addr %s297, 5
        %s299 = smul.addr %s298, 8
        %s300 = scalar_lea.vmem %s0, %s299
        %p301 = pneg %p44
        %p302 = pneg %p41
        %p303 = pneg %p65
        %p304 = pneg %p62
        %p305 = pneg %p86
        %p306 = pneg %p83
        %p307 = pneg %p107
        %p308 = pneg %p104
        %p309 = pneg %p128
        %p310 = pneg %p125
        %p311 = pneg %p149
        %p312 = pneg %p146
        %p313 = pneg %p170
        %p314 = pneg %p167
        %p315 = pneg %p191
        %p316 = pneg %p188
        %p317 = pneg %p212
        %p318 = pneg %p209
        %p319 = pneg %p238
        %p320 = pneg %p235
        %s321 = sand.u32 %s225, 1
        %s322 = scalar_lea.sflag [#allocation3], %s321
        %s323 = sand.u32 %s225, 1
        %s324 = scalar_lea.vmem [#allocation2], %s323
        %p325 = scmp.lt.s32.totalorder %s23, 1
        %s326 = scalar_select %p325, %s23, 1
        %s327 = smul.addr %s326, 5
        %s328 = smul.addr %s327, 8
        %s329 = scalar_lea.vmem %s0, %s328
        %v330 = vld [vmem:[%s329] sm:$0xff]
        %v331 = vld [vmem:[%s329 + $0x8] sm:$0xff]
        %v332 = vld [vmem:[%s329 + $0x12] sm:$0xff]
        %v333 = vld [vmem:[%s329 + $0x1a] sm:$0xff]
        %v334 = vld [vmem:[%s329 + $0x1] sm:$0xff]
        %v335 = vld [vmem:[%s329 + $0x9] sm:$0xff]
        %v336 = vld [vmem:[%s329 + $0x13] sm:$0xff]
        %v337 = vld [vmem:[%s329 + $0x1b] sm:$0xff]
        %v338 = vld [vmem:[%s329 + $0x2] sm:$0xff]
        %v339 = vld [vmem:[%s329 + $0xa] sm:$0xff]
        %v340 = vld [vmem:[%s329 + $0x14] sm:$0xff]
        %v341 = vld [vmem:[%s329 + $0x1c] sm:$0xff]
        %v342 = vld [vmem:[%s1] sm:$0xff]
        %v343 = vld [vmem:[%s1 + $0x8] sm:$0xff]
        %v344 = vld [vmem:[%s1 + $0x10] sm:$0xff]
        %v345 = vld [vmem:[%s1 + $0x18] sm:$0xff]
        %v346 = vld [vmem:[%s1 + $0x20] sm:$0xff]
        %v347 = vld [vmem:[%s1 + $0x28] sm:$0xff]
        %v348 = vld [vmem:[%s1 + $0x30] sm:$0xff]
        %v349 = vld [vmem:[%s1 + $0x38] sm:$0xff]
        %v350 = vld [vmem:[%s1 + $0x40] sm:$0xff]
        %v351 = vld [vmem:[%s1 + $0x48] sm:$0xff]
        %v352 = vld [vmem:[%s1 + $0x50] sm:$0xff]
        %v353 = vld [vmem:[%s1 + $0x58] sm:$0xff]
        %v354 = vld [vmem:[%s1 + $0x60] sm:$0xf]
        %v355 = vld [vmem:[%s1 + $0x68] sm:$0xf]
        %v356 = vld [vmem:[%s1 + $0x70] sm:$0xf]
        %v357 = vld [vmem:[%s1 + $0x78] sm:$0xf]
        %s358 = scalar_lea.vmem %s1, 128
        %v359 = vld [vmem:[%s358] sm:$0xff]
        %v360 = vld [vmem:[%s358 + $0x8] sm:$0xff]
        %v361 = vld [vmem:[%s358 + $0x10] sm:$0xff]
        %v362 = vld [vmem:[%s358 + $0x18] sm:$0xff]
        %v363 = vld [vmem:[%s358 + $0x20] sm:$0xff]
        %v364 = vld [vmem:[%s358 + $0x28] sm:$0xff]
        %v365 = vld [vmem:[%s358 + $0x30] sm:$0xff]
        %v366 = vld [vmem:[%s358 + $0x38] sm:$0xff]
        %v367 = vld [vmem:[%s358 + $0x40] sm:$0xff]
        %v368 = vld [vmem:[%s358 + $0x48] sm:$0xff]
        %v369 = vld [vmem:[%s358 + $0x50] sm:$0xff]
        %v370 = vld [vmem:[%s358 + $0x58] sm:$0xff]
        %v371 = vld [vmem:[%s358 + $0x60] sm:$0xf]
        %v372 = vld [vmem:[%s358 + $0x68] sm:$0xf]
        %v373 = vld [vmem:[%s358 + $0x70] sm:$0xf]
        %v374 = vld [vmem:[%s358 + $0x78] sm:$0xf]
        %vm375 = vcmask 228352
        %v377 = vsel %vm375, %v332, 0
        %v380 = vsel %vm375, %v333, 0
        %vm382 = vcmask 1043456
        %v384 = vsel %vm382, %v371, 0
        %v387 = vsel %vm382, %v372, 0
        %v390 = vsel %vm382, %v373, 0
        %v393 = vsel %vm382, %v374, 0
        %395 = vmatprep.subr.mxu0 0.0
        %396 = vmatpush1.msra.mxu0 0.0
        %397 = vmatprep.subr.mxu0 0.0
        %398 = vmatpush1.msra.mxu0 0.0
        %399 = vmatprep.subr.mxu0 0.0
        %400 = vmatpush1.msra.mxu0 0.0
        %401 = vmatprep.subr.mxu0 0.0
        %402 = vmatpush1.msra.mxu0 0.0
        %403 = vmatprep.subr.mxu0 0.0
        %404 = vmatpush1.msra.mxu0 0.0
        %405 = vmatprep.subr.mxu0 0.0
        %406 = vmatpush1.msra.mxu0 0.0
        %407 = vmatprep.subr.mxu0 0.0
        %408 = vmatpush1.msra.mxu0 0.0
        %409 = vmatprep.subr.mxu0 0.0
        %410 = vmatpush1.msra.mxu0 0.0
        %411 = vmatprep.subr.mxu0 0.0
        %412 = vmatpush1.msra.mxu0 0.0
        %413 = vmatprep.subr.mxu0 0.0
        %414 = vmatpush1.msra.mxu0 0.0
        %415 = vmatprep.subr.mxu0 0.0
        %416 = vmatpush1.msra.mxu0 0.0
        %417 = vmatprep.subr.mxu0 0.0
        %418 = vmatpush1.msra.mxu0 0.0
        %419 = vmatprep.subr.mxu0 %v387
        %420 = vmatpush1.msra.mxu0 %v384
        %421 = vmatprep.subr.mxu0 %v368
        %422 = vmatpush1.msra.mxu0 %v367
        %423 = vmatprep.subr.mxu0 %v364
        %424 = vmatpush1.msra.mxu0 %v363
        %425 = vmatprep.subr.mxu0 %v360
        %426 = vmatpush1.msra.mxu0 %v359
        %427 = vmatprep.subr.mxu0 0.0
        %428 = vmatpush2.msra.mxu0 0.0
        %429 = vmatprep.subr.mxu0 0.0
        %430 = vmatpush2.msra.mxu0 0.0
        %431 = vmatprep.subr.mxu0 0.0
        %432 = vmatpush2.msra.mxu0 0.0
        %433 = vmatprep.subr.mxu0 0.0
        %434 = vmatpush2.msra.mxu0 0.0
        %435 = vmatprep.subr.mxu0 0.0
        %436 = vmatpush2.msra.mxu0 0.0
        %437 = vmatprep.subr.mxu0 0.0
        %438 = vmatpush2.msra.mxu0 0.0
        %439 = vmatprep.subr.mxu0 0.0
        %440 = vmatpush2.msra.mxu0 0.0
        %441 = vmatprep.subr.mxu0 0.0
        %442 = vmatpush2.msra.mxu0 0.0
        %443 = vmatprep.subr.mxu0 0.0
        %444 = vmatpush2.msra.mxu0 0.0
        %445 = vmatprep.subr.mxu0 0.0
        %446 = vmatpush2.msra.mxu0 0.0
        %447 = vmatprep.subr.mxu0 0.0
        %448 = vmatpush2.msra.mxu0 0.0
        %449 = vmatprep.subr.mxu0 0.0
        %450 = vmatpush2.msra.mxu0 0.0
        %451 = vmatprep.subr.mxu0 0.0
        %452 = vmatpush2.msra.mxu0 0.0
        %453 = vmatprep.subr.mxu0 0.0
        %454 = vmatpush2.msra.mxu0 0.0
        %455 = vmatprep.subr.mxu0 0.0
        %456 = vmatpush2.msra.mxu0 0.0
        %457 = vmatprep.subr.mxu0 0.0
        %458 = vmatpush2.msra.mxu0 0.0
        %459 = vmatprep.mubr.f32.mxu0 0.0
        %460 = vmatmul.mubr.f32.gmra.mxu0 %v377
        %v461 = vpop.f32.mrf.mxu0
        %v462 = vadd.f32 0.0, %v461
        %v463 = vpop.f32.mrf.mxu0
        %v464 = vadd.f32 0.0, %v463
        %465 = vmatprep.mubr.f32.mxu0 0.0
        %466 = vmatmul.mubr.f32.gmra.mxu0 %v380
        %v467 = vpop.f32.mrf.mxu0
        %v468 = vadd.f32 0.0, %v467
        %v469 = vpop.f32.mrf.mxu0
        %v470 = vadd.f32 0.0, %v469
        %471 = vdwg.mxu0
        %472 = vmatprep.subr.mxu0 0.0
        %473 = vmatpush1.msra.mxu0 0.0
        %474 = vmatprep.subr.mxu0 0.0
        %475 = vmatpush1.msra.mxu0 0.0
        %476 = vmatprep.subr.mxu0 0.0
        %477 = vmatpush1.msra.mxu0 0.0
        %478 = vmatprep.subr.mxu0 0.0
        %479 = vmatpush1.msra.mxu0 0.0
        %480 = vmatprep.subr.mxu0 0.0
        %481 = vmatpush1.msra.mxu0 0.0
        %482 = vmatprep.subr.mxu0 0.0
        %483 = vmatpush1.msra.mxu0 0.0
        %484 = vmatprep.subr.mxu0 0.0
        %485 = vmatpush1.msra.mxu0 0.0
        %486 = vmatprep.subr.mxu0 0.0
        %487 = vmatpush1.msra.mxu0 0.0
        %488 = vmatprep.subr.mxu0 0.0
        %489 = vmatpush1.msra.mxu0 0.0
        %490 = vmatprep.subr.mxu0 0.0
        %491 = vmatpush1.msra.mxu0 0.0
        %492 = vmatprep.subr.mxu0 0.0
        %493 = vmatpush1.msra.mxu0 0.0
        %494 = vmatprep.subr.mxu0 0.0
        %495 = vmatpush1.msra.mxu0 0.0
        %496 = vmatprep.subr.mxu0 %v393
        %497 = vmatpush1.msra.mxu0 %v390
        %498 = vmatprep.subr.mxu0 %v370
        %499 = vmatpush1.msra.mxu0 %v369
        %500 = vmatprep.subr.mxu0 %v366
        %501 = vmatpush1.msra.mxu0 %v365
        %502 = vmatprep.subr.mxu0 %v362
        %503 = vmatpush1.msra.mxu0 %v361
        %504 = vmatprep.subr.mxu0 0.0
        %505 = vmatpush2.msra.mxu0 0.0
        %506 = vmatprep.subr.mxu0 0.0
        %507 = vmatpush2.msra.mxu0 0.0
        %508 = vmatprep.subr.mxu0 0.0
        %509 = vmatpush2.msra.mxu0 0.0
        %510 = vmatprep.subr.mxu0 0.0
        %511 = vmatpush2.msra.mxu0 0.0
        %512 = vmatprep.subr.mxu0 0.0
        %513 = vmatpush2.msra.mxu0 0.0
        %514 = vmatprep.subr.mxu0 0.0
        %515 = vmatpush2.msra.mxu0 0.0
        %516 = vmatprep.subr.mxu0 0.0
        %517 = vmatpush2.msra.mxu0 0.0
        %518 = vmatprep.subr.mxu0 0.0
        %519 = vmatpush2.msra.mxu0 0.0
        %520 = vmatprep.subr.mxu0 0.0
        %521 = vmatpush2.msra.mxu0 0.0
        %522 = vmatprep.subr.mxu0 0.0
        %523 = vmatpush2.msra.mxu0 0.0
        %524 = vmatprep.subr.mxu0 0.0
        %525 = vmatpush2.msra.mxu0 0.0
        %526 = vmatprep.subr.mxu0 0.0
        %527 = vmatpush2.msra.mxu0 0.0
        %528 = vmatprep.subr.mxu0 0.0
        %529 = vmatpush2.msra.mxu0 0.0
        %530 = vmatprep.subr.mxu0 0.0
        %531 = vmatpush2.msra.mxu0 0.0
        %532 = vmatprep.subr.mxu0 0.0
        %533 = vmatpush2.msra.mxu0 0.0
        %534 = vmatprep.subr.mxu0 0.0
        %535 = vmatpush2.msra.mxu0 0.0
        %536 = vmatprep.mubr.f32.mxu0 0.0
        %537 = vmatmul.mubr.f32.gmra.mxu0 %v377
        %v538 = vpop.f32.mrf.mxu0
        %v539 = vadd.f32 0.0, %v538
        %v540 = vpop.f32.mrf.mxu0
        %v541 = vadd.f32 0.0, %v540
        %542 = vmatprep.mubr.f32.mxu0 0.0
        %543 = vmatmul.mubr.f32.gmra.mxu0 %v380
        %v544 = vpop.f32.mrf.mxu0
        %v545 = vadd.f32 0.0, %v544
        %v546 = vpop.f32.mrf.mxu0
        %v547 = vadd.f32 0.0, %v546
        %548 = vdwg.mxu0
        %v550 = vsel %vm375, %v330, 0
        %v553 = vsel %vm375, %v331, 0
        %v556 = vsel %vm382, %v354, 0
        %v559 = vsel %vm382, %v355, 0
        %v562 = vsel %vm382, %v356, 0
        %v565 = vsel %vm382, %v357, 0
        %567 = vmatprep.subr.mxu0 0.0
        %568 = vmatpush1.msra.mxu0 0.0
        %569 = vmatprep.subr.mxu0 0.0
        %570 = vmatpush1.msra.mxu0 0.0
        %571 = vmatprep.subr.mxu0 0.0
        %572 = vmatpush1.msra.mxu0 0.0
        %573 = vmatprep.subr.mxu0 0.0
        %574 = vmatpush1.msra.mxu0 0.0
        %575 = vmatprep.subr.mxu0 0.0
        %576 = vmatpush1.msra.mxu0 0.0
        %577 = vmatprep.subr.mxu0 0.0
        %578 = vmatpush1.msra.mxu0 0.0
        %579 = vmatprep.subr.mxu0 0.0
        %580 = vmatpush1.msra.mxu0 0.0
        %581 = vmatprep.subr.mxu0 0.0
        %582 = vmatpush1.msra.mxu0 0.0
        %583 = vmatprep.subr.mxu0 0.0
        %584 = vmatpush1.msra.mxu0 0.0
        %585 = vmatprep.subr.mxu0 0.0
        %586 = vmatpush1.msra.mxu0 0.0
        %587 = vmatprep.subr.mxu0 0.0
        %588 = vmatpush1.msra.mxu0 0.0
        %589 = vmatprep.subr.mxu0 0.0
        %590 = vmatpush1.msra.mxu0 0.0
        %591 = vmatprep.subr.mxu0 %v559
        %592 = vmatpush1.msra.mxu0 %v556
        %593 = vmatprep.subr.mxu0 %v351
        %594 = vmatpush1.msra.mxu0 %v350
        %595 = vmatprep.subr.mxu0 %v347
        %596 = vmatpush1.msra.mxu0 %v346
        %597 = vmatprep.subr.mxu0 %v343
        %598 = vmatpush1.msra.mxu0 %v342
        %599 = vmatprep.subr.mxu0 0.0
        %600 = vmatpush2.msra.mxu0 0.0
        %601 = vmatprep.subr.mxu0 0.0
        %602 = vmatpush2.msra.mxu0 0.0
        %603 = vmatprep.subr.mxu0 0.0
        %604 = vmatpush2.msra.mxu0 0.0
        %605 = vmatprep.subr.mxu0 0.0
        %606 = vmatpush2.msra.mxu0 0.0
        %607 = vmatprep.subr.mxu0 0.0
        %608 = vmatpush2.msra.mxu0 0.0
        %609 = vmatprep.subr.mxu0 0.0
        %610 = vmatpush2.msra.mxu0 0.0
        %611 = vmatprep.subr.mxu0 0.0
        %612 = vmatpush2.msra.mxu0 0.0
        %613 = vmatprep.subr.mxu0 0.0
        %614 = vmatpush2.msra.mxu0 0.0
        %615 = vmatprep.subr.mxu0 0.0
        %616 = vmatpush2.msra.mxu0 0.0
        %617 = vmatprep.subr.mxu0 0.0
        %618 = vmatpush2.msra.mxu0 0.0
        %619 = vmatprep.subr.mxu0 0.0
        %620 = vmatpush2.msra.mxu0 0.0
        %621 = vmatprep.subr.mxu0 0.0
        %622 = vmatpush2.msra.mxu0 0.0
        %623 = vmatprep.subr.mxu0 0.0
        %624 = vmatpush2.msra.mxu0 0.0
        %625 = vmatprep.subr.mxu0 0.0
        %626 = vmatpush2.msra.mxu0 0.0
        %627 = vmatprep.subr.mxu0 0.0
        %628 = vmatpush2.msra.mxu0 0.0
        %629 = vmatprep.subr.mxu0 0.0
        %630 = vmatpush2.msra.mxu0 0.0
        %631 = vmatprep.mubr.f32.mxu0 0.0
        %632 = vmatmul.mubr.f32.gmra.mxu0 %v550
        %v633 = vpop.f32.mrf.mxu0
        %v634 = vadd.f32 %v462, %v633
        %v635 = vpop.f32.mrf.mxu0
        %v636 = vadd.f32 %v464, %v635
        %637 = vmatprep.mubr.f32.mxu0 0.0
        %638 = vmatmul.mubr.f32.gmra.mxu0 %v553
        %v639 = vpop.f32.mrf.mxu0
        %v640 = vadd.f32 %v468, %v639
        %v641 = vpop.f32.mrf.mxu0
        %v642 = vadd.f32 %v470, %v641
        %643 = vdwg.mxu0
        %644 = vmatprep.subr.mxu0 0.0
        %645 = vmatpush1.msra.mxu0 0.0
        %646 = vmatprep.subr.mxu0 0.0
        %647 = vmatpush1.msra.mxu0 0.0
        %648 = vmatprep.subr.mxu0 0.0
        %649 = vmatpush1.msra.mxu0 0.0
        %650 = vmatprep.subr.mxu0 0.0
        %651 = vmatpush1.msra.mxu0 0.0
        %652 = vmatprep.subr.mxu0 0.0
        %653 = vmatpush1.msra.mxu0 0.0
        %654 = vmatprep.subr.mxu0 0.0
        %655 = vmatpush1.msra.mxu0 0.0
        %656 = vmatprep.subr.mxu0 0.0
        %657 = vmatpush1.msra.mxu0 0.0
        %658 = vmatprep.subr.mxu0 0.0
        %659 = vmatpush1.msra.mxu0 0.0
        %660 = vmatprep.subr.mxu0 0.0
        %661 = vmatpush1.msra.mxu0 0.0
        %662 = vmatprep.subr.mxu0 0.0
        %663 = vmatpush1.msra.mxu0 0.0
        %664 = vmatprep.subr.mxu0 0.0
        %665 = vmatpush1.msra.mxu0 0.0
        %666 = vmatprep.subr.mxu0 0.0
        %667 = vmatpush1.msra.mxu0 0.0
        %668 = vmatprep.subr.mxu0 %v565
        %669 = vmatpush1.msra.mxu0 %v562
        %670 = vmatprep.subr.mxu0 %v353
        %671 = vmatpush1.msra.mxu0 %v352
        %672 = vmatprep.subr.mxu0 %v349
        %673 = vmatpush1.msra.mxu0 %v348
        %674 = vmatprep.subr.mxu0 %v345
        %675 = vmatpush1.msra.mxu0 %v344
        %676 = vmatprep.subr.mxu0 0.0
        %677 = vmatpush2.msra.mxu0 0.0
        %678 = vmatprep.subr.mxu0 0.0
        %679 = vmatpush2.msra.mxu0 0.0
        %680 = vmatprep.subr.mxu0 0.0
        %681 = vmatpush2.msra.mxu0 0.0
        %682 = vmatprep.subr.mxu0 0.0
        %683 = vmatpush2.msra.mxu0 0.0
        %684 = vmatprep.subr.mxu0 0.0
        %685 = vmatpush2.msra.mxu0 0.0
        %686 = vmatprep.subr.mxu0 0.0
        %687 = vmatpush2.msra.mxu0 0.0
        %688 = vmatprep.subr.mxu0 0.0
        %689 = vmatpush2.msra.mxu0 0.0
        %690 = vmatprep.subr.mxu0 0.0
        %691 = vmatpush2.msra.mxu0 0.0
        %692 = vmatprep.subr.mxu0 0.0
        %693 = vmatpush2.msra.mxu0 0.0
        %694 = vmatprep.subr.mxu0 0.0
        %695 = vmatpush2.msra.mxu0 0.0
        %696 = vmatprep.subr.mxu0 0.0
        %697 = vmatpush2.msra.mxu0 0.0
        %698 = vmatprep.subr.mxu0 0.0
        %699 = vmatpush2.msra.mxu0 0.0
        %700 = vmatprep.subr.mxu0 0.0
        %701 = vmatpush2.msra.mxu0 0.0
        %702 = vmatprep.subr.mxu0 0.0
        %703 = vmatpush2.msra.mxu0 0.0
        %704 = vmatprep.subr.mxu0 0.0
        %705 = vmatpush2.msra.mxu0 0.0
        %706 = vmatprep.subr.mxu0 0.0
        %707 = vmatpush2.msra.mxu0 0.0
        %708 = vmatprep.mubr.f32.mxu0 0.0
        %709 = vmatmul.mubr.f32.gmra.mxu0 %v550
        %v710 = vpop.f32.mrf.mxu0
        %v711 = vadd.f32 %v539, %v710
        %v712 = vpop.f32.mrf.mxu0
        %v713 = vadd.f32 %v541, %v712
        %714 = vmatprep.mubr.f32.mxu0 0.0
        %715 = vmatmul.mubr.f32.gmra.mxu0 %v553
        %v716 = vpop.f32.mrf.mxu0
        %v717 = vadd.f32 %v545, %v716
        %v718 = vpop.f32.mrf.mxu0
        %v719 = vadd.f32 %v547, %v718
        %720 = vdwg.mxu0
        %s721 = scalar_lea.vmem %s1, 256
        %v722 = vld [vmem:[%s721] sm:$0xff]
        %v723 = vld [vmem:[%s721 + $0x8] sm:$0xff]
        %v724 = vld [vmem:[%s721 + $0x10] sm:$0xff]
        %v725 = vld [vmem:[%s721 + $0x18] sm:$0xff]
        %v726 = vld [vmem:[%s721 + $0x20] sm:$0xff]
        %v727 = vld [vmem:[%s721 + $0x28] sm:$0xff]
        %v728 = vld [vmem:[%s721 + $0x30] sm:$0xff]
        %v729 = vld [vmem:[%s721 + $0x38] sm:$0xff]
        %v730 = vld [vmem:[%s721 + $0x40] sm:$0xff]
        %v731 = vld [vmem:[%s721 + $0x48] sm:$0xff]
        %v732 = vld [vmem:[%s721 + $0x50] sm:$0xff]
        %v733 = vld [vmem:[%s721 + $0x58] sm:$0xff]
        %v734 = vld [vmem:[%s721 + $0x60] sm:$0xf]
        %v735 = vld [vmem:[%s721 + $0x68] sm:$0xf]
        %v736 = vld [vmem:[%s721 + $0x70] sm:$0xf]
        %v737 = vld [vmem:[%s721 + $0x78] sm:$0xf]
        %v739 = vsel %vm375, %v334, 0
        %v742 = vsel %vm375, %v335, 0
        %v745 = vsel %vm382, %v734, 0
        %v748 = vsel %vm382, %v735, 0
        %v751 = vsel %vm382, %v736, 0
        %v754 = vsel %vm382, %v737, 0
        %756 = vmatprep.subr.mxu0 0.0
        %757 = vmatpush1.msra.mxu0 0.0
        %758 = vmatprep.subr.mxu0 0.0
        %759 = vmatpush1.msra.mxu0 0.0
        %760 = vmatprep.subr.mxu0 0.0
        %761 = vmatpush1.msra.mxu0 0.0
        %762 = vmatprep.subr.mxu0 0.0
        %763 = vmatpush1.msra.mxu0 0.0
        %764 = vmatprep.subr.mxu0 0.0
        %765 = vmatpush1.msra.mxu0 0.0
        %766 = vmatprep.subr.mxu0 0.0
        %767 = vmatpush1.msra.mxu0 0.0
        %768 = vmatprep.subr.mxu0 0.0
        %769 = vmatpush1.msra.mxu0 0.0
        %770 = vmatprep.subr.mxu0 0.0
        %771 = vmatpush1.msra.mxu0 0.0
        %772 = vmatprep.subr.mxu0 0.0
        %773 = vmatpush1.msra.mxu0 0.0
        %774 = vmatprep.subr.mxu0 0.0
        %775 = vmatpush1.msra.mxu0 0.0
        %776 = vmatprep.subr.mxu0 0.0
        %777 = vmatpush1.msra.mxu0 0.0
        %778 = vmatprep.subr.mxu0 0.0
        %779 = vmatpush1.msra.mxu0 0.0
        %780 = vmatprep.subr.mxu0 %v748
        %781 = vmatpush1.msra.mxu0 %v745
        %782 = vmatprep.subr.mxu0 %v731
        %783 = vmatpush1.msra.mxu0 %v730
        %784 = vmatprep.subr.mxu0 %v727
        %785 = vmatpush1.msra.mxu0 %v726
        %786 = vmatprep.subr.mxu0 %v723
        %787 = vmatpush1.msra.mxu0 %v722
        %788 = vmatprep.subr.mxu0 0.0
        %789 = vmatpush2.msra.mxu0 0.0
        %790 = vmatprep.subr.mxu0 0.0
        %791 = vmatpush2.msra.mxu0 0.0
        %792 = vmatprep.subr.mxu0 0.0
        %793 = vmatpush2.msra.mxu0 0.0
        %794 = vmatprep.subr.mxu0 0.0
        %795 = vmatpush2.msra.mxu0 0.0
        %796 = vmatprep.subr.mxu0 0.0
        %797 = vmatpush2.msra.mxu0 0.0
        %798 = vmatprep.subr.mxu0 0.0
        %799 = vmatpush2.msra.mxu0 0.0
        %800 = vmatprep.subr.mxu0 0.0
        %801 = vmatpush2.msra.mxu0 0.0
        %802 = vmatprep.subr.mxu0 0.0
        %803 = vmatpush2.msra.mxu0 0.0
        %804 = vmatprep.subr.mxu0 0.0
        %805 = vmatpush2.msra.mxu0 0.0
        %806 = vmatprep.subr.mxu0 0.0
        %807 = vmatpush2.msra.mxu0 0.0
        %808 = vmatprep.subr.mxu0 0.0
        %809 = vmatpush2.msra.mxu0 0.0
        %810 = vmatprep.subr.mxu0 0.0
        %811 = vmatpush2.msra.mxu0 0.0
        %812 = vmatprep.subr.mxu0 0.0
        %813 = vmatpush2.msra.mxu0 0.0
        %814 = vmatprep.subr.mxu0 0.0
        %815 = vmatpush2.msra.mxu0 0.0
        %816 = vmatprep.subr.mxu0 0.0
        %817 = vmatpush2.msra.mxu0 0.0
        %818 = vmatprep.subr.mxu0 0.0
        %819 = vmatpush2.msra.mxu0 0.0
        %820 = vmatprep.mubr.f32.mxu0 0.0
        %821 = vmatmul.mubr.f32.gmra.mxu0 %v739
        %v822 = vpop.f32.mrf.mxu0
        %v823 = vadd.f32 0.0, %v822
        %v824 = vpop.f32.mrf.mxu0
        %v825 = vadd.f32 0.0, %v824
        %826 = vmatprep.mubr.f32.mxu0 0.0
        %827 = vmatmul.mubr.f32.gmra.mxu0 %v742
        %v828 = vpop.f32.mrf.mxu0
        %v829 = vadd.f32 0.0, %v828
        %v830 = vpop.f32.mrf.mxu0
        %v831 = vadd.f32 0.0, %v830
        %832 = vdwg.mxu0
        %833 = vmatprep.subr.mxu0 0.0
        %834 = vmatpush1.msra.mxu0 0.0
        %835 = vmatprep.subr.mxu0 0.0
        %836 = vmatpush1.msra.mxu0 0.0
        %837 = vmatprep.subr.mxu0 0.0
        %838 = vmatpush1.msra.mxu0 0.0
        %839 = vmatprep.subr.mxu0 0.0
        %840 = vmatpush1.msra.mxu0 0.0
        %841 = vmatprep.subr.mxu0 0.0
        %842 = vmatpush1.msra.mxu0 0.0
        %843 = vmatprep.subr.mxu0 0.0
        %844 = vmatpush1.msra.mxu0 0.0
        %845 = vmatprep.subr.mxu0 0.0
        %846 = vmatpush1.msra.mxu0 0.0
        %847 = vmatprep.subr.mxu0 0.0
        %848 = vmatpush1.msra.mxu0 0.0
        %849 = vmatprep.subr.mxu0 0.0
        %850 = vmatpush1.msra.mxu0 0.0
        %851 = vmatprep.subr.mxu0 0.0
        %852 = vmatpush1.msra.mxu0 0.0
        %853 = vmatprep.subr.mxu0 0.0
        %854 = vmatpush1.msra.mxu0 0.0
        %855 = vmatprep.subr.mxu0 0.0
        %856 = vmatpush1.msra.mxu0 0.0
        %857 = vmatprep.subr.mxu0 %v754
        %858 = vmatpush1.msra.mxu0 %v751
        %859 = vmatprep.subr.mxu0 %v733
        %860 = vmatpush1.msra.mxu0 %v732
        %861 = vmatprep.subr.mxu0 %v729
        %862 = vmatpush1.msra.mxu0 %v728
        %863 = vmatprep.subr.mxu0 %v725
        %864 = vmatpush1.msra.mxu0 %v724
        %865 = vmatprep.subr.mxu0 0.0
        %866 = vmatpush2.msra.mxu0 0.0
        %867 = vmatprep.subr.mxu0 0.0
        %868 = vmatpush2.msra.mxu0 0.0
        %869 = vmatprep.subr.mxu0 0.0
        %870 = vmatpush2.msra.mxu0 0.0
        %871 = vmatprep.subr.mxu0 0.0
        %872 = vmatpush2.msra.mxu0 0.0
        %873 = vmatprep.subr.mxu0 0.0
        %874 = vmatpush2.msra.mxu0 0.0
        %875 = vmatprep.subr.mxu0 0.0
        %876 = vmatpush2.msra.mxu0 0.0
        %877 = vmatprep.subr.mxu0 0.0
        %878 = vmatpush2.msra.mxu0 0.0
        %879 = vmatprep.subr.mxu0 0.0
        %880 = vmatpush2.msra.mxu0 0.0
        %881 = vmatprep.subr.mxu0 0.0
        %882 = vmatpush2.msra.mxu0 0.0
        %883 = vmatprep.subr.mxu0 0.0
        %884 = vmatpush2.msra.mxu0 0.0
        %885 = vmatprep.subr.mxu0 0.0
        %886 = vmatpush2.msra.mxu0 0.0
        %887 = vmatprep.subr.mxu0 0.0
        %888 = vmatpush2.msra.mxu0 0.0
        %889 = vmatprep.subr.mxu0 0.0
        %890 = vmatpush2.msra.mxu0 0.0
        %891 = vmatprep.subr.mxu0 0.0
        %892 = vmatpush2.msra.mxu0 0.0
        %893 = vmatprep.subr.mxu0 0.0
        %894 = vmatpush2.msra.mxu0 0.0
        %895 = vmatprep.subr.mxu0 0.0
        %896 = vmatpush2.msra.mxu0 0.0
        %897 = vmatprep.mubr.f32.mxu0 0.0
        %898 = vmatmul.mubr.f32.gmra.mxu0 %v739
        %v899 = vpop.f32.mrf.mxu0
        %v900 = vadd.f32 0.0, %v899
        %v901 = vpop.f32.mrf.mxu0
        %v902 = vadd.f32 0.0, %v901
        %903 = vmatprep.mubr.f32.mxu0 0.0
        %904 = vmatmul.mubr.f32.gmra.mxu0 %v742
        %v905 = vpop.f32.mrf.mxu0
        %v906 = vadd.f32 0.0, %v905
        %v907 = vpop.f32.mrf.mxu0
        %v908 = vadd.f32 0.0, %v907
        %909 = vdwg.mxu0
        %v910 = vadd.f32 %v634, %v823
        %v911 = vadd.f32 %v636, %v825
        %v912 = vadd.f32 %v711, %v900
        %v913 = vadd.f32 %v713, %v902
        %v914 = vadd.f32 %v640, %v829
        %v915 = vadd.f32 %v642, %v831
        %v916 = vadd.f32 %v717, %v906
        %v917 = vadd.f32 %v719, %v908
        %s918 = scalar_lea.vmem %s1, 384
        %v919 = vld [vmem:[%s918] sm:$0xff]
        %v920 = vld [vmem:[%s918 + $0x8] sm:$0xff]
        %v921 = vld [vmem:[%s918 + $0x10] sm:$0xff]
        %v922 = vld [vmem:[%s918 + $0x18] sm:$0xff]
        %v923 = vld [vmem:[%s918 + $0x20] sm:$0xff]
        %v924 = vld [vmem:[%s918 + $0x28] sm:$0xff]
        %v925 = vld [vmem:[%s918 + $0x30] sm:$0xff]
        %v926 = vld [vmem:[%s918 + $0x38] sm:$0xff]
        %v927 = vld [vmem:[%s918 + $0x40] sm:$0xff]
        %v928 = vld [vmem:[%s918 + $0x48] sm:$0xff]
        %v929 = vld [vmem:[%s918 + $0x50] sm:$0xff]
        %v930 = vld [vmem:[%s918 + $0x58] sm:$0xff]
        %v931 = vld [vmem:[%s918 + $0x60] sm:$0xf]
        %v932 = vld [vmem:[%s918 + $0x68] sm:$0xf]
        %v933 = vld [vmem:[%s918 + $0x70] sm:$0xf]
        %v934 = vld [vmem:[%s918 + $0x78] sm:$0xf]
        %v936 = vsel %vm375, %v336, 0
        %v939 = vsel %vm375, %v337, 0
        %v942 = vsel %vm382, %v931, 0
        %v945 = vsel %vm382, %v932, 0
        %v948 = vsel %vm382, %v933, 0
        %v951 = vsel %vm382, %v934, 0
        %953 = vmatprep.subr.mxu0 0.0
        %954 = vmatpush1.msra.mxu0 0.0
        %955 = vmatprep.subr.mxu0 0.0
        %956 = vmatpush1.msra.mxu0 0.0
        %957 = vmatprep.subr.mxu0 0.0
        %958 = vmatpush1.msra.mxu0 0.0
        %959 = vmatprep.subr.mxu0 0.0
        %960 = vmatpush1.msra.mxu0 0.0
        %961 = vmatprep.subr.mxu0 0.0
        %962 = vmatpush1.msra.mxu0 0.0
        %963 = vmatprep.subr.mxu0 0.0
        %964 = vmatpush1.msra.mxu0 0.0
        %965 = vmatprep.subr.mxu0 0.0
        %966 = vmatpush1.msra.mxu0 0.0
        %967 = vmatprep.subr.mxu0 0.0
        %968 = vmatpush1.msra.mxu0 0.0
        %969 = vmatprep.subr.mxu0 0.0
        %970 = vmatpush1.msra.mxu0 0.0
        %971 = vmatprep.subr.mxu0 0.0
        %972 = vmatpush1.msra.mxu0 0.0
        %973 = vmatprep.subr.mxu0 0.0
        %974 = vmatpush1.msra.mxu0 0.0
        %975 = vmatprep.subr.mxu0 0.0
        %976 = vmatpush1.msra.mxu0 0.0
        %977 = vmatprep.subr.mxu0 %v945
        %978 = vmatpush1.msra.mxu0 %v942
        %979 = vmatprep.subr.mxu0 %v928
        %980 = vmatpush1.msra.mxu0 %v927
        %981 = vmatprep.subr.mxu0 %v924
        %982 = vmatpush1.msra.mxu0 %v923
        %983 = vmatprep.subr.mxu0 %v920
        %984 = vmatpush1.msra.mxu0 %v919
        %985 = vmatprep.subr.mxu0 0.0
        %986 = vmatpush2.msra.mxu0 0.0
        %987 = vmatprep.subr.mxu0 0.0
        %988 = vmatpush2.msra.mxu0 0.0
        %989 = vmatprep.subr.mxu0 0.0
        %990 = vmatpush2.msra.mxu0 0.0
        %991 = vmatprep.subr.mxu0 0.0
        %992 = vmatpush2.msra.mxu0 0.0
        %993 = vmatprep.subr.mxu0 0.0
        %994 = vmatpush2.msra.mxu0 0.0
        %995 = vmatprep.subr.mxu0 0.0
        %996 = vmatpush2.msra.mxu0 0.0
        %997 = vmatprep.subr.mxu0 0.0
        %998 = vmatpush2.msra.mxu0 0.0
        %999 = vmatprep.subr.mxu0 0.0
        %1000 = vmatpush2.msra.mxu0 0.0
        %1001 = vmatprep.subr.mxu0 0.0
        %1002 = vmatpush2.msra.mxu0 0.0
        %1003 = vmatprep.subr.mxu0 0.0
        %1004 = vmatpush2.msra.mxu0 0.0
        %1005 = vmatprep.subr.mxu0 0.0
        %1006 = vmatpush2.msra.mxu0 0.0
        %1007 = vmatprep.subr.mxu0 0.0
        %1008 = vmatpush2.msra.mxu0 0.0
        %1009 = vmatprep.subr.mxu0 0.0
        %1010 = vmatpush2.msra.mxu0 0.0
        %1011 = vmatprep.subr.mxu0 0.0
        %1012 = vmatpush2.msra.mxu0 0.0
        %1013 = vmatprep.subr.mxu0 0.0
        %1014 = vmatpush2.msra.mxu0 0.0
        %1015 = vmatprep.subr.mxu0 0.0
        %1016 = vmatpush2.msra.mxu0 0.0
        %1017 = vmatprep.mubr.f32.mxu0 0.0
        %1018 = vmatmul.mubr.f32.gmra.mxu0 %v936
        %v1019 = vpop.f32.mrf.mxu0
        %v1020 = vadd.f32 0.0, %v1019
        %v1021 = vpop.f32.mrf.mxu0
        %v1022 = vadd.f32 0.0, %v1021
        %1023 = vmatprep.mubr.f32.mxu0 0.0
        %1024 = vmatmul.mubr.f32.gmra.mxu0 %v939
        %v1025 = vpop.f32.mrf.mxu0
        %v1026 = vadd.f32 0.0, %v1025
        %v1027 = vpop.f32.mrf.mxu0
        %v1028 = vadd.f32 0.0, %v1027
        %1029 = vdwg.mxu0
        %1030 = vmatprep.subr.mxu0 0.0
        %1031 = vmatpush1.msra.mxu0 0.0
        %1032 = vmatprep.subr.mxu0 0.0
        %1033 = vmatpush1.msra.mxu0 0.0
        %1034 = vmatprep.subr.mxu0 0.0
        %1035 = vmatpush1.msra.mxu0 0.0
        %1036 = vmatprep.subr.mxu0 0.0
        %1037 = vmatpush1.msra.mxu0 0.0
        %1038 = vmatprep.subr.mxu0 0.0
        %1039 = vmatpush1.msra.mxu0 0.0
        %1040 = vmatprep.subr.mxu0 0.0
        %1041 = vmatpush1.msra.mxu0 0.0
        %1042 = vmatprep.subr.mxu0 0.0
        %1043 = vmatpush1.msra.mxu0 0.0
        %1044 = vmatprep.subr.mxu0 0.0
        %1045 = vmatpush1.msra.mxu0 0.0
        %1046 = vmatprep.subr.mxu0 0.0
        %1047 = vmatpush1.msra.mxu0 0.0
        %1048 = vmatprep.subr.mxu0 0.0
        %1049 = vmatpush1.msra.mxu0 0.0
        %1050 = vmatprep.subr.mxu0 0.0
        %1051 = vmatpush1.msra.mxu0 0.0
        %1052 = vmatprep.subr.mxu0 0.0
        %1053 = vmatpush1.msra.mxu0 0.0
        %1054 = vmatprep.subr.mxu0 %v951
        %1055 = vmatpush1.msra.mxu0 %v948
        %1056 = vmatprep.subr.mxu0 %v930
        %1057 = vmatpush1.msra.mxu0 %v929
        %1058 = vmatprep.subr.mxu0 %v926
        %1059 = vmatpush1.msra.mxu0 %v925
        %1060 = vmatprep.subr.mxu0 %v922
        %1061 = vmatpush1.msra.mxu0 %v921
        %1062 = vmatprep.subr.mxu0 0.0
        %1063 = vmatpush2.msra.mxu0 0.0
        %1064 = vmatprep.subr.mxu0 0.0
        %1065 = vmatpush2.msra.mxu0 0.0
        %1066 = vmatprep.subr.mxu0 0.0
        %1067 = vmatpush2.msra.mxu0 0.0
        %1068 = vmatprep.subr.mxu0 0.0
        %1069 = vmatpush2.msra.mxu0 0.0
        %1070 = vmatprep.subr.mxu0 0.0
        %1071 = vmatpush2.msra.mxu0 0.0
        %1072 = vmatprep.subr.mxu0 0.0
        %1073 = vmatpush2.msra.mxu0 0.0
        %1074 = vmatprep.subr.mxu0 0.0
        %1075 = vmatpush2.msra.mxu0 0.0
        %1076 = vmatprep.subr.mxu0 0.0
        %1077 = vmatpush2.msra.mxu0 0.0
        %1078 = vmatprep.subr.mxu0 0.0
        %1079 = vmatpush2.msra.mxu0 0.0
        %1080 = vmatprep.subr.mxu0 0.0
        %1081 = vmatpush2.msra.mxu0 0.0
        %1082 = vmatprep.subr.mxu0 0.0
        %1083 = vmatpush2.msra.mxu0 0.0
        %1084 = vmatprep.subr.mxu0 0.0
        %1085 = vmatpush2.msra.mxu0 0.0
        %1086 = vmatprep.subr.mxu0 0.0
        %1087 = vmatpush2.msra.mxu0 0.0
        %1088 = vmatprep.subr.mxu0 0.0
        %1089 = vmatpush2.msra.mxu0 0.0
        %1090 = vmatprep.subr.mxu0 0.0
        %1091 = vmatpush2.msra.mxu0 0.0
        %1092 = vmatprep.subr.mxu0 0.0
        %1093 = vmatpush2.msra.mxu0 0.0
        %1094 = vmatprep.mubr.f32.mxu0 0.0
        %1095 = vmatmul.mubr.f32.gmra.mxu0 %v936
        %v1096 = vpop.f32.mrf.mxu0
        %v1097 = vadd.f32 0.0, %v1096
        %v1098 = vpop.f32.mrf.mxu0
        %v1099 = vadd.f32 0.0, %v1098
        %1100 = vmatprep.mubr.f32.mxu0 0.0
        %1101 = vmatmul.mubr.f32.gmra.mxu0 %v939
        %v1102 = vpop.f32.mrf.mxu0
        %v1103 = vadd.f32 0.0, %v1102
        %v1104 = vpop.f32.mrf.mxu0
        %v1105 = vadd.f32 0.0, %v1104
        %1106 = vdwg.mxu0
        %v1107 = vadd.f32 %v910, %v1020
        %v1108 = vadd.f32 %v911, %v1022
        %v1109 = vadd.f32 %v912, %v1097
        %v1110 = vadd.f32 %v913, %v1099
        %v1111 = vadd.f32 %v914, %v1026
        %v1112 = vadd.f32 %v915, %v1028
        %v1113 = vadd.f32 %v916, %v1103
        %v1114 = vadd.f32 %v917, %v1105
        %s1115 = scalar_lea.vmem %s1, 512
        %v1116 = vld [vmem:[%s1115] sm:$0xff]
        %v1117 = vld [vmem:[%s1115 + $0x8] sm:$0xff]
        %v1118 = vld [vmem:[%s1115 + $0x10] sm:$0xff]
        %v1119 = vld [vmem:[%s1115 + $0x18] sm:$0xff]
        %v1120 = vld [vmem:[%s1115 + $0x20] sm:$0xff]
        %v1121 = vld [vmem:[%s1115 + $0x28] sm:$0xff]
        %v1122 = vld [vmem:[%s1115 + $0x30] sm:$0xff]
        %v1123 = vld [vmem:[%s1115 + $0x38] sm:$0xff]
        %v1124 = vld [vmem:[%s1115 + $0x40] sm:$0xff]
        %v1125 = vld [vmem:[%s1115 + $0x48] sm:$0xff]
        %v1126 = vld [vmem:[%s1115 + $0x50] sm:$0xff]
        %v1127 = vld [vmem:[%s1115 + $0x58] sm:$0xff]
        %v1128 = vld [vmem:[%s1115 + $0x60] sm:$0xf]
        %v1129 = vld [vmem:[%s1115 + $0x68] sm:$0xf]
        %v1130 = vld [vmem:[%s1115 + $0x70] sm:$0xf]
        %v1131 = vld [vmem:[%s1115 + $0x78] sm:$0xf]
        %v1133 = vsel %vm375, %v338, 0
        %v1136 = vsel %vm375, %v339, 0
        %v1139 = vsel %vm382, %v1128, 0
        %v1142 = vsel %vm382, %v1129, 0
        %v1145 = vsel %vm382, %v1130, 0
        %v1148 = vsel %vm382, %v1131, 0
        %1150 = vmatprep.subr.mxu0 0.0
        %1151 = vmatpush1.msra.mxu0 0.0
        %1152 = vmatprep.subr.mxu0 0.0
        %1153 = vmatpush1.msra.mxu0 0.0
        %1154 = vmatprep.subr.mxu0 0.0
        %1155 = vmatpush1.msra.mxu0 0.0
        %1156 = vmatprep.subr.mxu0 0.0
        %1157 = vmatpush1.msra.mxu0 0.0
        %1158 = vmatprep.subr.mxu0 0.0
        %1159 = vmatpush1.msra.mxu0 0.0
        %1160 = vmatprep.subr.mxu0 0.0
        %1161 = vmatpush1.msra.mxu0 0.0
        %1162 = vmatprep.subr.mxu0 0.0
        %1163 = vmatpush1.msra.mxu0 0.0
        %1164 = vmatprep.subr.mxu0 0.0
        %1165 = vmatpush1.msra.mxu0 0.0
        %1166 = vmatprep.subr.mxu0 0.0
        %1167 = vmatpush1.msra.mxu0 0.0
        %1168 = vmatprep.subr.mxu0 0.0
        %1169 = vmatpush1.msra.mxu0 0.0
        %1170 = vmatprep.subr.mxu0 0.0
        %1171 = vmatpush1.msra.mxu0 0.0
        %1172 = vmatprep.subr.mxu0 0.0
        %1173 = vmatpush1.msra.mxu0 0.0
        %1174 = vmatprep.subr.mxu0 %v1142
        %1175 = vmatpush1.msra.mxu0 %v1139
        %1176 = vmatprep.subr.mxu0 %v1125
        %1177 = vmatpush1.msra.mxu0 %v1124
        %1178 = vmatprep.subr.mxu0 %v1121
        %1179 = vmatpush1.msra.mxu0 %v1120
        %1180 = vmatprep.subr.mxu0 %v1117
        %1181 = vmatpush1.msra.mxu0 %v1116
        %1182 = vmatprep.subr.mxu0 0.0
        %1183 = vmatpush2.msra.mxu0 0.0
        %1184 = vmatprep.subr.mxu0 0.0
        %1185 = vmatpush2.msra.mxu0 0.0
        %1186 = vmatprep.subr.mxu0 0.0
        %1187 = vmatpush2.msra.mxu0 0.0
        %1188 = vmatprep.subr.mxu0 0.0
        %1189 = vmatpush2.msra.mxu0 0.0
        %1190 = vmatprep.subr.mxu0 0.0
        %1191 = vmatpush2.msra.mxu0 0.0
        %1192 = vmatprep.subr.mxu0 0.0
        %1193 = vmatpush2.msra.mxu0 0.0
        %1194 = vmatprep.subr.mxu0 0.0
        %1195 = vmatpush2.msra.mxu0 0.0
        %1196 = vmatprep.subr.mxu0 0.0
        %1197 = vmatpush2.msra.mxu0 0.0
        %1198 = vmatprep.subr.mxu0 0.0
        %1199 = vmatpush2.msra.mxu0 0.0
        %1200 = vmatprep.subr.mxu0 0.0
        %1201 = vmatpush2.msra.mxu0 0.0
        %1202 = vmatprep.subr.mxu0 0.0
        %1203 = vmatpush2.msra.mxu0 0.0
        %1204 = vmatprep.subr.mxu0 0.0
        %1205 = vmatpush2.msra.mxu0 0.0
        %1206 = vmatprep.subr.mxu0 0.0
        %1207 = vmatpush2.msra.mxu0 0.0
        %1208 = vmatprep.subr.mxu0 0.0
        %1209 = vmatpush2.msra.mxu0 0.0
        %1210 = vmatprep.subr.mxu0 0.0
        %1211 = vmatpush2.msra.mxu0 0.0
        %1212 = vmatprep.subr.mxu0 0.0
        %1213 = vmatpush2.msra.mxu0 0.0
        %1214 = vmatprep.mubr.f32.mxu0 0.0
        %1215 = vmatmul.mubr.f32.gmra.mxu0 %v1133
        %v1216 = vpop.f32.mrf.mxu0
        %v1217 = vadd.f32 0.0, %v1216
        %v1218 = vpop.f32.mrf.mxu0
        %v1219 = vadd.f32 0.0, %v1218
        %1220 = vmatprep.mubr.f32.mxu0 0.0
        %1221 = vmatmul.mubr.f32.gmra.mxu0 %v1136
        %v1222 = vpop.f32.mrf.mxu0
        %v1223 = vadd.f32 0.0, %v1222
        %v1224 = vpop.f32.mrf.mxu0
        %v1225 = vadd.f32 0.0, %v1224
        %1226 = vdwg.mxu0
        %1227 = vmatprep.subr.mxu0 0.0
        %1228 = vmatpush1.msra.mxu0 0.0
        %1229 = vmatprep.subr.mxu0 0.0
        %1230 = vmatpush1.msra.mxu0 0.0
        %1231 = vmatprep.subr.mxu0 0.0
        %1232 = vmatpush1.msra.mxu0 0.0
        %1233 = vmatprep.subr.mxu0 0.0
        %1234 = vmatpush1.msra.mxu0 0.0
        %1235 = vmatprep.subr.mxu0 0.0
        %1236 = vmatpush1.msra.mxu0 0.0
        %1237 = vmatprep.subr.mxu0 0.0
        %1238 = vmatpush1.msra.mxu0 0.0
        %1239 = vmatprep.subr.mxu0 0.0
        %1240 = vmatpush1.msra.mxu0 0.0
        %1241 = vmatprep.subr.mxu0 0.0
        %1242 = vmatpush1.msra.mxu0 0.0
        %1243 = vmatprep.subr.mxu0 0.0
        %1244 = vmatpush1.msra.mxu0 0.0
        %1245 = vmatprep.subr.mxu0 0.0
        %1246 = vmatpush1.msra.mxu0 0.0
        %1247 = vmatprep.subr.mxu0 0.0
        %1248 = vmatpush1.msra.mxu0 0.0
        %1249 = vmatprep.subr.mxu0 0.0
        %1250 = vmatpush1.msra.mxu0 0.0
        %1251 = vmatprep.subr.mxu0 %v1148
        %1252 = vmatpush1.msra.mxu0 %v1145
        %1253 = vmatprep.subr.mxu0 %v1127
        %1254 = vmatpush1.msra.mxu0 %v1126
        %1255 = vmatprep.subr.mxu0 %v1123
        %1256 = vmatpush1.msra.mxu0 %v1122
        %1257 = vmatprep.subr.mxu0 %v1119
        %1258 = vmatpush1.msra.mxu0 %v1118
        %1259 = vmatprep.subr.mxu0 0.0
        %1260 = vmatpush2.msra.mxu0 0.0
        %1261 = vmatprep.subr.mxu0 0.0
        %1262 = vmatpush2.msra.mxu0 0.0
        %1263 = vmatprep.subr.mxu0 0.0
        %1264 = vmatpush2.msra.mxu0 0.0
        %1265 = vmatprep.subr.mxu0 0.0
        %1266 = vmatpush2.msra.mxu0 0.0
        %1267 = vmatprep.subr.mxu0 0.0
        %1268 = vmatpush2.msra.mxu0 0.0
        %1269 = vmatprep.subr.mxu0 0.0
        %1270 = vmatpush2.msra.mxu0 0.0
        %1271 = vmatprep.subr.mxu0 0.0
        %1272 = vmatpush2.msra.mxu0 0.0
        %1273 = vmatprep.subr.mxu0 0.0
        %1274 = vmatpush2.msra.mxu0 0.0
        %1275 = vmatprep.subr.mxu0 0.0
        %1276 = vmatpush2.msra.mxu0 0.0
        %1277 = vmatprep.subr.mxu0 0.0
        %1278 = vmatpush2.msra.mxu0 0.0
        %1279 = vmatprep.subr.mxu0 0.0
        %1280 = vmatpush2.msra.mxu0 0.0
        %1281 = vmatprep.subr.mxu0 0.0
        %1282 = vmatpush2.msra.mxu0 0.0
        %1283 = vmatprep.subr.mxu0 0.0
        %1284 = vmatpush2.msra.mxu0 0.0
        %1285 = vmatprep.subr.mxu0 0.0
        %1286 = vmatpush2.msra.mxu0 0.0
        %1287 = vmatprep.subr.mxu0 0.0
        %1288 = vmatpush2.msra.mxu0 0.0
        %1289 = vmatprep.subr.mxu0 0.0
        %1290 = vmatpush2.msra.mxu0 0.0
        %1291 = vmatprep.mubr.f32.mxu0 0.0
        %1292 = vmatmul.mubr.f32.gmra.mxu0 %v1133
        %v1293 = vpop.f32.mrf.mxu0
        %v1294 = vadd.f32 0.0, %v1293
        %v1295 = vpop.f32.mrf.mxu0
        %v1296 = vadd.f32 0.0, %v1295
        %1297 = vmatprep.mubr.f32.mxu0 0.0
        %1298 = vmatmul.mubr.f32.gmra.mxu0 %v1136
        %v1299 = vpop.f32.mrf.mxu0
        %v1300 = vadd.f32 0.0, %v1299
        %v1301 = vpop.f32.mrf.mxu0
        %v1302 = vadd.f32 0.0, %v1301
        %1303 = vdwg.mxu0
        %v1304 = vadd.f32 %v1107, %v1217
        %v1305 = vadd.f32 %v1108, %v1219
        %v1306 = vadd.f32 %v1109, %v1294
        %v1307 = vadd.f32 %v1110, %v1296
        %v1308 = vadd.f32 %v1111, %v1223
        %v1309 = vadd.f32 %v1112, %v1225
        %v1310 = vadd.f32 %v1113, %v1300
        %v1311 = vadd.f32 %v1114, %v1302
        %v1312 = vld [vmem:[%s2] sm:$0xf]
        %v1314 = vlaneseq
        %v1315 = vshrl.u32 %v1314, 7
        %v1316 = vsub.s32 0, %v1315
        %v1317 = vrot.slane %v1312, %v1316
        %v1318 = vlaneseq
        %v1319 = vshrl.u32 %v1318, 7
        %v1320 = vsub.s32 1, %v1319
        %v1321 = vrot.slane %v1312, %v1320
        %v1322 = vlaneseq
        %v1323 = vshrl.u32 %v1322, 7
        %v1324 = vsub.s32 2, %v1323
        %v1325 = vrot.slane %v1312, %v1324
        %v1326 = vlaneseq
        %v1327 = vshrl.u32 %v1326, 7
        %v1328 = vsub.s32 3, %v1327
        %v1329 = vrot.slane %v1312, %v1328
        %v1334 = vadd.f32 %v1304, %v1317
        %v1335 = vadd.f32 %v1305, %v1321
        %v1336 = vadd.f32 %v1306, %v1325
        %v1337 = vadd.f32 %v1307, %v1329
        %v1338 = vadd.f32 %v1308, %v1317
        %v1339 = vadd.f32 %v1309, %v1321
        %v1340 = vadd.f32 %v1310, %v1325
        %v1341 = vadd.f32 %v1311, %v1329
        %v1342 = vmax.f32 %v1334, 0.0
        %v1343 = vmax.f32 %v1335, 0.0
        %v1344 = vmax.f32 %v1336, 0.0
        %v1345 = vmax.f32 %v1337, 0.0
        %v1346 = vmax.f32 %v1338, 0.0
        %v1347 = vmax.f32 %v1339, 0.0
        %v1348 = vmax.f32 %v1340, 0.0
        %v1349 = vmax.f32 %v1341, 0.0
        %1350 = vmatprep.subr.mxu0 0.0
        %1351 = vmatpush1.msra.mxu0 0.0
        %1352 = vmatprep.subr.mxu0 0.0
        %1353 = vmatpush1.msra.mxu0 0.0
        %1354 = vmatprep.subr.mxu0 0.0
        %1355 = vmatpush1.msra.mxu0 0.0
        %1356 = vmatprep.subr.mxu0 0.0
        %1357 = vmatpush1.msra.mxu0 0.0
        %1358 = vmatprep.subr.mxu0 0.0
        %1359 = vmatpush1.msra.mxu0 0.0
        %1360 = vmatprep.subr.mxu0 0.0
        %1361 = vmatpush1.msra.mxu0 0.0
        %1362 = vmatprep.subr.mxu0 0.0
        %1363 = vmatpush1.msra.mxu0 0.0
        %1364 = vmatprep.subr.mxu0 0.0
        %1365 = vmatpush1.msra.mxu0 0.0
        %1366 = vmatprep.subr.mxu0 0.0
        %1367 = vmatpush1.msra.mxu0 0.0
        %1368 = vmatprep.subr.mxu0 0.0
        %1369 = vmatpush1.msra.mxu0 0.0
        %1370 = vmatprep.subr.mxu0 0.0
        %1371 = vmatpush1.msra.mxu0 0.0
        %1372 = vmatprep.subr.mxu0 0.0
        %1373 = vmatpush1.msra.mxu0 0.0
        %1374 = vmatprep.subr.mxu0 %v387
        %1375 = vmatpush1.msra.mxu0 %v384
        %1376 = vmatprep.subr.mxu0 %v368
        %1377 = vmatpush1.msra.mxu0 %v367
        %1378 = vmatprep.subr.mxu0 %v364
        %1379 = vmatpush1.msra.mxu0 %v363
        %1380 = vmatprep.subr.mxu0 %v360
        %1381 = vmatpush1.msra.mxu0 %v359
        %1382 = vmatprep.subr.mxu0 0.0
        %1383 = vmatpush2.msra.mxu0 0.0
        %1384 = vmatprep.subr.mxu0 0.0
        %1385 = vmatpush2.msra.mxu0 0.0
        %1386 = vmatprep.subr.mxu0 0.0
        %1387 = vmatpush2.msra.mxu0 0.0
        %1388 = vmatprep.subr.mxu0 0.0
        %1389 = vmatpush2.msra.mxu0 0.0
        %1390 = vmatprep.subr.mxu0 0.0
        %1391 = vmatpush2.msra.mxu0 0.0
        %1392 = vmatprep.subr.mxu0 0.0
        %1393 = vmatpush2.msra.mxu0 0.0
        %1394 = vmatprep.subr.mxu0 0.0
        %1395 = vmatpush2.msra.mxu0 0.0
        %1396 = vmatprep.subr.mxu0 0.0
        %1397 = vmatpush2.msra.mxu0 0.0
        %1398 = vmatprep.subr.mxu0 0.0
        %1399 = vmatpush2.msra.mxu0 0.0
        %1400 = vmatprep.subr.mxu0 0.0
        %1401 = vmatpush2.msra.mxu0 0.0
        %1402 = vmatprep.subr.mxu0 0.0
        %1403 = vmatpush2.msra.mxu0 0.0
        %1404 = vmatprep.subr.mxu0 0.0
        %1405 = vmatpush2.msra.mxu0 0.0
        %1406 = vmatprep.subr.mxu0 0.0
        %1407 = vmatpush2.msra.mxu0 0.0
        %1408 = vmatprep.subr.mxu0 0.0
        %1409 = vmatpush2.msra.mxu0 0.0
        %1410 = vmatprep.subr.mxu0 0.0
        %1411 = vmatpush2.msra.mxu0 0.0
        %1412 = vmatprep.subr.mxu0 0.0
        %1413 = vmatpush2.msra.mxu0 0.0
        %1414 = vmatprep.mubr.f32.mxu0 0.0
        %1415 = vmatmul.mubr.f32.gmra.mxu0 %v739
        %v1416 = vpop.f32.mrf.mxu0
        %v1417 = vadd.f32 0.0, %v1416
        %v1418 = vpop.f32.mrf.mxu0
        %v1419 = vadd.f32 0.0, %v1418
        %1420 = vmatprep.mubr.f32.mxu0 0.0
        %1421 = vmatmul.mubr.f32.gmra.mxu0 %v742
        %v1422 = vpop.f32.mrf.mxu0
        %v1423 = vadd.f32 0.0, %v1422
        %v1424 = vpop.f32.mrf.mxu0
        %v1425 = vadd.f32 0.0, %v1424
        %1426 = vdwg.mxu0
        %1427 = vmatprep.subr.mxu0 0.0
        %1428 = vmatpush1.msra.mxu0 0.0
        %1429 = vmatprep.subr.mxu0 0.0
        %1430 = vmatpush1.msra.mxu0 0.0
        %1431 = vmatprep.subr.mxu0 0.0
        %1432 = vmatpush1.msra.mxu0 0.0
        %1433 = vmatprep.subr.mxu0 0.0
        %1434 = vmatpush1.msra.mxu0 0.0
        %1435 = vmatprep.subr.mxu0 0.0
        %1436 = vmatpush1.msra.mxu0 0.0
        %1437 = vmatprep.subr.mxu0 0.0
        %1438 = vmatpush1.msra.mxu0 0.0
        %1439 = vmatprep.subr.mxu0 0.0
        %1440 = vmatpush1.msra.mxu0 0.0
        %1441 = vmatprep.subr.mxu0 0.0
        %1442 = vmatpush1.msra.mxu0 0.0
        %1443 = vmatprep.subr.mxu0 0.0
        %1444 = vmatpush1.msra.mxu0 0.0
        %1445 = vmatprep.subr.mxu0 0.0
        %1446 = vmatpush1.msra.mxu0 0.0
        %1447 = vmatprep.subr.mxu0 0.0
        %1448 = vmatpush1.msra.mxu0 0.0
        %1449 = vmatprep.subr.mxu0 0.0
        %1450 = vmatpush1.msra.mxu0 0.0
        %1451 = vmatprep.subr.mxu0 %v393
        %1452 = vmatpush1.msra.mxu0 %v390
        %1453 = vmatprep.subr.mxu0 %v370
        %1454 = vmatpush1.msra.mxu0 %v369
        %1455 = vmatprep.subr.mxu0 %v366
        %1456 = vmatpush1.msra.mxu0 %v365
        %1457 = vmatprep.subr.mxu0 %v362
        %1458 = vmatpush1.msra.mxu0 %v361
        %1459 = vmatprep.subr.mxu0 0.0
        %1460 = vmatpush2.msra.mxu0 0.0
        %1461 = vmatprep.subr.mxu0 0.0
        %1462 = vmatpush2.msra.mxu0 0.0
        %1463 = vmatprep.subr.mxu0 0.0
        %1464 = vmatpush2.msra.mxu0 0.0
        %1465 = vmatprep.subr.mxu0 0.0
        %1466 = vmatpush2.msra.mxu0 0.0
        %1467 = vmatprep.subr.mxu0 0.0
        %1468 = vmatpush2.msra.mxu0 0.0
        %1469 = vmatprep.subr.mxu0 0.0
        %1470 = vmatpush2.msra.mxu0 0.0
        %1471 = vmatprep.subr.mxu0 0.0
        %1472 = vmatpush2.msra.mxu0 0.0
        %1473 = vmatprep.subr.mxu0 0.0
        %1474 = vmatpush2.msra.mxu0 0.0
        %1475 = vmatprep.subr.mxu0 0.0
        %1476 = vmatpush2.msra.mxu0 0.0
        %1477 = vmatprep.subr.mxu0 0.0
        %1478 = vmatpush2.msra.mxu0 0.0
        %1479 = vmatprep.subr.mxu0 0.0
        %1480 = vmatpush2.msra.mxu0 0.0
        %1481 = vmatprep.subr.mxu0 0.0
        %1482 = vmatpush2.msra.mxu0 0.0
        %1483 = vmatprep.subr.mxu0 0.0
        %1484 = vmatpush2.msra.mxu0 0.0
        %1485 = vmatprep.subr.mxu0 0.0
        %1486 = vmatpush2.msra.mxu0 0.0
        %1487 = vmatprep.subr.mxu0 0.0
        %1488 = vmatpush2.msra.mxu0 0.0
        %1489 = vmatprep.subr.mxu0 0.0
        %1490 = vmatpush2.msra.mxu0 0.0
        %1491 = vmatprep.mubr.f32.mxu0 0.0
        %1492 = vmatmul.mubr.f32.gmra.mxu0 %v739
        %v1493 = vpop.f32.mrf.mxu0
        %v1494 = vadd.f32 0.0, %v1493
        %v1495 = vpop.f32.mrf.mxu0
        %v1496 = vadd.f32 0.0, %v1495
        %1497 = vmatprep.mubr.f32.mxu0 0.0
        %1498 = vmatmul.mubr.f32.gmra.mxu0 %v742
        %v1499 = vpop.f32.mrf.mxu0
        %v1500 = vadd.f32 0.0, %v1499
        %v1501 = vpop.f32.mrf.mxu0
        %v1502 = vadd.f32 0.0, %v1501
        %1503 = vdwg.mxu0
        %1504 = vmatprep.subr.mxu0 0.0
        %1505 = vmatpush1.msra.mxu0 0.0
        %1506 = vmatprep.subr.mxu0 0.0
        %1507 = vmatpush1.msra.mxu0 0.0
        %1508 = vmatprep.subr.mxu0 0.0
        %1509 = vmatpush1.msra.mxu0 0.0
        %1510 = vmatprep.subr.mxu0 0.0
        %1511 = vmatpush1.msra.mxu0 0.0
        %1512 = vmatprep.subr.mxu0 0.0
        %1513 = vmatpush1.msra.mxu0 0.0
        %1514 = vmatprep.subr.mxu0 0.0
        %1515 = vmatpush1.msra.mxu0 0.0
        %1516 = vmatprep.subr.mxu0 0.0
        %1517 = vmatpush1.msra.mxu0 0.0
        %1518 = vmatprep.subr.mxu0 0.0
        %1519 = vmatpush1.msra.mxu0 0.0
        %1520 = vmatprep.subr.mxu0 0.0
        %1521 = vmatpush1.msra.mxu0 0.0
        %1522 = vmatprep.subr.mxu0 0.0
        %1523 = vmatpush1.msra.mxu0 0.0
        %1524 = vmatprep.subr.mxu0 0.0
        %1525 = vmatpush1.msra.mxu0 0.0
        %1526 = vmatprep.subr.mxu0 0.0
        %1527 = vmatpush1.msra.mxu0 0.0
        %1528 = vmatprep.subr.mxu0 %v559
        %1529 = vmatpush1.msra.mxu0 %v556
        %1530 = vmatprep.subr.mxu0 %v351
        %1531 = vmatpush1.msra.mxu0 %v350
        %1532 = vmatprep.subr.mxu0 %v347
        %1533 = vmatpush1.msra.mxu0 %v346
        %1534 = vmatprep.subr.mxu0 %v343
        %1535 = vmatpush1.msra.mxu0 %v342
        %1536 = vmatprep.subr.mxu0 0.0
        %1537 = vmatpush2.msra.mxu0 0.0
        %1538 = vmatprep.subr.mxu0 0.0
        %1539 = vmatpush2.msra.mxu0 0.0
        %1540 = vmatprep.subr.mxu0 0.0
        %1541 = vmatpush2.msra.mxu0 0.0
        %1542 = vmatprep.subr.mxu0 0.0
        %1543 = vmatpush2.msra.mxu0 0.0
        %1544 = vmatprep.subr.mxu0 0.0
        %1545 = vmatpush2.msra.mxu0 0.0
        %1546 = vmatprep.subr.mxu0 0.0
        %1547 = vmatpush2.msra.mxu0 0.0
        %1548 = vmatprep.subr.mxu0 0.0
        %1549 = vmatpush2.msra.mxu0 0.0
        %1550 = vmatprep.subr.mxu0 0.0
        %1551 = vmatpush2.msra.mxu0 0.0
        %1552 = vmatprep.subr.mxu0 0.0
        %1553 = vmatpush2.msra.mxu0 0.0
        %1554 = vmatprep.subr.mxu0 0.0
        %1555 = vmatpush2.msra.mxu0 0.0
        %1556 = vmatprep.subr.mxu0 0.0
        %1557 = vmatpush2.msra.mxu0 0.0
        %1558 = vmatprep.subr.mxu0 0.0
        %1559 = vmatpush2.msra.mxu0 0.0
        %1560 = vmatprep.subr.mxu0 0.0
        %1561 = vmatpush2.msra.mxu0 0.0
        %1562 = vmatprep.subr.mxu0 0.0
        %1563 = vmatpush2.msra.mxu0 0.0
        %1564 = vmatprep.subr.mxu0 0.0
        %1565 = vmatpush2.msra.mxu0 0.0
        %1566 = vmatprep.subr.mxu0 0.0
        %1567 = vmatpush2.msra.mxu0 0.0
        %1568 = vmatprep.mubr.f32.mxu0 0.0
        %1569 = vmatmul.mubr.f32.gmra.mxu0 %v377
        %v1570 = vpop.f32.mrf.mxu0
        %v1571 = vadd.f32 %v1417, %v1570
        %v1572 = vpop.f32.mrf.mxu0
        %v1573 = vadd.f32 %v1419, %v1572
        %1574 = vmatprep.mubr.f32.mxu0 0.0
        %1575 = vmatmul.mubr.f32.gmra.mxu0 %v380
        %v1576 = vpop.f32.mrf.mxu0
        %v1577 = vadd.f32 %v1423, %v1576
        %v1578 = vpop.f32.mrf.mxu0
        %v1579 = vadd.f32 %v1425, %v1578
        %1580 = vdwg.mxu0
        %1581 = vmatprep.subr.mxu0 0.0
        %1582 = vmatpush1.msra.mxu0 0.0
        %1583 = vmatprep.subr.mxu0 0.0
        %1584 = vmatpush1.msra.mxu0 0.0
        %1585 = vmatprep.subr.mxu0 0.0
        %1586 = vmatpush1.msra.mxu0 0.0
        %1587 = vmatprep.subr.mxu0 0.0
        %1588 = vmatpush1.msra.mxu0 0.0
        %1589 = vmatprep.subr.mxu0 0.0
        %1590 = vmatpush1.msra.mxu0 0.0
        %1591 = vmatprep.subr.mxu0 0.0
        %1592 = vmatpush1.msra.mxu0 0.0
        %1593 = vmatprep.subr.mxu0 0.0
        %1594 = vmatpush1.msra.mxu0 0.0
        %1595 = vmatprep.subr.mxu0 0.0
        %1596 = vmatpush1.msra.mxu0 0.0
        %1597 = vmatprep.subr.mxu0 0.0
        %1598 = vmatpush1.msra.mxu0 0.0
        %1599 = vmatprep.subr.mxu0 0.0
        %1600 = vmatpush1.msra.mxu0 0.0
        %1601 = vmatprep.subr.mxu0 0.0
        %1602 = vmatpush1.msra.mxu0 0.0
        %1603 = vmatprep.subr.mxu0 0.0
        %1604 = vmatpush1.msra.mxu0 0.0
        %1605 = vmatprep.subr.mxu0 %v565
        %1606 = vmatpush1.msra.mxu0 %v562
        %1607 = vmatprep.subr.mxu0 %v353
        %1608 = vmatpush1.msra.mxu0 %v352
        %1609 = vmatprep.subr.mxu0 %v349
        %1610 = vmatpush1.msra.mxu0 %v348
        %1611 = vmatprep.subr.mxu0 %v345
        %1612 = vmatpush1.msra.mxu0 %v344
        %1613 = vmatprep.subr.mxu0 0.0
        %1614 = vmatpush2.msra.mxu0 0.0
        %1615 = vmatprep.subr.mxu0 0.0
        %1616 = vmatpush2.msra.mxu0 0.0
        %1617 = vmatprep.subr.mxu0 0.0
        %1618 = vmatpush2.msra.mxu0 0.0
        %1619 = vmatprep.subr.mxu0 0.0
        %1620 = vmatpush2.msra.mxu0 0.0
        %1621 = vmatprep.subr.mxu0 0.0
        %1622 = vmatpush2.msra.mxu0 0.0
        %1623 = vmatprep.subr.mxu0 0.0
        %1624 = vmatpush2.msra.mxu0 0.0
        %1625 = vmatprep.subr.mxu0 0.0
        %1626 = vmatpush2.msra.mxu0 0.0
        %1627 = vmatprep.subr.mxu0 0.0
        %1628 = vmatpush2.msra.mxu0 0.0
        %1629 = vmatprep.subr.mxu0 0.0
        %1630 = vmatpush2.msra.mxu0 0.0
        %1631 = vmatprep.subr.mxu0 0.0
        %1632 = vmatpush2.msra.mxu0 0.0
        %1633 = vmatprep.subr.mxu0 0.0
        %1634 = vmatpush2.msra.mxu0 0.0
        %1635 = vmatprep.subr.mxu0 0.0
        %1636 = vmatpush2.msra.mxu0 0.0
        %1637 = vmatprep.subr.mxu0 0.0
        %1638 = vmatpush2.msra.mxu0 0.0
        %1639 = vmatprep.subr.mxu0 0.0
        %1640 = vmatpush2.msra.mxu0 0.0
        %1641 = vmatprep.subr.mxu0 0.0
        %1642 = vmatpush2.msra.mxu0 0.0
        %1643 = vmatprep.subr.mxu0 0.0
        %1644 = vmatpush2.msra.mxu0 0.0
        %1645 = vmatprep.mubr.f32.mxu0 0.0
        %1646 = vmatmul.mubr.f32.gmra.mxu0 %v377
        %v1647 = vpop.f32.mrf.mxu0
        %v1648 = vadd.f32 %v1494, %v1647
        %v1649 = vpop.f32.mrf.mxu0
        %v1650 = vadd.f32 %v1496, %v1649
        %1651 = vmatprep.mubr.f32.mxu0 0.0
        %1652 = vmatmul.mubr.f32.gmra.mxu0 %v380
        %v1653 = vpop.f32.mrf.mxu0
        %v1654 = vadd.f32 %v1500, %v1653
        %v1655 = vpop.f32.mrf.mxu0
        %v1656 = vadd.f32 %v1502, %v1655
        %1657 = vdwg.mxu0
        %1658 = vmatprep.subr.mxu0 0.0
        %1659 = vmatpush1.msra.mxu0 0.0
        %1660 = vmatprep.subr.mxu0 0.0
        %1661 = vmatpush1.msra.mxu0 0.0
        %1662 = vmatprep.subr.mxu0 0.0
        %1663 = vmatpush1.msra.mxu0 0.0
        %1664 = vmatprep.subr.mxu0 0.0
        %1665 = vmatpush1.msra.mxu0 0.0
        %1666 = vmatprep.subr.mxu0 0.0
        %1667 = vmatpush1.msra.mxu0 0.0
        %1668 = vmatprep.subr.mxu0 0.0
        %1669 = vmatpush1.msra.mxu0 0.0
        %1670 = vmatprep.subr.mxu0 0.0
        %1671 = vmatpush1.msra.mxu0 0.0
        %1672 = vmatprep.subr.mxu0 0.0
        %1673 = vmatpush1.msra.mxu0 0.0
        %1674 = vmatprep.subr.mxu0 0.0
        %1675 = vmatpush1.msra.mxu0 0.0
        %1676 = vmatprep.subr.mxu0 0.0
        %1677 = vmatpush1.msra.mxu0 0.0
        %1678 = vmatprep.subr.mxu0 0.0
        %1679 = vmatpush1.msra.mxu0 0.0
        %1680 = vmatprep.subr.mxu0 0.0
        %1681 = vmatpush1.msra.mxu0 0.0
        %1682 = vmatprep.subr.mxu0 %v748
        %1683 = vmatpush1.msra.mxu0 %v745
        %1684 = vmatprep.subr.mxu0 %v731
        %1685 = vmatpush1.msra.mxu0 %v730
        %1686 = vmatprep.subr.mxu0 %v727
        %1687 = vmatpush1.msra.mxu0 %v726
        %1688 = vmatprep.subr.mxu0 %v723
        %1689 = vmatpush1.msra.mxu0 %v722
        %1690 = vmatprep.subr.mxu0 0.0
        %1691 = vmatpush2.msra.mxu0 0.0
        %1692 = vmatprep.subr.mxu0 0.0
        %1693 = vmatpush2.msra.mxu0 0.0
        %1694 = vmatprep.subr.mxu0 0.0
        %1695 = vmatpush2.msra.mxu0 0.0
        %1696 = vmatprep.subr.mxu0 0.0
        %1697 = vmatpush2.msra.mxu0 0.0
        %1698 = vmatprep.subr.mxu0 0.0
        %1699 = vmatpush2.msra.mxu0 0.0
        %1700 = vmatprep.subr.mxu0 0.0
        %1701 = vmatpush2.msra.mxu0 0.0
        %1702 = vmatprep.subr.mxu0 0.0
        %1703 = vmatpush2.msra.mxu0 0.0
        %1704 = vmatprep.subr.mxu0 0.0
        %1705 = vmatpush2.msra.mxu0 0.0
        %1706 = vmatprep.subr.mxu0 0.0
        %1707 = vmatpush2.msra.mxu0 0.0
        %1708 = vmatprep.subr.mxu0 0.0
        %1709 = vmatpush2.msra.mxu0 0.0
        %1710 = vmatprep.subr.mxu0 0.0
        %1711 = vmatpush2.msra.mxu0 0.0
        %1712 = vmatprep.subr.mxu0 0.0
        %1713 = vmatpush2.msra.mxu0 0.0
        %1714 = vmatprep.subr.mxu0 0.0
        %1715 = vmatpush2.msra.mxu0 0.0
        %1716 = vmatprep.subr.mxu0 0.0
        %1717 = vmatpush2.msra.mxu0 0.0
        %1718 = vmatprep.subr.mxu0 0.0
        %1719 = vmatpush2.msra.mxu0 0.0
        %1720 = vmatprep.subr.mxu0 0.0
        %1721 = vmatpush2.msra.mxu0 0.0
        %1722 = vmatprep.mubr.f32.mxu0 0.0
        %1723 = vmatmul.mubr.f32.gmra.mxu0 %v936
        %v1724 = vpop.f32.mrf.mxu0
        %v1725 = vadd.f32 0.0, %v1724
        %v1726 = vpop.f32.mrf.mxu0
        %v1727 = vadd.f32 0.0, %v1726
        %1728 = vmatprep.mubr.f32.mxu0 0.0
        %1729 = vmatmul.mubr.f32.gmra.mxu0 %v939
        %v1730 = vpop.f32.mrf.mxu0
        %v1731 = vadd.f32 0.0, %v1730
        %v1732 = vpop.f32.mrf.mxu0
        %v1733 = vadd.f32 0.0, %v1732
        %1734 = vdwg.mxu0
        %1735 = vmatprep.subr.mxu0 0.0
        %1736 = vmatpush1.msra.mxu0 0.0
        %1737 = vmatprep.subr.mxu0 0.0
        %1738 = vmatpush1.msra.mxu0 0.0
        %1739 = vmatprep.subr.mxu0 0.0
        %1740 = vmatpush1.msra.mxu0 0.0
        %1741 = vmatprep.subr.mxu0 0.0
        %1742 = vmatpush1.msra.mxu0 0.0
        %1743 = vmatprep.subr.mxu0 0.0
        %1744 = vmatpush1.msra.mxu0 0.0
        %1745 = vmatprep.subr.mxu0 0.0
        %1746 = vmatpush1.msra.mxu0 0.0
        %1747 = vmatprep.subr.mxu0 0.0
        %1748 = vmatpush1.msra.mxu0 0.0
        %1749 = vmatprep.subr.mxu0 0.0
        %1750 = vmatpush1.msra.mxu0 0.0
        %1751 = vmatprep.subr.mxu0 0.0
        %1752 = vmatpush1.msra.mxu0 0.0
        %1753 = vmatprep.subr.mxu0 0.0
        %1754 = vmatpush1.msra.mxu0 0.0
        %1755 = vmatprep.subr.mxu0 0.0
        %1756 = vmatpush1.msra.mxu0 0.0
        %1757 = vmatprep.subr.mxu0 0.0
        %1758 = vmatpush1.msra.mxu0 0.0
        %1759 = vmatprep.subr.mxu0 %v754
        %1760 = vmatpush1.msra.mxu0 %v751
        %1761 = vmatprep.subr.mxu0 %v733
        %1762 = vmatpush1.msra.mxu0 %v732
        %1763 = vmatprep.subr.mxu0 %v729
        %1764 = vmatpush1.msra.mxu0 %v728
        %1765 = vmatprep.subr.mxu0 %v725
        %1766 = vmatpush1.msra.mxu0 %v724
        %1767 = vmatprep.subr.mxu0 0.0
        %1768 = vmatpush2.msra.mxu0 0.0
        %1769 = vmatprep.subr.mxu0 0.0
        %1770 = vmatpush2.msra.mxu0 0.0
        %1771 = vmatprep.subr.mxu0 0.0
        %1772 = vmatpush2.msra.mxu0 0.0
        %1773 = vmatprep.subr.mxu0 0.0
        %1774 = vmatpush2.msra.mxu0 0.0
        %1775 = vmatprep.subr.mxu0 0.0
        %1776 = vmatpush2.msra.mxu0 0.0
        %1777 = vmatprep.subr.mxu0 0.0
        %1778 = vmatpush2.msra.mxu0 0.0
        %1779 = vmatprep.subr.mxu0 0.0
        %1780 = vmatpush2.msra.mxu0 0.0
        %1781 = vmatprep.subr.mxu0 0.0
        %1782 = vmatpush2.msra.mxu0 0.0
        %1783 = vmatprep.subr.mxu0 0.0
        %1784 = vmatpush2.msra.mxu0 0.0
        %1785 = vmatprep.subr.mxu0 0.0
        %1786 = vmatpush2.msra.mxu0 0.0
        %1787 = vmatprep.subr.mxu0 0.0
        %1788 = vmatpush2.msra.mxu0 0.0
        %1789 = vmatprep.subr.mxu0 0.0
        %1790 = vmatpush2.msra.mxu0 0.0
        %1791 = vmatprep.subr.mxu0 0.0
        %1792 = vmatpush2.msra.mxu0 0.0
        %1793 = vmatprep.subr.mxu0 0.0
        %1794 = vmatpush2.msra.mxu0 0.0
        %1795 = vmatprep.subr.mxu0 0.0
        %1796 = vmatpush2.msra.mxu0 0.0
        %1797 = vmatprep.subr.mxu0 0.0
        %1798 = vmatpush2.msra.mxu0 0.0
        %1799 = vmatprep.mubr.f32.mxu0 0.0
        %1800 = vmatmul.mubr.f32.gmra.mxu0 %v936
        %v1801 = vpop.f32.mrf.mxu0
        %v1802 = vadd.f32 0.0, %v1801
        %v1803 = vpop.f32.mrf.mxu0
        %v1804 = vadd.f32 0.0, %v1803
        %1805 = vmatprep.mubr.f32.mxu0 0.0
        %1806 = vmatmul.mubr.f32.gmra.mxu0 %v939
        %v1807 = vpop.f32.mrf.mxu0
        %v1808 = vadd.f32 0.0, %v1807
        %v1809 = vpop.f32.mrf.mxu0
        %v1810 = vadd.f32 0.0, %v1809
        %1811 = vdwg.mxu0
        %v1812 = vadd.f32 %v1571, %v1725
        %v1813 = vadd.f32 %v1573, %v1727
        %v1814 = vadd.f32 %v1648, %v1802
        %v1815 = vadd.f32 %v1650, %v1804
        %v1816 = vadd.f32 %v1577, %v1731
        %v1817 = vadd.f32 %v1579, %v1733
        %v1818 = vadd.f32 %v1654, %v1808
        %v1819 = vadd.f32 %v1656, %v1810
        %1820 = vmatprep.subr.mxu0 0.0
        %1821 = vmatpush1.msra.mxu0 0.0
        %1822 = vmatprep.subr.mxu0 0.0
        %1823 = vmatpush1.msra.mxu0 0.0
        %1824 = vmatprep.subr.mxu0 0.0
        %1825 = vmatpush1.msra.mxu0 0.0
        %1826 = vmatprep.subr.mxu0 0.0
        %1827 = vmatpush1.msra.mxu0 0.0
        %1828 = vmatprep.subr.mxu0 0.0
        %1829 = vmatpush1.msra.mxu0 0.0
        %1830 = vmatprep.subr.mxu0 0.0
        %1831 = vmatpush1.msra.mxu0 0.0
        %1832 = vmatprep.subr.mxu0 0.0
        %1833 = vmatpush1.msra.mxu0 0.0
        %1834 = vmatprep.subr.mxu0 0.0
        %1835 = vmatpush1.msra.mxu0 0.0
        %1836 = vmatprep.subr.mxu0 0.0
        %1837 = vmatpush1.msra.mxu0 0.0
        %1838 = vmatprep.subr.mxu0 0.0
        %1839 = vmatpush1.msra.mxu0 0.0
        %1840 = vmatprep.subr.mxu0 0.0
        %1841 = vmatpush1.msra.mxu0 0.0
        %1842 = vmatprep.subr.mxu0 0.0
        %1843 = vmatpush1.msra.mxu0 0.0
        %1844 = vmatprep.subr.mxu0 %v945
        %1845 = vmatpush1.msra.mxu0 %v942
        %1846 = vmatprep.subr.mxu0 %v928
        %1847 = vmatpush1.msra.mxu0 %v927
        %1848 = vmatprep.subr.mxu0 %v924
        %1849 = vmatpush1.msra.mxu0 %v923
        %1850 = vmatprep.subr.mxu0 %v920
        %1851 = vmatpush1.msra.mxu0 %v919
        %1852 = vmatprep.subr.mxu0 0.0
        %1853 = vmatpush2.msra.mxu0 0.0
        %1854 = vmatprep.subr.mxu0 0.0
        %1855 = vmatpush2.msra.mxu0 0.0
        %1856 = vmatprep.subr.mxu0 0.0
        %1857 = vmatpush2.msra.mxu0 0.0
        %1858 = vmatprep.subr.mxu0 0.0
        %1859 = vmatpush2.msra.mxu0 0.0
        %1860 = vmatprep.subr.mxu0 0.0
        %1861 = vmatpush2.msra.mxu0 0.0
        %1862 = vmatprep.subr.mxu0 0.0
        %1863 = vmatpush2.msra.mxu0 0.0
        %1864 = vmatprep.subr.mxu0 0.0
        %1865 = vmatpush2.msra.mxu0 0.0
        %1866 = vmatprep.subr.mxu0 0.0
        %1867 = vmatpush2.msra.mxu0 0.0
        %1868 = vmatprep.subr.mxu0 0.0
        %1869 = vmatpush2.msra.mxu0 0.0
        %1870 = vmatprep.subr.mxu0 0.0
        %1871 = vmatpush2.msra.mxu0 0.0
        %1872 = vmatprep.subr.mxu0 0.0
        %1873 = vmatpush2.msra.mxu0 0.0
        %1874 = vmatprep.subr.mxu0 0.0
        %1875 = vmatpush2.msra.mxu0 0.0
        %1876 = vmatprep.subr.mxu0 0.0
        %1877 = vmatpush2.msra.mxu0 0.0
        %1878 = vmatprep.subr.mxu0 0.0
        %1879 = vmatpush2.msra.mxu0 0.0
        %1880 = vmatprep.subr.mxu0 0.0
        %1881 = vmatpush2.msra.mxu0 0.0
        %1882 = vmatprep.subr.mxu0 0.0
        %1883 = vmatpush2.msra.mxu0 0.0
        %1884 = vmatprep.mubr.f32.mxu0 0.0
        %1885 = vmatmul.mubr.f32.gmra.mxu0 %v1133
        %v1886 = vpop.f32.mrf.mxu0
        %v1887 = vadd.f32 0.0, %v1886
        %v1888 = vpop.f32.mrf.mxu0
        %v1889 = vadd.f32 0.0, %v1888
        %1890 = vmatprep.mubr.f32.mxu0 0.0
        %1891 = vmatmul.mubr.f32.gmra.mxu0 %v1136
        %v1892 = vpop.f32.mrf.mxu0
        %v1893 = vadd.f32 0.0, %v1892
        %v1894 = vpop.f32.mrf.mxu0
        %v1895 = vadd.f32 0.0, %v1894
        %1896 = vdwg.mxu0
        %1897 = vmatprep.subr.mxu0 0.0
        %1898 = vmatpush1.msra.mxu0 0.0
        %1899 = vmatprep.subr.mxu0 0.0
        %1900 = vmatpush1.msra.mxu0 0.0
        %1901 = vmatprep.subr.mxu0 0.0
        %1902 = vmatpush1.msra.mxu0 0.0
        %1903 = vmatprep.subr.mxu0 0.0
        %1904 = vmatpush1.msra.mxu0 0.0
        %1905 = vmatprep.subr.mxu0 0.0
        %1906 = vmatpush1.msra.mxu0 0.0
        %1907 = vmatprep.subr.mxu0 0.0
        %1908 = vmatpush1.msra.mxu0 0.0
        %1909 = vmatprep.subr.mxu0 0.0
        %1910 = vmatpush1.msra.mxu0 0.0
        %1911 = vmatprep.subr.mxu0 0.0
        %1912 = vmatpush1.msra.mxu0 0.0
        %1913 = vmatprep.subr.mxu0 0.0
        %1914 = vmatpush1.msra.mxu0 0.0
        %1915 = vmatprep.subr.mxu0 0.0
        %1916 = vmatpush1.msra.mxu0 0.0
        %1917 = vmatprep.subr.mxu0 0.0
        %1918 = vmatpush1.msra.mxu0 0.0
        %1919 = vmatprep.subr.mxu0 0.0
        %1920 = vmatpush1.msra.mxu0 0.0
        %1921 = vmatprep.subr.mxu0 %v951
        %1922 = vmatpush1.msra.mxu0 %v948
        %1923 = vmatprep.subr.mxu0 %v930
        %1924 = vmatpush1.msra.mxu0 %v929
        %1925 = vmatprep.subr.mxu0 %v926
        %1926 = vmatpush1.msra.mxu0 %v925
        %1927 = vmatprep.subr.mxu0 %v922
        %1928 = vmatpush1.msra.mxu0 %v921
        %1929 = vmatprep.subr.mxu0 0.0
        %1930 = vmatpush2.msra.mxu0 0.0
        %1931 = vmatprep.subr.mxu0 0.0
        %1932 = vmatpush2.msra.mxu0 0.0
        %1933 = vmatprep.subr.mxu0 0.0
        %1934 = vmatpush2.msra.mxu0 0.0
        %1935 = vmatprep.subr.mxu0 0.0
        %1936 = vmatpush2.msra.mxu0 0.0
        %1937 = vmatprep.subr.mxu0 0.0
        %1938 = vmatpush2.msra.mxu0 0.0
        %1939 = vmatprep.subr.mxu0 0.0
        %1940 = vmatpush2.msra.mxu0 0.0
        %1941 = vmatprep.subr.mxu0 0.0
        %1942 = vmatpush2.msra.mxu0 0.0
        %1943 = vmatprep.subr.mxu0 0.0
        %1944 = vmatpush2.msra.mxu0 0.0
        %1945 = vmatprep.subr.mxu0 0.0
        %1946 = vmatpush2.msra.mxu0 0.0
        %1947 = vmatprep.subr.mxu0 0.0
        %1948 = vmatpush2.msra.mxu0 0.0
        %1949 = vmatprep.subr.mxu0 0.0
        %1950 = vmatpush2.msra.mxu0 0.0
        %1951 = vmatprep.subr.mxu0 0.0
        %1952 = vmatpush2.msra.mxu0 0.0
        %1953 = vmatprep.subr.mxu0 0.0
        %1954 = vmatpush2.msra.mxu0 0.0
        %1955 = vmatprep.subr.mxu0 0.0
        %1956 = vmatpush2.msra.mxu0 0.0
        %1957 = vmatprep.subr.mxu0 0.0
        %1958 = vmatpush2.msra.mxu0 0.0
        %1959 = vmatprep.subr.mxu0 0.0
        %1960 = vmatpush2.msra.mxu0 0.0
        %1961 = vmatprep.mubr.f32.mxu0 0.0
        %1962 = vmatmul.mubr.f32.gmra.mxu0 %v1133
        %v1963 = vpop.f32.mrf.mxu0
        %v1964 = vadd.f32 0.0, %v1963
        %v1965 = vpop.f32.mrf.mxu0
        %v1966 = vadd.f32 0.0, %v1965
        %1967 = vmatprep.mubr.f32.mxu0 0.0
        %1968 = vmatmul.mubr.f32.gmra.mxu0 %v1136
        %v1969 = vpop.f32.mrf.mxu0
        %v1970 = vadd.f32 0.0, %v1969
        %v1971 = vpop.f32.mrf.mxu0
        %v1972 = vadd.f32 0.0, %v1971
        %1973 = vdwg.mxu0
        %v1974 = vadd.f32 %v1812, %v1887
        %v1975 = vadd.f32 %v1813, %v1889
        %v1976 = vadd.f32 %v1814, %v1964
        %v1977 = vadd.f32 %v1815, %v1966
        %v1978 = vadd.f32 %v1816, %v1893
        %v1979 = vadd.f32 %v1817, %v1895
        %v1980 = vadd.f32 %v1818, %v1970
        %v1981 = vadd.f32 %v1819, %v1972
        %v1983 = vsel %vm375, %v340, 0
        %v1986 = vsel %vm375, %v341, 0
        %1988 = vmatprep.subr.mxu0 0.0
        %1989 = vmatpush1.msra.mxu0 0.0
        %1990 = vmatprep.subr.mxu0 0.0
        %1991 = vmatpush1.msra.mxu0 0.0
        %1992 = vmatprep.subr.mxu0 0.0
        %1993 = vmatpush1.msra.mxu0 0.0
        %1994 = vmatprep.subr.mxu0 0.0
        %1995 = vmatpush1.msra.mxu0 0.0
        %1996 = vmatprep.subr.mxu0 0.0
        %1997 = vmatpush1.msra.mxu0 0.0
        %1998 = vmatprep.subr.mxu0 0.0
        %1999 = vmatpush1.msra.mxu0 0.0
        %2000 = vmatprep.subr.mxu0 0.0
        %2001 = vmatpush1.msra.mxu0 0.0
        %2002 = vmatprep.subr.mxu0 0.0
        %2003 = vmatpush1.msra.mxu0 0.0
        %2004 = vmatprep.subr.mxu0 0.0
        %2005 = vmatpush1.msra.mxu0 0.0
        %2006 = vmatprep.subr.mxu0 0.0
        %2007 = vmatpush1.msra.mxu0 0.0
        %2008 = vmatprep.subr.mxu0 0.0
        %2009 = vmatpush1.msra.mxu0 0.0
        %2010 = vmatprep.subr.mxu0 0.0
        %2011 = vmatpush1.msra.mxu0 0.0
        %2012 = vmatprep.subr.mxu0 %v1142
        %2013 = vmatpush1.msra.mxu0 %v1139
        %2014 = vmatprep.subr.mxu0 %v1125
        %2015 = vmatpush1.msra.mxu0 %v1124
        %2016 = vmatprep.subr.mxu0 %v1121
        %2017 = vmatpush1.msra.mxu0 %v1120
        %2018 = vmatprep.subr.mxu0 %v1117
        %2019 = vmatpush1.msra.mxu0 %v1116
        %2020 = vmatprep.subr.mxu0 0.0
        %2021 = vmatpush2.msra.mxu0 0.0
        %2022 = vmatprep.subr.mxu0 0.0
        %2023 = vmatpush2.msra.mxu0 0.0
        %2024 = vmatprep.subr.mxu0 0.0
        %2025 = vmatpush2.msra.mxu0 0.0
        %2026 = vmatprep.subr.mxu0 0.0
        %2027 = vmatpush2.msra.mxu0 0.0
        %2028 = vmatprep.subr.mxu0 0.0
        %2029 = vmatpush2.msra.mxu0 0.0
        %2030 = vmatprep.subr.mxu0 0.0
        %2031 = vmatpush2.msra.mxu0 0.0
        %2032 = vmatprep.subr.mxu0 0.0
        %2033 = vmatpush2.msra.mxu0 0.0
        %2034 = vmatprep.subr.mxu0 0.0
        %2035 = vmatpush2.msra.mxu0 0.0
        %2036 = vmatprep.subr.mxu0 0.0
        %2037 = vmatpush2.msra.mxu0 0.0
        %2038 = vmatprep.subr.mxu0 0.0
        %2039 = vmatpush2.msra.mxu0 0.0
        %2040 = vmatprep.subr.mxu0 0.0
        %2041 = vmatpush2.msra.mxu0 0.0
        %2042 = vmatprep.subr.mxu0 0.0
        %2043 = vmatpush2.msra.mxu0 0.0
        %2044 = vmatprep.subr.mxu0 0.0
        %2045 = vmatpush2.msra.mxu0 0.0
        %2046 = vmatprep.subr.mxu0 0.0
        %2047 = vmatpush2.msra.mxu0 0.0
        %2048 = vmatprep.subr.mxu0 0.0
        %2049 = vmatpush2.msra.mxu0 0.0
        %2050 = vmatprep.subr.mxu0 0.0
        %2051 = vmatpush2.msra.mxu0 0.0
        %2052 = vmatprep.mubr.f32.mxu0 0.0
        %2053 = vmatmul.mubr.f32.gmra.mxu0 %v1983
        %v2054 = vpop.f32.mrf.mxu0
        %v2055 = vadd.f32 0.0, %v2054
        %v2056 = vpop.f32.mrf.mxu0
        %v2057 = vadd.f32 0.0, %v2056
        %2058 = vmatprep.mubr.f32.mxu0 0.0
        %2059 = vmatmul.mubr.f32.gmra.mxu0 %v1986
        %v2060 = vpop.f32.mrf.mxu0
        %v2061 = vadd.f32 0.0, %v2060
        %v2062 = vpop.f32.mrf.mxu0
        %v2063 = vadd.f32 0.0, %v2062
        %2064 = vdwg.mxu0
        %2065 = vmatprep.subr.mxu0 0.0
        %2066 = vmatpush1.msra.mxu0 0.0
        %2067 = vmatprep.subr.mxu0 0.0
        %2068 = vmatpush1.msra.mxu0 0.0
        %2069 = vmatprep.subr.mxu0 0.0
        %2070 = vmatpush1.msra.mxu0 0.0
        %2071 = vmatprep.subr.mxu0 0.0
        %2072 = vmatpush1.msra.mxu0 0.0
        %2073 = vmatprep.subr.mxu0 0.0
        %2074 = vmatpush1.msra.mxu0 0.0
        %2075 = vmatprep.subr.mxu0 0.0
        %2076 = vmatpush1.msra.mxu0 0.0
        %2077 = vmatprep.subr.mxu0 0.0
        %2078 = vmatpush1.msra.mxu0 0.0
        %2079 = vmatprep.subr.mxu0 0.0
        %2080 = vmatpush1.msra.mxu0 0.0
        %2081 = vmatprep.subr.mxu0 0.0
        %2082 = vmatpush1.msra.mxu0 0.0
        %2083 = vmatprep.subr.mxu0 0.0
        %2084 = vmatpush1.msra.mxu0 0.0
        %2085 = vmatprep.subr.mxu0 0.0
        %2086 = vmatpush1.msra.mxu0 0.0
        %2087 = vmatprep.subr.mxu0 0.0
        %2088 = vmatpush1.msra.mxu0 0.0
        %2089 = vmatprep.subr.mxu0 %v1148
        %2090 = vmatpush1.msra.mxu0 %v1145
        %2091 = vmatprep.subr.mxu0 %v1127
        %2092 = vmatpush1.msra.mxu0 %v1126
        %2093 = vmatprep.subr.mxu0 %v1123
        %2094 = vmatpush1.msra.mxu0 %v1122
        %2095 = vmatprep.subr.mxu0 %v1119
        %2096 = vmatpush1.msra.mxu0 %v1118
        %2097 = vmatprep.subr.mxu0 0.0
        %2098 = vmatpush2.msra.mxu0 0.0
        %2099 = vmatprep.subr.mxu0 0.0
        %2100 = vmatpush2.msra.mxu0 0.0
        %2101 = vmatprep.subr.mxu0 0.0
        %2102 = vmatpush2.msra.mxu0 0.0
        %2103 = vmatprep.subr.mxu0 0.0
        %2104 = vmatpush2.msra.mxu0 0.0
        %2105 = vmatprep.subr.mxu0 0.0
        %2106 = vmatpush2.msra.mxu0 0.0
        %2107 = vmatprep.subr.mxu0 0.0
        %2108 = vmatpush2.msra.mxu0 0.0
        %2109 = vmatprep.subr.mxu0 0.0
        %2110 = vmatpush2.msra.mxu0 0.0
        %2111 = vmatprep.subr.mxu0 0.0
        %2112 = vmatpush2.msra.mxu0 0.0
        %2113 = vmatprep.subr.mxu0 0.0
        %2114 = vmatpush2.msra.mxu0 0.0
        %2115 = vmatprep.subr.mxu0 0.0
        %2116 = vmatpush2.msra.mxu0 0.0
        %2117 = vmatprep.subr.mxu0 0.0
        %2118 = vmatpush2.msra.mxu0 0.0
        %2119 = vmatprep.subr.mxu0 0.0
        %2120 = vmatpush2.msra.mxu0 0.0
        %2121 = vmatprep.subr.mxu0 0.0
        %2122 = vmatpush2.msra.mxu0 0.0
        %2123 = vmatprep.subr.mxu0 0.0
        %2124 = vmatpush2.msra.mxu0 0.0
        %2125 = vmatprep.subr.mxu0 0.0
        %2126 = vmatpush2.msra.mxu0 0.0
        %2127 = vmatprep.subr.mxu0 0.0
        %2128 = vmatpush2.msra.mxu0 0.0
        %2129 = vmatprep.mubr.f32.mxu0 0.0
        %2130 = vmatmul.mubr.f32.gmra.mxu0 %v1983
        %v2131 = vpop.f32.mrf.mxu0
        %v2132 = vadd.f32 0.0, %v2131
        %v2133 = vpop.f32.mrf.mxu0
        %v2134 = vadd.f32 0.0, %v2133
        %2135 = vmatprep.mubr.f32.mxu0 0.0
        %2136 = vmatmul.mubr.f32.gmra.mxu0 %v1986
        %v2137 = vpop.f32.mrf.mxu0
        %v2138 = vadd.f32 0.0, %v2137
        %v2139 = vpop.f32.mrf.mxu0
        %v2140 = vadd.f32 0.0, %v2139
        %2141 = vdwg.mxu0
        %v2142 = vadd.f32 %v1974, %v2055
        %v2143 = vadd.f32 %v1975, %v2057
        %v2144 = vadd.f32 %v1976, %v2132
        %v2145 = vadd.f32 %v1977, %v2134
        %v2146 = vadd.f32 %v1978, %v2061
        %v2147 = vadd.f32 %v1979, %v2063
        %v2148 = vadd.f32 %v1980, %v2138
        %v2149 = vadd.f32 %v1981, %v2140
        %v2150 = vadd.f32 %v2142, %v1317
        %v2151 = vadd.f32 %v2143, %v1321
        %v2152 = vadd.f32 %v2144, %v1325
        %v2153 = vadd.f32 %v2145, %v1329
        %v2154 = vadd.f32 %v2146, %v1317
        %v2155 = vadd.f32 %v2147, %v1321
        %v2156 = vadd.f32 %v2148, %v1325
        %v2157 = vadd.f32 %v2149, %v1329
        %v2158 = vmax.f32 %v2150, 0.0
        %v2159 = vmax.f32 %v2151, 0.0
        %v2160 = vmax.f32 %v2152, 0.0
        %v2161 = vmax.f32 %v2153, 0.0
        %v2162 = vmax.f32 %v2154, 0.0
        %v2163 = vmax.f32 %v2155, 0.0
        %v2164 = vmax.f32 %v2156, 0.0
        %v2165 = vmax.f32 %v2157, 0.0
        %v2166 = vadd.f32 %v1342, %v1344
        %v2167 = vadd.f32 %v1343, %v1345
        %v2168 = vadd.f32 %v1346, %v1348
        %v2169 = vadd.f32 %v1347, %v1349
        %v2170 = vadd.f32 %v2166, %v2158
        %v2171 = vadd.f32 %v2167, %v2159
        %v2172 = vadd.f32 %v2168, %v2162
        %v2173 = vadd.f32 %v2169, %v2163
        %v2174 = vadd.f32 %v2170, %v2160
        %v2175 = vadd.f32 %v2171, %v2161
        %v2176 = vadd.f32 %v2172, %v2164
        %v2177 = vadd.f32 %v2173, %v2165
        %v2178 = vmul.f32 %v2174, 0.25
        %v2179 = vmul.f32 %v2175, 0.25
        %v2180 = vmul.f32 %v2176, 0.25
        %v2181 = vmul.f32 %v2177, 0.25
        %v2182 = vld [vmem:[%s3] sm:$0xff]
        %v2183 = vld [vmem:[%s3 + $0x8] sm:$0xff]
        %v2184 = vld [vmem:[%s3 + $0x10] sm:$0xff]
        %v2185 = vld [vmem:[%s3 + $0x18] sm:$0xff]
        %v2186 = vld [vmem:[%s3 + $0x20] sm:$0xff]
        %v2187 = vld [vmem:[%s3 + $0x28] sm:$0xff]
        %v2188 = vld [vmem:[%s3 + $0x30] sm:$0xff]
        %v2189 = vld [vmem:[%s3 + $0x38] sm:$0xff]
        %v2190 = vld [vmem:[%s3 + $0x40] sm:$0xff]
        %v2191 = vld [vmem:[%s3 + $0x48] sm:$0xff]
        %v2192 = vld [vmem:[%s3 + $0x50] sm:$0xff]
        %v2193 = vld [vmem:[%s3 + $0x58] sm:$0xff]
        %v2194 = vld [vmem:[%s3 + $0x60] sm:$0xff]
        %v2195 = vld [vmem:[%s3 + $0x68] sm:$0xff]
        %v2196 = vld [vmem:[%s3 + $0x70] sm:$0xff]
        %v2197 = vld [vmem:[%s3 + $0x78] sm:$0xff]
        %v2198 = vld [vmem:[%s3 + $0x80] sm:$0xff]
        %v2199 = vld [vmem:[%s3 + $0x88] sm:$0xff]
        %v2200 = vld [vmem:[%s3 + $0x90] sm:$0xff]
        %v2201 = vld [vmem:[%s3 + $0x98] sm:$0xff]
        %v2202 = vld [vmem:[%s3 + $0xa0] sm:$0xff]
        %v2203 = vld [vmem:[%s3 + $0xa8] sm:$0xff]
        %v2204 = vld [vmem:[%s3 + $0xb0] sm:$0xff]
        %v2205 = vld [vmem:[%s3 + $0xb8] sm:$0xff]
        %v2206 = vld [vmem:[%s3 + $0xc0] sm:$0xff]
        %v2207 = vld [vmem:[%s3 + $0xc8] sm:$0xff]
        %v2208 = vld [vmem:[%s3 + $0xd0] sm:$0xff]
        %v2209 = vld [vmem:[%s3 + $0xd8] sm:$0xff]
        %v2210 = vld [vmem:[%s3 + $0xe0] sm:$0xff]
        %v2211 = vld [vmem:[%s3 + $0xe8] sm:$0xff]
        %v2212 = vld [vmem:[%s3 + $0xf0] sm:$0xff]
        %v2213 = vld [vmem:[%s3 + $0xf8] sm:$0xff]
        %v2214 = vld [vmem:[%s3 + $0x100] sm:$0xff]
        %v2215 = vld [vmem:[%s3 + $0x108] sm:$0xff]
        %v2216 = vld [vmem:[%s3 + $0x110] sm:$0xff]
        %v2217 = vld [vmem:[%s3 + $0x118] sm:$0xff]
        %v2218 = vld [vmem:[%s3 + $0x120] sm:$0xff]
        %v2219 = vld [vmem:[%s3 + $0x128] sm:$0xff]
        %v2220 = vld [vmem:[%s3 + $0x130] sm:$0xff]
        %v2221 = vld [vmem:[%s3 + $0x138] sm:$0xff]
        %v2222 = vld [vmem:[%s3 + $0x140] sm:$0xff]
        %v2223 = vld [vmem:[%s3 + $0x148] sm:$0xff]
        %v2224 = vld [vmem:[%s3 + $0x150] sm:$0xff]
        %v2225 = vld [vmem:[%s3 + $0x158] sm:$0xff]
        %v2226 = vld [vmem:[%s3 + $0x160] sm:$0xff]
        %v2227 = vld [vmem:[%s3 + $0x168] sm:$0xff]
        %v2228 = vld [vmem:[%s3 + $0x170] sm:$0xff]
        %v2229 = vld [vmem:[%s3 + $0x178] sm:$0xff]
        %v2230 = vld [vmem:[%s3 + $0x180] sm:$0xff]
        %v2231 = vld [vmem:[%s3 + $0x188] sm:$0xff]
        %v2232 = vld [vmem:[%s3 + $0x190] sm:$0xff]
        %v2233 = vld [vmem:[%s3 + $0x198] sm:$0xff]
        %v2234 = vld [vmem:[%s3 + $0x1a0] sm:$0xff]
        %v2235 = vld [vmem:[%s3 + $0x1a8] sm:$0xff]
        %v2236 = vld [vmem:[%s3 + $0x1b0] sm:$0xff]
        %v2237 = vld [vmem:[%s3 + $0x1b8] sm:$0xff]
        %v2238 = vld [vmem:[%s3 + $0x1c0] sm:$0xff]
        %v2239 = vld [vmem:[%s3 + $0x1c8] sm:$0xff]
        %v2240 = vld [vmem:[%s3 + $0x1d0] sm:$0xff]
        %v2241 = vld [vmem:[%s3 + $0x1d8] sm:$0xff]
        %v2242 = vld [vmem:[%s3 + $0x1e0] sm:$0xff]
        %v2243 = vld [vmem:[%s3 + $0x1e8] sm:$0xff]
        %v2244 = vld [vmem:[%s3 + $0x1f0] sm:$0xff]
        %v2245 = vld [vmem:[%s3 + $0x1f8] sm:$0xff]
        %v2246 = vld [vmem:[%s3 + $0x200] sm:$0xff]
        %v2247 = vld [vmem:[%s3 + $0x208] sm:$0xff]
        %v2248 = vld [vmem:[%s3 + $0x210] sm:$0xff]
        %v2249 = vld [vmem:[%s3 + $0x218] sm:$0xff]
        %v2250 = vld [vmem:[%s3 + $0x220] sm:$0xff]
        %v2251 = vld [vmem:[%s3 + $0x228] sm:$0xff]
        %v2252 = vld [vmem:[%s3 + $0x230] sm:$0xff]
        %v2253 = vld [vmem:[%s3 + $0x238] sm:$0xff]
        %v2254 = vld [vmem:[%s3 + $0x240] sm:$0xff]
        %v2255 = vld [vmem:[%s3 + $0x248] sm:$0xff]
        %v2256 = vld [vmem:[%s3 + $0x250] sm:$0xff]
        %v2257 = vld [vmem:[%s3 + $0x258] sm:$0xff]
        %v2258 = vld [vmem:[%s3 + $0x260] sm:$0xff]
        %v2259 = vld [vmem:[%s3 + $0x268] sm:$0xff]
        %v2260 = vld [vmem:[%s3 + $0x270] sm:$0xff]
        %v2261 = vld [vmem:[%s3 + $0x278] sm:$0xff]
        %v2262 = vld [vmem:[%s3 + $0x280] sm:$0xff]
        %v2263 = vld [vmem:[%s3 + $0x288] sm:$0xff]
        %v2264 = vld [vmem:[%s3 + $0x290] sm:$0xff]
        %v2265 = vld [vmem:[%s3 + $0x298] sm:$0xff]
        %v2266 = vld [vmem:[%s3 + $0x2a0] sm:$0xff]
        %v2267 = vld [vmem:[%s3 + $0x2a8] sm:$0xff]
        %v2268 = vld [vmem:[%s3 + $0x2b0] sm:$0xff]
        %v2269 = vld [vmem:[%s3 + $0x2b8] sm:$0xff]
        %v2270 = vld [vmem:[%s3 + $0x2c0] sm:$0xff]
        %v2271 = vld [vmem:[%s3 + $0x2c8] sm:$0xff]
        %v2272 = vld [vmem:[%s3 + $0x2d0] sm:$0xff]
        %v2273 = vld [vmem:[%s3 + $0x2d8] sm:$0xff]
        %v2274 = vld [vmem:[%s3 + $0x2e0] sm:$0xff]
        %v2275 = vld [vmem:[%s3 + $0x2e8] sm:$0xff]
        %v2276 = vld [vmem:[%s3 + $0x2f0] sm:$0xff]
        %v2277 = vld [vmem:[%s3 + $0x2f8] sm:$0xff]
        %v2278 = vld [vmem:[%s3 + $0x300] sm:$0xff]
        %v2279 = vld [vmem:[%s3 + $0x308] sm:$0xff]
        %v2280 = vld [vmem:[%s3 + $0x310] sm:$0xff]
        %v2281 = vld [vmem:[%s3 + $0x318] sm:$0xff]
        %v2282 = vld [vmem:[%s3 + $0x320] sm:$0xff]
        %v2283 = vld [vmem:[%s3 + $0x328] sm:$0xff]
        %v2284 = vld [vmem:[%s3 + $0x330] sm:$0xff]
        %v2285 = vld [vmem:[%s3 + $0x338] sm:$0xff]
        %v2286 = vld [vmem:[%s3 + $0x340] sm:$0xff]
        %v2287 = vld [vmem:[%s3 + $0x348] sm:$0xff]
        %v2288 = vld [vmem:[%s3 + $0x350] sm:$0xff]
        %v2289 = vld [vmem:[%s3 + $0x358] sm:$0xff]
        %v2290 = vld [vmem:[%s3 + $0x360] sm:$0xff]
        %v2291 = vld [vmem:[%s3 + $0x368] sm:$0xff]
        %v2292 = vld [vmem:[%s3 + $0x370] sm:$0xff]
        %v2293 = vld [vmem:[%s3 + $0x378] sm:$0xff]
        %v2294 = vld [vmem:[%s3 + $0x380] sm:$0xff]
        %v2295 = vld [vmem:[%s3 + $0x388] sm:$0xff]
        %v2296 = vld [vmem:[%s3 + $0x390] sm:$0xff]
        %v2297 = vld [vmem:[%s3 + $0x398] sm:$0xff]
        %v2298 = vld [vmem:[%s3 + $0x3a0] sm:$0xff]
        %v2299 = vld [vmem:[%s3 + $0x3a8] sm:$0xff]
        %v2300 = vld [vmem:[%s3 + $0x3b0] sm:$0xff]
        %v2301 = vld [vmem:[%s3 + $0x3b8] sm:$0xff]
        %v2302 = vld [vmem:[%s3 + $0x3c0] sm:$0xff]
        %v2303 = vld [vmem:[%s3 + $0x3c8] sm:$0xff]
        %v2304 = vld [vmem:[%s3 + $0x3d0] sm:$0xff]
        %v2305 = vld [vmem:[%s3 + $0x3d8] sm:$0xff]
        %v2306 = vld [vmem:[%s3 + $0x3e0] sm:$0xff]
        %v2307 = vld [vmem:[%s3 + $0x3e8] sm:$0xff]
        %v2308 = vld [vmem:[%s3 + $0x3f0] sm:$0xff]
        %v2309 = vld [vmem:[%s3 + $0x3f8] sm:$0xff]
        %s2310 = scalar_lea.vmem %s3, 1024
        %v2311 = vld [vmem:[%s2310] sm:$0xff]
        %v2312 = vld [vmem:[%s2310 + $0x8] sm:$0xff]
        %v2313 = vld [vmem:[%s2310 + $0x10] sm:$0xff]
        %v2314 = vld [vmem:[%s2310 + $0x18] sm:$0xff]
        %v2315 = vld [vmem:[%s2310 + $0x20] sm:$0xff]
        %v2316 = vld [vmem:[%s2310 + $0x28] sm:$0xff]
        %v2317 = vld [vmem:[%s2310 + $0x30] sm:$0xff]
        %v2318 = vld [vmem:[%s2310 + $0x38] sm:$0xff]
        %v2319 = vld [vmem:[%s2310 + $0x40] sm:$0xff]
        %v2320 = vld [vmem:[%s2310 + $0x48] sm:$0xff]
        %v2321 = vld [vmem:[%s2310 + $0x50] sm:$0xff]
        %v2322 = vld [vmem:[%s2310 + $0x58] sm:$0xff]
        %v2323 = vld [vmem:[%s2310 + $0x60] sm:$0xff]
        %v2324 = vld [vmem:[%s2310 + $0x68] sm:$0xff]
        %v2325 = vld [vmem:[%s2310 + $0x70] sm:$0xff]
        %v2326 = vld [vmem:[%s2310 + $0x78] sm:$0xff]
        %v2327 = vld [vmem:[%s2310 + $0x80] sm:$0xff]
        %v2328 = vld [vmem:[%s2310 + $0x88] sm:$0xff]
        %v2329 = vld [vmem:[%s2310 + $0x90] sm:$0xff]
        %v2330 = vld [vmem:[%s2310 + $0x98] sm:$0xff]
        %v2331 = vld [vmem:[%s2310 + $0xa0] sm:$0xff]
        %v2332 = vld [vmem:[%s2310 + $0xa8] sm:$0xff]
        %v2333 = vld [vmem:[%s2310 + $0xb0] sm:$0xff]
        %v2334 = vld [vmem:[%s2310 + $0xb8] sm:$0xff]
        %v2335 = vld [vmem:[%s2310 + $0xc0] sm:$0xff]
        %v2336 = vld [vmem:[%s2310 + $0xc8] sm:$0xff]
        %v2337 = vld [vmem:[%s2310 + $0xd0] sm:$0xff]
        %v2338 = vld [vmem:[%s2310 + $0xd8] sm:$0xff]
        %v2339 = vld [vmem:[%s2310 + $0xe0] sm:$0xff]
        %v2340 = vld [vmem:[%s2310 + $0xe8] sm:$0xff]
        %v2341 = vld [vmem:[%s2310 + $0xf0] sm:$0xff]
        %v2342 = vld [vmem:[%s2310 + $0xf8] sm:$0xff]
        %v2343 = vld [vmem:[%s2310 + $0x100] sm:$0xff]
        %v2344 = vld [vmem:[%s2310 + $0x108] sm:$0xff]
        %v2345 = vld [vmem:[%s2310 + $0x110] sm:$0xff]
        %v2346 = vld [vmem:[%s2310 + $0x118] sm:$0xff]
        %v2347 = vld [vmem:[%s2310 + $0x120] sm:$0xff]
        %v2348 = vld [vmem:[%s2310 + $0x128] sm:$0xff]
        %v2349 = vld [vmem:[%s2310 + $0x130] sm:$0xff]
        %v2350 = vld [vmem:[%s2310 + $0x138] sm:$0xff]
        %v2351 = vld [vmem:[%s2310 + $0x140] sm:$0xff]
        %v2352 = vld [vmem:[%s2310 + $0x148] sm:$0xff]
        %v2353 = vld [vmem:[%s2310 + $0x150] sm:$0xff]
        %v2354 = vld [vmem:[%s2310 + $0x158] sm:$0xff]
        %v2355 = vld [vmem:[%s2310 + $0x160] sm:$0xff]
        %v2356 = vld [vmem:[%s2310 + $0x168] sm:$0xff]
        %v2357 = vld [vmem:[%s2310 + $0x170] sm:$0xff]
        %v2358 = vld [vmem:[%s2310 + $0x178] sm:$0xff]
        %v2359 = vld [vmem:[%s2310 + $0x180] sm:$0xff]
        %v2360 = vld [vmem:[%s2310 + $0x188] sm:$0xff]
        %v2361 = vld [vmem:[%s2310 + $0x190] sm:$0xff]
        %v2362 = vld [vmem:[%s2310 + $0x198] sm:$0xff]
        %v2363 = vld [vmem:[%s2310 + $0x1a0] sm:$0xff]
        %v2364 = vld [vmem:[%s2310 + $0x1a8] sm:$0xff]
        %v2365 = vld [vmem:[%s2310 + $0x1b0] sm:$0xff]
        %v2366 = vld [vmem:[%s2310 + $0x1b8] sm:$0xff]
        %v2367 = vld [vmem:[%s2310 + $0x1c0] sm:$0xff]
        %v2368 = vld [vmem:[%s2310 + $0x1c8] sm:$0xff]
        %v2369 = vld [vmem:[%s2310 + $0x1d0] sm:$0xff]
        %v2370 = vld [vmem:[%s2310 + $0x1d8] sm:$0xff]
        %v2371 = vld [vmem:[%s2310 + $0x1e0] sm:$0xff]
        %v2372 = vld [vmem:[%s2310 + $0x1e8] sm:$0xff]
        %v2373 = vld [vmem:[%s2310 + $0x1f0] sm:$0xff]
        %v2374 = vld [vmem:[%s2310 + $0x1f8] sm:$0xff]
        %v2375 = vld [vmem:[%s2310 + $0x200] sm:$0xff]
        %v2376 = vld [vmem:[%s2310 + $0x208] sm:$0xff]
        %v2377 = vld [vmem:[%s2310 + $0x210] sm:$0xff]
        %v2378 = vld [vmem:[%s2310 + $0x218] sm:$0xff]
        %v2379 = vld [vmem:[%s2310 + $0x220] sm:$0xff]
        %v2380 = vld [vmem:[%s2310 + $0x228] sm:$0xff]
        %v2381 = vld [vmem:[%s2310 + $0x230] sm:$0xff]
        %v2382 = vld [vmem:[%s2310 + $0x238] sm:$0xff]
        %v2383 = vld [vmem:[%s2310 + $0x240] sm:$0xff]
        %v2384 = vld [vmem:[%s2310 + $0x248] sm:$0xff]
        %v2385 = vld [vmem:[%s2310 + $0x250] sm:$0xff]
        %v2386 = vld [vmem:[%s2310 + $0x258] sm:$0xff]
        %v2387 = vld [vmem:[%s2310 + $0x260] sm:$0xff]
        %v2388 = vld [vmem:[%s2310 + $0x268] sm:$0xff]
        %v2389 = vld [vmem:[%s2310 + $0x270] sm:$0xff]
        %v2390 = vld [vmem:[%s2310 + $0x278] sm:$0xff]
        %v2391 = vld [vmem:[%s2310 + $0x280] sm:$0xff]
        %v2392 = vld [vmem:[%s2310 + $0x288] sm:$0xff]
        %v2393 = vld [vmem:[%s2310 + $0x290] sm:$0xff]
        %v2394 = vld [vmem:[%s2310 + $0x298] sm:$0xff]
        %v2395 = vld [vmem:[%s2310 + $0x2a0] sm:$0xff]
        %v2396 = vld [vmem:[%s2310 + $0x2a8] sm:$0xff]
        %v2397 = vld [vmem:[%s2310 + $0x2b0] sm:$0xff]
        %v2398 = vld [vmem:[%s2310 + $0x2b8] sm:$0xff]
        %v2399 = vld [vmem:[%s2310 + $0x2c0] sm:$0xff]
        %v2400 = vld [vmem:[%s2310 + $0x2c8] sm:$0xff]
        %v2401 = vld [vmem:[%s2310 + $0x2d0] sm:$0xff]
        %v2402 = vld [vmem:[%s2310 + $0x2d8] sm:$0xff]
        %v2403 = vld [vmem:[%s2310 + $0x2e0] sm:$0xff]
        %v2404 = vld [vmem:[%s2310 + $0x2e8] sm:$0xff]
        %v2405 = vld [vmem:[%s2310 + $0x2f0] sm:$0xff]
        %v2406 = vld [vmem:[%s2310 + $0x2f8] sm:$0xff]
        %v2407 = vld [vmem:[%s2310 + $0x300] sm:$0xff]
        %v2408 = vld [vmem:[%s2310 + $0x308] sm:$0xff]
        %v2409 = vld [vmem:[%s2310 + $0x310] sm:$0xff]
        %v2410 = vld [vmem:[%s2310 + $0x318] sm:$0xff]
        %v2411 = vld [vmem:[%s2310 + $0x320] sm:$0xff]
        %v2412 = vld [vmem:[%s2310 + $0x328] sm:$0xff]
        %v2413 = vld [vmem:[%s2310 + $0x330] sm:$0xff]
        %v2414 = vld [vmem:[%s2310 + $0x338] sm:$0xff]
        %v2415 = vld [vmem:[%s2310 + $0x340] sm:$0xff]
        %v2416 = vld [vmem:[%s2310 + $0x348] sm:$0xff]
        %v2417 = vld [vmem:[%s2310 + $0x350] sm:$0xff]
        %v2418 = vld [vmem:[%s2310 + $0x358] sm:$0xff]
        %v2419 = vld [vmem:[%s2310 + $0x360] sm:$0xff]
        %v2420 = vld [vmem:[%s2310 + $0x368] sm:$0xff]
        %v2421 = vld [vmem:[%s2310 + $0x370] sm:$0xff]
        %v2422 = vld [vmem:[%s2310 + $0x378] sm:$0xff]
        %v2423 = vld [vmem:[%s2310 + $0x380] sm:$0xff]
        %v2424 = vld [vmem:[%s2310 + $0x388] sm:$0xff]
        %v2425 = vld [vmem:[%s2310 + $0x390] sm:$0xff]
        %v2426 = vld [vmem:[%s2310 + $0x398] sm:$0xff]
        %v2427 = vld [vmem:[%s2310 + $0x3a0] sm:$0xff]
        %v2428 = vld [vmem:[%s2310 + $0x3a8] sm:$0xff]
        %v2429 = vld [vmem:[%s2310 + $0x3b0] sm:$0xff]
        %v2430 = vld [vmem:[%s2310 + $0x3b8] sm:$0xff]
        %v2431 = vld [vmem:[%s2310 + $0x3c0] sm:$0xff]
        %v2432 = vld [vmem:[%s2310 + $0x3c8] sm:$0xff]
        %v2433 = vld [vmem:[%s2310 + $0x3d0] sm:$0xff]
        %v2434 = vld [vmem:[%s2310 + $0x3d8] sm:$0xff]
        %v2435 = vld [vmem:[%s2310 + $0x3e0] sm:$0xff]
        %v2436 = vld [vmem:[%s2310 + $0x3e8] sm:$0xff]
        %v2437 = vld [vmem:[%s2310 + $0x3f0] sm:$0xff]
        %v2438 = vld [vmem:[%s2310 + $0x3f8] sm:$0xff]
        %vm2443 = vcmask 1046528
        %v2444 = vrot.slane %v2178, 1
        %v2445 = vrot.slane %v2180, 1
        %v2446 = vsel %vm2443, %v2444, %v2445
        %v2447 = vrot.slane %v2179, 1
        %v2448 = vrot.slane %v2181, 1
        %v2449 = vsel %vm2443, %v2447, %v2448
        %2452 = vmatprep.subr.mxu0 %v2372
        %2453 = vmatpush1.msra.mxu0 %v2371
        %2454 = vmatprep.subr.mxu0 %v2368
        %2455 = vmatpush1.msra.mxu0 %v2367
        %2456 = vmatprep.subr.mxu0 %v2364
        %2457 = vmatpush1.msra.mxu0 %v2363
        %2458 = vmatprep.subr.mxu0 %v2360
        %2459 = vmatpush1.msra.mxu0 %v2359
        %2460 = vmatprep.subr.mxu0 %v2356
        %2461 = vmatpush1.msra.mxu0 %v2355
        %2462 = vmatprep.subr.mxu0 %v2352
        %2463 = vmatpush1.msra.mxu0 %v2351
        %2464 = vmatprep.subr.mxu0 %v2348
        %2465 = vmatpush1.msra.mxu0 %v2347
        %2466 = vmatprep.subr.mxu0 %v2344
        %2467 = vmatpush1.msra.mxu0 %v2343
        %2468 = vmatprep.subr.mxu0 %v2340
        %2469 = vmatpush1.msra.mxu0 %v2339
        %2470 = vmatprep.subr.mxu0 %v2336
        %2471 = vmatpush1.msra.mxu0 %v2335
        %2472 = vmatprep.subr.mxu0 %v2332
        %2473 = vmatpush1.msra.mxu0 %v2331
        %2474 = vmatprep.subr.mxu0 %v2328
        %2475 = vmatpush1.msra.mxu0 %v2327
        %2476 = vmatprep.subr.mxu0 %v2324
        %2477 = vmatpush1.msra.mxu0 %v2323
        %2478 = vmatprep.subr.mxu0 %v2320
        %2479 = vmatpush1.msra.mxu0 %v2319
        %2480 = vmatprep.subr.mxu0 %v2316
        %2481 = vmatpush1.msra.mxu0 %v2315
        %2482 = vmatprep.subr.mxu0 %v2312
        %2483 = vmatpush1.msra.mxu0 %v2311
        %2484 = vmatprep.subr.mxu0 %v2436
        %2485 = vmatpush2.msra.mxu0 %v2435
        %2486 = vmatprep.subr.mxu0 %v2432
        %2487 = vmatpush2.msra.mxu0 %v2431
        %2488 = vmatprep.subr.mxu0 %v2428
        %2489 = vmatpush2.msra.mxu0 %v2427
        %2490 = vmatprep.subr.mxu0 %v2424
        %2491 = vmatpush2.msra.mxu0 %v2423
        %2492 = vmatprep.subr.mxu0 %v2420
        %2493 = vmatpush2.msra.mxu0 %v2419
        %2494 = vmatprep.subr.mxu0 %v2416
        %2495 = vmatpush2.msra.mxu0 %v2415
        %2496 = vmatprep.subr.mxu0 %v2412
        %2497 = vmatpush2.msra.mxu0 %v2411
        %2498 = vmatprep.subr.mxu0 %v2408
        %2499 = vmatpush2.msra.mxu0 %v2407
        %2500 = vmatprep.subr.mxu0 %v2404
        %2501 = vmatpush2.msra.mxu0 %v2403
        %2502 = vmatprep.subr.mxu0 %v2400
        %2503 = vmatpush2.msra.mxu0 %v2399
        %2504 = vmatprep.subr.mxu0 %v2396
        %2505 = vmatpush2.msra.mxu0 %v2395
        %2506 = vmatprep.subr.mxu0 %v2392
        %2507 = vmatpush2.msra.mxu0 %v2391
        %2508 = vmatprep.subr.mxu0 %v2388
        %2509 = vmatpush2.msra.mxu0 %v2387
        %2510 = vmatprep.subr.mxu0 %v2384
        %2511 = vmatpush2.msra.mxu0 %v2383
        %2512 = vmatprep.subr.mxu0 %v2380
        %2513 = vmatpush2.msra.mxu0 %v2379
        %2514 = vmatprep.subr.mxu0 %v2376
        %2515 = vmatpush2.msra.mxu0 %v2375
        %2516 = vmatprep.mubr.f32.mxu0 %v2449
        %2517 = vmatmul.mubr.f32.gmra.mxu0 %v2446
        %v2518 = vpop.f32.mrf.mxu0
        %v2519 = vadd.f32 0.0, %v2518
        %v2520 = vpop.f32.mrf.mxu0
        %v2521 = vadd.f32 0.0, %v2520
        %2522 = vdwg.mxu0
        %2523 = vmatprep.subr.mxu0 %v2374
        %2524 = vmatpush1.msra.mxu0 %v2373
        %2525 = vmatprep.subr.mxu0 %v2370
        %2526 = vmatpush1.msra.mxu0 %v2369
        %2527 = vmatprep.subr.mxu0 %v2366
        %2528 = vmatpush1.msra.mxu0 %v2365
        %2529 = vmatprep.subr.mxu0 %v2362
        %2530 = vmatpush1.msra.mxu0 %v2361
        %2531 = vmatprep.subr.mxu0 %v2358
        %2532 = vmatpush1.msra.mxu0 %v2357
        %2533 = vmatprep.subr.mxu0 %v2354
        %2534 = vmatpush1.msra.mxu0 %v2353
        %2535 = vmatprep.subr.mxu0 %v2350
        %2536 = vmatpush1.msra.mxu0 %v2349
        %2537 = vmatprep.subr.mxu0 %v2346
        %2538 = vmatpush1.msra.mxu0 %v2345
        %2539 = vmatprep.subr.mxu0 %v2342
        %2540 = vmatpush1.msra.mxu0 %v2341
        %2541 = vmatprep.subr.mxu0 %v2338
        %2542 = vmatpush1.msra.mxu0 %v2337
        %2543 = vmatprep.subr.mxu0 %v2334
        %2544 = vmatpush1.msra.mxu0 %v2333
        %2545 = vmatprep.subr.mxu0 %v2330
        %2546 = vmatpush1.msra.mxu0 %v2329
        %2547 = vmatprep.subr.mxu0 %v2326
        %2548 = vmatpush1.msra.mxu0 %v2325
        %2549 = vmatprep.subr.mxu0 %v2322
        %2550 = vmatpush1.msra.mxu0 %v2321
        %2551 = vmatprep.subr.mxu0 %v2318
        %2552 = vmatpush1.msra.mxu0 %v2317
        %2553 = vmatprep.subr.mxu0 %v2314
        %2554 = vmatpush1.msra.mxu0 %v2313
        %2555 = vmatprep.subr.mxu0 %v2438
        %2556 = vmatpush2.msra.mxu0 %v2437
        %2557 = vmatprep.subr.mxu0 %v2434
        %2558 = vmatpush2.msra.mxu0 %v2433
        %2559 = vmatprep.subr.mxu0 %v2430
        %2560 = vmatpush2.msra.mxu0 %v2429
        %2561 = vmatprep.subr.mxu0 %v2426
        %2562 = vmatpush2.msra.mxu0 %v2425
        %2563 = vmatprep.subr.mxu0 %v2422
        %2564 = vmatpush2.msra.mxu0 %v2421
        %2565 = vmatprep.subr.mxu0 %v2418
        %2566 = vmatpush2.msra.mxu0 %v2417
        %2567 = vmatprep.subr.mxu0 %v2414
        %2568 = vmatpush2.msra.mxu0 %v2413
        %2569 = vmatprep.subr.mxu0 %v2410
        %2570 = vmatpush2.msra.mxu0 %v2409
        %2571 = vmatprep.subr.mxu0 %v2406
        %2572 = vmatpush2.msra.mxu0 %v2405
        %2573 = vmatprep.subr.mxu0 %v2402
        %2574 = vmatpush2.msra.mxu0 %v2401
        %2575 = vmatprep.subr.mxu0 %v2398
        %2576 = vmatpush2.msra.mxu0 %v2397
        %2577 = vmatprep.subr.mxu0 %v2394
        %2578 = vmatpush2.msra.mxu0 %v2393
        %2579 = vmatprep.subr.mxu0 %v2390
        %2580 = vmatpush2.msra.mxu0 %v2389
        %2581 = vmatprep.subr.mxu0 %v2386
        %2582 = vmatpush2.msra.mxu0 %v2385
        %2583 = vmatprep.subr.mxu0 %v2382
        %2584 = vmatpush2.msra.mxu0 %v2381
        %2585 = vmatprep.subr.mxu0 %v2378
        %2586 = vmatpush2.msra.mxu0 %v2377
        %2587 = vmatprep.mubr.f32.mxu0 %v2449
        %2588 = vmatmul.mubr.f32.gmra.mxu0 %v2446
        %v2589 = vpop.f32.mrf.mxu0
        %v2590 = vadd.f32 0.0, %v2589
        %v2591 = vpop.f32.mrf.mxu0
        %v2592 = vadd.f32 0.0, %v2591
        %2593 = vdwg.mxu0
        %2594 = vmatprep.subr.mxu0 %v2243
        %2595 = vmatpush1.msra.mxu0 %v2242
        %2596 = vmatprep.subr.mxu0 %v2239
        %2597 = vmatpush1.msra.mxu0 %v2238
        %2598 = vmatprep.subr.mxu0 %v2235
        %2599 = vmatpush1.msra.mxu0 %v2234
        %2600 = vmatprep.subr.mxu0 %v2231
        %2601 = vmatpush1.msra.mxu0 %v2230
        %2602 = vmatprep.subr.mxu0 %v2227
        %2603 = vmatpush1.msra.mxu0 %v2226
        %2604 = vmatprep.subr.mxu0 %v2223
        %2605 = vmatpush1.msra.mxu0 %v2222
        %2606 = vmatprep.subr.mxu0 %v2219
        %2607 = vmatpush1.msra.mxu0 %v2218
        %2608 = vmatprep.subr.mxu0 %v2215
        %2609 = vmatpush1.msra.mxu0 %v2214
        %2610 = vmatprep.subr.mxu0 %v2211
        %2611 = vmatpush1.msra.mxu0 %v2210
        %2612 = vmatprep.subr.mxu0 %v2207
        %2613 = vmatpush1.msra.mxu0 %v2206
        %2614 = vmatprep.subr.mxu0 %v2203
        %2615 = vmatpush1.msra.mxu0 %v2202
        %2616 = vmatprep.subr.mxu0 %v2199
        %2617 = vmatpush1.msra.mxu0 %v2198
        %2618 = vmatprep.subr.mxu0 %v2195
        %2619 = vmatpush1.msra.mxu0 %v2194
        %2620 = vmatprep.subr.mxu0 %v2191
        %2621 = vmatpush1.msra.mxu0 %v2190
        %2622 = vmatprep.subr.mxu0 %v2187
        %2623 = vmatpush1.msra.mxu0 %v2186
        %2624 = vmatprep.subr.mxu0 %v2183
        %2625 = vmatpush1.msra.mxu0 %v2182
        %2626 = vmatprep.subr.mxu0 %v2307
        %2627 = vmatpush2.msra.mxu0 %v2306
        %2628 = vmatprep.subr.mxu0 %v2303
        %2629 = vmatpush2.msra.mxu0 %v2302
        %2630 = vmatprep.subr.mxu0 %v2299
        %2631 = vmatpush2.msra.mxu0 %v2298
        %2632 = vmatprep.subr.mxu0 %v2295
        %2633 = vmatpush2.msra.mxu0 %v2294
        %2634 = vmatprep.subr.mxu0 %v2291
        %2635 = vmatpush2.msra.mxu0 %v2290
        %2636 = vmatprep.subr.mxu0 %v2287
        %2637 = vmatpush2.msra.mxu0 %v2286
        %2638 = vmatprep.subr.mxu0 %v2283
        %2639 = vmatpush2.msra.mxu0 %v2282
        %2640 = vmatprep.subr.mxu0 %v2279
        %2641 = vmatpush2.msra.mxu0 %v2278
        %2642 = vmatprep.subr.mxu0 %v2275
        %2643 = vmatpush2.msra.mxu0 %v2274
        %2644 = vmatprep.subr.mxu0 %v2271
        %2645 = vmatpush2.msra.mxu0 %v2270
        %2646 = vmatprep.subr.mxu0 %v2267
        %2647 = vmatpush2.msra.mxu0 %v2266
        %2648 = vmatprep.subr.mxu0 %v2263
        %2649 = vmatpush2.msra.mxu0 %v2262
        %2650 = vmatprep.subr.mxu0 %v2259
        %2651 = vmatpush2.msra.mxu0 %v2258
        %2652 = vmatprep.subr.mxu0 %v2255
        %2653 = vmatpush2.msra.mxu0 %v2254
        %2654 = vmatprep.subr.mxu0 %v2251
        %2655 = vmatpush2.msra.mxu0 %v2250
        %2656 = vmatprep.subr.mxu0 %v2247
        %2657 = vmatpush2.msra.mxu0 %v2246
        %2658 = vmatprep.mubr.f32.mxu0 %v2179
        %2659 = vmatmul.mubr.f32.gmra.mxu0 %v2178
        %v2660 = vpop.f32.mrf.mxu0
        %v2661 = vadd.f32 %v2519, %v2660
        %v2662 = vpop.f32.mrf.mxu0
        %v2663 = vadd.f32 %v2521, %v2662
        %2664 = vdwg.mxu0
        %2665 = vmatprep.subr.mxu0 %v2245
        %2666 = vmatpush1.msra.mxu0 %v2244
        %2667 = vmatprep.subr.mxu0 %v2241
        %2668 = vmatpush1.msra.mxu0 %v2240
        %2669 = vmatprep.subr.mxu0 %v2237
        %2670 = vmatpush1.msra.mxu0 %v2236
        %2671 = vmatprep.subr.mxu0 %v2233
        %2672 = vmatpush1.msra.mxu0 %v2232
        %2673 = vmatprep.subr.mxu0 %v2229
        %2674 = vmatpush1.msra.mxu0 %v2228
        %2675 = vmatprep.subr.mxu0 %v2225
        %2676 = vmatpush1.msra.mxu0 %v2224
        %2677 = vmatprep.subr.mxu0 %v2221
        %2678 = vmatpush1.msra.mxu0 %v2220
        %2679 = vmatprep.subr.mxu0 %v2217
        %2680 = vmatpush1.msra.mxu0 %v2216
        %2681 = vmatprep.subr.mxu0 %v2213
        %2682 = vmatpush1.msra.mxu0 %v2212
        %2683 = vmatprep.subr.mxu0 %v2209
        %2684 = vmatpush1.msra.mxu0 %v2208
        %2685 = vmatprep.subr.mxu0 %v2205
        %2686 = vmatpush1.msra.mxu0 %v2204
        %2687 = vmatprep.subr.mxu0 %v2201
        %2688 = vmatpush1.msra.mxu0 %v2200
        %2689 = vmatprep.subr.mxu0 %v2197
        %2690 = vmatpush1.msra.mxu0 %v2196
        %2691 = vmatprep.subr.mxu0 %v2193
        %2692 = vmatpush1.msra.mxu0 %v2192
        %2693 = vmatprep.subr.mxu0 %v2189
        %2694 = vmatpush1.msra.mxu0 %v2188
        %2695 = vmatprep.subr.mxu0 %v2185
        %2696 = vmatpush1.msra.mxu0 %v2184
        %2697 = vmatprep.subr.mxu0 %v2309
        %2698 = vmatpush2.msra.mxu0 %v2308
        %2699 = vmatprep.subr.mxu0 %v2305
        %2700 = vmatpush2.msra.mxu0 %v2304
        %2701 = vmatprep.subr.mxu0 %v2301
        %2702 = vmatpush2.msra.mxu0 %v2300
        %2703 = vmatprep.subr.mxu0 %v2297
        %2704 = vmatpush2.msra.mxu0 %v2296
        %2705 = vmatprep.subr.mxu0 %v2293
        %2706 = vmatpush2.msra.mxu0 %v2292
        %2707 = vmatprep.subr.mxu0 %v2289
        %2708 = vmatpush2.msra.mxu0 %v2288
        %2709 = vmatprep.subr.mxu0 %v2285
        %2710 = vmatpush2.msra.mxu0 %v2284
        %2711 = vmatprep.subr.mxu0 %v2281
        %2712 = vmatpush2.msra.mxu0 %v2280
        %2713 = vmatprep.subr.mxu0 %v2277
        %2714 = vmatpush2.msra.mxu0 %v2276
        %2715 = vmatprep.subr.mxu0 %v2273
        %2716 = vmatpush2.msra.mxu0 %v2272
        %2717 = vmatprep.subr.mxu0 %v2269
        %2718 = vmatpush2.msra.mxu0 %v2268
        %2719 = vmatprep.subr.mxu0 %v2265
        %2720 = vmatpush2.msra.mxu0 %v2264
        %2721 = vmatprep.subr.mxu0 %v2261
        %2722 = vmatpush2.msra.mxu0 %v2260
        %2723 = vmatprep.subr.mxu0 %v2257
        %2724 = vmatpush2.msra.mxu0 %v2256
        %2725 = vmatprep.subr.mxu0 %v2253
        %2726 = vmatpush2.msra.mxu0 %v2252
        %2727 = vmatprep.subr.mxu0 %v2249
        %2728 = vmatpush2.msra.mxu0 %v2248
        %2729 = vmatprep.mubr.f32.mxu0 %v2179
        %2730 = vmatmul.mubr.f32.gmra.mxu0 %v2178
        %v2731 = vpop.f32.mrf.mxu0
        %v2732 = vadd.f32 %v2590, %v2731
        %v2733 = vpop.f32.mrf.mxu0
        %v2734 = vadd.f32 %v2592, %v2733
        %2735 = vdwg.mxu0
        %s2736 = scalar_lea.vmem %s3, 2048
        %v2737 = vld [vmem:[%s2736] sm:$0xff]
        %v2738 = vld [vmem:[%s2736 + $0x8] sm:$0xff]
        %v2739 = vld [vmem:[%s2736 + $0x10] sm:$0xff]
        %v2740 = vld [vmem:[%s2736 + $0x18] sm:$0xff]
        %v2741 = vld [vmem:[%s2736 + $0x20] sm:$0xff]
        %v2742 = vld [vmem:[%s2736 + $0x28] sm:$0xff]
        %v2743 = vld [vmem:[%s2736 + $0x30] sm:$0xff]
        %v2744 = vld [vmem:[%s2736 + $0x38] sm:$0xff]
        %v2745 = vld [vmem:[%s2736 + $0x40] sm:$0xff]
        %v2746 = vld [vmem:[%s2736 + $0x48] sm:$0xff]
        %v2747 = vld [vmem:[%s2736 + $0x50] sm:$0xff]
        %v2748 = vld [vmem:[%s2736 + $0x58] sm:$0xff]
        %v2749 = vld [vmem:[%s2736 + $0x60] sm:$0xff]
        %v2750 = vld [vmem:[%s2736 + $0x68] sm:$0xff]
        %v2751 = vld [vmem:[%s2736 + $0x70] sm:$0xff]
        %v2752 = vld [vmem:[%s2736 + $0x78] sm:$0xff]
        %v2753 = vld [vmem:[%s2736 + $0x80] sm:$0xff]
        %v2754 = vld [vmem:[%s2736 + $0x88] sm:$0xff]
        %v2755 = vld [vmem:[%s2736 + $0x90] sm:$0xff]
        %v2756 = vld [vmem:[%s2736 + $0x98] sm:$0xff]
        %v2757 = vld [vmem:[%s2736 + $0xa0] sm:$0xff]
        %v2758 = vld [vmem:[%s2736 + $0xa8] sm:$0xff]
        %v2759 = vld [vmem:[%s2736 + $0xb0] sm:$0xff]
        %v2760 = vld [vmem:[%s2736 + $0xb8] sm:$0xff]
        %v2761 = vld [vmem:[%s2736 + $0xc0] sm:$0xff]
        %v2762 = vld [vmem:[%s2736 + $0xc8] sm:$0xff]
        %v2763 = vld [vmem:[%s2736 + $0xd0] sm:$0xff]
        %v2764 = vld [vmem:[%s2736 + $0xd8] sm:$0xff]
        %v2765 = vld [vmem:[%s2736 + $0xe0] sm:$0xff]
        %v2766 = vld [vmem:[%s2736 + $0xe8] sm:$0xff]
        %v2767 = vld [vmem:[%s2736 + $0xf0] sm:$0xff]
        %v2768 = vld [vmem:[%s2736 + $0xf8] sm:$0xff]
        %v2769 = vld [vmem:[%s2736 + $0x100] sm:$0xff]
        %v2770 = vld [vmem:[%s2736 + $0x108] sm:$0xff]
        %v2771 = vld [vmem:[%s2736 + $0x110] sm:$0xff]
        %v2772 = vld [vmem:[%s2736 + $0x118] sm:$0xff]
        %v2773 = vld [vmem:[%s2736 + $0x120] sm:$0xff]
        %v2774 = vld [vmem:[%s2736 + $0x128] sm:$0xff]
        %v2775 = vld [vmem:[%s2736 + $0x130] sm:$0xff]
        %v2776 = vld [vmem:[%s2736 + $0x138] sm:$0xff]
        %v2777 = vld [vmem:[%s2736 + $0x140] sm:$0xff]
        %v2778 = vld [vmem:[%s2736 + $0x148] sm:$0xff]
        %v2779 = vld [vmem:[%s2736 + $0x150] sm:$0xff]
        %v2780 = vld [vmem:[%s2736 + $0x158] sm:$0xff]
        %v2781 = vld [vmem:[%s2736 + $0x160] sm:$0xff]
        %v2782 = vld [vmem:[%s2736 + $0x168] sm:$0xff]
        %v2783 = vld [vmem:[%s2736 + $0x170] sm:$0xff]
        %v2784 = vld [vmem:[%s2736 + $0x178] sm:$0xff]
        %v2785 = vld [vmem:[%s2736 + $0x180] sm:$0xff]
        %v2786 = vld [vmem:[%s2736 + $0x188] sm:$0xff]
        %v2787 = vld [vmem:[%s2736 + $0x190] sm:$0xff]
        %v2788 = vld [vmem:[%s2736 + $0x198] sm:$0xff]
        %v2789 = vld [vmem:[%s2736 + $0x1a0] sm:$0xff]
        %v2790 = vld [vmem:[%s2736 + $0x1a8] sm:$0xff]
        %v2791 = vld [vmem:[%s2736 + $0x1b0] sm:$0xff]
        %v2792 = vld [vmem:[%s2736 + $0x1b8] sm:$0xff]
        %v2793 = vld [vmem:[%s2736 + $0x1c0] sm:$0xff]
        %v2794 = vld [vmem:[%s2736 + $0x1c8] sm:$0xff]
        %v2795 = vld [vmem:[%s2736 + $0x1d0] sm:$0xff]
        %v2796 = vld [vmem:[%s2736 + $0x1d8] sm:$0xff]
        %v2797 = vld [vmem:[%s2736 + $0x1e0] sm:$0xff]
        %v2798 = vld [vmem:[%s2736 + $0x1e8] sm:$0xff]
        %v2799 = vld [vmem:[%s2736 + $0x1f0] sm:$0xff]
        %v2800 = vld [vmem:[%s2736 + $0x1f8] sm:$0xff]
        %v2801 = vld [vmem:[%s2736 + $0x200] sm:$0xff]
        %v2802 = vld [vmem:[%s2736 + $0x208] sm:$0xff]
        %v2803 = vld [vmem:[%s2736 + $0x210] sm:$0xff]
        %v2804 = vld [vmem:[%s2736 + $0x218] sm:$0xff]
        %v2805 = vld [vmem:[%s2736 + $0x220] sm:$0xff]
        %v2806 = vld [vmem:[%s2736 + $0x228] sm:$0xff]
        %v2807 = vld [vmem:[%s2736 + $0x230] sm:$0xff]
        %v2808 = vld [vmem:[%s2736 + $0x238] sm:$0xff]
        %v2809 = vld [vmem:[%s2736 + $0x240] sm:$0xff]
        %v2810 = vld [vmem:[%s2736 + $0x248] sm:$0xff]
        %v2811 = vld [vmem:[%s2736 + $0x250] sm:$0xff]
        %v2812 = vld [vmem:[%s2736 + $0x258] sm:$0xff]
        %v2813 = vld [vmem:[%s2736 + $0x260] sm:$0xff]
        %v2814 = vld [vmem:[%s2736 + $0x268] sm:$0xff]
        %v2815 = vld [vmem:[%s2736 + $0x270] sm:$0xff]
        %v2816 = vld [vmem:[%s2736 + $0x278] sm:$0xff]
        %v2817 = vld [vmem:[%s2736 + $0x280] sm:$0xff]
        %v2818 = vld [vmem:[%s2736 + $0x288] sm:$0xff]
        %v2819 = vld [vmem:[%s2736 + $0x290] sm:$0xff]
        %v2820 = vld [vmem:[%s2736 + $0x298] sm:$0xff]
        %v2821 = vld [vmem:[%s2736 + $0x2a0] sm:$0xff]
        %v2822 = vld [vmem:[%s2736 + $0x2a8] sm:$0xff]
        %v2823 = vld [vmem:[%s2736 + $0x2b0] sm:$0xff]
        %v2824 = vld [vmem:[%s2736 + $0x2b8] sm:$0xff]
        %v2825 = vld [vmem:[%s2736 + $0x2c0] sm:$0xff]
        %v2826 = vld [vmem:[%s2736 + $0x2c8] sm:$0xff]
        %v2827 = vld [vmem:[%s2736 + $0x2d0] sm:$0xff]
        %v2828 = vld [vmem:[%s2736 + $0x2d8] sm:$0xff]
        %v2829 = vld [vmem:[%s2736 + $0x2e0] sm:$0xff]
        %v2830 = vld [vmem:[%s2736 + $0x2e8] sm:$0xff]
        %v2831 = vld [vmem:[%s2736 + $0x2f0] sm:$0xff]
        %v2832 = vld [vmem:[%s2736 + $0x2f8] sm:$0xff]
        %v2833 = vld [vmem:[%s2736 + $0x300] sm:$0xff]
        %v2834 = vld [vmem:[%s2736 + $0x308] sm:$0xff]
        %v2835 = vld [vmem:[%s2736 + $0x310] sm:$0xff]
        %v2836 = vld [vmem:[%s2736 + $0x318] sm:$0xff]
        %v2837 = vld [vmem:[%s2736 + $0x320] sm:$0xff]
        %v2838 = vld [vmem:[%s2736 + $0x328] sm:$0xff]
        %v2839 = vld [vmem:[%s2736 + $0x330] sm:$0xff]
        %v2840 = vld [vmem:[%s2736 + $0x338] sm:$0xff]
        %v2841 = vld [vmem:[%s2736 + $0x340] sm:$0xff]
        %v2842 = vld [vmem:[%s2736 + $0x348] sm:$0xff]
        %v2843 = vld [vmem:[%s2736 + $0x350] sm:$0xff]
        %v2844 = vld [vmem:[%s2736 + $0x358] sm:$0xff]
        %v2845 = vld [vmem:[%s2736 + $0x360] sm:$0xff]
        %v2846 = vld [vmem:[%s2736 + $0x368] sm:$0xff]
        %v2847 = vld [vmem:[%s2736 + $0x370] sm:$0xff]
        %v2848 = vld [vmem:[%s2736 + $0x378] sm:$0xff]
        %v2849 = vld [vmem:[%s2736 + $0x380] sm:$0xff]
        %v2850 = vld [vmem:[%s2736 + $0x388] sm:$0xff]
        %v2851 = vld [vmem:[%s2736 + $0x390] sm:$0xff]
        %v2852 = vld [vmem:[%s2736 + $0x398] sm:$0xff]
        %v2853 = vld [vmem:[%s2736 + $0x3a0] sm:$0xff]
        %v2854 = vld [vmem:[%s2736 + $0x3a8] sm:$0xff]
        %v2855 = vld [vmem:[%s2736 + $0x3b0] sm:$0xff]
        %v2856 = vld [vmem:[%s2736 + $0x3b8] sm:$0xff]
        %v2857 = vld [vmem:[%s2736 + $0x3c0] sm:$0xff]
        %v2858 = vld [vmem:[%s2736 + $0x3c8] sm:$0xff]
        %v2859 = vld [vmem:[%s2736 + $0x3d0] sm:$0xff]
        %v2860 = vld [vmem:[%s2736 + $0x3d8] sm:$0xff]
        %v2861 = vld [vmem:[%s2736 + $0x3e0] sm:$0xff]
        %v2862 = vld [vmem:[%s2736 + $0x3e8] sm:$0xff]
        %v2863 = vld [vmem:[%s2736 + $0x3f0] sm:$0xff]
        %v2864 = vld [vmem:[%s2736 + $0x3f8] sm:$0xff]
        %vm2865 = vcmask 1045504
        %v2866 = vrot.slane %v2178, 2
        %v2867 = vrot.slane %v2180, 2
        %v2868 = vsel %vm2865, %v2866, %v2867
        %v2869 = vrot.slane %v2179, 2
        %v2870 = vrot.slane %v2181, 2
        %v2871 = vsel %vm2865, %v2869, %v2870
        %2874 = vmatprep.subr.mxu0 %v2798
        %2875 = vmatpush1.msra.mxu0 %v2797
        %2876 = vmatprep.subr.mxu0 %v2794
        %2877 = vmatpush1.msra.mxu0 %v2793
        %2878 = vmatprep.subr.mxu0 %v2790
        %2879 = vmatpush1.msra.mxu0 %v2789
        %2880 = vmatprep.subr.mxu0 %v2786
        %2881 = vmatpush1.msra.mxu0 %v2785
        %2882 = vmatprep.subr.mxu0 %v2782
        %2883 = vmatpush1.msra.mxu0 %v2781
        %2884 = vmatprep.subr.mxu0 %v2778
        %2885 = vmatpush1.msra.mxu0 %v2777
        %2886 = vmatprep.subr.mxu0 %v2774
        %2887 = vmatpush1.msra.mxu0 %v2773
        %2888 = vmatprep.subr.mxu0 %v2770
        %2889 = vmatpush1.msra.mxu0 %v2769
        %2890 = vmatprep.subr.mxu0 %v2766
        %2891 = vmatpush1.msra.mxu0 %v2765
        %2892 = vmatprep.subr.mxu0 %v2762
        %2893 = vmatpush1.msra.mxu0 %v2761
        %2894 = vmatprep.subr.mxu0 %v2758
        %2895 = vmatpush1.msra.mxu0 %v2757
        %2896 = vmatprep.subr.mxu0 %v2754
        %2897 = vmatpush1.msra.mxu0 %v2753
        %2898 = vmatprep.subr.mxu0 %v2750
        %2899 = vmatpush1.msra.mxu0 %v2749
        %2900 = vmatprep.subr.mxu0 %v2746
        %2901 = vmatpush1.msra.mxu0 %v2745
        %2902 = vmatprep.subr.mxu0 %v2742
        %2903 = vmatpush1.msra.mxu0 %v2741
        %2904 = vmatprep.subr.mxu0 %v2738
        %2905 = vmatpush1.msra.mxu0 %v2737
        %2906 = vmatprep.subr.mxu0 %v2862
        %2907 = vmatpush2.msra.mxu0 %v2861
        %2908 = vmatprep.subr.mxu0 %v2858
        %2909 = vmatpush2.msra.mxu0 %v2857
        %2910 = vmatprep.subr.mxu0 %v2854
        %2911 = vmatpush2.msra.mxu0 %v2853
        %2912 = vmatprep.subr.mxu0 %v2850
        %2913 = vmatpush2.msra.mxu0 %v2849
        %2914 = vmatprep.subr.mxu0 %v2846
        %2915 = vmatpush2.msra.mxu0 %v2845
        %2916 = vmatprep.subr.mxu0 %v2842
        %2917 = vmatpush2.msra.mxu0 %v2841
        %2918 = vmatprep.subr.mxu0 %v2838
        %2919 = vmatpush2.msra.mxu0 %v2837
        %2920 = vmatprep.subr.mxu0 %v2834
        %2921 = vmatpush2.msra.mxu0 %v2833
        %2922 = vmatprep.subr.mxu0 %v2830
        %2923 = vmatpush2.msra.mxu0 %v2829
        %2924 = vmatprep.subr.mxu0 %v2826
        %2925 = vmatpush2.msra.mxu0 %v2825
        %2926 = vmatprep.subr.mxu0 %v2822
        %2927 = vmatpush2.msra.mxu0 %v2821
        %2928 = vmatprep.subr.mxu0 %v2818
        %2929 = vmatpush2.msra.mxu0 %v2817
        %2930 = vmatprep.subr.mxu0 %v2814
        %2931 = vmatpush2.msra.mxu0 %v2813
        %2932 = vmatprep.subr.mxu0 %v2810
        %2933 = vmatpush2.msra.mxu0 %v2809
        %2934 = vmatprep.subr.mxu0 %v2806
        %2935 = vmatpush2.msra.mxu0 %v2805
        %2936 = vmatprep.subr.mxu0 %v2802
        %2937 = vmatpush2.msra.mxu0 %v2801
        %2938 = vmatprep.mubr.f32.mxu0 %v2871
        %2939 = vmatmul.mubr.f32.gmra.mxu0 %v2868
        %v2940 = vpop.f32.mrf.mxu0
        %v2941 = vadd.f32 0.0, %v2940
        %v2942 = vpop.f32.mrf.mxu0
        %v2943 = vadd.f32 0.0, %v2942
        %2944 = vdwg.mxu0
        %2945 = vmatprep.subr.mxu0 %v2800
        %2946 = vmatpush1.msra.mxu0 %v2799
        %2947 = vmatprep.subr.mxu0 %v2796
        %2948 = vmatpush1.msra.mxu0 %v2795
        %2949 = vmatprep.subr.mxu0 %v2792
        %2950 = vmatpush1.msra.mxu0 %v2791
        %2951 = vmatprep.subr.mxu0 %v2788
        %2952 = vmatpush1.msra.mxu0 %v2787
        %2953 = vmatprep.subr.mxu0 %v2784
        %2954 = vmatpush1.msra.mxu0 %v2783
        %2955 = vmatprep.subr.mxu0 %v2780
        %2956 = vmatpush1.msra.mxu0 %v2779
        %2957 = vmatprep.subr.mxu0 %v2776
        %2958 = vmatpush1.msra.mxu0 %v2775
        %2959 = vmatprep.subr.mxu0 %v2772
        %2960 = vmatpush1.msra.mxu0 %v2771
        %2961 = vmatprep.subr.mxu0 %v2768
        %2962 = vmatpush1.msra.mxu0 %v2767
        %2963 = vmatprep.subr.mxu0 %v2764
        %2964 = vmatpush1.msra.mxu0 %v2763
        %2965 = vmatprep.subr.mxu0 %v2760
        %2966 = vmatpush1.msra.mxu0 %v2759
        %2967 = vmatprep.subr.mxu0 %v2756
        %2968 = vmatpush1.msra.mxu0 %v2755
        %2969 = vmatprep.subr.mxu0 %v2752
        %2970 = vmatpush1.msra.mxu0 %v2751
        %2971 = vmatprep.subr.mxu0 %v2748
        %2972 = vmatpush1.msra.mxu0 %v2747
        %2973 = vmatprep.subr.mxu0 %v2744
        %2974 = vmatpush1.msra.mxu0 %v2743
        %2975 = vmatprep.subr.mxu0 %v2740
        %2976 = vmatpush1.msra.mxu0 %v2739
        %2977 = vmatprep.subr.mxu0 %v2864
        %2978 = vmatpush2.msra.mxu0 %v2863
        %2979 = vmatprep.subr.mxu0 %v2860
        %2980 = vmatpush2.msra.mxu0 %v2859
        %2981 = vmatprep.subr.mxu0 %v2856
        %2982 = vmatpush2.msra.mxu0 %v2855
        %2983 = vmatprep.subr.mxu0 %v2852
        %2984 = vmatpush2.msra.mxu0 %v2851
        %2985 = vmatprep.subr.mxu0 %v2848
        %2986 = vmatpush2.msra.mxu0 %v2847
        %2987 = vmatprep.subr.mxu0 %v2844
        %2988 = vmatpush2.msra.mxu0 %v2843
        %2989 = vmatprep.subr.mxu0 %v2840
        %2990 = vmatpush2.msra.mxu0 %v2839
        %2991 = vmatprep.subr.mxu0 %v2836
        %2992 = vmatpush2.msra.mxu0 %v2835
        %2993 = vmatprep.subr.mxu0 %v2832
        %2994 = vmatpush2.msra.mxu0 %v2831
        %2995 = vmatprep.subr.mxu0 %v2828
        %2996 = vmatpush2.msra.mxu0 %v2827
        %2997 = vmatprep.subr.mxu0 %v2824
        %2998 = vmatpush2.msra.mxu0 %v2823
        %2999 = vmatprep.subr.mxu0 %v2820
        %3000 = vmatpush2.msra.mxu0 %v2819
        %3001 = vmatprep.subr.mxu0 %v2816
        %3002 = vmatpush2.msra.mxu0 %v2815
        %3003 = vmatprep.subr.mxu0 %v2812
        %3004 = vmatpush2.msra.mxu0 %v2811
        %3005 = vmatprep.subr.mxu0 %v2808
        %3006 = vmatpush2.msra.mxu0 %v2807
        %3007 = vmatprep.subr.mxu0 %v2804
        %3008 = vmatpush2.msra.mxu0 %v2803
        %3009 = vmatprep.mubr.f32.mxu0 %v2871
        %3010 = vmatmul.mubr.f32.gmra.mxu0 %v2868
        %v3011 = vpop.f32.mrf.mxu0
        %v3012 = vadd.f32 0.0, %v3011
        %v3013 = vpop.f32.mrf.mxu0
        %v3014 = vadd.f32 0.0, %v3013
        %3015 = vdwg.mxu0
        %v3016 = vadd.f32 %v2661, %v2941
        %v3017 = vadd.f32 %v2663, %v2943
        %v3018 = vadd.f32 %v2732, %v3012
        %v3019 = vadd.f32 %v2734, %v3014
        %s3020 = scalar_lea.vmem %s3, 3072
        %v3021 = vld [vmem:[%s3020] sm:$0xff]
        %v3022 = vld [vmem:[%s3020 + $0x8] sm:$0xff]
        %v3023 = vld [vmem:[%s3020 + $0x10] sm:$0xff]
        %v3024 = vld [vmem:[%s3020 + $0x18] sm:$0xff]
        %v3025 = vld [vmem:[%s3020 + $0x20] sm:$0xff]
        %v3026 = vld [vmem:[%s3020 + $0x28] sm:$0xff]
        %v3027 = vld [vmem:[%s3020 + $0x30] sm:$0xff]
        %v3028 = vld [vmem:[%s3020 + $0x38] sm:$0xff]
        %v3029 = vld [vmem:[%s3020 + $0x40] sm:$0xff]
        %v3030 = vld [vmem:[%s3020 + $0x48] sm:$0xff]
        %v3031 = vld [vmem:[%s3020 + $0x50] sm:$0xff]
        %v3032 = vld [vmem:[%s3020 + $0x58] sm:$0xff]
        %v3033 = vld [vmem:[%s3020 + $0x60] sm:$0xff]
        %v3034 = vld [vmem:[%s3020 + $0x68] sm:$0xff]
        %v3035 = vld [vmem:[%s3020 + $0x70] sm:$0xff]
        %v3036 = vld [vmem:[%s3020 + $0x78] sm:$0xff]
        %v3037 = vld [vmem:[%s3020 + $0x80] sm:$0xff]
        %v3038 = vld [vmem:[%s3020 + $0x88] sm:$0xff]
        %v3039 = vld [vmem:[%s3020 + $0x90] sm:$0xff]
        %v3040 = vld [vmem:[%s3020 + $0x98] sm:$0xff]
        %v3041 = vld [vmem:[%s3020 + $0xa0] sm:$0xff]
        %v3042 = vld [vmem:[%s3020 + $0xa8] sm:$0xff]
        %v3043 = vld [vmem:[%s3020 + $0xb0] sm:$0xff]
        %v3044 = vld [vmem:[%s3020 + $0xb8] sm:$0xff]
        %v3045 = vld [vmem:[%s3020 + $0xc0] sm:$0xff]
        %v3046 = vld [vmem:[%s3020 + $0xc8] sm:$0xff]
        %v3047 = vld [vmem:[%s3020 + $0xd0] sm:$0xff]
        %v3048 = vld [vmem:[%s3020 + $0xd8] sm:$0xff]
        %v3049 = vld [vmem:[%s3020 + $0xe0] sm:$0xff]
        %v3050 = vld [vmem:[%s3020 + $0xe8] sm:$0xff]
        %v3051 = vld [vmem:[%s3020 + $0xf0] sm:$0xff]
        %v3052 = vld [vmem:[%s3020 + $0xf8] sm:$0xff]
        %v3053 = vld [vmem:[%s3020 + $0x100] sm:$0xff]
        %v3054 = vld [vmem:[%s3020 + $0x108] sm:$0xff]
        %v3055 = vld [vmem:[%s3020 + $0x110] sm:$0xff]
        %v3056 = vld [vmem:[%s3020 + $0x118] sm:$0xff]
        %v3057 = vld [vmem:[%s3020 + $0x120] sm:$0xff]
        %v3058 = vld [vmem:[%s3020 + $0x128] sm:$0xff]
        %v3059 = vld [vmem:[%s3020 + $0x130] sm:$0xff]
        %v3060 = vld [vmem:[%s3020 + $0x138] sm:$0xff]
        %v3061 = vld [vmem:[%s3020 + $0x140] sm:$0xff]
        %v3062 = vld [vmem:[%s3020 + $0x148] sm:$0xff]
        %v3063 = vld [vmem:[%s3020 + $0x150] sm:$0xff]
        %v3064 = vld [vmem:[%s3020 + $0x158] sm:$0xff]
        %v3065 = vld [vmem:[%s3020 + $0x160] sm:$0xff]
        %v3066 = vld [vmem:[%s3020 + $0x168] sm:$0xff]
        %v3067 = vld [vmem:[%s3020 + $0x170] sm:$0xff]
        %v3068 = vld [vmem:[%s3020 + $0x178] sm:$0xff]
        %v3069 = vld [vmem:[%s3020 + $0x180] sm:$0xff]
        %v3070 = vld [vmem:[%s3020 + $0x188] sm:$0xff]
        %v3071 = vld [vmem:[%s3020 + $0x190] sm:$0xff]
        %v3072 = vld [vmem:[%s3020 + $0x198] sm:$0xff]
        %v3073 = vld [vmem:[%s3020 + $0x1a0] sm:$0xff]
        %v3074 = vld [vmem:[%s3020 + $0x1a8] sm:$0xff]
        %v3075 = vld [vmem:[%s3020 + $0x1b0] sm:$0xff]
        %v3076 = vld [vmem:[%s3020 + $0x1b8] sm:$0xff]
        %v3077 = vld [vmem:[%s3020 + $0x1c0] sm:$0xff]
        %v3078 = vld [vmem:[%s3020 + $0x1c8] sm:$0xff]
        %v3079 = vld [vmem:[%s3020 + $0x1d0] sm:$0xff]
        %v3080 = vld [vmem:[%s3020 + $0x1d8] sm:$0xff]
        %v3081 = vld [vmem:[%s3020 + $0x1e0] sm:$0xff]
        %v3082 = vld [vmem:[%s3020 + $0x1e8] sm:$0xff]
        %v3083 = vld [vmem:[%s3020 + $0x1f0] sm:$0xff]
        %v3084 = vld [vmem:[%s3020 + $0x1f8] sm:$0xff]
        %v3085 = vld [vmem:[%s3020 + $0x200] sm:$0xff]
        %v3086 = vld [vmem:[%s3020 + $0x208] sm:$0xff]
        %v3087 = vld [vmem:[%s3020 + $0x210] sm:$0xff]
        %v3088 = vld [vmem:[%s3020 + $0x218] sm:$0xff]
        %v3089 = vld [vmem:[%s3020 + $0x220] sm:$0xff]
        %v3090 = vld [vmem:[%s3020 + $0x228] sm:$0xff]
        %v3091 = vld [vmem:[%s3020 + $0x230] sm:$0xff]
        %v3092 = vld [vmem:[%s3020 + $0x238] sm:$0xff]
        %v3093 = vld [vmem:[%s3020 + $0x240] sm:$0xff]
        %v3094 = vld [vmem:[%s3020 + $0x248] sm:$0xff]
        %v3095 = vld [vmem:[%s3020 + $0x250] sm:$0xff]
        %v3096 = vld [vmem:[%s3020 + $0x258] sm:$0xff]
        %v3097 = vld [vmem:[%s3020 + $0x260] sm:$0xff]
        %v3098 = vld [vmem:[%s3020 + $0x268] sm:$0xff]
        %v3099 = vld [vmem:[%s3020 + $0x270] sm:$0xff]
        %v3100 = vld [vmem:[%s3020 + $0x278] sm:$0xff]
        %v3101 = vld [vmem:[%s3020 + $0x280] sm:$0xff]
        %v3102 = vld [vmem:[%s3020 + $0x288] sm:$0xff]
        %v3103 = vld [vmem:[%s3020 + $0x290] sm:$0xff]
        %v3104 = vld [vmem:[%s3020 + $0x298] sm:$0xff]
        %v3105 = vld [vmem:[%s3020 + $0x2a0] sm:$0xff]
        %v3106 = vld [vmem:[%s3020 + $0x2a8] sm:$0xff]
        %v3107 = vld [vmem:[%s3020 + $0x2b0] sm:$0xff]
        %v3108 = vld [vmem:[%s3020 + $0x2b8] sm:$0xff]
        %v3109 = vld [vmem:[%s3020 + $0x2c0] sm:$0xff]
        %v3110 = vld [vmem:[%s3020 + $0x2c8] sm:$0xff]
        %v3111 = vld [vmem:[%s3020 + $0x2d0] sm:$0xff]
        %v3112 = vld [vmem:[%s3020 + $0x2d8] sm:$0xff]
        %v3113 = vld [vmem:[%s3020 + $0x2e0] sm:$0xff]
        %v3114 = vld [vmem:[%s3020 + $0x2e8] sm:$0xff]
        %v3115 = vld [vmem:[%s3020 + $0x2f0] sm:$0xff]
        %v3116 = vld [vmem:[%s3020 + $0x2f8] sm:$0xff]
        %v3117 = vld [vmem:[%s3020 + $0x300] sm:$0xff]
        %v3118 = vld [vmem:[%s3020 + $0x308] sm:$0xff]
        %v3119 = vld [vmem:[%s3020 + $0x310] sm:$0xff]
        %v3120 = vld [vmem:[%s3020 + $0x318] sm:$0xff]
        %v3121 = vld [vmem:[%s3020 + $0x320] sm:$0xff]
        %v3122 = vld [vmem:[%s3020 + $0x328] sm:$0xff]
        %v3123 = vld [vmem:[%s3020 + $0x330] sm:$0xff]
        %v3124 = vld [vmem:[%s3020 + $0x338] sm:$0xff]
        %v3125 = vld [vmem:[%s3020 + $0x340] sm:$0xff]
        %v3126 = vld [vmem:[%s3020 + $0x348] sm:$0xff]
        %v3127 = vld [vmem:[%s3020 + $0x350] sm:$0xff]
        %v3128 = vld [vmem:[%s3020 + $0x358] sm:$0xff]
        %v3129 = vld [vmem:[%s3020 + $0x360] sm:$0xff]
        %v3130 = vld [vmem:[%s3020 + $0x368] sm:$0xff]
        %v3131 = vld [vmem:[%s3020 + $0x370] sm:$0xff]
        %v3132 = vld [vmem:[%s3020 + $0x378] sm:$0xff]
        %v3133 = vld [vmem:[%s3020 + $0x380] sm:$0xff]
        %v3134 = vld [vmem:[%s3020 + $0x388] sm:$0xff]
        %v3135 = vld [vmem:[%s3020 + $0x390] sm:$0xff]
        %v3136 = vld [vmem:[%s3020 + $0x398] sm:$0xff]
        %v3137 = vld [vmem:[%s3020 + $0x3a0] sm:$0xff]
        %v3138 = vld [vmem:[%s3020 + $0x3a8] sm:$0xff]
        %v3139 = vld [vmem:[%s3020 + $0x3b0] sm:$0xff]
        %v3140 = vld [vmem:[%s3020 + $0x3b8] sm:$0xff]
        %v3141 = vld [vmem:[%s3020 + $0x3c0] sm:$0xff]
        %v3142 = vld [vmem:[%s3020 + $0x3c8] sm:$0xff]
        %v3143 = vld [vmem:[%s3020 + $0x3d0] sm:$0xff]
        %v3144 = vld [vmem:[%s3020 + $0x3d8] sm:$0xff]
        %v3145 = vld [vmem:[%s3020 + $0x3e0] sm:$0xff]
        %v3146 = vld [vmem:[%s3020 + $0x3e8] sm:$0xff]
        %v3147 = vld [vmem:[%s3020 + $0x3f0] sm:$0xff]
        %v3148 = vld [vmem:[%s3020 + $0x3f8] sm:$0xff]
        %vm3149 = vcmask 1044480
        %v3150 = vrot.slane %v2178, 3
        %v3151 = vrot.slane %v2180, 3
        %v3152 = vsel %vm3149, %v3150, %v3151
        %v3153 = vrot.slane %v2179, 3
        %v3154 = vrot.slane %v2181, 3
        %v3155 = vsel %vm3149, %v3153, %v3154
        %3158 = vmatprep.subr.mxu0 %v3082
        %3159 = vmatpush1.msra.mxu0 %v3081
        %3160 = vmatprep.subr.mxu0 %v3078
        %3161 = vmatpush1.msra.mxu0 %v3077
        %3162 = vmatprep.subr.mxu0 %v3074
        %3163 = vmatpush1.msra.mxu0 %v3073
        %3164 = vmatprep.subr.mxu0 %v3070
        %3165 = vmatpush1.msra.mxu0 %v3069
        %3166 = vmatprep.subr.mxu0 %v3066
        %3167 = vmatpush1.msra.mxu0 %v3065
        %3168 = vmatprep.subr.mxu0 %v3062
        %3169 = vmatpush1.msra.mxu0 %v3061
        %3170 = vmatprep.subr.mxu0 %v3058
        %3171 = vmatpush1.msra.mxu0 %v3057
        %3172 = vmatprep.subr.mxu0 %v3054
        %3173 = vmatpush1.msra.mxu0 %v3053
        %3174 = vmatprep.subr.mxu0 %v3050
        %3175 = vmatpush1.msra.mxu0 %v3049
        %3176 = vmatprep.subr.mxu0 %v3046
        %3177 = vmatpush1.msra.mxu0 %v3045
        %3178 = vmatprep.subr.mxu0 %v3042
        %3179 = vmatpush1.msra.mxu0 %v3041
        %3180 = vmatprep.subr.mxu0 %v3038
        %3181 = vmatpush1.msra.mxu0 %v3037
        %3182 = vmatprep.subr.mxu0 %v3034
        %3183 = vmatpush1.msra.mxu0 %v3033
        %3184 = vmatprep.subr.mxu0 %v3030
        %3185 = vmatpush1.msra.mxu0 %v3029
        %3186 = vmatprep.subr.mxu0 %v3026
        %3187 = vmatpush1.msra.mxu0 %v3025
        %3188 = vmatprep.subr.mxu0 %v3022
        %3189 = vmatpush1.msra.mxu0 %v3021
        %3190 = vmatprep.subr.mxu0 %v3146
        %3191 = vmatpush2.msra.mxu0 %v3145
        %3192 = vmatprep.subr.mxu0 %v3142
        %3193 = vmatpush2.msra.mxu0 %v3141
        %3194 = vmatprep.subr.mxu0 %v3138
        %3195 = vmatpush2.msra.mxu0 %v3137
        %3196 = vmatprep.subr.mxu0 %v3134
        %3197 = vmatpush2.msra.mxu0 %v3133
        %3198 = vmatprep.subr.mxu0 %v3130
        %3199 = vmatpush2.msra.mxu0 %v3129
        %3200 = vmatprep.subr.mxu0 %v3126
        %3201 = vmatpush2.msra.mxu0 %v3125
        %3202 = vmatprep.subr.mxu0 %v3122
        %3203 = vmatpush2.msra.mxu0 %v3121
        %3204 = vmatprep.subr.mxu0 %v3118
        %3205 = vmatpush2.msra.mxu0 %v3117
        %3206 = vmatprep.subr.mxu0 %v3114
        %3207 = vmatpush2.msra.mxu0 %v3113
        %3208 = vmatprep.subr.mxu0 %v3110
        %3209 = vmatpush2.msra.mxu0 %v3109
        %3210 = vmatprep.subr.mxu0 %v3106
        %3211 = vmatpush2.msra.mxu0 %v3105
        %3212 = vmatprep.subr.mxu0 %v3102
        %3213 = vmatpush2.msra.mxu0 %v3101
        %3214 = vmatprep.subr.mxu0 %v3098
        %3215 = vmatpush2.msra.mxu0 %v3097
        %3216 = vmatprep.subr.mxu0 %v3094
        %3217 = vmatpush2.msra.mxu0 %v3093
        %3218 = vmatprep.subr.mxu0 %v3090
        %3219 = vmatpush2.msra.mxu0 %v3089
        %3220 = vmatprep.subr.mxu0 %v3086
        %3221 = vmatpush2.msra.mxu0 %v3085
        %3222 = vmatprep.mubr.f32.mxu0 %v3155
        %3223 = vmatmul.mubr.f32.gmra.mxu0 %v3152
        %v3224 = vpop.f32.mrf.mxu0
        %v3225 = vadd.f32 0.0, %v3224
        %v3226 = vpop.f32.mrf.mxu0
        %v3227 = vadd.f32 0.0, %v3226
        %3228 = vdwg.mxu0
        %3229 = vmatprep.subr.mxu0 %v3084
        %3230 = vmatpush1.msra.mxu0 %v3083
        %3231 = vmatprep.subr.mxu0 %v3080
        %3232 = vmatpush1.msra.mxu0 %v3079
        %3233 = vmatprep.subr.mxu0 %v3076
        %3234 = vmatpush1.msra.mxu0 %v3075
        %3235 = vmatprep.subr.mxu0 %v3072
        %3236 = vmatpush1.msra.mxu0 %v3071
        %3237 = vmatprep.subr.mxu0 %v3068
        %3238 = vmatpush1.msra.mxu0 %v3067
        %3239 = vmatprep.subr.mxu0 %v3064
        %3240 = vmatpush1.msra.mxu0 %v3063
        %3241 = vmatprep.subr.mxu0 %v3060
        %3242 = vmatpush1.msra.mxu0 %v3059
        %3243 = vmatprep.subr.mxu0 %v3056
        %3244 = vmatpush1.msra.mxu0 %v3055
        %3245 = vmatprep.subr.mxu0 %v3052
        %3246 = vmatpush1.msra.mxu0 %v3051
        %3247 = vmatprep.subr.mxu0 %v3048
        %3248 = vmatpush1.msra.mxu0 %v3047
        %3249 = vmatprep.subr.mxu0 %v3044
        %3250 = vmatpush1.msra.mxu0 %v3043
        %3251 = vmatprep.subr.mxu0 %v3040
        %3252 = vmatpush1.msra.mxu0 %v3039
        %3253 = vmatprep.subr.mxu0 %v3036
        %3254 = vmatpush1.msra.mxu0 %v3035
        %3255 = vmatprep.subr.mxu0 %v3032
        %3256 = vmatpush1.msra.mxu0 %v3031
        %3257 = vmatprep.subr.mxu0 %v3028
        %3258 = vmatpush1.msra.mxu0 %v3027
        %3259 = vmatprep.subr.mxu0 %v3024
        %3260 = vmatpush1.msra.mxu0 %v3023
        %3261 = vmatprep.subr.mxu0 %v3148
        %3262 = vmatpush2.msra.mxu0 %v3147
        %3263 = vmatprep.subr.mxu0 %v3144
        %3264 = vmatpush2.msra.mxu0 %v3143
        %3265 = vmatprep.subr.mxu0 %v3140
        %3266 = vmatpush2.msra.mxu0 %v3139
        %3267 = vmatprep.subr.mxu0 %v3136
        %3268 = vmatpush2.msra.mxu0 %v3135
        %3269 = vmatprep.subr.mxu0 %v3132
        %3270 = vmatpush2.msra.mxu0 %v3131
        %3271 = vmatprep.subr.mxu0 %v3128
        %3272 = vmatpush2.msra.mxu0 %v3127
        %3273 = vmatprep.subr.mxu0 %v3124
        %3274 = vmatpush2.msra.mxu0 %v3123
        %3275 = vmatprep.subr.mxu0 %v3120
        %3276 = vmatpush2.msra.mxu0 %v3119
        %3277 = vmatprep.subr.mxu0 %v3116
        %3278 = vmatpush2.msra.mxu0 %v3115
        %3279 = vmatprep.subr.mxu0 %v3112
        %3280 = vmatpush2.msra.mxu0 %v3111
        %3281 = vmatprep.subr.mxu0 %v3108
        %3282 = vmatpush2.msra.mxu0 %v3107
        %3283 = vmatprep.subr.mxu0 %v3104
        %3284 = vmatpush2.msra.mxu0 %v3103
        %3285 = vmatprep.subr.mxu0 %v3100
        %3286 = vmatpush2.msra.mxu0 %v3099
        %3287 = vmatprep.subr.mxu0 %v3096
        %3288 = vmatpush2.msra.mxu0 %v3095
        %3289 = vmatprep.subr.mxu0 %v3092
        %3290 = vmatpush2.msra.mxu0 %v3091
        %3291 = vmatprep.subr.mxu0 %v3088
        %3292 = vmatpush2.msra.mxu0 %v3087
        %3293 = vmatprep.mubr.f32.mxu0 %v3155
        %3294 = vmatmul.mubr.f32.gmra.mxu0 %v3152
        %v3295 = vpop.f32.mrf.mxu0
        %v3296 = vadd.f32 0.0, %v3295
        %v3297 = vpop.f32.mrf.mxu0
        %v3298 = vadd.f32 0.0, %v3297
        %3299 = vdwg.mxu0
        %v3300 = vadd.f32 %v3016, %v3225
        %v3301 = vadd.f32 %v3017, %v3227
        %v3302 = vadd.f32 %v3018, %v3296
        %v3303 = vadd.f32 %v3019, %v3298
        %s3304 = scalar_lea.vmem %s3, 4096
        %v3305 = vld [vmem:[%s3304] sm:$0xff]
        %v3306 = vld [vmem:[%s3304 + $0x8] sm:$0xff]
        %v3307 = vld [vmem:[%s3304 + $0x10] sm:$0xff]
        %v3308 = vld [vmem:[%s3304 + $0x18] sm:$0xff]
        %v3309 = vld [vmem:[%s3304 + $0x20] sm:$0xff]
        %v3310 = vld [vmem:[%s3304 + $0x28] sm:$0xff]
        %v3311 = vld [vmem:[%s3304 + $0x30] sm:$0xff]
        %v3312 = vld [vmem:[%s3304 + $0x38] sm:$0xff]
        %v3313 = vld [vmem:[%s3304 + $0x40] sm:$0xff]
        %v3314 = vld [vmem:[%s3304 + $0x48] sm:$0xff]
        %v3315 = vld [vmem:[%s3304 + $0x50] sm:$0xff]
        %v3316 = vld [vmem:[%s3304 + $0x58] sm:$0xff]
        %v3317 = vld [vmem:[%s3304 + $0x60] sm:$0xff]
        %v3318 = vld [vmem:[%s3304 + $0x68] sm:$0xff]
        %v3319 = vld [vmem:[%s3304 + $0x70] sm:$0xff]
        %v3320 = vld [vmem:[%s3304 + $0x78] sm:$0xff]
        %v3321 = vld [vmem:[%s3304 + $0x80] sm:$0xff]
        %v3322 = vld [vmem:[%s3304 + $0x88] sm:$0xff]
        %v3323 = vld [vmem:[%s3304 + $0x90] sm:$0xff]
        %v3324 = vld [vmem:[%s3304 + $0x98] sm:$0xff]
        %v3325 = vld [vmem:[%s3304 + $0xa0] sm:$0xff]
        %v3326 = vld [vmem:[%s3304 + $0xa8] sm:$0xff]
        %v3327 = vld [vmem:[%s3304 + $0xb0] sm:$0xff]
        %v3328 = vld [vmem:[%s3304 + $0xb8] sm:$0xff]
        %v3329 = vld [vmem:[%s3304 + $0xc0] sm:$0xff]
        %v3330 = vld [vmem:[%s3304 + $0xc8] sm:$0xff]
        %v3331 = vld [vmem:[%s3304 + $0xd0] sm:$0xff]
        %v3332 = vld [vmem:[%s3304 + $0xd8] sm:$0xff]
        %v3333 = vld [vmem:[%s3304 + $0xe0] sm:$0xff]
        %v3334 = vld [vmem:[%s3304 + $0xe8] sm:$0xff]
        %v3335 = vld [vmem:[%s3304 + $0xf0] sm:$0xff]
        %v3336 = vld [vmem:[%s3304 + $0xf8] sm:$0xff]
        %v3337 = vld [vmem:[%s3304 + $0x100] sm:$0xff]
        %v3338 = vld [vmem:[%s3304 + $0x108] sm:$0xff]
        %v3339 = vld [vmem:[%s3304 + $0x110] sm:$0xff]
        %v3340 = vld [vmem:[%s3304 + $0x118] sm:$0xff]
        %v3341 = vld [vmem:[%s3304 + $0x120] sm:$0xff]
        %v3342 = vld [vmem:[%s3304 + $0x128] sm:$0xff]
        %v3343 = vld [vmem:[%s3304 + $0x130] sm:$0xff]
        %v3344 = vld [vmem:[%s3304 + $0x138] sm:$0xff]
        %v3345 = vld [vmem:[%s3304 + $0x140] sm:$0xff]
        %v3346 = vld [vmem:[%s3304 + $0x148] sm:$0xff]
        %v3347 = vld [vmem:[%s3304 + $0x150] sm:$0xff]
        %v3348 = vld [vmem:[%s3304 + $0x158] sm:$0xff]
        %v3349 = vld [vmem:[%s3304 + $0x160] sm:$0xff]
        %v3350 = vld [vmem:[%s3304 + $0x168] sm:$0xff]
        %v3351 = vld [vmem:[%s3304 + $0x170] sm:$0xff]
        %v3352 = vld [vmem:[%s3304 + $0x178] sm:$0xff]
        %v3353 = vld [vmem:[%s3304 + $0x180] sm:$0xff]
        %v3354 = vld [vmem:[%s3304 + $0x188] sm:$0xff]
        %v3355 = vld [vmem:[%s3304 + $0x190] sm:$0xff]
        %v3356 = vld [vmem:[%s3304 + $0x198] sm:$0xff]
        %v3357 = vld [vmem:[%s3304 + $0x1a0] sm:$0xff]
        %v3358 = vld [vmem:[%s3304 + $0x1a8] sm:$0xff]
        %v3359 = vld [vmem:[%s3304 + $0x1b0] sm:$0xff]
        %v3360 = vld [vmem:[%s3304 + $0x1b8] sm:$0xff]
        %v3361 = vld [vmem:[%s3304 + $0x1c0] sm:$0xff]
        %v3362 = vld [vmem:[%s3304 + $0x1c8] sm:$0xff]
        %v3363 = vld [vmem:[%s3304 + $0x1d0] sm:$0xff]
        %v3364 = vld [vmem:[%s3304 + $0x1d8] sm:$0xff]
        %v3365 = vld [vmem:[%s3304 + $0x1e0] sm:$0xff]
        %v3366 = vld [vmem:[%s3304 + $0x1e8] sm:$0xff]
        %v3367 = vld [vmem:[%s3304 + $0x1f0] sm:$0xff]
        %v3368 = vld [vmem:[%s3304 + $0x1f8] sm:$0xff]
        %v3369 = vld [vmem:[%s3304 + $0x200] sm:$0xff]
        %v3370 = vld [vmem:[%s3304 + $0x208] sm:$0xff]
        %v3371 = vld [vmem:[%s3304 + $0x210] sm:$0xff]
        %v3372 = vld [vmem:[%s3304 + $0x218] sm:$0xff]
        %v3373 = vld [vmem:[%s3304 + $0x220] sm:$0xff]
        %v3374 = vld [vmem:[%s3304 + $0x228] sm:$0xff]
        %v3375 = vld [vmem:[%s3304 + $0x230] sm:$0xff]
        %v3376 = vld [vmem:[%s3304 + $0x238] sm:$0xff]
        %v3377 = vld [vmem:[%s3304 + $0x240] sm:$0xff]
        %v3378 = vld [vmem:[%s3304 + $0x248] sm:$0xff]
        %v3379 = vld [vmem:[%s3304 + $0x250] sm:$0xff]
        %v3380 = vld [vmem:[%s3304 + $0x258] sm:$0xff]
        %v3381 = vld [vmem:[%s3304 + $0x260] sm:$0xff]
        %v3382 = vld [vmem:[%s3304 + $0x268] sm:$0xff]
        %v3383 = vld [vmem:[%s3304 + $0x270] sm:$0xff]
        %v3384 = vld [vmem:[%s3304 + $0x278] sm:$0xff]
        %v3385 = vld [vmem:[%s3304 + $0x280] sm:$0xff]
        %v3386 = vld [vmem:[%s3304 + $0x288] sm:$0xff]
        %v3387 = vld [vmem:[%s3304 + $0x290] sm:$0xff]
        %v3388 = vld [vmem:[%s3304 + $0x298] sm:$0xff]
        %v3389 = vld [vmem:[%s3304 + $0x2a0] sm:$0xff]
        %v3390 = vld [vmem:[%s3304 + $0x2a8] sm:$0xff]
        %v3391 = vld [vmem:[%s3304 + $0x2b0] sm:$0xff]
        %v3392 = vld [vmem:[%s3304 + $0x2b8] sm:$0xff]
        %v3393 = vld [vmem:[%s3304 + $0x2c0] sm:$0xff]
        %v3394 = vld [vmem:[%s3304 + $0x2c8] sm:$0xff]
        %v3395 = vld [vmem:[%s3304 + $0x2d0] sm:$0xff]
        %v3396 = vld [vmem:[%s3304 + $0x2d8] sm:$0xff]
        %v3397 = vld [vmem:[%s3304 + $0x2e0] sm:$0xff]
        %v3398 = vld [vmem:[%s3304 + $0x2e8] sm:$0xff]
        %v3399 = vld [vmem:[%s3304 + $0x2f0] sm:$0xff]
        %v3400 = vld [vmem:[%s3304 + $0x2f8] sm:$0xff]
        %v3401 = vld [vmem:[%s3304 + $0x300] sm:$0xff]
        %v3402 = vld [vmem:[%s3304 + $0x308] sm:$0xff]
        %v3403 = vld [vmem:[%s3304 + $0x310] sm:$0xff]
        %v3404 = vld [vmem:[%s3304 + $0x318] sm:$0xff]
        %v3405 = vld [vmem:[%s3304 + $0x320] sm:$0xff]
        %v3406 = vld [vmem:[%s3304 + $0x328] sm:$0xff]
        %v3407 = vld [vmem:[%s3304 + $0x330] sm:$0xff]
        %v3408 = vld [vmem:[%s3304 + $0x338] sm:$0xff]
        %v3409 = vld [vmem:[%s3304 + $0x340] sm:$0xff]
        %v3410 = vld [vmem:[%s3304 + $0x348] sm:$0xff]
        %v3411 = vld [vmem:[%s3304 + $0x350] sm:$0xff]
        %v3412 = vld [vmem:[%s3304 + $0x358] sm:$0xff]
        %v3413 = vld [vmem:[%s3304 + $0x360] sm:$0xff]
        %v3414 = vld [vmem:[%s3304 + $0x368] sm:$0xff]
        %v3415 = vld [vmem:[%s3304 + $0x370] sm:$0xff]
        %v3416 = vld [vmem:[%s3304 + $0x378] sm:$0xff]
        %v3417 = vld [vmem:[%s3304 + $0x380] sm:$0xff]
        %v3418 = vld [vmem:[%s3304 + $0x388] sm:$0xff]
        %v3419 = vld [vmem:[%s3304 + $0x390] sm:$0xff]
        %v3420 = vld [vmem:[%s3304 + $0x398] sm:$0xff]
        %v3421 = vld [vmem:[%s3304 + $0x3a0] sm:$0xff]
        %v3422 = vld [vmem:[%s3304 + $0x3a8] sm:$0xff]
        %v3423 = vld [vmem:[%s3304 + $0x3b0] sm:$0xff]
        %v3424 = vld [vmem:[%s3304 + $0x3b8] sm:$0xff]
        %v3425 = vld [vmem:[%s3304 + $0x3c0] sm:$0xff]
        %v3426 = vld [vmem:[%s3304 + $0x3c8] sm:$0xff]
        %v3427 = vld [vmem:[%s3304 + $0x3d0] sm:$0xff]
        %v3428 = vld [vmem:[%s3304 + $0x3d8] sm:$0xff]
        %v3429 = vld [vmem:[%s3304 + $0x3e0] sm:$0xff]
        %v3430 = vld [vmem:[%s3304 + $0x3e8] sm:$0xff]
        %v3431 = vld [vmem:[%s3304 + $0x3f0] sm:$0xff]
        %v3432 = vld [vmem:[%s3304 + $0x3f8] sm:$0xff]
        %v3433 = vrot.slane %v2178, 4
        %v3434 = vrot.slane %v2180, 4
        %v3435 = vsel %vm382, %v3433, %v3434
        %v3436 = vrot.slane %v2179, 4
        %v3437 = vrot.slane %v2181, 4
        %v3438 = vsel %vm382, %v3436, %v3437
        %3441 = vmatprep.subr.mxu0 %v3366
        %3442 = vmatpush1.msra.mxu0 %v3365
        %3443 = vmatprep.subr.mxu0 %v3362
        %3444 = vmatpush1.msra.mxu0 %v3361
        %3445 = vmatprep.subr.mxu0 %v3358
        %3446 = vmatpush1.msra.mxu0 %v3357
        %3447 = vmatprep.subr.mxu0 %v3354
        %3448 = vmatpush1.msra.mxu0 %v3353
        %3449 = vmatprep.subr.mxu0 %v3350
        %3450 = vmatpush1.msra.mxu0 %v3349
        %3451 = vmatprep.subr.mxu0 %v3346
        %3452 = vmatpush1.msra.mxu0 %v3345
        %3453 = vmatprep.subr.mxu0 %v3342
        %3454 = vmatpush1.msra.mxu0 %v3341
        %3455 = vmatprep.subr.mxu0 %v3338
        %3456 = vmatpush1.msra.mxu0 %v3337
        %3457 = vmatprep.subr.mxu0 %v3334
        %3458 = vmatpush1.msra.mxu0 %v3333
        %3459 = vmatprep.subr.mxu0 %v3330
        %3460 = vmatpush1.msra.mxu0 %v3329
        %3461 = vmatprep.subr.mxu0 %v3326
        %3462 = vmatpush1.msra.mxu0 %v3325
        %3463 = vmatprep.subr.mxu0 %v3322
        %3464 = vmatpush1.msra.mxu0 %v3321
        %3465 = vmatprep.subr.mxu0 %v3318
        %3466 = vmatpush1.msra.mxu0 %v3317
        %3467 = vmatprep.subr.mxu0 %v3314
        %3468 = vmatpush1.msra.mxu0 %v3313
        %3469 = vmatprep.subr.mxu0 %v3310
        %3470 = vmatpush1.msra.mxu0 %v3309
        %3471 = vmatprep.subr.mxu0 %v3306
        %3472 = vmatpush1.msra.mxu0 %v3305
        %3473 = vmatprep.subr.mxu0 %v3430
        %3474 = vmatpush2.msra.mxu0 %v3429
        %3475 = vmatprep.subr.mxu0 %v3426
        %3476 = vmatpush2.msra.mxu0 %v3425
        %3477 = vmatprep.subr.mxu0 %v3422
        %3478 = vmatpush2.msra.mxu0 %v3421
        %3479 = vmatprep.subr.mxu0 %v3418
        %3480 = vmatpush2.msra.mxu0 %v3417
        %3481 = vmatprep.subr.mxu0 %v3414
        %3482 = vmatpush2.msra.mxu0 %v3413
        %3483 = vmatprep.subr.mxu0 %v3410
        %3484 = vmatpush2.msra.mxu0 %v3409
        %3485 = vmatprep.subr.mxu0 %v3406
        %3486 = vmatpush2.msra.mxu0 %v3405
        %3487 = vmatprep.subr.mxu0 %v3402
        %3488 = vmatpush2.msra.mxu0 %v3401
        %3489 = vmatprep.subr.mxu0 %v3398
        %3490 = vmatpush2.msra.mxu0 %v3397
        %3491 = vmatprep.subr.mxu0 %v3394
        %3492 = vmatpush2.msra.mxu0 %v3393
        %3493 = vmatprep.subr.mxu0 %v3390
        %3494 = vmatpush2.msra.mxu0 %v3389
        %3495 = vmatprep.subr.mxu0 %v3386
        %3496 = vmatpush2.msra.mxu0 %v3385
        %3497 = vmatprep.subr.mxu0 %v3382
        %3498 = vmatpush2.msra.mxu0 %v3381
        %3499 = vmatprep.subr.mxu0 %v3378
        %3500 = vmatpush2.msra.mxu0 %v3377
        %3501 = vmatprep.subr.mxu0 %v3374
        %3502 = vmatpush2.msra.mxu0 %v3373
        %3503 = vmatprep.subr.mxu0 %v3370
        %3504 = vmatpush2.msra.mxu0 %v3369
        %3505 = vmatprep.mubr.f32.mxu0 %v3438
        %3506 = vmatmul.mubr.f32.gmra.mxu0 %v3435
        %v3507 = vpop.f32.mrf.mxu0
        %v3508 = vadd.f32 0.0, %v3507
        %v3509 = vpop.f32.mrf.mxu0
        %v3510 = vadd.f32 0.0, %v3509
        %3511 = vdwg.mxu0
        %3512 = vmatprep.subr.mxu0 %v3368
        %3513 = vmatpush1.msra.mxu0 %v3367
        %3514 = vmatprep.subr.mxu0 %v3364
        %3515 = vmatpush1.msra.mxu0 %v3363
        %3516 = vmatprep.subr.mxu0 %v3360
        %3517 = vmatpush1.msra.mxu0 %v3359
        %3518 = vmatprep.subr.mxu0 %v3356
        %3519 = vmatpush1.msra.mxu0 %v3355
        %3520 = vmatprep.subr.mxu0 %v3352
        %3521 = vmatpush1.msra.mxu0 %v3351
        %3522 = vmatprep.subr.mxu0 %v3348
        %3523 = vmatpush1.msra.mxu0 %v3347
        %3524 = vmatprep.subr.mxu0 %v3344
        %3525 = vmatpush1.msra.mxu0 %v3343
        %3526 = vmatprep.subr.mxu0 %v3340
        %3527 = vmatpush1.msra.mxu0 %v3339
        %3528 = vmatprep.subr.mxu0 %v3336
        %3529 = vmatpush1.msra.mxu0 %v3335
        %3530 = vmatprep.subr.mxu0 %v3332
        %3531 = vmatpush1.msra.mxu0 %v3331
        %3532 = vmatprep.subr.mxu0 %v3328
        %3533 = vmatpush1.msra.mxu0 %v3327
        %3534 = vmatprep.subr.mxu0 %v3324
        %3535 = vmatpush1.msra.mxu0 %v3323
        %3536 = vmatprep.subr.mxu0 %v3320
        %3537 = vmatpush1.msra.mxu0 %v3319
        %3538 = vmatprep.subr.mxu0 %v3316
        %3539 = vmatpush1.msra.mxu0 %v3315
        %3540 = vmatprep.subr.mxu0 %v3312
        %3541 = vmatpush1.msra.mxu0 %v3311
        %3542 = vmatprep.subr.mxu0 %v3308
        %3543 = vmatpush1.msra.mxu0 %v3307
        %3544 = vmatprep.subr.mxu0 %v3432
        %3545 = vmatpush2.msra.mxu0 %v3431
        %3546 = vmatprep.subr.mxu0 %v3428
        %3547 = vmatpush2.msra.mxu0 %v3427
        %3548 = vmatprep.subr.mxu0 %v3424
        %3549 = vmatpush2.msra.mxu0 %v3423
        %3550 = vmatprep.subr.mxu0 %v3420
        %3551 = vmatpush2.msra.mxu0 %v3419
        %3552 = vmatprep.subr.mxu0 %v3416
        %3553 = vmatpush2.msra.mxu0 %v3415
        %3554 = vmatprep.subr.mxu0 %v3412
        %3555 = vmatpush2.msra.mxu0 %v3411
        %3556 = vmatprep.subr.mxu0 %v3408
        %3557 = vmatpush2.msra.mxu0 %v3407
        %3558 = vmatprep.subr.mxu0 %v3404
        %3559 = vmatpush2.msra.mxu0 %v3403
        %3560 = vmatprep.subr.mxu0 %v3400
        %3561 = vmatpush2.msra.mxu0 %v3399
        %3562 = vmatprep.subr.mxu0 %v3396
        %3563 = vmatpush2.msra.mxu0 %v3395
        %3564 = vmatprep.subr.mxu0 %v3392
        %3565 = vmatpush2.msra.mxu0 %v3391
        %3566 = vmatprep.subr.mxu0 %v3388
        %3567 = vmatpush2.msra.mxu0 %v3387
        %3568 = vmatprep.subr.mxu0 %v3384
        %3569 = vmatpush2.msra.mxu0 %v3383
        %3570 = vmatprep.subr.mxu0 %v3380
        %3571 = vmatpush2.msra.mxu0 %v3379
        %3572 = vmatprep.subr.mxu0 %v3376
        %3573 = vmatpush2.msra.mxu0 %v3375
        %3574 = vmatprep.subr.mxu0 %v3372
        %3575 = vmatpush2.msra.mxu0 %v3371
        %3576 = vmatprep.mubr.f32.mxu0 %v3438
        %3577 = vmatmul.mubr.f32.gmra.mxu0 %v3435
        %v3578 = vpop.f32.mrf.mxu0
        %v3579 = vadd.f32 0.0, %v3578
        %v3580 = vpop.f32.mrf.mxu0
        %v3581 = vadd.f32 0.0, %v3580
        %3582 = vdwg.mxu0
        %v3583 = vadd.f32 %v3300, %v3508
        %v3584 = vadd.f32 %v3301, %v3510
        %v3585 = vadd.f32 %v3302, %v3579
        %v3586 = vadd.f32 %v3303, %v3581
        %v3587 = vld [vmem:[%s4] sm:$0xf]
        %v3589 = vlaneseq
        %v3590 = vshrl.u32 %v3589, 7
        %v3591 = vsub.s32 0, %v3590
        %v3592 = vrot.slane %v3587, %v3591
        %v3593 = vlaneseq
        %v3594 = vshrl.u32 %v3593, 7
        %v3595 = vsub.s32 1, %v3594
        %v3596 = vrot.slane %v3587, %v3595
        %v3597 = vlaneseq
        %v3598 = vshrl.u32 %v3597, 7
        %v3599 = vsub.s32 2, %v3598
        %v3600 = vrot.slane %v3587, %v3599
        %v3601 = vlaneseq
        %v3602 = vshrl.u32 %v3601, 7
        %v3603 = vsub.s32 3, %v3602
        %v3604 = vrot.slane %v3587, %v3603
        %v3609 = vadd.f32 %v3583, %v3592
        %v3610 = vadd.f32 %v3584, %v3596
        %v3611 = vadd.f32 %v3585, %v3600
        %v3612 = vadd.f32 %v3586, %v3604
        %v3613 = vmax.f32 %v3609, 0.0
        %v3614 = vmax.f32 %v3610, 0.0
        %v3615 = vmax.f32 %v3611, 0.0
        %v3616 = vmax.f32 %v3612, 0.0
        %v3617 = vadd.f32 %v3613, %v3615
        %v3618 = vadd.f32 %v3614, %v3616
        %v3619 = vld [vmem:[%s5] sm:$0xff]
        %v3620 = vld [vmem:[%s5 + $0x8] sm:$0xff]
        %v3621 = vld [vmem:[%s5 + $0x10] sm:$0xff]
        %v3622 = vld [vmem:[%s5 + $0x18] sm:$0xff]
        %v3623 = vld [vmem:[%s5 + $0x20] sm:$0xff]
        %v3624 = vld [vmem:[%s5 + $0x28] sm:$0xff]
        %v3625 = vld [vmem:[%s5 + $0x30] sm:$0xff]
        %v3626 = vld [vmem:[%s5 + $0x38] sm:$0xff]
        %v3627 = vld [vmem:[%s5 + $0x40] sm:$0xff]
        %v3628 = vld [vmem:[%s5 + $0x48] sm:$0xff]
        %v3629 = vld [vmem:[%s5 + $0x50] sm:$0xff]
        %v3630 = vld [vmem:[%s5 + $0x58] sm:$0xff]
        %v3631 = vld [vmem:[%s5 + $0x60] sm:$0xff]
        %v3632 = vld [vmem:[%s5 + $0x68] sm:$0xff]
        %v3633 = vld [vmem:[%s5 + $0x70] sm:$0xff]
        %v3634 = vld [vmem:[%s5 + $0x78] sm:$0xff]
        %v3635 = vld [vmem:[%s5 + $0x80] sm:$0xff]
        %v3636 = vld [vmem:[%s5 + $0x88] sm:$0xff]
        %v3637 = vld [vmem:[%s5 + $0x90] sm:$0xff]
        %v3638 = vld [vmem:[%s5 + $0x98] sm:$0xff]
        %v3639 = vld [vmem:[%s5 + $0xa0] sm:$0xff]
        %v3640 = vld [vmem:[%s5 + $0xa8] sm:$0xff]
        %v3641 = vld [vmem:[%s5 + $0xb0] sm:$0xff]
        %v3642 = vld [vmem:[%s5 + $0xb8] sm:$0xff]
        %v3643 = vld [vmem:[%s5 + $0xc0] sm:$0xff]
        %v3644 = vld [vmem:[%s5 + $0xc8] sm:$0xff]
        %v3645 = vld [vmem:[%s5 + $0xd0] sm:$0xff]
        %v3646 = vld [vmem:[%s5 + $0xd8] sm:$0xff]
        %v3647 = vld [vmem:[%s5 + $0xe0] sm:$0xff]
        %v3648 = vld [vmem:[%s5 + $0xe8] sm:$0xff]
        %v3649 = vld [vmem:[%s5 + $0xf0] sm:$0xff]
        %v3650 = vld [vmem:[%s5 + $0xf8] sm:$0xff]
        %v3651 = vld [vmem:[%s5 + $0x100] sm:$0xff]
        %v3652 = vld [vmem:[%s5 + $0x108] sm:$0xff]
        %v3653 = vld [vmem:[%s5 + $0x110] sm:$0xff]
        %v3654 = vld [vmem:[%s5 + $0x118] sm:$0xff]
        %v3655 = vld [vmem:[%s5 + $0x120] sm:$0xff]
        %v3656 = vld [vmem:[%s5 + $0x128] sm:$0xff]
        %v3657 = vld [vmem:[%s5 + $0x130] sm:$0xff]
        %v3658 = vld [vmem:[%s5 + $0x138] sm:$0xff]
        %v3659 = vld [vmem:[%s5 + $0x140] sm:$0xff]
        %v3660 = vld [vmem:[%s5 + $0x148] sm:$0xff]
        %v3661 = vld [vmem:[%s5 + $0x150] sm:$0xff]
        %v3662 = vld [vmem:[%s5 + $0x158] sm:$0xff]
        %v3663 = vld [vmem:[%s5 + $0x160] sm:$0xff]
        %v3664 = vld [vmem:[%s5 + $0x168] sm:$0xff]
        %v3665 = vld [vmem:[%s5 + $0x170] sm:$0xff]
        %v3666 = vld [vmem:[%s5 + $0x178] sm:$0xff]
        %v3667 = vld [vmem:[%s5 + $0x180] sm:$0xff]
        %v3668 = vld [vmem:[%s5 + $0x188] sm:$0xff]
        %v3669 = vld [vmem:[%s5 + $0x190] sm:$0xff]
        %v3670 = vld [vmem:[%s5 + $0x198] sm:$0xff]
        %v3671 = vld [vmem:[%s5 + $0x1a0] sm:$0xff]
        %v3672 = vld [vmem:[%s5 + $0x1a8] sm:$0xff]
        %v3673 = vld [vmem:[%s5 + $0x1b0] sm:$0xff]
        %v3674 = vld [vmem:[%s5 + $0x1b8] sm:$0xff]
        %v3675 = vld [vmem:[%s5 + $0x1c0] sm:$0xff]
        %v3676 = vld [vmem:[%s5 + $0x1c8] sm:$0xff]
        %v3677 = vld [vmem:[%s5 + $0x1d0] sm:$0xff]
        %v3678 = vld [vmem:[%s5 + $0x1d8] sm:$0xff]
        %v3679 = vld [vmem:[%s5 + $0x1e0] sm:$0xff]
        %v3680 = vld [vmem:[%s5 + $0x1e8] sm:$0xff]
        %v3681 = vld [vmem:[%s5 + $0x1f0] sm:$0xff]
        %v3682 = vld [vmem:[%s5 + $0x1f8] sm:$0xff]
        %v3683 = vld [vmem:[%s5 + $0x200] sm:$0xff]
        %v3684 = vld [vmem:[%s5 + $0x208] sm:$0xff]
        %v3685 = vld [vmem:[%s5 + $0x210] sm:$0xff]
        %v3686 = vld [vmem:[%s5 + $0x218] sm:$0xff]
        %v3687 = vld [vmem:[%s5 + $0x220] sm:$0xff]
        %v3688 = vld [vmem:[%s5 + $0x228] sm:$0xff]
        %v3689 = vld [vmem:[%s5 + $0x230] sm:$0xff]
        %v3690 = vld [vmem:[%s5 + $0x238] sm:$0xff]
        %v3691 = vld [vmem:[%s5 + $0x240] sm:$0xff]
        %v3692 = vld [vmem:[%s5 + $0x248] sm:$0xff]
        %v3693 = vld [vmem:[%s5 + $0x250] sm:$0xff]
        %v3694 = vld [vmem:[%s5 + $0x258] sm:$0xff]
        %v3695 = vld [vmem:[%s5 + $0x260] sm:$0xff]
        %v3696 = vld [vmem:[%s5 + $0x268] sm:$0xff]
        %v3697 = vld [vmem:[%s5 + $0x270] sm:$0xff]
        %v3698 = vld [vmem:[%s5 + $0x278] sm:$0xff]
        %v3699 = vld [vmem:[%s5 + $0x280] sm:$0xff]
        %v3700 = vld [vmem:[%s5 + $0x288] sm:$0xff]
        %v3701 = vld [vmem:[%s5 + $0x290] sm:$0xff]
        %v3702 = vld [vmem:[%s5 + $0x298] sm:$0xff]
        %v3703 = vld [vmem:[%s5 + $0x2a0] sm:$0xff]
        %v3704 = vld [vmem:[%s5 + $0x2a8] sm:$0xff]
        %v3705 = vld [vmem:[%s5 + $0x2b0] sm:$0xff]
        %v3706 = vld [vmem:[%s5 + $0x2b8] sm:$0xff]
        %v3707 = vld [vmem:[%s5 + $0x2c0] sm:$0xff]
        %v3708 = vld [vmem:[%s5 + $0x2c8] sm:$0xff]
        %v3709 = vld [vmem:[%s5 + $0x2d0] sm:$0xff]
        %v3710 = vld [vmem:[%s5 + $0x2d8] sm:$0xff]
        %v3711 = vld [vmem:[%s5 + $0x2e0] sm:$0xff]
        %v3712 = vld [vmem:[%s5 + $0x2e8] sm:$0xff]
        %v3713 = vld [vmem:[%s5 + $0x2f0] sm:$0xff]
        %v3714 = vld [vmem:[%s5 + $0x2f8] sm:$0xff]
        %v3715 = vld [vmem:[%s5 + $0x300] sm:$0xff]
        %v3716 = vld [vmem:[%s5 + $0x308] sm:$0xff]
        %v3717 = vld [vmem:[%s5 + $0x310] sm:$0xff]
        %v3718 = vld [vmem:[%s5 + $0x318] sm:$0xff]
        %v3719 = vld [vmem:[%s5 + $0x320] sm:$0xff]
        %v3720 = vld [vmem:[%s5 + $0x328] sm:$0xff]
        %v3721 = vld [vmem:[%s5 + $0x330] sm:$0xff]
        %v3722 = vld [vmem:[%s5 + $0x338] sm:$0xff]
        %v3723 = vld [vmem:[%s5 + $0x340] sm:$0xff]
        %v3724 = vld [vmem:[%s5 + $0x348] sm:$0xff]
        %v3725 = vld [vmem:[%s5 + $0x350] sm:$0xff]
        %v3726 = vld [vmem:[%s5 + $0x358] sm:$0xff]
        %v3727 = vld [vmem:[%s5 + $0x360] sm:$0xff]
        %v3728 = vld [vmem:[%s5 + $0x368] sm:$0xff]
        %v3729 = vld [vmem:[%s5 + $0x370] sm:$0xff]
        %v3730 = vld [vmem:[%s5 + $0x378] sm:$0xff]
        %v3731 = vld [vmem:[%s5 + $0x380] sm:$0xff]
        %v3732 = vld [vmem:[%s5 + $0x388] sm:$0xff]
        %v3733 = vld [vmem:[%s5 + $0x390] sm:$0xff]
        %v3734 = vld [vmem:[%s5 + $0x398] sm:$0xff]
        %v3735 = vld [vmem:[%s5 + $0x3a0] sm:$0xff]
        %v3736 = vld [vmem:[%s5 + $0x3a8] sm:$0xff]
        %v3737 = vld [vmem:[%s5 + $0x3b0] sm:$0xff]
        %v3738 = vld [vmem:[%s5 + $0x3b8] sm:$0xff]
        %v3739 = vld [vmem:[%s5 + $0x3c0] sm:$0xff]
        %v3740 = vld [vmem:[%s5 + $0x3c8] sm:$0xff]
        %v3741 = vld [vmem:[%s5 + $0x3d0] sm:$0xff]
        %v3742 = vld [vmem:[%s5 + $0x3d8] sm:$0xff]
        %v3743 = vld [vmem:[%s5 + $0x3e0] sm:$0xff]
        %v3744 = vld [vmem:[%s5 + $0x3e8] sm:$0xff]
        %v3745 = vld [vmem:[%s5 + $0x3f0] sm:$0xff]
        %v3746 = vld [vmem:[%s5 + $0x3f8] sm:$0xff]
        %s3747 = scalar_lea.vmem %s5, 1024
        %v3748 = vld [vmem:[%s3747] sm:$0xff]
        %v3749 = vld [vmem:[%s3747 + $0x8] sm:$0xff]
        %v3750 = vld [vmem:[%s3747 + $0x10] sm:$0xff]
        %v3751 = vld [vmem:[%s3747 + $0x18] sm:$0xff]
        %v3752 = vld [vmem:[%s3747 + $0x20] sm:$0xff]
        %v3753 = vld [vmem:[%s3747 + $0x28] sm:$0xff]
        %v3754 = vld [vmem:[%s3747 + $0x30] sm:$0xff]
        %v3755 = vld [vmem:[%s3747 + $0x38] sm:$0xff]
        %v3756 = vld [vmem:[%s3747 + $0x40] sm:$0xff]
        %v3757 = vld [vmem:[%s3747 + $0x48] sm:$0xff]
        %v3758 = vld [vmem:[%s3747 + $0x50] sm:$0xff]
        %v3759 = vld [vmem:[%s3747 + $0x58] sm:$0xff]
        %v3760 = vld [vmem:[%s3747 + $0x60] sm:$0xff]
        %v3761 = vld [vmem:[%s3747 + $0x68] sm:$0xff]
        %v3762 = vld [vmem:[%s3747 + $0x70] sm:$0xff]
        %v3763 = vld [vmem:[%s3747 + $0x78] sm:$0xff]
        %v3764 = vld [vmem:[%s3747 + $0x80] sm:$0xff]
        %v3765 = vld [vmem:[%s3747 + $0x88] sm:$0xff]
        %v3766 = vld [vmem:[%s3747 + $0x90] sm:$0xff]
        %v3767 = vld [vmem:[%s3747 + $0x98] sm:$0xff]
        %v3768 = vld [vmem:[%s3747 + $0xa0] sm:$0xff]
        %v3769 = vld [vmem:[%s3747 + $0xa8] sm:$0xff]
        %v3770 = vld [vmem:[%s3747 + $0xb0] sm:$0xff]
        %v3771 = vld [vmem:[%s3747 + $0xb8] sm:$0xff]
        %v3772 = vld [vmem:[%s3747 + $0xc0] sm:$0xff]
        %v3773 = vld [vmem:[%s3747 + $0xc8] sm:$0xff]
        %v3774 = vld [vmem:[%s3747 + $0xd0] sm:$0xff]
        %v3775 = vld [vmem:[%s3747 + $0xd8] sm:$0xff]
        %v3776 = vld [vmem:[%s3747 + $0xe0] sm:$0xff]
        %v3777 = vld [vmem:[%s3747 + $0xe8] sm:$0xff]
        %v3778 = vld [vmem:[%s3747 + $0xf0] sm:$0xff]
        %v3779 = vld [vmem:[%s3747 + $0xf8] sm:$0xff]
        %v3780 = vld [vmem:[%s3747 + $0x100] sm:$0xff]
        %v3781 = vld [vmem:[%s3747 + $0x108] sm:$0xff]
        %v3782 = vld [vmem:[%s3747 + $0x110] sm:$0xff]
        %v3783 = vld [vmem:[%s3747 + $0x118] sm:$0xff]
        %v3784 = vld [vmem:[%s3747 + $0x120] sm:$0xff]
        %v3785 = vld [vmem:[%s3747 + $0x128] sm:$0xff]
        %v3786 = vld [vmem:[%s3747 + $0x130] sm:$0xff]
        %v3787 = vld [vmem:[%s3747 + $0x138] sm:$0xff]
        %v3788 = vld [vmem:[%s3747 + $0x140] sm:$0xff]
        %v3789 = vld [vmem:[%s3747 + $0x148] sm:$0xff]
        %v3790 = vld [vmem:[%s3747 + $0x150] sm:$0xff]
        %v3791 = vld [vmem:[%s3747 + $0x158] sm:$0xff]
        %v3792 = vld [vmem:[%s3747 + $0x160] sm:$0xff]
        %v3793 = vld [vmem:[%s3747 + $0x168] sm:$0xff]
        %v3794 = vld [vmem:[%s3747 + $0x170] sm:$0xff]
        %v3795 = vld [vmem:[%s3747 + $0x178] sm:$0xff]
        %v3796 = vld [vmem:[%s3747 + $0x180] sm:$0xff]
        %v3797 = vld [vmem:[%s3747 + $0x188] sm:$0xff]
        %v3798 = vld [vmem:[%s3747 + $0x190] sm:$0xff]
        %v3799 = vld [vmem:[%s3747 + $0x198] sm:$0xff]
        %v3800 = vld [vmem:[%s3747 + $0x1a0] sm:$0xff]
        %v3801 = vld [vmem:[%s3747 + $0x1a8] sm:$0xff]
        %v3802 = vld [vmem:[%s3747 + $0x1b0] sm:$0xff]
        %v3803 = vld [vmem:[%s3747 + $0x1b8] sm:$0xff]
        %v3804 = vld [vmem:[%s3747 + $0x1c0] sm:$0xff]
        %v3805 = vld [vmem:[%s3747 + $0x1c8] sm:$0xff]
        %v3806 = vld [vmem:[%s3747 + $0x1d0] sm:$0xff]
        %v3807 = vld [vmem:[%s3747 + $0x1d8] sm:$0xff]
        %v3808 = vld [vmem:[%s3747 + $0x1e0] sm:$0xff]
        %v3809 = vld [vmem:[%s3747 + $0x1e8] sm:$0xff]
        %v3810 = vld [vmem:[%s3747 + $0x1f0] sm:$0xff]
        %v3811 = vld [vmem:[%s3747 + $0x1f8] sm:$0xff]
        %v3812 = vld [vmem:[%s3747 + $0x200] sm:$0xff]
        %v3813 = vld [vmem:[%s3747 + $0x208] sm:$0xff]
        %v3814 = vld [vmem:[%s3747 + $0x210] sm:$0xff]
        %v3815 = vld [vmem:[%s3747 + $0x218] sm:$0xff]
        %v3816 = vld [vmem:[%s3747 + $0x220] sm:$0xff]
        %v3817 = vld [vmem:[%s3747 + $0x228] sm:$0xff]
        %v3818 = vld [vmem:[%s3747 + $0x230] sm:$0xff]
        %v3819 = vld [vmem:[%s3747 + $0x238] sm:$0xff]
        %v3820 = vld [vmem:[%s3747 + $0x240] sm:$0xff]
        %v3821 = vld [vmem:[%s3747 + $0x248] sm:$0xff]
        %v3822 = vld [vmem:[%s3747 + $0x250] sm:$0xff]
        %v3823 = vld [vmem:[%s3747 + $0x258] sm:$0xff]
        %v3824 = vld [vmem:[%s3747 + $0x260] sm:$0xff]
        %v3825 = vld [vmem:[%s3747 + $0x268] sm:$0xff]
        %v3826 = vld [vmem:[%s3747 + $0x270] sm:$0xff]
        %v3827 = vld [vmem:[%s3747 + $0x278] sm:$0xff]
        %v3828 = vld [vmem:[%s3747 + $0x280] sm:$0xff]
        %v3829 = vld [vmem:[%s3747 + $0x288] sm:$0xff]
        %v3830 = vld [vmem:[%s3747 + $0x290] sm:$0xff]
        %v3831 = vld [vmem:[%s3747 + $0x298] sm:$0xff]
        %v3832 = vld [vmem:[%s3747 + $0x2a0] sm:$0xff]
        %v3833 = vld [vmem:[%s3747 + $0x2a8] sm:$0xff]
        %v3834 = vld [vmem:[%s3747 + $0x2b0] sm:$0xff]
        %v3835 = vld [vmem:[%s3747 + $0x2b8] sm:$0xff]
        %v3836 = vld [vmem:[%s3747 + $0x2c0] sm:$0xff]
        %v3837 = vld [vmem:[%s3747 + $0x2c8] sm:$0xff]
        %v3838 = vld [vmem:[%s3747 + $0x2d0] sm:$0xff]
        %v3839 = vld [vmem:[%s3747 + $0x2d8] sm:$0xff]
        %v3840 = vld [vmem:[%s3747 + $0x2e0] sm:$0xff]
        %v3841 = vld [vmem:[%s3747 + $0x2e8] sm:$0xff]
        %v3842 = vld [vmem:[%s3747 + $0x2f0] sm:$0xff]
        %v3843 = vld [vmem:[%s3747 + $0x2f8] sm:$0xff]
        %v3844 = vld [vmem:[%s3747 + $0x300] sm:$0xff]
        %v3845 = vld [vmem:[%s3747 + $0x308] sm:$0xff]
        %v3846 = vld [vmem:[%s3747 + $0x310] sm:$0xff]
        %v3847 = vld [vmem:[%s3747 + $0x318] sm:$0xff]
        %v3848 = vld [vmem:[%s3747 + $0x320] sm:$0xff]
        %v3849 = vld [vmem:[%s3747 + $0x328] sm:$0xff]
        %v3850 = vld [vmem:[%s3747 + $0x330] sm:$0xff]
        %v3851 = vld [vmem:[%s3747 + $0x338] sm:$0xff]
        %v3852 = vld [vmem:[%s3747 + $0x340] sm:$0xff]
        %v3853 = vld [vmem:[%s3747 + $0x348] sm:$0xff]
        %v3854 = vld [vmem:[%s3747 + $0x350] sm:$0xff]
        %v3855 = vld [vmem:[%s3747 + $0x358] sm:$0xff]
        %v3856 = vld [vmem:[%s3747 + $0x360] sm:$0xff]
        %v3857 = vld [vmem:[%s3747 + $0x368] sm:$0xff]
        %v3858 = vld [vmem:[%s3747 + $0x370] sm:$0xff]
        %v3859 = vld [vmem:[%s3747 + $0x378] sm:$0xff]
        %v3860 = vld [vmem:[%s3747 + $0x380] sm:$0xff]
        %v3861 = vld [vmem:[%s3747 + $0x388] sm:$0xff]
        %v3862 = vld [vmem:[%s3747 + $0x390] sm:$0xff]
        %v3863 = vld [vmem:[%s3747 + $0x398] sm:$0xff]
        %v3864 = vld [vmem:[%s3747 + $0x3a0] sm:$0xff]
        %v3865 = vld [vmem:[%s3747 + $0x3a8] sm:$0xff]
        %v3866 = vld [vmem:[%s3747 + $0x3b0] sm:$0xff]
        %v3867 = vld [vmem:[%s3747 + $0x3b8] sm:$0xff]
        %v3868 = vld [vmem:[%s3747 + $0x3c0] sm:$0xff]
        %v3869 = vld [vmem:[%s3747 + $0x3c8] sm:$0xff]
        %v3870 = vld [vmem:[%s3747 + $0x3d0] sm:$0xff]
        %v3871 = vld [vmem:[%s3747 + $0x3d8] sm:$0xff]
        %v3872 = vld [vmem:[%s3747 + $0x3e0] sm:$0xff]
        %v3873 = vld [vmem:[%s3747 + $0x3e8] sm:$0xff]
        %v3874 = vld [vmem:[%s3747 + $0x3f0] sm:$0xff]
        %v3875 = vld [vmem:[%s3747 + $0x3f8] sm:$0xff]
        %v3878 = vrot.slane %v3617, 1
        %v3879 = vrot.slane %v3618, 1
        %3882 = vmatprep.subr.mxu0 %v3809
        %3883 = vmatpush1.msra.mxu0 %v3808
        %3884 = vmatprep.subr.mxu0 %v3805
        %3885 = vmatpush1.msra.mxu0 %v3804
        %3886 = vmatprep.subr.mxu0 %v3801
        %3887 = vmatpush1.msra.mxu0 %v3800
        %3888 = vmatprep.subr.mxu0 %v3797
        %3889 = vmatpush1.msra.mxu0 %v3796
        %3890 = vmatprep.subr.mxu0 %v3793
        %3891 = vmatpush1.msra.mxu0 %v3792
        %3892 = vmatprep.subr.mxu0 %v3789
        %3893 = vmatpush1.msra.mxu0 %v3788
        %3894 = vmatprep.subr.mxu0 %v3785
        %3895 = vmatpush1.msra.mxu0 %v3784
        %3896 = vmatprep.subr.mxu0 %v3781
        %3897 = vmatpush1.msra.mxu0 %v3780
        %3898 = vmatprep.subr.mxu0 %v3777
        %3899 = vmatpush1.msra.mxu0 %v3776
        %3900 = vmatprep.subr.mxu0 %v3773
        %3901 = vmatpush1.msra.mxu0 %v3772
        %3902 = vmatprep.subr.mxu0 %v3769
        %3903 = vmatpush1.msra.mxu0 %v3768
        %3904 = vmatprep.subr.mxu0 %v3765
        %3905 = vmatpush1.msra.mxu0 %v3764
        %3906 = vmatprep.subr.mxu0 %v3761
        %3907 = vmatpush1.msra.mxu0 %v3760
        %3908 = vmatprep.subr.mxu0 %v3757
        %3909 = vmatpush1.msra.mxu0 %v3756
        %3910 = vmatprep.subr.mxu0 %v3753
        %3911 = vmatpush1.msra.mxu0 %v3752
        %3912 = vmatprep.subr.mxu0 %v3749
        %3913 = vmatpush1.msra.mxu0 %v3748
        %3914 = vmatprep.subr.mxu0 %v3873
        %3915 = vmatpush2.msra.mxu0 %v3872
        %3916 = vmatprep.subr.mxu0 %v3869
        %3917 = vmatpush2.msra.mxu0 %v3868
        %3918 = vmatprep.subr.mxu0 %v3865
        %3919 = vmatpush2.msra.mxu0 %v3864
        %3920 = vmatprep.subr.mxu0 %v3861
        %3921 = vmatpush2.msra.mxu0 %v3860
        %3922 = vmatprep.subr.mxu0 %v3857
        %3923 = vmatpush2.msra.mxu0 %v3856
        %3924 = vmatprep.subr.mxu0 %v3853
        %3925 = vmatpush2.msra.mxu0 %v3852
        %3926 = vmatprep.subr.mxu0 %v3849
        %3927 = vmatpush2.msra.mxu0 %v3848
        %3928 = vmatprep.subr.mxu0 %v3845
        %3929 = vmatpush2.msra.mxu0 %v3844
        %3930 = vmatprep.subr.mxu0 %v3841
        %3931 = vmatpush2.msra.mxu0 %v3840
        %3932 = vmatprep.subr.mxu0 %v3837
        %3933 = vmatpush2.msra.mxu0 %v3836
        %3934 = vmatprep.subr.mxu0 %v3833
        %3935 = vmatpush2.msra.mxu0 %v3832
        %3936 = vmatprep.subr.mxu0 %v3829
        %3937 = vmatpush2.msra.mxu0 %v3828
        %3938 = vmatprep.subr.mxu0 %v3825
        %3939 = vmatpush2.msra.mxu0 %v3824
        %3940 = vmatprep.subr.mxu0 %v3821
        %3941 = vmatpush2.msra.mxu0 %v3820
        %3942 = vmatprep.subr.mxu0 %v3817
        %3943 = vmatpush2.msra.mxu0 %v3816
        %3944 = vmatprep.subr.mxu0 %v3813
        %3945 = vmatpush2.msra.mxu0 %v3812
        %3946 = vmatprep.mubr.f32.mxu0 %v3879
        %3947 = vmatmul.mubr.f32.gmra.mxu0 %v3878
        %v3948 = vpop.f32.mrf.mxu0
        %v3949 = vadd.f32 0.0, %v3948
        %v3950 = vpop.f32.mrf.mxu0
        %v3951 = vadd.f32 0.0, %v3950
        %3952 = vdwg.mxu0
        %3953 = vmatprep.subr.mxu0 %v3811
        %3954 = vmatpush1.msra.mxu0 %v3810
        %3955 = vmatprep.subr.mxu0 %v3807
        %3956 = vmatpush1.msra.mxu0 %v3806
        %3957 = vmatprep.subr.mxu0 %v3803
        %3958 = vmatpush1.msra.mxu0 %v3802
        %3959 = vmatprep.subr.mxu0 %v3799
        %3960 = vmatpush1.msra.mxu0 %v3798
        %3961 = vmatprep.subr.mxu0 %v3795
        %3962 = vmatpush1.msra.mxu0 %v3794
        %3963 = vmatprep.subr.mxu0 %v3791
        %3964 = vmatpush1.msra.mxu0 %v3790
        %3965 = vmatprep.subr.mxu0 %v3787
        %3966 = vmatpush1.msra.mxu0 %v3786
        %3967 = vmatprep.subr.mxu0 %v3783
        %3968 = vmatpush1.msra.mxu0 %v3782
        %3969 = vmatprep.subr.mxu0 %v3779
        %3970 = vmatpush1.msra.mxu0 %v3778
        %3971 = vmatprep.subr.mxu0 %v3775
        %3972 = vmatpush1.msra.mxu0 %v3774
        %3973 = vmatprep.subr.mxu0 %v3771
        %3974 = vmatpush1.msra.mxu0 %v3770
        %3975 = vmatprep.subr.mxu0 %v3767
        %3976 = vmatpush1.msra.mxu0 %v3766
        %3977 = vmatprep.subr.mxu0 %v3763
        %3978 = vmatpush1.msra.mxu0 %v3762
        %3979 = vmatprep.subr.mxu0 %v3759
        %3980 = vmatpush1.msra.mxu0 %v3758
        %3981 = vmatprep.subr.mxu0 %v3755
        %3982 = vmatpush1.msra.mxu0 %v3754
        %3983 = vmatprep.subr.mxu0 %v3751
        %3984 = vmatpush1.msra.mxu0 %v3750
        %3985 = vmatprep.subr.mxu0 %v3875
        %3986 = vmatpush2.msra.mxu0 %v3874
        %3987 = vmatprep.subr.mxu0 %v3871
        %3988 = vmatpush2.msra.mxu0 %v3870
        %3989 = vmatprep.subr.mxu0 %v3867
        %3990 = vmatpush2.msra.mxu0 %v3866
        %3991 = vmatprep.subr.mxu0 %v3863
        %3992 = vmatpush2.msra.mxu0 %v3862
        %3993 = vmatprep.subr.mxu0 %v3859
        %3994 = vmatpush2.msra.mxu0 %v3858
        %3995 = vmatprep.subr.mxu0 %v3855
        %3996 = vmatpush2.msra.mxu0 %v3854
        %3997 = vmatprep.subr.mxu0 %v3851
        %3998 = vmatpush2.msra.mxu0 %v3850
        %3999 = vmatprep.subr.mxu0 %v3847
        %4000 = vmatpush2.msra.mxu0 %v3846
        %4001 = vmatprep.subr.mxu0 %v3843
        %4002 = vmatpush2.msra.mxu0 %v3842
        %4003 = vmatprep.subr.mxu0 %v3839
        %4004 = vmatpush2.msra.mxu0 %v3838
        %4005 = vmatprep.subr.mxu0 %v3835
        %4006 = vmatpush2.msra.mxu0 %v3834
        %4007 = vmatprep.subr.mxu0 %v3831
        %4008 = vmatpush2.msra.mxu0 %v3830
        %4009 = vmatprep.subr.mxu0 %v3827
        %4010 = vmatpush2.msra.mxu0 %v3826
        %4011 = vmatprep.subr.mxu0 %v3823
        %4012 = vmatpush2.msra.mxu0 %v3822
        %4013 = vmatprep.subr.mxu0 %v3819
        %4014 = vmatpush2.msra.mxu0 %v3818
        %4015 = vmatprep.subr.mxu0 %v3815
        %4016 = vmatpush2.msra.mxu0 %v3814
        %4017 = vmatprep.mubr.f32.mxu0 %v3879
        %4018 = vmatmul.mubr.f32.gmra.mxu0 %v3878
        %v4019 = vpop.f32.mrf.mxu0
        %v4020 = vadd.f32 0.0, %v4019
        %v4021 = vpop.f32.mrf.mxu0
        %v4022 = vadd.f32 0.0, %v4021
        %4023 = vdwg.mxu0
        %4024 = vmatprep.subr.mxu0 %v3680
        %4025 = vmatpush1.msra.mxu0 %v3679
        %4026 = vmatprep.subr.mxu0 %v3676
        %4027 = vmatpush1.msra.mxu0 %v3675
        %4028 = vmatprep.subr.mxu0 %v3672
        %4029 = vmatpush1.msra.mxu0 %v3671
        %4030 = vmatprep.subr.mxu0 %v3668
        %4031 = vmatpush1.msra.mxu0 %v3667
        %4032 = vmatprep.subr.mxu0 %v3664
        %4033 = vmatpush1.msra.mxu0 %v3663
        %4034 = vmatprep.subr.mxu0 %v3660
        %4035 = vmatpush1.msra.mxu0 %v3659
        %4036 = vmatprep.subr.mxu0 %v3656
        %4037 = vmatpush1.msra.mxu0 %v3655
        %4038 = vmatprep.subr.mxu0 %v3652
        %4039 = vmatpush1.msra.mxu0 %v3651
        %4040 = vmatprep.subr.mxu0 %v3648
        %4041 = vmatpush1.msra.mxu0 %v3647
        %4042 = vmatprep.subr.mxu0 %v3644
        %4043 = vmatpush1.msra.mxu0 %v3643
        %4044 = vmatprep.subr.mxu0 %v3640
        %4045 = vmatpush1.msra.mxu0 %v3639
        %4046 = vmatprep.subr.mxu0 %v3636
        %4047 = vmatpush1.msra.mxu0 %v3635
        %4048 = vmatprep.subr.mxu0 %v3632
        %4049 = vmatpush1.msra.mxu0 %v3631
        %4050 = vmatprep.subr.mxu0 %v3628
        %4051 = vmatpush1.msra.mxu0 %v3627
        %4052 = vmatprep.subr.mxu0 %v3624
        %4053 = vmatpush1.msra.mxu0 %v3623
        %4054 = vmatprep.subr.mxu0 %v3620
        %4055 = vmatpush1.msra.mxu0 %v3619
        %4056 = vmatprep.subr.mxu0 %v3744
        %4057 = vmatpush2.msra.mxu0 %v3743
        %4058 = vmatprep.subr.mxu0 %v3740
        %4059 = vmatpush2.msra.mxu0 %v3739
        %4060 = vmatprep.subr.mxu0 %v3736
        %4061 = vmatpush2.msra.mxu0 %v3735
        %4062 = vmatprep.subr.mxu0 %v3732
        %4063 = vmatpush2.msra.mxu0 %v3731
        %4064 = vmatprep.subr.mxu0 %v3728
        %4065 = vmatpush2.msra.mxu0 %v3727
        %4066 = vmatprep.subr.mxu0 %v3724
        %4067 = vmatpush2.msra.mxu0 %v3723
        %4068 = vmatprep.subr.mxu0 %v3720
        %4069 = vmatpush2.msra.mxu0 %v3719
        %4070 = vmatprep.subr.mxu0 %v3716
        %4071 = vmatpush2.msra.mxu0 %v3715
        %4072 = vmatprep.subr.mxu0 %v3712
        %4073 = vmatpush2.msra.mxu0 %v3711
        %4074 = vmatprep.subr.mxu0 %v3708
        %4075 = vmatpush2.msra.mxu0 %v3707
        %4076 = vmatprep.subr.mxu0 %v3704
        %4077 = vmatpush2.msra.mxu0 %v3703
        %4078 = vmatprep.subr.mxu0 %v3700
        %4079 = vmatpush2.msra.mxu0 %v3699
        %4080 = vmatprep.subr.mxu0 %v3696
        %4081 = vmatpush2.msra.mxu0 %v3695
        %4082 = vmatprep.subr.mxu0 %v3692
        %4083 = vmatpush2.msra.mxu0 %v3691
        %4084 = vmatprep.subr.mxu0 %v3688
        %4085 = vmatpush2.msra.mxu0 %v3687
        %4086 = vmatprep.subr.mxu0 %v3684
        %4087 = vmatpush2.msra.mxu0 %v3683
        %4088 = vmatprep.mubr.f32.mxu0 %v3618
        %4089 = vmatmul.mubr.f32.gmra.mxu0 %v3617
        %v4090 = vpop.f32.mrf.mxu0
        %v4091 = vadd.f32 %v3949, %v4090
        %v4092 = vpop.f32.mrf.mxu0
        %v4093 = vadd.f32 %v3951, %v4092
        %4094 = vdwg.mxu0
        %4095 = vmatprep.subr.mxu0 %v3682
        %4096 = vmatpush1.msra.mxu0 %v3681
        %4097 = vmatprep.subr.mxu0 %v3678
        %4098 = vmatpush1.msra.mxu0 %v3677
        %4099 = vmatprep.subr.mxu0 %v3674
        %4100 = vmatpush1.msra.mxu0 %v3673
        %4101 = vmatprep.subr.mxu0 %v3670
        %4102 = vmatpush1.msra.mxu0 %v3669
        %4103 = vmatprep.subr.mxu0 %v3666
        %4104 = vmatpush1.msra.mxu0 %v3665
        %4105 = vmatprep.subr.mxu0 %v3662
        %4106 = vmatpush1.msra.mxu0 %v3661
        %4107 = vmatprep.subr.mxu0 %v3658
        %4108 = vmatpush1.msra.mxu0 %v3657
        %4109 = vmatprep.subr.mxu0 %v3654
        %4110 = vmatpush1.msra.mxu0 %v3653
        %4111 = vmatprep.subr.mxu0 %v3650
        %4112 = vmatpush1.msra.mxu0 %v3649
        %4113 = vmatprep.subr.mxu0 %v3646
        %4114 = vmatpush1.msra.mxu0 %v3645
        %4115 = vmatprep.subr.mxu0 %v3642
        %4116 = vmatpush1.msra.mxu0 %v3641
        %4117 = vmatprep.subr.mxu0 %v3638
        %4118 = vmatpush1.msra.mxu0 %v3637
        %4119 = vmatprep.subr.mxu0 %v3634
        %4120 = vmatpush1.msra.mxu0 %v3633
        %4121 = vmatprep.subr.mxu0 %v3630
        %4122 = vmatpush1.msra.mxu0 %v3629
        %4123 = vmatprep.subr.mxu0 %v3626
        %4124 = vmatpush1.msra.mxu0 %v3625
        %4125 = vmatprep.subr.mxu0 %v3622
        %4126 = vmatpush1.msra.mxu0 %v3621
        %4127 = vmatprep.subr.mxu0 %v3746
        %4128 = vmatpush2.msra.mxu0 %v3745
        %4129 = vmatprep.subr.mxu0 %v3742
        %4130 = vmatpush2.msra.mxu0 %v3741
        %4131 = vmatprep.subr.mxu0 %v3738
        %4132 = vmatpush2.msra.mxu0 %v3737
        %4133 = vmatprep.subr.mxu0 %v3734
        %4134 = vmatpush2.msra.mxu0 %v3733
        %4135 = vmatprep.subr.mxu0 %v3730
        %4136 = vmatpush2.msra.mxu0 %v3729
        %4137 = vmatprep.subr.mxu0 %v3726
        %4138 = vmatpush2.msra.mxu0 %v3725
        %4139 = vmatprep.subr.mxu0 %v3722
        %4140 = vmatpush2.msra.mxu0 %v3721
        %4141 = vmatprep.subr.mxu0 %v3718
        %4142 = vmatpush2.msra.mxu0 %v3717
        %4143 = vmatprep.subr.mxu0 %v3714
        %4144 = vmatpush2.msra.mxu0 %v3713
        %4145 = vmatprep.subr.mxu0 %v3710
        %4146 = vmatpush2.msra.mxu0 %v3709
        %4147 = vmatprep.subr.mxu0 %v3706
        %4148 = vmatpush2.msra.mxu0 %v3705
        %4149 = vmatprep.subr.mxu0 %v3702
        %4150 = vmatpush2.msra.mxu0 %v3701
        %4151 = vmatprep.subr.mxu0 %v3698
        %4152 = vmatpush2.msra.mxu0 %v3697
        %4153 = vmatprep.subr.mxu0 %v3694
        %4154 = vmatpush2.msra.mxu0 %v3693
        %4155 = vmatprep.subr.mxu0 %v3690
        %4156 = vmatpush2.msra.mxu0 %v3689
        %4157 = vmatprep.subr.mxu0 %v3686
        %4158 = vmatpush2.msra.mxu0 %v3685
        %4159 = vmatprep.mubr.f32.mxu0 %v3618
        %4160 = vmatmul.mubr.f32.gmra.mxu0 %v3617
        %v4161 = vpop.f32.mrf.mxu0
        %v4162 = vadd.f32 %v4020, %v4161
        %v4163 = vpop.f32.mrf.mxu0
        %v4164 = vadd.f32 %v4022, %v4163
        %4165 = vdwg.mxu0
        %s4166 = scalar_lea.vmem %s5, 2048
        %v4167 = vld [vmem:[%s4166] sm:$0xff]
        %v4168 = vld [vmem:[%s4166 + $0x8] sm:$0xff]
        %v4169 = vld [vmem:[%s4166 + $0x10] sm:$0xff]
        %v4170 = vld [vmem:[%s4166 + $0x18] sm:$0xff]
        %v4171 = vld [vmem:[%s4166 + $0x20] sm:$0xff]
        %v4172 = vld [vmem:[%s4166 + $0x28] sm:$0xff]
        %v4173 = vld [vmem:[%s4166 + $0x30] sm:$0xff]
        %v4174 = vld [vmem:[%s4166 + $0x38] sm:$0xff]
        %v4175 = vld [vmem:[%s4166 + $0x40] sm:$0xff]
        %v4176 = vld [vmem:[%s4166 + $0x48] sm:$0xff]
        %v4177 = vld [vmem:[%s4166 + $0x50] sm:$0xff]
        %v4178 = vld [vmem:[%s4166 + $0x58] sm:$0xff]
        %v4179 = vld [vmem:[%s4166 + $0x60] sm:$0xff]
        %v4180 = vld [vmem:[%s4166 + $0x68] sm:$0xff]
        %v4181 = vld [vmem:[%s4166 + $0x70] sm:$0xff]
        %v4182 = vld [vmem:[%s4166 + $0x78] sm:$0xff]
        %v4183 = vld [vmem:[%s4166 + $0x80] sm:$0xff]
        %v4184 = vld [vmem:[%s4166 + $0x88] sm:$0xff]
        %v4185 = vld [vmem:[%s4166 + $0x90] sm:$0xff]
        %v4186 = vld [vmem:[%s4166 + $0x98] sm:$0xff]
        %v4187 = vld [vmem:[%s4166 + $0xa0] sm:$0xff]
        %v4188 = vld [vmem:[%s4166 + $0xa8] sm:$0xff]
        %v4189 = vld [vmem:[%s4166 + $0xb0] sm:$0xff]
        %v4190 = vld [vmem:[%s4166 + $0xb8] sm:$0xff]
        %v4191 = vld [vmem:[%s4166 + $0xc0] sm:$0xff]
        %v4192 = vld [vmem:[%s4166 + $0xc8] sm:$0xff]
        %v4193 = vld [vmem:[%s4166 + $0xd0] sm:$0xff]
        %v4194 = vld [vmem:[%s4166 + $0xd8] sm:$0xff]
        %v4195 = vld [vmem:[%s4166 + $0xe0] sm:$0xff]
        %v4196 = vld [vmem:[%s4166 + $0xe8] sm:$0xff]
        %v4197 = vld [vmem:[%s4166 + $0xf0] sm:$0xff]
        %v4198 = vld [vmem:[%s4166 + $0xf8] sm:$0xff]
        %v4199 = vld [vmem:[%s4166 + $0x100] sm:$0xff]
        %v4200 = vld [vmem:[%s4166 + $0x108] sm:$0xff]
        %v4201 = vld [vmem:[%s4166 + $0x110] sm:$0xff]
        %v4202 = vld [vmem:[%s4166 + $0x118] sm:$0xff]
        %v4203 = vld [vmem:[%s4166 + $0x120] sm:$0xff]
        %v4204 = vld [vmem:[%s4166 + $0x128] sm:$0xff]
        %v4205 = vld [vmem:[%s4166 + $0x130] sm:$0xff]
        %v4206 = vld [vmem:[%s4166 + $0x138] sm:$0xff]
        %v4207 = vld [vmem:[%s4166 + $0x140] sm:$0xff]
        %v4208 = vld [vmem:[%s4166 + $0x148] sm:$0xff]
        %v4209 = vld [vmem:[%s4166 + $0x150] sm:$0xff]
        %v4210 = vld [vmem:[%s4166 + $0x158] sm:$0xff]
        %v4211 = vld [vmem:[%s4166 + $0x160] sm:$0xff]
        %v4212 = vld [vmem:[%s4166 + $0x168] sm:$0xff]
        %v4213 = vld [vmem:[%s4166 + $0x170] sm:$0xff]
        %v4214 = vld [vmem:[%s4166 + $0x178] sm:$0xff]
        %v4215 = vld [vmem:[%s4166 + $0x180] sm:$0xff]
        %v4216 = vld [vmem:[%s4166 + $0x188] sm:$0xff]
        %v4217 = vld [vmem:[%s4166 + $0x190] sm:$0xff]
        %v4218 = vld [vmem:[%s4166 + $0x198] sm:$0xff]
        %v4219 = vld [vmem:[%s4166 + $0x1a0] sm:$0xff]
        %v4220 = vld [vmem:[%s4166 + $0x1a8] sm:$0xff]
        %v4221 = vld [vmem:[%s4166 + $0x1b0] sm:$0xff]
        %v4222 = vld [vmem:[%s4166 + $0x1b8] sm:$0xff]
        %v4223 = vld [vmem:[%s4166 + $0x1c0] sm:$0xff]
        %v4224 = vld [vmem:[%s4166 + $0x1c8] sm:$0xff]
        %v4225 = vld [vmem:[%s4166 + $0x1d0] sm:$0xff]
        %v4226 = vld [vmem:[%s4166 + $0x1d8] sm:$0xff]
        %v4227 = vld [vmem:[%s4166 + $0x1e0] sm:$0xff]
        %v4228 = vld [vmem:[%s4166 + $0x1e8] sm:$0xff]
        %v4229 = vld [vmem:[%s4166 + $0x1f0] sm:$0xff]
        %v4230 = vld [vmem:[%s4166 + $0x1f8] sm:$0xff]
        %v4231 = vld [vmem:[%s4166 + $0x200] sm:$0xff]
        %v4232 = vld [vmem:[%s4166 + $0x208] sm:$0xff]
        %v4233 = vld [vmem:[%s4166 + $0x210] sm:$0xff]
        %v4234 = vld [vmem:[%s4166 + $0x218] sm:$0xff]
        %v4235 = vld [vmem:[%s4166 + $0x220] sm:$0xff]
        %v4236 = vld [vmem:[%s4166 + $0x228] sm:$0xff]
        %v4237 = vld [vmem:[%s4166 + $0x230] sm:$0xff]
        %v4238 = vld [vmem:[%s4166 + $0x238] sm:$0xff]
        %v4239 = vld [vmem:[%s4166 + $0x240] sm:$0xff]
        %v4240 = vld [vmem:[%s4166 + $0x248] sm:$0xff]
        %v4241 = vld [vmem:[%s4166 + $0x250] sm:$0xff]
        %v4242 = vld [vmem:[%s4166 + $0x258] sm:$0xff]
        %v4243 = vld [vmem:[%s4166 + $0x260] sm:$0xff]
        %v4244 = vld [vmem:[%s4166 + $0x268] sm:$0xff]
        %v4245 = vld [vmem:[%s4166 + $0x270] sm:$0xff]
        %v4246 = vld [vmem:[%s4166 + $0x278] sm:$0xff]
        %v4247 = vld [vmem:[%s4166 + $0x280] sm:$0xff]
        %v4248 = vld [vmem:[%s4166 + $0x288] sm:$0xff]
        %v4249 = vld [vmem:[%s4166 + $0x290] sm:$0xff]
        %v4250 = vld [vmem:[%s4166 + $0x298] sm:$0xff]
        %v4251 = vld [vmem:[%s4166 + $0x2a0] sm:$0xff]
        %v4252 = vld [vmem:[%s4166 + $0x2a8] sm:$0xff]
        %v4253 = vld [vmem:[%s4166 + $0x2b0] sm:$0xff]
        %v4254 = vld [vmem:[%s4166 + $0x2b8] sm:$0xff]
        %v4255 = vld [vmem:[%s4166 + $0x2c0] sm:$0xff]
        %v4256 = vld [vmem:[%s4166 + $0x2c8] sm:$0xff]
        %v4257 = vld [vmem:[%s4166 + $0x2d0] sm:$0xff]
        %v4258 = vld [vmem:[%s4166 + $0x2d8] sm:$0xff]
        %v4259 = vld [vmem:[%s4166 + $0x2e0] sm:$0xff]
        %v4260 = vld [vmem:[%s4166 + $0x2e8] sm:$0xff]
        %v4261 = vld [vmem:[%s4166 + $0x2f0] sm:$0xff]
        %v4262 = vld [vmem:[%s4166 + $0x2f8] sm:$0xff]
        %v4263 = vld [vmem:[%s4166 + $0x300] sm:$0xff]
        %v4264 = vld [vmem:[%s4166 + $0x308] sm:$0xff]
        %v4265 = vld [vmem:[%s4166 + $0x310] sm:$0xff]
        %v4266 = vld [vmem:[%s4166 + $0x318] sm:$0xff]
        %v4267 = vld [vmem:[%s4166 + $0x320] sm:$0xff]
        %v4268 = vld [vmem:[%s4166 + $0x328] sm:$0xff]
        %v4269 = vld [vmem:[%s4166 + $0x330] sm:$0xff]
        %v4270 = vld [vmem:[%s4166 + $0x338] sm:$0xff]
        %v4271 = vld [vmem:[%s4166 + $0x340] sm:$0xff]
        %v4272 = vld [vmem:[%s4166 + $0x348] sm:$0xff]
        %v4273 = vld [vmem:[%s4166 + $0x350] sm:$0xff]
        %v4274 = vld [vmem:[%s4166 + $0x358] sm:$0xff]
        %v4275 = vld [vmem:[%s4166 + $0x360] sm:$0xff]
        %v4276 = vld [vmem:[%s4166 + $0x368] sm:$0xff]
        %v4277 = vld [vmem:[%s4166 + $0x370] sm:$0xff]
        %v4278 = vld [vmem:[%s4166 + $0x378] sm:$0xff]
        %v4279 = vld [vmem:[%s4166 + $0x380] sm:$0xff]
        %v4280 = vld [vmem:[%s4166 + $0x388] sm:$0xff]
        %v4281 = vld [vmem:[%s4166 + $0x390] sm:$0xff]
        %v4282 = vld [vmem:[%s4166 + $0x398] sm:$0xff]
        %v4283 = vld [vmem:[%s4166 + $0x3a0] sm:$0xff]
        %v4284 = vld [vmem:[%s4166 + $0x3a8] sm:$0xff]
        %v4285 = vld [vmem:[%s4166 + $0x3b0] sm:$0xff]
        %v4286 = vld [vmem:[%s4166 + $0x3b8] sm:$0xff]
        %v4287 = vld [vmem:[%s4166 + $0x3c0] sm:$0xff]
        %v4288 = vld [vmem:[%s4166 + $0x3c8] sm:$0xff]
        %v4289 = vld [vmem:[%s4166 + $0x3d0] sm:$0xff]
        %v4290 = vld [vmem:[%s4166 + $0x3d8] sm:$0xff]
        %v4291 = vld [vmem:[%s4166 + $0x3e0] sm:$0xff]
        %v4292 = vld [vmem:[%s4166 + $0x3e8] sm:$0xff]
        %v4293 = vld [vmem:[%s4166 + $0x3f0] sm:$0xff]
        %v4294 = vld [vmem:[%s4166 + $0x3f8] sm:$0xff]
        %v4295 = vrot.slane %v3617, 2
        %v4296 = vrot.slane %v3618, 2
        %4299 = vmatprep.subr.mxu0 %v4228
        %4300 = vmatpush1.msra.mxu0 %v4227
        %4301 = vmatprep.subr.mxu0 %v4224
        %4302 = vmatpush1.msra.mxu0 %v4223
        %4303 = vmatprep.subr.mxu0 %v4220
        %4304 = vmatpush1.msra.mxu0 %v4219
        %4305 = vmatprep.subr.mxu0 %v4216
        %4306 = vmatpush1.msra.mxu0 %v4215
        %4307 = vmatprep.subr.mxu0 %v4212
        %4308 = vmatpush1.msra.mxu0 %v4211
        %4309 = vmatprep.subr.mxu0 %v4208
        %4310 = vmatpush1.msra.mxu0 %v4207
        %4311 = vmatprep.subr.mxu0 %v4204
        %4312 = vmatpush1.msra.mxu0 %v4203
        %4313 = vmatprep.subr.mxu0 %v4200
        %4314 = vmatpush1.msra.mxu0 %v4199
        %4315 = vmatprep.subr.mxu0 %v4196
        %4316 = vmatpush1.msra.mxu0 %v4195
        %4317 = vmatprep.subr.mxu0 %v4192
        %4318 = vmatpush1.msra.mxu0 %v4191
        %4319 = vmatprep.subr.mxu0 %v4188
        %4320 = vmatpush1.msra.mxu0 %v4187
        %4321 = vmatprep.subr.mxu0 %v4184
        %4322 = vmatpush1.msra.mxu0 %v4183
        %4323 = vmatprep.subr.mxu0 %v4180
        %4324 = vmatpush1.msra.mxu0 %v4179
        %4325 = vmatprep.subr.mxu0 %v4176
        %4326 = vmatpush1.msra.mxu0 %v4175
        %4327 = vmatprep.subr.mxu0 %v4172
        %4328 = vmatpush1.msra.mxu0 %v4171
        %4329 = vmatprep.subr.mxu0 %v4168
        %4330 = vmatpush1.msra.mxu0 %v4167
        %4331 = vmatprep.subr.mxu0 %v4292
        %4332 = vmatpush2.msra.mxu0 %v4291
        %4333 = vmatprep.subr.mxu0 %v4288
        %4334 = vmatpush2.msra.mxu0 %v4287
        %4335 = vmatprep.subr.mxu0 %v4284
        %4336 = vmatpush2.msra.mxu0 %v4283
        %4337 = vmatprep.subr.mxu0 %v4280
        %4338 = vmatpush2.msra.mxu0 %v4279
        %4339 = vmatprep.subr.mxu0 %v4276
        %4340 = vmatpush2.msra.mxu0 %v4275
        %4341 = vmatprep.subr.mxu0 %v4272
        %4342 = vmatpush2.msra.mxu0 %v4271
        %4343 = vmatprep.subr.mxu0 %v4268
        %4344 = vmatpush2.msra.mxu0 %v4267
        %4345 = vmatprep.subr.mxu0 %v4264
        %4346 = vmatpush2.msra.mxu0 %v4263
        %4347 = vmatprep.subr.mxu0 %v4260
        %4348 = vmatpush2.msra.mxu0 %v4259
        %4349 = vmatprep.subr.mxu0 %v4256
        %4350 = vmatpush2.msra.mxu0 %v4255
        %4351 = vmatprep.subr.mxu0 %v4252
        %4352 = vmatpush2.msra.mxu0 %v4251
        %4353 = vmatprep.subr.mxu0 %v4248
        %4354 = vmatpush2.msra.mxu0 %v4247
        %4355 = vmatprep.subr.mxu0 %v4244
        %4356 = vmatpush2.msra.mxu0 %v4243
        %4357 = vmatprep.subr.mxu0 %v4240
        %4358 = vmatpush2.msra.mxu0 %v4239
        %4359 = vmatprep.subr.mxu0 %v4236
        %4360 = vmatpush2.msra.mxu0 %v4235
        %4361 = vmatprep.subr.mxu0 %v4232
        %4362 = vmatpush2.msra.mxu0 %v4231
        %4363 = vmatprep.mubr.f32.mxu0 %v4296
        %4364 = vmatmul.mubr.f32.gmra.mxu0 %v4295
        %v4365 = vpop.f32.mrf.mxu0
        %v4366 = vadd.f32 0.0, %v4365
        %v4367 = vpop.f32.mrf.mxu0
        %v4368 = vadd.f32 0.0, %v4367
        %4369 = vdwg.mxu0
        %4370 = vmatprep.subr.mxu0 %v4230
        %4371 = vmatpush1.msra.mxu0 %v4229
        %4372 = vmatprep.subr.mxu0 %v4226
        %4373 = vmatpush1.msra.mxu0 %v4225
        %4374 = vmatprep.subr.mxu0 %v4222
        %4375 = vmatpush1.msra.mxu0 %v4221
        %4376 = vmatprep.subr.mxu0 %v4218
        %4377 = vmatpush1.msra.mxu0 %v4217
        %4378 = vmatprep.subr.mxu0 %v4214
        %4379 = vmatpush1.msra.mxu0 %v4213
        %4380 = vmatprep.subr.mxu0 %v4210
        %4381 = vmatpush1.msra.mxu0 %v4209
        %4382 = vmatprep.subr.mxu0 %v4206
        %4383 = vmatpush1.msra.mxu0 %v4205
        %4384 = vmatprep.subr.mxu0 %v4202
        %4385 = vmatpush1.msra.mxu0 %v4201
        %4386 = vmatprep.subr.mxu0 %v4198
        %4387 = vmatpush1.msra.mxu0 %v4197
        %4388 = vmatprep.subr.mxu0 %v4194
        %4389 = vmatpush1.msra.mxu0 %v4193
        %4390 = vmatprep.subr.mxu0 %v4190
        %4391 = vmatpush1.msra.mxu0 %v4189
        %4392 = vmatprep.subr.mxu0 %v4186
        %4393 = vmatpush1.msra.mxu0 %v4185
        %4394 = vmatprep.subr.mxu0 %v4182
        %4395 = vmatpush1.msra.mxu0 %v4181
        %4396 = vmatprep.subr.mxu0 %v4178
        %4397 = vmatpush1.msra.mxu0 %v4177
        %4398 = vmatprep.subr.mxu0 %v4174
        %4399 = vmatpush1.msra.mxu0 %v4173
        %4400 = vmatprep.subr.mxu0 %v4170
        %4401 = vmatpush1.msra.mxu0 %v4169
        %4402 = vmatprep.subr.mxu0 %v4294
        %4403 = vmatpush2.msra.mxu0 %v4293
        %4404 = vmatprep.subr.mxu0 %v4290
        %4405 = vmatpush2.msra.mxu0 %v4289
        %4406 = vmatprep.subr.mxu0 %v4286
        %4407 = vmatpush2.msra.mxu0 %v4285
        %4408 = vmatprep.subr.mxu0 %v4282
        %4409 = vmatpush2.msra.mxu0 %v4281
        %4410 = vmatprep.subr.mxu0 %v4278
        %4411 = vmatpush2.msra.mxu0 %v4277
        %4412 = vmatprep.subr.mxu0 %v4274
        %4413 = vmatpush2.msra.mxu0 %v4273
        %4414 = vmatprep.subr.mxu0 %v4270
        %4415 = vmatpush2.msra.mxu0 %v4269
        %4416 = vmatprep.subr.mxu0 %v4266
        %4417 = vmatpush2.msra.mxu0 %v4265
        %4418 = vmatprep.subr.mxu0 %v4262
        %4419 = vmatpush2.msra.mxu0 %v4261
        %4420 = vmatprep.subr.mxu0 %v4258
        %4421 = vmatpush2.msra.mxu0 %v4257
        %4422 = vmatprep.subr.mxu0 %v4254
        %4423 = vmatpush2.msra.mxu0 %v4253
        %4424 = vmatprep.subr.mxu0 %v4250
        %4425 = vmatpush2.msra.mxu0 %v4249
        %4426 = vmatprep.subr.mxu0 %v4246
        %4427 = vmatpush2.msra.mxu0 %v4245
        %4428 = vmatprep.subr.mxu0 %v4242
        %4429 = vmatpush2.msra.mxu0 %v4241
        %4430 = vmatprep.subr.mxu0 %v4238
        %4431 = vmatpush2.msra.mxu0 %v4237
        %4432 = vmatprep.subr.mxu0 %v4234
        %4433 = vmatpush2.msra.mxu0 %v4233
        %4434 = vmatprep.mubr.f32.mxu0 %v4296
        %4435 = vmatmul.mubr.f32.gmra.mxu0 %v4295
        %v4436 = vpop.f32.mrf.mxu0
        %v4437 = vadd.f32 0.0, %v4436
        %v4438 = vpop.f32.mrf.mxu0
        %v4439 = vadd.f32 0.0, %v4438
        %4440 = vdwg.mxu0
        %v4441 = vadd.f32 %v4091, %v4366
        %v4442 = vadd.f32 %v4093, %v4368
        %v4443 = vadd.f32 %v4162, %v4437
        %v4444 = vadd.f32 %v4164, %v4439
        %s4445 = scalar_lea.vmem %s5, 3072
        %v4446 = vld [vmem:[%s4445] sm:$0xff]
        %v4447 = vld [vmem:[%s4445 + $0x8] sm:$0xff]
        %v4448 = vld [vmem:[%s4445 + $0x10] sm:$0xff]
        %v4449 = vld [vmem:[%s4445 + $0x18] sm:$0xff]
        %v4450 = vld [vmem:[%s4445 + $0x20] sm:$0xff]
        %v4451 = vld [vmem:[%s4445 + $0x28] sm:$0xff]
        %v4452 = vld [vmem:[%s4445 + $0x30] sm:$0xff]
        %v4453 = vld [vmem:[%s4445 + $0x38] sm:$0xff]
        %v4454 = vld [vmem:[%s4445 + $0x40] sm:$0xff]
        %v4455 = vld [vmem:[%s4445 + $0x48] sm:$0xff]
        %v4456 = vld [vmem:[%s4445 + $0x50] sm:$0xff]
        %v4457 = vld [vmem:[%s4445 + $0x58] sm:$0xff]
        %v4458 = vld [vmem:[%s4445 + $0x60] sm:$0xff]
        %v4459 = vld [vmem:[%s4445 + $0x68] sm:$0xff]
        %v4460 = vld [vmem:[%s4445 + $0x70] sm:$0xff]
        %v4461 = vld [vmem:[%s4445 + $0x78] sm:$0xff]
        %v4462 = vld [vmem:[%s4445 + $0x80] sm:$0xff]
        %v4463 = vld [vmem:[%s4445 + $0x88] sm:$0xff]
        %v4464 = vld [vmem:[%s4445 + $0x90] sm:$0xff]
        %v4465 = vld [vmem:[%s4445 + $0x98] sm:$0xff]
        %v4466 = vld [vmem:[%s4445 + $0xa0] sm:$0xff]
        %v4467 = vld [vmem:[%s4445 + $0xa8] sm:$0xff]
        %v4468 = vld [vmem:[%s4445 + $0xb0] sm:$0xff]
        %v4469 = vld [vmem:[%s4445 + $0xb8] sm:$0xff]
        %v4470 = vld [vmem:[%s4445 + $0xc0] sm:$0xff]
        %v4471 = vld [vmem:[%s4445 + $0xc8] sm:$0xff]
        %v4472 = vld [vmem:[%s4445 + $0xd0] sm:$0xff]
        %v4473 = vld [vmem:[%s4445 + $0xd8] sm:$0xff]
        %v4474 = vld [vmem:[%s4445 + $0xe0] sm:$0xff]
        %v4475 = vld [vmem:[%s4445 + $0xe8] sm:$0xff]
        %v4476 = vld [vmem:[%s4445 + $0xf0] sm:$0xff]
        %v4477 = vld [vmem:[%s4445 + $0xf8] sm:$0xff]
        %v4478 = vld [vmem:[%s4445 + $0x100] sm:$0xff]
        %v4479 = vld [vmem:[%s4445 + $0x108] sm:$0xff]
        %v4480 = vld [vmem:[%s4445 + $0x110] sm:$0xff]
        %v4481 = vld [vmem:[%s4445 + $0x118] sm:$0xff]
        %v4482 = vld [vmem:[%s4445 + $0x120] sm:$0xff]
        %v4483 = vld [vmem:[%s4445 + $0x128] sm:$0xff]
        %v4484 = vld [vmem:[%s4445 + $0x130] sm:$0xff]
        %v4485 = vld [vmem:[%s4445 + $0x138] sm:$0xff]
        %v4486 = vld [vmem:[%s4445 + $0x140] sm:$0xff]
        %v4487 = vld [vmem:[%s4445 + $0x148] sm:$0xff]
        %v4488 = vld [vmem:[%s4445 + $0x150] sm:$0xff]
        %v4489 = vld [vmem:[%s4445 + $0x158] sm:$0xff]
        %v4490 = vld [vmem:[%s4445 + $0x160] sm:$0xff]
        %v4491 = vld [vmem:[%s4445 + $0x168] sm:$0xff]
        %v4492 = vld [vmem:[%s4445 + $0x170] sm:$0xff]
        %v4493 = vld [vmem:[%s4445 + $0x178] sm:$0xff]
        %v4494 = vld [vmem:[%s4445 + $0x180] sm:$0xff]
        %v4495 = vld [vmem:[%s4445 + $0x188] sm:$0xff]
        %v4496 = vld [vmem:[%s4445 + $0x190] sm:$0xff]
        %v4497 = vld [vmem:[%s4445 + $0x198] sm:$0xff]
        %v4498 = vld [vmem:[%s4445 + $0x1a0] sm:$0xff]
        %v4499 = vld [vmem:[%s4445 + $0x1a8] sm:$0xff]
        %v4500 = vld [vmem:[%s4445 + $0x1b0] sm:$0xff]
        %v4501 = vld [vmem:[%s4445 + $0x1b8] sm:$0xff]
        %v4502 = vld [vmem:[%s4445 + $0x1c0] sm:$0xff]
        %v4503 = vld [vmem:[%s4445 + $0x1c8] sm:$0xff]
        %v4504 = vld [vmem:[%s4445 + $0x1d0] sm:$0xff]
        %v4505 = vld [vmem:[%s4445 + $0x1d8] sm:$0xff]
        %v4506 = vld [vmem:[%s4445 + $0x1e0] sm:$0xff]
        %v4507 = vld [vmem:[%s4445 + $0x1e8] sm:$0xff]
        %v4508 = vld [vmem:[%s4445 + $0x1f0] sm:$0xff]
        %v4509 = vld [vmem:[%s4445 + $0x1f8] sm:$0xff]
        %v4510 = vld [vmem:[%s4445 + $0x200] sm:$0xff]
        %v4511 = vld [vmem:[%s4445 + $0x208] sm:$0xff]
        %v4512 = vld [vmem:[%s4445 + $0x210] sm:$0xff]
        %v4513 = vld [vmem:[%s4445 + $0x218] sm:$0xff]
        %v4514 = vld [vmem:[%s4445 + $0x220] sm:$0xff]
        %v4515 = vld [vmem:[%s4445 + $0x228] sm:$0xff]
        %v4516 = vld [vmem:[%s4445 + $0x230] sm:$0xff]
        %v4517 = vld [vmem:[%s4445 + $0x238] sm:$0xff]
        %v4518 = vld [vmem:[%s4445 + $0x240] sm:$0xff]
        %v4519 = vld [vmem:[%s4445 + $0x248] sm:$0xff]
        %v4520 = vld [vmem:[%s4445 + $0x250] sm:$0xff]
        %v4521 = vld [vmem:[%s4445 + $0x258] sm:$0xff]
        %v4522 = vld [vmem:[%s4445 + $0x260] sm:$0xff]
        %v4523 = vld [vmem:[%s4445 + $0x268] sm:$0xff]
        %v4524 = vld [vmem:[%s4445 + $0x270] sm:$0xff]
        %v4525 = vld [vmem:[%s4445 + $0x278] sm:$0xff]
        %v4526 = vld [vmem:[%s4445 + $0x280] sm:$0xff]
        %v4527 = vld [vmem:[%s4445 + $0x288] sm:$0xff]
        %v4528 = vld [vmem:[%s4445 + $0x290] sm:$0xff]
        %v4529 = vld [vmem:[%s4445 + $0x298] sm:$0xff]
        %v4530 = vld [vmem:[%s4445 + $0x2a0] sm:$0xff]
        %v4531 = vld [vmem:[%s4445 + $0x2a8] sm:$0xff]
        %v4532 = vld [vmem:[%s4445 + $0x2b0] sm:$0xff]
        %v4533 = vld [vmem:[%s4445 + $0x2b8] sm:$0xff]
        %v4534 = vld [vmem:[%s4445 + $0x2c0] sm:$0xff]
        %v4535 = vld [vmem:[%s4445 + $0x2c8] sm:$0xff]
        %v4536 = vld [vmem:[%s4445 + $0x2d0] sm:$0xff]
        %v4537 = vld [vmem:[%s4445 + $0x2d8] sm:$0xff]
        %v4538 = vld [vmem:[%s4445 + $0x2e0] sm:$0xff]
        %v4539 = vld [vmem:[%s4445 + $0x2e8] sm:$0xff]
        %v4540 = vld [vmem:[%s4445 + $0x2f0] sm:$0xff]
        %v4541 = vld [vmem:[%s4445 + $0x2f8] sm:$0xff]
        %v4542 = vld [vmem:[%s4445 + $0x300] sm:$0xff]
        %v4543 = vld [vmem:[%s4445 + $0x308] sm:$0xff]
        %v4544 = vld [vmem:[%s4445 + $0x310] sm:$0xff]
        %v4545 = vld [vmem:[%s4445 + $0x318] sm:$0xff]
        %v4546 = vld [vmem:[%s4445 + $0x320] sm:$0xff]
        %v4547 = vld [vmem:[%s4445 + $0x328] sm:$0xff]
        %v4548 = vld [vmem:[%s4445 + $0x330] sm:$0xff]
        %v4549 = vld [vmem:[%s4445 + $0x338] sm:$0xff]
        %v4550 = vld [vmem:[%s4445 + $0x340] sm:$0xff]
        %v4551 = vld [vmem:[%s4445 + $0x348] sm:$0xff]
        %v4552 = vld [vmem:[%s4445 + $0x350] sm:$0xff]
        %v4553 = vld [vmem:[%s4445 + $0x358] sm:$0xff]
        %v4554 = vld [vmem:[%s4445 + $0x360] sm:$0xff]
        %v4555 = vld [vmem:[%s4445 + $0x368] sm:$0xff]
        %v4556 = vld [vmem:[%s4445 + $0x370] sm:$0xff]
        %v4557 = vld [vmem:[%s4445 + $0x378] sm:$0xff]
        %v4558 = vld [vmem:[%s4445 + $0x380] sm:$0xff]
        %v4559 = vld [vmem:[%s4445 + $0x388] sm:$0xff]
        %v4560 = vld [vmem:[%s4445 + $0x390] sm:$0xff]
        %v4561 = vld [vmem:[%s4445 + $0x398] sm:$0xff]
        %v4562 = vld [vmem:[%s4445 + $0x3a0] sm:$0xff]
        %v4563 = vld [vmem:[%s4445 + $0x3a8] sm:$0xff]
        %v4564 = vld [vmem:[%s4445 + $0x3b0] sm:$0xff]
        %v4565 = vld [vmem:[%s4445 + $0x3b8] sm:$0xff]
        %v4566 = vld [vmem:[%s4445 + $0x3c0] sm:$0xff]
        %v4567 = vld [vmem:[%s4445 + $0x3c8] sm:$0xff]
        %v4568 = vld [vmem:[%s4445 + $0x3d0] sm:$0xff]
        %v4569 = vld [vmem:[%s4445 + $0x3d8] sm:$0xff]
        %v4570 = vld [vmem:[%s4445 + $0x3e0] sm:$0xff]
        %v4571 = vld [vmem:[%s4445 + $0x3e8] sm:$0xff]
        %v4572 = vld [vmem:[%s4445 + $0x3f0] sm:$0xff]
        %v4573 = vld [vmem:[%s4445 + $0x3f8] sm:$0xff]
        %v4574 = vrot.slane %v3617, 3
        %v4575 = vrot.slane %v3618, 3
        %4578 = vmatprep.subr.mxu0 %v4507
        %4579 = vmatpush1.msra.mxu0 %v4506
        %4580 = vmatprep.subr.mxu0 %v4503
        %4581 = vmatpush1.msra.mxu0 %v4502
        %4582 = vmatprep.subr.mxu0 %v4499
        %4583 = vmatpush1.msra.mxu0 %v4498
        %4584 = vmatprep.subr.mxu0 %v4495
        %4585 = vmatpush1.msra.mxu0 %v4494
        %4586 = vmatprep.subr.mxu0 %v4491
        %4587 = vmatpush1.msra.mxu0 %v4490
        %4588 = vmatprep.subr.mxu0 %v4487
        %4589 = vmatpush1.msra.mxu0 %v4486
        %4590 = vmatprep.subr.mxu0 %v4483
        %4591 = vmatpush1.msra.mxu0 %v4482
        %4592 = vmatprep.subr.mxu0 %v4479
        %4593 = vmatpush1.msra.mxu0 %v4478
        %4594 = vmatprep.subr.mxu0 %v4475
        %4595 = vmatpush1.msra.mxu0 %v4474
        %4596 = vmatprep.subr.mxu0 %v4471
        %4597 = vmatpush1.msra.mxu0 %v4470
        %4598 = vmatprep.subr.mxu0 %v4467
        %4599 = vmatpush1.msra.mxu0 %v4466
        %4600 = vmatprep.subr.mxu0 %v4463
        %4601 = vmatpush1.msra.mxu0 %v4462
        %4602 = vmatprep.subr.mxu0 %v4459
        %4603 = vmatpush1.msra.mxu0 %v4458
        %4604 = vmatprep.subr.mxu0 %v4455
        %4605 = vmatpush1.msra.mxu0 %v4454
        %4606 = vmatprep.subr.mxu0 %v4451
        %4607 = vmatpush1.msra.mxu0 %v4450
        %4608 = vmatprep.subr.mxu0 %v4447
        %4609 = vmatpush1.msra.mxu0 %v4446
        %4610 = vmatprep.subr.mxu0 %v4571
        %4611 = vmatpush2.msra.mxu0 %v4570
        %4612 = vmatprep.subr.mxu0 %v4567
        %4613 = vmatpush2.msra.mxu0 %v4566
        %4614 = vmatprep.subr.mxu0 %v4563
        %4615 = vmatpush2.msra.mxu0 %v4562
        %4616 = vmatprep.subr.mxu0 %v4559
        %4617 = vmatpush2.msra.mxu0 %v4558
        %4618 = vmatprep.subr.mxu0 %v4555
        %4619 = vmatpush2.msra.mxu0 %v4554
        %4620 = vmatprep.subr.mxu0 %v4551
        %4621 = vmatpush2.msra.mxu0 %v4550
        %4622 = vmatprep.subr.mxu0 %v4547
        %4623 = vmatpush2.msra.mxu0 %v4546
        %4624 = vmatprep.subr.mxu0 %v4543
        %4625 = vmatpush2.msra.mxu0 %v4542
        %4626 = vmatprep.subr.mxu0 %v4539
        %4627 = vmatpush2.msra.mxu0 %v4538
        %4628 = vmatprep.subr.mxu0 %v4535
        %4629 = vmatpush2.msra.mxu0 %v4534
        %4630 = vmatprep.subr.mxu0 %v4531
        %4631 = vmatpush2.msra.mxu0 %v4530
        %4632 = vmatprep.subr.mxu0 %v4527
        %4633 = vmatpush2.msra.mxu0 %v4526
        %4634 = vmatprep.subr.mxu0 %v4523
        %4635 = vmatpush2.msra.mxu0 %v4522
        %4636 = vmatprep.subr.mxu0 %v4519
        %4637 = vmatpush2.msra.mxu0 %v4518
        %4638 = vmatprep.subr.mxu0 %v4515
        %4639 = vmatpush2.msra.mxu0 %v4514
        %4640 = vmatprep.subr.mxu0 %v4511
        %4641 = vmatpush2.msra.mxu0 %v4510
        %4642 = vmatprep.mubr.f32.mxu0 %v4575
        %4643 = vmatmul.mubr.f32.gmra.mxu0 %v4574
        %v4644 = vpop.f32.mrf.mxu0
        %v4645 = vadd.f32 0.0, %v4644
        %v4646 = vpop.f32.mrf.mxu0
        %v4647 = vadd.f32 0.0, %v4646
        %4648 = vdwg.mxu0
        %4649 = vmatprep.subr.mxu0 %v4509
        %4650 = vmatpush1.msra.mxu0 %v4508
        %4651 = vmatprep.subr.mxu0 %v4505
        %4652 = vmatpush1.msra.mxu0 %v4504
        %4653 = vmatprep.subr.mxu0 %v4501
        %4654 = vmatpush1.msra.mxu0 %v4500
        %4655 = vmatprep.subr.mxu0 %v4497
        %4656 = vmatpush1.msra.mxu0 %v4496
        %4657 = vmatprep.subr.mxu0 %v4493
        %4658 = vmatpush1.msra.mxu0 %v4492
        %4659 = vmatprep.subr.mxu0 %v4489
        %4660 = vmatpush1.msra.mxu0 %v4488
        %4661 = vmatprep.subr.mxu0 %v4485
        %4662 = vmatpush1.msra.mxu0 %v4484
        %4663 = vmatprep.subr.mxu0 %v4481
        %4664 = vmatpush1.msra.mxu0 %v4480
        %4665 = vmatprep.subr.mxu0 %v4477
        %4666 = vmatpush1.msra.mxu0 %v4476
        %4667 = vmatprep.subr.mxu0 %v4473
        %4668 = vmatpush1.msra.mxu0 %v4472
        %4669 = vmatprep.subr.mxu0 %v4469
        %4670 = vmatpush1.msra.mxu0 %v4468
        %4671 = vmatprep.subr.mxu0 %v4465
        %4672 = vmatpush1.msra.mxu0 %v4464
        %4673 = vmatprep.subr.mxu0 %v4461
        %4674 = vmatpush1.msra.mxu0 %v4460
        %4675 = vmatprep.subr.mxu0 %v4457
        %4676 = vmatpush1.msra.mxu0 %v4456
        %4677 = vmatprep.subr.mxu0 %v4453
        %4678 = vmatpush1.msra.mxu0 %v4452
        %4679 = vmatprep.subr.mxu0 %v4449
        %4680 = vmatpush1.msra.mxu0 %v4448
        %4681 = vmatprep.subr.mxu0 %v4573
        %4682 = vmatpush2.msra.mxu0 %v4572
        %4683 = vmatprep.subr.mxu0 %v4569
        %4684 = vmatpush2.msra.mxu0 %v4568
        %4685 = vmatprep.subr.mxu0 %v4565
        %4686 = vmatpush2.msra.mxu0 %v4564
        %4687 = vmatprep.subr.mxu0 %v4561
        %4688 = vmatpush2.msra.mxu0 %v4560
        %4689 = vmatprep.subr.mxu0 %v4557
        %4690 = vmatpush2.msra.mxu0 %v4556
        %4691 = vmatprep.subr.mxu0 %v4553
        %4692 = vmatpush2.msra.mxu0 %v4552
        %4693 = vmatprep.subr.mxu0 %v4549
        %4694 = vmatpush2.msra.mxu0 %v4548
        %4695 = vmatprep.subr.mxu0 %v4545
        %4696 = vmatpush2.msra.mxu0 %v4544
        %4697 = vmatprep.subr.mxu0 %v4541
        %4698 = vmatpush2.msra.mxu0 %v4540
        %4699 = vmatprep.subr.mxu0 %v4537
        %4700 = vmatpush2.msra.mxu0 %v4536
        %4701 = vmatprep.subr.mxu0 %v4533
        %4702 = vmatpush2.msra.mxu0 %v4532
        %4703 = vmatprep.subr.mxu0 %v4529
        %4704 = vmatpush2.msra.mxu0 %v4528
        %4705 = vmatprep.subr.mxu0 %v4525
        %4706 = vmatpush2.msra.mxu0 %v4524
        %4707 = vmatprep.subr.mxu0 %v4521
        %4708 = vmatpush2.msra.mxu0 %v4520
        %4709 = vmatprep.subr.mxu0 %v4517
        %4710 = vmatpush2.msra.mxu0 %v4516
        %4711 = vmatprep.subr.mxu0 %v4513
        %4712 = vmatpush2.msra.mxu0 %v4512
        %4713 = vmatprep.mubr.f32.mxu0 %v4575
        %4714 = vmatmul.mubr.f32.gmra.mxu0 %v4574
        %v4715 = vpop.f32.mrf.mxu0
        %v4716 = vadd.f32 0.0, %v4715
        %v4717 = vpop.f32.mrf.mxu0
        %v4718 = vadd.f32 0.0, %v4717
        %4719 = vdwg.mxu0
        %v4720 = vadd.f32 %v4441, %v4645
        %v4721 = vadd.f32 %v4442, %v4647
        %v4722 = vadd.f32 %v4443, %v4716
        %v4723 = vadd.f32 %v4444, %v4718
        %s4724 = scalar_lea.vmem %s5, 4096
        %v4725 = vld [vmem:[%s4724] sm:$0xff]
        %v4726 = vld [vmem:[%s4724 + $0x8] sm:$0xff]
        %v4727 = vld [vmem:[%s4724 + $0x10] sm:$0xff]
        %v4728 = vld [vmem:[%s4724 + $0x18] sm:$0xff]
        %v4729 = vld [vmem:[%s4724 + $0x20] sm:$0xff]
        %v4730 = vld [vmem:[%s4724 + $0x28] sm:$0xff]
        %v4731 = vld [vmem:[%s4724 + $0x30] sm:$0xff]
        %v4732 = vld [vmem:[%s4724 + $0x38] sm:$0xff]
        %v4733 = vld [vmem:[%s4724 + $0x40] sm:$0xff]
        %v4734 = vld [vmem:[%s4724 + $0x48] sm:$0xff]
        %v4735 = vld [vmem:[%s4724 + $0x50] sm:$0xff]
        %v4736 = vld [vmem:[%s4724 + $0x58] sm:$0xff]
        %v4737 = vld [vmem:[%s4724 + $0x60] sm:$0xff]
        %v4738 = vld [vmem:[%s4724 + $0x68] sm:$0xff]
        %v4739 = vld [vmem:[%s4724 + $0x70] sm:$0xff]
        %v4740 = vld [vmem:[%s4724 + $0x78] sm:$0xff]
        %v4741 = vld [vmem:[%s4724 + $0x80] sm:$0xff]
        %v4742 = vld [vmem:[%s4724 + $0x88] sm:$0xff]
        %v4743 = vld [vmem:[%s4724 + $0x90] sm:$0xff]
        %v4744 = vld [vmem:[%s4724 + $0x98] sm:$0xff]
        %v4745 = vld [vmem:[%s4724 + $0xa0] sm:$0xff]
        %v4746 = vld [vmem:[%s4724 + $0xa8] sm:$0xff]
        %v4747 = vld [vmem:[%s4724 + $0xb0] sm:$0xff]
        %v4748 = vld [vmem:[%s4724 + $0xb8] sm:$0xff]
        %v4749 = vld [vmem:[%s4724 + $0xc0] sm:$0xff]
        %v4750 = vld [vmem:[%s4724 + $0xc8] sm:$0xff]
        %v4751 = vld [vmem:[%s4724 + $0xd0] sm:$0xff]
        %v4752 = vld [vmem:[%s4724 + $0xd8] sm:$0xff]
        %v4753 = vld [vmem:[%s4724 + $0xe0] sm:$0xff]
        %v4754 = vld [vmem:[%s4724 + $0xe8] sm:$0xff]
        %v4755 = vld [vmem:[%s4724 + $0xf0] sm:$0xff]
        %v4756 = vld [vmem:[%s4724 + $0xf8] sm:$0xff]
        %v4757 = vld [vmem:[%s4724 + $0x100] sm:$0xff]
        %v4758 = vld [vmem:[%s4724 + $0x108] sm:$0xff]
        %v4759 = vld [vmem:[%s4724 + $0x110] sm:$0xff]
        %v4760 = vld [vmem:[%s4724 + $0x118] sm:$0xff]
        %v4761 = vld [vmem:[%s4724 + $0x120] sm:$0xff]
        %v4762 = vld [vmem:[%s4724 + $0x128] sm:$0xff]
        %v4763 = vld [vmem:[%s4724 + $0x130] sm:$0xff]
        %v4764 = vld [vmem:[%s4724 + $0x138] sm:$0xff]
        %v4765 = vld [vmem:[%s4724 + $0x140] sm:$0xff]
        %v4766 = vld [vmem:[%s4724 + $0x148] sm:$0xff]
        %v4767 = vld [vmem:[%s4724 + $0x150] sm:$0xff]
        %v4768 = vld [vmem:[%s4724 + $0x158] sm:$0xff]
        %v4769 = vld [vmem:[%s4724 + $0x160] sm:$0xff]
        %v4770 = vld [vmem:[%s4724 + $0x168] sm:$0xff]
        %v4771 = vld [vmem:[%s4724 + $0x170] sm:$0xff]
        %v4772 = vld [vmem:[%s4724 + $0x178] sm:$0xff]
        %v4773 = vld [vmem:[%s4724 + $0x180] sm:$0xff]
        %v4774 = vld [vmem:[%s4724 + $0x188] sm:$0xff]
        %v4775 = vld [vmem:[%s4724 + $0x190] sm:$0xff]
        %v4776 = vld [vmem:[%s4724 + $0x198] sm:$0xff]
        %v4777 = vld [vmem:[%s4724 + $0x1a0] sm:$0xff]
        %v4778 = vld [vmem:[%s4724 + $0x1a8] sm:$0xff]
        %v4779 = vld [vmem:[%s4724 + $0x1b0] sm:$0xff]
        %v4780 = vld [vmem:[%s4724 + $0x1b8] sm:$0xff]
        %v4781 = vld [vmem:[%s4724 + $0x1c0] sm:$0xff]
        %v4782 = vld [vmem:[%s4724 + $0x1c8] sm:$0xff]
        %v4783 = vld [vmem:[%s4724 + $0x1d0] sm:$0xff]
        %v4784 = vld [vmem:[%s4724 + $0x1d8] sm:$0xff]
        %v4785 = vld [vmem:[%s4724 + $0x1e0] sm:$0xff]
        %v4786 = vld [vmem:[%s4724 + $0x1e8] sm:$0xff]
        %v4787 = vld [vmem:[%s4724 + $0x1f0] sm:$0xff]
        %v4788 = vld [vmem:[%s4724 + $0x1f8] sm:$0xff]
        %v4789 = vld [vmem:[%s4724 + $0x200] sm:$0xff]
        %v4790 = vld [vmem:[%s4724 + $0x208] sm:$0xff]
        %v4791 = vld [vmem:[%s4724 + $0x210] sm:$0xff]
        %v4792 = vld [vmem:[%s4724 + $0x218] sm:$0xff]
        %v4793 = vld [vmem:[%s4724 + $0x220] sm:$0xff]
        %v4794 = vld [vmem:[%s4724 + $0x228] sm:$0xff]
        %v4795 = vld [vmem:[%s4724 + $0x230] sm:$0xff]
        %v4796 = vld [vmem:[%s4724 + $0x238] sm:$0xff]
        %v4797 = vld [vmem:[%s4724 + $0x240] sm:$0xff]
        %v4798 = vld [vmem:[%s4724 + $0x248] sm:$0xff]
        %v4799 = vld [vmem:[%s4724 + $0x250] sm:$0xff]
        %v4800 = vld [vmem:[%s4724 + $0x258] sm:$0xff]
        %v4801 = vld [vmem:[%s4724 + $0x260] sm:$0xff]
        %v4802 = vld [vmem:[%s4724 + $0x268] sm:$0xff]
        %v4803 = vld [vmem:[%s4724 + $0x270] sm:$0xff]
        %v4804 = vld [vmem:[%s4724 + $0x278] sm:$0xff]
        %v4805 = vld [vmem:[%s4724 + $0x280] sm:$0xff]
        %v4806 = vld [vmem:[%s4724 + $0x288] sm:$0xff]
        %v4807 = vld [vmem:[%s4724 + $0x290] sm:$0xff]
        %v4808 = vld [vmem:[%s4724 + $0x298] sm:$0xff]
        %v4809 = vld [vmem:[%s4724 + $0x2a0] sm:$0xff]
        %v4810 = vld [vmem:[%s4724 + $0x2a8] sm:$0xff]
        %v4811 = vld [vmem:[%s4724 + $0x2b0] sm:$0xff]
        %v4812 = vld [vmem:[%s4724 + $0x2b8] sm:$0xff]
        %v4813 = vld [vmem:[%s4724 + $0x2c0] sm:$0xff]
        %v4814 = vld [vmem:[%s4724 + $0x2c8] sm:$0xff]
        %v4815 = vld [vmem:[%s4724 + $0x2d0] sm:$0xff]
        %v4816 = vld [vmem:[%s4724 + $0x2d8] sm:$0xff]
        %v4817 = vld [vmem:[%s4724 + $0x2e0] sm:$0xff]
        %v4818 = vld [vmem:[%s4724 + $0x2e8] sm:$0xff]
        %v4819 = vld [vmem:[%s4724 + $0x2f0] sm:$0xff]
        %v4820 = vld [vmem:[%s4724 + $0x2f8] sm:$0xff]
        %v4821 = vld [vmem:[%s4724 + $0x300] sm:$0xff]
        %v4822 = vld [vmem:[%s4724 + $0x308] sm:$0xff]
        %v4823 = vld [vmem:[%s4724 + $0x310] sm:$0xff]
        %v4824 = vld [vmem:[%s4724 + $0x318] sm:$0xff]
        %v4825 = vld [vmem:[%s4724 + $0x320] sm:$0xff]
        %v4826 = vld [vmem:[%s4724 + $0x328] sm:$0xff]
        %v4827 = vld [vmem:[%s4724 + $0x330] sm:$0xff]
        %v4828 = vld [vmem:[%s4724 + $0x338] sm:$0xff]
        %v4829 = vld [vmem:[%s4724 + $0x340] sm:$0xff]
        %v4830 = vld [vmem:[%s4724 + $0x348] sm:$0xff]
        %v4831 = vld [vmem:[%s4724 + $0x350] sm:$0xff]
        %v4832 = vld [vmem:[%s4724 + $0x358] sm:$0xff]
        %v4833 = vld [vmem:[%s4724 + $0x360] sm:$0xff]
        %v4834 = vld [vmem:[%s4724 + $0x368] sm:$0xff]
        %v4835 = vld [vmem:[%s4724 + $0x370] sm:$0xff]
        %v4836 = vld [vmem:[%s4724 + $0x378] sm:$0xff]
        %v4837 = vld [vmem:[%s4724 + $0x380] sm:$0xff]
        %v4838 = vld [vmem:[%s4724 + $0x388] sm:$0xff]
        %v4839 = vld [vmem:[%s4724 + $0x390] sm:$0xff]
        %v4840 = vld [vmem:[%s4724 + $0x398] sm:$0xff]
        %v4841 = vld [vmem:[%s4724 + $0x3a0] sm:$0xff]
        %v4842 = vld [vmem:[%s4724 + $0x3a8] sm:$0xff]
        %v4843 = vld [vmem:[%s4724 + $0x3b0] sm:$0xff]
        %v4844 = vld [vmem:[%s4724 + $0x3b8] sm:$0xff]
        %v4845 = vld [vmem:[%s4724 + $0x3c0] sm:$0xff]
        %v4846 = vld [vmem:[%s4724 + $0x3c8] sm:$0xff]
        %v4847 = vld [vmem:[%s4724 + $0x3d0] sm:$0xff]
        %v4848 = vld [vmem:[%s4724 + $0x3d8] sm:$0xff]
        %v4849 = vld [vmem:[%s4724 + $0x3e0] sm:$0xff]
        %v4850 = vld [vmem:[%s4724 + $0x3e8] sm:$0xff]
        %v4851 = vld [vmem:[%s4724 + $0x3f0] sm:$0xff]
        %v4852 = vld [vmem:[%s4724 + $0x3f8] sm:$0xff]
        %v4853 = vrot.slane %v3617, 4
        %v4854 = vrot.slane %v3618, 4
        %4857 = vmatprep.subr.mxu0 %v4786
        %4858 = vmatpush1.msra.mxu0 %v4785
        %4859 = vmatprep.subr.mxu0 %v4782
        %4860 = vmatpush1.msra.mxu0 %v4781
        %4861 = vmatprep.subr.mxu0 %v4778
        %4862 = vmatpush1.msra.mxu0 %v4777
        %4863 = vmatprep.subr.mxu0 %v4774
        %4864 = vmatpush1.msra.mxu0 %v4773
        %4865 = vmatprep.subr.mxu0 %v4770
        %4866 = vmatpush1.msra.mxu0 %v4769
        %4867 = vmatprep.subr.mxu0 %v4766
        %4868 = vmatpush1.msra.mxu0 %v4765
        %4869 = vmatprep.subr.mxu0 %v4762
        %4870 = vmatpush1.msra.mxu0 %v4761
        %4871 = vmatprep.subr.mxu0 %v4758
        %4872 = vmatpush1.msra.mxu0 %v4757
        %4873 = vmatprep.subr.mxu0 %v4754
        %4874 = vmatpush1.msra.mxu0 %v4753
        %4875 = vmatprep.subr.mxu0 %v4750
        %4876 = vmatpush1.msra.mxu0 %v4749
        %4877 = vmatprep.subr.mxu0 %v4746
        %4878 = vmatpush1.msra.mxu0 %v4745
        %4879 = vmatprep.subr.mxu0 %v4742
        %4880 = vmatpush1.msra.mxu0 %v4741
        %4881 = vmatprep.subr.mxu0 %v4738
        %4882 = vmatpush1.msra.mxu0 %v4737
        %4883 = vmatprep.subr.mxu0 %v4734
        %4884 = vmatpush1.msra.mxu0 %v4733
        %4885 = vmatprep.subr.mxu0 %v4730
        %4886 = vmatpush1.msra.mxu0 %v4729
        %4887 = vmatprep.subr.mxu0 %v4726
        %4888 = vmatpush1.msra.mxu0 %v4725
        %4889 = vmatprep.subr.mxu0 %v4850
        %4890 = vmatpush2.msra.mxu0 %v4849
        %4891 = vmatprep.subr.mxu0 %v4846
        %4892 = vmatpush2.msra.mxu0 %v4845
        %4893 = vmatprep.subr.mxu0 %v4842
        %4894 = vmatpush2.msra.mxu0 %v4841
        %4895 = vmatprep.subr.mxu0 %v4838
        %4896 = vmatpush2.msra.mxu0 %v4837
        %4897 = vmatprep.subr.mxu0 %v4834
        %4898 = vmatpush2.msra.mxu0 %v4833
        %4899 = vmatprep.subr.mxu0 %v4830
        %4900 = vmatpush2.msra.mxu0 %v4829
        %4901 = vmatprep.subr.mxu0 %v4826
        %4902 = vmatpush2.msra.mxu0 %v4825
        %4903 = vmatprep.subr.mxu0 %v4822
        %4904 = vmatpush2.msra.mxu0 %v4821
        %4905 = vmatprep.subr.mxu0 %v4818
        %4906 = vmatpush2.msra.mxu0 %v4817
        %4907 = vmatprep.subr.mxu0 %v4814
        %4908 = vmatpush2.msra.mxu0 %v4813
        %4909 = vmatprep.subr.mxu0 %v4810
        %4910 = vmatpush2.msra.mxu0 %v4809
        %4911 = vmatprep.subr.mxu0 %v4806
        %4912 = vmatpush2.msra.mxu0 %v4805
        %4913 = vmatprep.subr.mxu0 %v4802
        %4914 = vmatpush2.msra.mxu0 %v4801
        %4915 = vmatprep.subr.mxu0 %v4798
        %4916 = vmatpush2.msra.mxu0 %v4797
        %4917 = vmatprep.subr.mxu0 %v4794
        %4918 = vmatpush2.msra.mxu0 %v4793
        %4919 = vmatprep.subr.mxu0 %v4790
        %4920 = vmatpush2.msra.mxu0 %v4789
        %4921 = vmatprep.mubr.f32.mxu0 %v4854
        %4922 = vmatmul.mubr.f32.gmra.mxu0 %v4853
        %v4923 = vpop.f32.mrf.mxu0
        %v4924 = vadd.f32 0.0, %v4923
        %v4925 = vpop.f32.mrf.mxu0
        %v4926 = vadd.f32 0.0, %v4925
        %4927 = vdwg.mxu0
        %4928 = vmatprep.subr.mxu0 %v4788
        %4929 = vmatpush1.msra.mxu0 %v4787
        %4930 = vmatprep.subr.mxu0 %v4784
        %4931 = vmatpush1.msra.mxu0 %v4783
        %4932 = vmatprep.subr.mxu0 %v4780
        %4933 = vmatpush1.msra.mxu0 %v4779
        %4934 = vmatprep.subr.mxu0 %v4776
        %4935 = vmatpush1.msra.mxu0 %v4775
        %4936 = vmatprep.subr.mxu0 %v4772
        %4937 = vmatpush1.msra.mxu0 %v4771
        %4938 = vmatprep.subr.mxu0 %v4768
        %4939 = vmatpush1.msra.mxu0 %v4767
        %4940 = vmatprep.subr.mxu0 %v4764
        %4941 = vmatpush1.msra.mxu0 %v4763
        %4942 = vmatprep.subr.mxu0 %v4760
        %4943 = vmatpush1.msra.mxu0 %v4759
        %4944 = vmatprep.subr.mxu0 %v4756
        %4945 = vmatpush1.msra.mxu0 %v4755
        %4946 = vmatprep.subr.mxu0 %v4752
        %4947 = vmatpush1.msra.mxu0 %v4751
        %4948 = vmatprep.subr.mxu0 %v4748
        %4949 = vmatpush1.msra.mxu0 %v4747
        %4950 = vmatprep.subr.mxu0 %v4744
        %4951 = vmatpush1.msra.mxu0 %v4743
        %4952 = vmatprep.subr.mxu0 %v4740
        %4953 = vmatpush1.msra.mxu0 %v4739
        %4954 = vmatprep.subr.mxu0 %v4736
        %4955 = vmatpush1.msra.mxu0 %v4735
        %4956 = vmatprep.subr.mxu0 %v4732
        %4957 = vmatpush1.msra.mxu0 %v4731
        %4958 = vmatprep.subr.mxu0 %v4728
        %4959 = vmatpush1.msra.mxu0 %v4727
        %4960 = vmatprep.subr.mxu0 %v4852
        %4961 = vmatpush2.msra.mxu0 %v4851
        %4962 = vmatprep.subr.mxu0 %v4848
        %4963 = vmatpush2.msra.mxu0 %v4847
        %4964 = vmatprep.subr.mxu0 %v4844
        %4965 = vmatpush2.msra.mxu0 %v4843
        %4966 = vmatprep.subr.mxu0 %v4840
        %4967 = vmatpush2.msra.mxu0 %v4839
        %4968 = vmatprep.subr.mxu0 %v4836
        %4969 = vmatpush2.msra.mxu0 %v4835
        %4970 = vmatprep.subr.mxu0 %v4832
        %4971 = vmatpush2.msra.mxu0 %v4831
        %4972 = vmatprep.subr.mxu0 %v4828
        %4973 = vmatpush2.msra.mxu0 %v4827
        %4974 = vmatprep.subr.mxu0 %v4824
        %4975 = vmatpush2.msra.mxu0 %v4823
        %4976 = vmatprep.subr.mxu0 %v4820
        %4977 = vmatpush2.msra.mxu0 %v4819
        %4978 = vmatprep.subr.mxu0 %v4816
        %4979 = vmatpush2.msra.mxu0 %v4815
        %4980 = vmatprep.subr.mxu0 %v4812
        %4981 = vmatpush2.msra.mxu0 %v4811
        %4982 = vmatprep.subr.mxu0 %v4808
        %4983 = vmatpush2.msra.mxu0 %v4807
        %4984 = vmatprep.subr.mxu0 %v4804
        %4985 = vmatpush2.msra.mxu0 %v4803
        %4986 = vmatprep.subr.mxu0 %v4800
        %4987 = vmatpush2.msra.mxu0 %v4799
        %4988 = vmatprep.subr.mxu0 %v4796
        %4989 = vmatpush2.msra.mxu0 %v4795
        %4990 = vmatprep.subr.mxu0 %v4792
        %4991 = vmatpush2.msra.mxu0 %v4791
        %4992 = vmatprep.mubr.f32.mxu0 %v4854
        %4993 = vmatmul.mubr.f32.gmra.mxu0 %v4853
        %v4994 = vpop.f32.mrf.mxu0
        %v4995 = vadd.f32 0.0, %v4994
        %v4996 = vpop.f32.mrf.mxu0
        %v4997 = vadd.f32 0.0, %v4996
        %4998 = vdwg.mxu0
        %v4999 = vadd.f32 %v4720, %v4924
        %v5000 = vadd.f32 %v4721, %v4926
        %v5001 = vadd.f32 %v4722, %v4995
        %v5002 = vadd.f32 %v4723, %v4997
        %s5003 = scalar_lea.vmem %s5, 5120
        %v5004 = vld [vmem:[%s5003] sm:$0xff]
        %v5005 = vld [vmem:[%s5003 + $0x8] sm:$0xff]
        %v5006 = vld [vmem:[%s5003 + $0x10] sm:$0xff]
        %v5007 = vld [vmem:[%s5003 + $0x18] sm:$0xff]
        %v5008 = vld [vmem:[%s5003 + $0x20] sm:$0xff]
        %v5009 = vld [vmem:[%s5003 + $0x28] sm:$0xff]
        %v5010 = vld [vmem:[%s5003 + $0x30] sm:$0xff]
        %v5011 = vld [vmem:[%s5003 + $0x38] sm:$0xff]
        %v5012 = vld [vmem:[%s5003 + $0x40] sm:$0xff]
        %v5013 = vld [vmem:[%s5003 + $0x48] sm:$0xff]
        %v5014 = vld [vmem:[%s5003 + $0x50] sm:$0xff]
        %v5015 = vld [vmem:[%s5003 + $0x58] sm:$0xff]
        %v5016 = vld [vmem:[%s5003 + $0x60] sm:$0xff]
        %v5017 = vld [vmem:[%s5003 + $0x68] sm:$0xff]
        %v5018 = vld [vmem:[%s5003 + $0x70] sm:$0xff]
        %v5019 = vld [vmem:[%s5003 + $0x78] sm:$0xff]
        %v5020 = vld [vmem:[%s5003 + $0x80] sm:$0xff]
        %v5021 = vld [vmem:[%s5003 + $0x88] sm:$0xff]
        %v5022 = vld [vmem:[%s5003 + $0x90] sm:$0xff]
        %v5023 = vld [vmem:[%s5003 + $0x98] sm:$0xff]
        %v5024 = vld [vmem:[%s5003 + $0xa0] sm:$0xff]
        %v5025 = vld [vmem:[%s5003 + $0xa8] sm:$0xff]
        %v5026 = vld [vmem:[%s5003 + $0xb0] sm:$0xff]
        %v5027 = vld [vmem:[%s5003 + $0xb8] sm:$0xff]
        %v5028 = vld [vmem:[%s5003 + $0xc0] sm:$0xff]
        %v5029 = vld [vmem:[%s5003 + $0xc8] sm:$0xff]
        %v5030 = vld [vmem:[%s5003 + $0xd0] sm:$0xff]
        %v5031 = vld [vmem:[%s5003 + $0xd8] sm:$0xff]
        %v5032 = vld [vmem:[%s5003 + $0xe0] sm:$0xff]
        %v5033 = vld [vmem:[%s5003 + $0xe8] sm:$0xff]
        %v5034 = vld [vmem:[%s5003 + $0xf0] sm:$0xff]
        %v5035 = vld [vmem:[%s5003 + $0xf8] sm:$0xff]
        %v5036 = vld [vmem:[%s5003 + $0x100] sm:$0xff]
        %v5037 = vld [vmem:[%s5003 + $0x108] sm:$0xff]
        %v5038 = vld [vmem:[%s5003 + $0x110] sm:$0xff]
        %v5039 = vld [vmem:[%s5003 + $0x118] sm:$0xff]
        %v5040 = vld [vmem:[%s5003 + $0x120] sm:$0xff]
        %v5041 = vld [vmem:[%s5003 + $0x128] sm:$0xff]
        %v5042 = vld [vmem:[%s5003 + $0x130] sm:$0xff]
        %v5043 = vld [vmem:[%s5003 + $0x138] sm:$0xff]
        %v5044 = vld [vmem:[%s5003 + $0x140] sm:$0xff]
        %v5045 = vld [vmem:[%s5003 + $0x148] sm:$0xff]
        %v5046 = vld [vmem:[%s5003 + $0x150] sm:$0xff]
        %v5047 = vld [vmem:[%s5003 + $0x158] sm:$0xff]
        %v5048 = vld [vmem:[%s5003 + $0x160] sm:$0xff]
        %v5049 = vld [vmem:[%s5003 + $0x168] sm:$0xff]
        %v5050 = vld [vmem:[%s5003 + $0x170] sm:$0xff]
        %v5051 = vld [vmem:[%s5003 + $0x178] sm:$0xff]
        %v5052 = vld [vmem:[%s5003 + $0x180] sm:$0xff]
        %v5053 = vld [vmem:[%s5003 + $0x188] sm:$0xff]
        %v5054 = vld [vmem:[%s5003 + $0x190] sm:$0xff]
        %v5055 = vld [vmem:[%s5003 + $0x198] sm:$0xff]
        %v5056 = vld [vmem:[%s5003 + $0x1a0] sm:$0xff]
        %v5057 = vld [vmem:[%s5003 + $0x1a8] sm:$0xff]
        %v5058 = vld [vmem:[%s5003 + $0x1b0] sm:$0xff]
        %v5059 = vld [vmem:[%s5003 + $0x1b8] sm:$0xff]
        %v5060 = vld [vmem:[%s5003 + $0x1c0] sm:$0xff]
        %v5061 = vld [vmem:[%s5003 + $0x1c8] sm:$0xff]
        %v5062 = vld [vmem:[%s5003 + $0x1d0] sm:$0xff]
        %v5063 = vld [vmem:[%s5003 + $0x1d8] sm:$0xff]
        %v5064 = vld [vmem:[%s5003 + $0x1e0] sm:$0xff]
        %v5065 = vld [vmem:[%s5003 + $0x1e8] sm:$0xff]
        %v5066 = vld [vmem:[%s5003 + $0x1f0] sm:$0xff]
        %v5067 = vld [vmem:[%s5003 + $0x1f8] sm:$0xff]
        %v5068 = vld [vmem:[%s5003 + $0x200] sm:$0xff]
        %v5069 = vld [vmem:[%s5003 + $0x208] sm:$0xff]
        %v5070 = vld [vmem:[%s5003 + $0x210] sm:$0xff]
        %v5071 = vld [vmem:[%s5003 + $0x218] sm:$0xff]
        %v5072 = vld [vmem:[%s5003 + $0x220] sm:$0xff]
        %v5073 = vld [vmem:[%s5003 + $0x228] sm:$0xff]
        %v5074 = vld [vmem:[%s5003 + $0x230] sm:$0xff]
        %v5075 = vld [vmem:[%s5003 + $0x238] sm:$0xff]
        %v5076 = vld [vmem:[%s5003 + $0x240] sm:$0xff]
        %v5077 = vld [vmem:[%s5003 + $0x248] sm:$0xff]
        %v5078 = vld [vmem:[%s5003 + $0x250] sm:$0xff]
        %v5079 = vld [vmem:[%s5003 + $0x258] sm:$0xff]
        %v5080 = vld [vmem:[%s5003 + $0x260] sm:$0xff]
        %v5081 = vld [vmem:[%s5003 + $0x268] sm:$0xff]
        %v5082 = vld [vmem:[%s5003 + $0x270] sm:$0xff]
        %v5083 = vld [vmem:[%s5003 + $0x278] sm:$0xff]
        %v5084 = vld [vmem:[%s5003 + $0x280] sm:$0xff]
        %v5085 = vld [vmem:[%s5003 + $0x288] sm:$0xff]
        %v5086 = vld [vmem:[%s5003 + $0x290] sm:$0xff]
        %v5087 = vld [vmem:[%s5003 + $0x298] sm:$0xff]
        %v5088 = vld [vmem:[%s5003 + $0x2a0] sm:$0xff]
        %v5089 = vld [vmem:[%s5003 + $0x2a8] sm:$0xff]
        %v5090 = vld [vmem:[%s5003 + $0x2b0] sm:$0xff]
        %v5091 = vld [vmem:[%s5003 + $0x2b8] sm:$0xff]
        %v5092 = vld [vmem:[%s5003 + $0x2c0] sm:$0xff]
        %v5093 = vld [vmem:[%s5003 + $0x2c8] sm:$0xff]
        %v5094 = vld [vmem:[%s5003 + $0x2d0] sm:$0xff]
        %v5095 = vld [vmem:[%s5003 + $0x2d8] sm:$0xff]
        %v5096 = vld [vmem:[%s5003 + $0x2e0] sm:$0xff]
        %v5097 = vld [vmem:[%s5003 + $0x2e8] sm:$0xff]
        %v5098 = vld [vmem:[%s5003 + $0x2f0] sm:$0xff]
        %v5099 = vld [vmem:[%s5003 + $0x2f8] sm:$0xff]
        %v5100 = vld [vmem:[%s5003 + $0x300] sm:$0xff]
        %v5101 = vld [vmem:[%s5003 + $0x308] sm:$0xff]
        %v5102 = vld [vmem:[%s5003 + $0x310] sm:$0xff]
        %v5103 = vld [vmem:[%s5003 + $0x318] sm:$0xff]
        %v5104 = vld [vmem:[%s5003 + $0x320] sm:$0xff]
        %v5105 = vld [vmem:[%s5003 + $0x328] sm:$0xff]
        %v5106 = vld [vmem:[%s5003 + $0x330] sm:$0xff]
        %v5107 = vld [vmem:[%s5003 + $0x338] sm:$0xff]
        %v5108 = vld [vmem:[%s5003 + $0x340] sm:$0xff]
        %v5109 = vld [vmem:[%s5003 + $0x348] sm:$0xff]
        %v5110 = vld [vmem:[%s5003 + $0x350] sm:$0xff]
        %v5111 = vld [vmem:[%s5003 + $0x358] sm:$0xff]
        %v5112 = vld [vmem:[%s5003 + $0x360] sm:$0xff]
        %v5113 = vld [vmem:[%s5003 + $0x368] sm:$0xff]
        %v5114 = vld [vmem:[%s5003 + $0x370] sm:$0xff]
        %v5115 = vld [vmem:[%s5003 + $0x378] sm:$0xff]
        %v5116 = vld [vmem:[%s5003 + $0x380] sm:$0xff]
        %v5117 = vld [vmem:[%s5003 + $0x388] sm:$0xff]
        %v5118 = vld [vmem:[%s5003 + $0x390] sm:$0xff]
        %v5119 = vld [vmem:[%s5003 + $0x398] sm:$0xff]
        %v5120 = vld [vmem:[%s5003 + $0x3a0] sm:$0xff]
        %v5121 = vld [vmem:[%s5003 + $0x3a8] sm:$0xff]
        %v5122 = vld [vmem:[%s5003 + $0x3b0] sm:$0xff]
        %v5123 = vld [vmem:[%s5003 + $0x3b8] sm:$0xff]
        %v5124 = vld [vmem:[%s5003 + $0x3c0] sm:$0xff]
        %v5125 = vld [vmem:[%s5003 + $0x3c8] sm:$0xff]
        %v5126 = vld [vmem:[%s5003 + $0x3d0] sm:$0xff]
        %v5127 = vld [vmem:[%s5003 + $0x3d8] sm:$0xff]
        %v5128 = vld [vmem:[%s5003 + $0x3e0] sm:$0xff]
        %v5129 = vld [vmem:[%s5003 + $0x3e8] sm:$0xff]
        %v5130 = vld [vmem:[%s5003 + $0x3f0] sm:$0xff]
        %v5131 = vld [vmem:[%s5003 + $0x3f8] sm:$0xff]
        %v5132 = vrot.slane %v3617, 5
        %v5133 = vrot.slane %v3618, 5
        %5136 = vmatprep.subr.mxu0 %v5065
        %5137 = vmatpush1.msra.mxu0 %v5064
        %5138 = vmatprep.subr.mxu0 %v5061
        %5139 = vmatpush1.msra.mxu0 %v5060
        %5140 = vmatprep.subr.mxu0 %v5057
        %5141 = vmatpush1.msra.mxu0 %v5056
        %5142 = vmatprep.subr.mxu0 %v5053
        %5143 = vmatpush1.msra.mxu0 %v5052
        %5144 = vmatprep.subr.mxu0 %v5049
        %5145 = vmatpush1.msra.mxu0 %v5048
        %5146 = vmatprep.subr.mxu0 %v5045
        %5147 = vmatpush1.msra.mxu0 %v5044
        %5148 = vmatprep.subr.mxu0 %v5041
        %5149 = vmatpush1.msra.mxu0 %v5040
        %5150 = vmatprep.subr.mxu0 %v5037
        %5151 = vmatpush1.msra.mxu0 %v5036
        %5152 = vmatprep.subr.mxu0 %v5033
        %5153 = vmatpush1.msra.mxu0 %v5032
        %5154 = vmatprep.subr.mxu0 %v5029
        %5155 = vmatpush1.msra.mxu0 %v5028
        %5156 = vmatprep.subr.mxu0 %v5025
        %5157 = vmatpush1.msra.mxu0 %v5024
        %5158 = vmatprep.subr.mxu0 %v5021
        %5159 = vmatpush1.msra.mxu0 %v5020
        %5160 = vmatprep.subr.mxu0 %v5017
        %5161 = vmatpush1.msra.mxu0 %v5016
        %5162 = vmatprep.subr.mxu0 %v5013
        %5163 = vmatpush1.msra.mxu0 %v5012
        %5164 = vmatprep.subr.mxu0 %v5009
        %5165 = vmatpush1.msra.mxu0 %v5008
        %5166 = vmatprep.subr.mxu0 %v5005
        %5167 = vmatpush1.msra.mxu0 %v5004
        %5168 = vmatprep.subr.mxu0 %v5129
        %5169 = vmatpush2.msra.mxu0 %v5128
        %5170 = vmatprep.subr.mxu0 %v5125
        %5171 = vmatpush2.msra.mxu0 %v5124
        %5172 = vmatprep.subr.mxu0 %v5121
        %5173 = vmatpush2.msra.mxu0 %v5120
        %5174 = vmatprep.subr.mxu0 %v5117
        %5175 = vmatpush2.msra.mxu0 %v5116
        %5176 = vmatprep.subr.mxu0 %v5113
        %5177 = vmatpush2.msra.mxu0 %v5112
        %5178 = vmatprep.subr.mxu0 %v5109
        %5179 = vmatpush2.msra.mxu0 %v5108
        %5180 = vmatprep.subr.mxu0 %v5105
        %5181 = vmatpush2.msra.mxu0 %v5104
        %5182 = vmatprep.subr.mxu0 %v5101
        %5183 = vmatpush2.msra.mxu0 %v5100
        %5184 = vmatprep.subr.mxu0 %v5097
        %5185 = vmatpush2.msra.mxu0 %v5096
        %5186 = vmatprep.subr.mxu0 %v5093
        %5187 = vmatpush2.msra.mxu0 %v5092
        %5188 = vmatprep.subr.mxu0 %v5089
        %5189 = vmatpush2.msra.mxu0 %v5088
        %5190 = vmatprep.subr.mxu0 %v5085
        %5191 = vmatpush2.msra.mxu0 %v5084
        %5192 = vmatprep.subr.mxu0 %v5081
        %5193 = vmatpush2.msra.mxu0 %v5080
        %5194 = vmatprep.subr.mxu0 %v5077
        %5195 = vmatpush2.msra.mxu0 %v5076
        %5196 = vmatprep.subr.mxu0 %v5073
        %5197 = vmatpush2.msra.mxu0 %v5072
        %5198 = vmatprep.subr.mxu0 %v5069
        %5199 = vmatpush2.msra.mxu0 %v5068
        %5200 = vmatprep.mubr.f32.mxu0 %v5133
        %5201 = vmatmul.mubr.f32.gmra.mxu0 %v5132
        %v5202 = vpop.f32.mrf.mxu0
        %v5203 = vadd.f32 0.0, %v5202
        %v5204 = vpop.f32.mrf.mxu0
        %v5205 = vadd.f32 0.0, %v5204
        %5206 = vdwg.mxu0
        %5207 = vmatprep.subr.mxu0 %v5067
        %5208 = vmatpush1.msra.mxu0 %v5066
        %5209 = vmatprep.subr.mxu0 %v5063
        %5210 = vmatpush1.msra.mxu0 %v5062
        %5211 = vmatprep.subr.mxu0 %v5059
        %5212 = vmatpush1.msra.mxu0 %v5058
        %5213 = vmatprep.subr.mxu0 %v5055
        %5214 = vmatpush1.msra.mxu0 %v5054
        %5215 = vmatprep.subr.mxu0 %v5051
        %5216 = vmatpush1.msra.mxu0 %v5050
        %5217 = vmatprep.subr.mxu0 %v5047
        %5218 = vmatpush1.msra.mxu0 %v5046
        %5219 = vmatprep.subr.mxu0 %v5043
        %5220 = vmatpush1.msra.mxu0 %v5042
        %5221 = vmatprep.subr.mxu0 %v5039
        %5222 = vmatpush1.msra.mxu0 %v5038
        %5223 = vmatprep.subr.mxu0 %v5035
        %5224 = vmatpush1.msra.mxu0 %v5034
        %5225 = vmatprep.subr.mxu0 %v5031
        %5226 = vmatpush1.msra.mxu0 %v5030
        %5227 = vmatprep.subr.mxu0 %v5027
        %5228 = vmatpush1.msra.mxu0 %v5026
        %5229 = vmatprep.subr.mxu0 %v5023
        %5230 = vmatpush1.msra.mxu0 %v5022
        %5231 = vmatprep.subr.mxu0 %v5019
        %5232 = vmatpush1.msra.mxu0 %v5018
        %5233 = vmatprep.subr.mxu0 %v5015
        %5234 = vmatpush1.msra.mxu0 %v5014
        %5235 = vmatprep.subr.mxu0 %v5011
        %5236 = vmatpush1.msra.mxu0 %v5010
        %5237 = vmatprep.subr.mxu0 %v5007
        %5238 = vmatpush1.msra.mxu0 %v5006
        %5239 = vmatprep.subr.mxu0 %v5131
        %5240 = vmatpush2.msra.mxu0 %v5130
        %5241 = vmatprep.subr.mxu0 %v5127
        %5242 = vmatpush2.msra.mxu0 %v5126
        %5243 = vmatprep.subr.mxu0 %v5123
        %5244 = vmatpush2.msra.mxu0 %v5122
        %5245 = vmatprep.subr.mxu0 %v5119
        %5246 = vmatpush2.msra.mxu0 %v5118
        %5247 = vmatprep.subr.mxu0 %v5115
        %5248 = vmatpush2.msra.mxu0 %v5114
        %5249 = vmatprep.subr.mxu0 %v5111
        %5250 = vmatpush2.msra.mxu0 %v5110
        %5251 = vmatprep.subr.mxu0 %v5107
        %5252 = vmatpush2.msra.mxu0 %v5106
        %5253 = vmatprep.subr.mxu0 %v5103
        %5254 = vmatpush2.msra.mxu0 %v5102
        %5255 = vmatprep.subr.mxu0 %v5099
        %5256 = vmatpush2.msra.mxu0 %v5098
        %5257 = vmatprep.subr.mxu0 %v5095
        %5258 = vmatpush2.msra.mxu0 %v5094
        %5259 = vmatprep.subr.mxu0 %v5091
        %5260 = vmatpush2.msra.mxu0 %v5090
        %5261 = vmatprep.subr.mxu0 %v5087
        %5262 = vmatpush2.msra.mxu0 %v5086
        %5263 = vmatprep.subr.mxu0 %v5083
        %5264 = vmatpush2.msra.mxu0 %v5082
        %5265 = vmatprep.subr.mxu0 %v5079
        %5266 = vmatpush2.msra.mxu0 %v5078
        %5267 = vmatprep.subr.mxu0 %v5075
        %5268 = vmatpush2.msra.mxu0 %v5074
        %5269 = vmatprep.subr.mxu0 %v5071
        %5270 = vmatpush2.msra.mxu0 %v5070
        %5271 = vmatprep.mubr.f32.mxu0 %v5133
        %5272 = vmatmul.mubr.f32.gmra.mxu0 %v5132
        %v5273 = vpop.f32.mrf.mxu0
        %v5274 = vadd.f32 0.0, %v5273
        %v5275 = vpop.f32.mrf.mxu0
        %v5276 = vadd.f32 0.0, %v5275
        %5277 = vdwg.mxu0
        %v5278 = vadd.f32 %v4999, %v5203
        %v5279 = vadd.f32 %v5000, %v5205
        %v5280 = vadd.f32 %v5001, %v5274
        %v5281 = vadd.f32 %v5002, %v5276
        %s5282 = scalar_lea.vmem %s5, 6144
        %v5283 = vld [vmem:[%s5282] sm:$0xff]
        %v5284 = vld [vmem:[%s5282 + $0x8] sm:$0xff]
        %v5285 = vld [vmem:[%s5282 + $0x10] sm:$0xff]
        %v5286 = vld [vmem:[%s5282 + $0x18] sm:$0xff]
        %v5287 = vld [vmem:[%s5282 + $0x20] sm:$0xff]
        %v5288 = vld [vmem:[%s5282 + $0x28] sm:$0xff]
        %v5289 = vld [vmem:[%s5282 + $0x30] sm:$0xff]
        %v5290 = vld [vmem:[%s5282 + $0x38] sm:$0xff]
        %v5291 = vld [vmem:[%s5282 + $0x40] sm:$0xff]
        %v5292 = vld [vmem:[%s5282 + $0x48] sm:$0xff]
        %v5293 = vld [vmem:[%s5282 + $0x50] sm:$0xff]
        %v5294 = vld [vmem:[%s5282 + $0x58] sm:$0xff]
        %v5295 = vld [vmem:[%s5282 + $0x60] sm:$0xff]
        %v5296 = vld [vmem:[%s5282 + $0x68] sm:$0xff]
        %v5297 = vld [vmem:[%s5282 + $0x70] sm:$0xff]
        %v5298 = vld [vmem:[%s5282 + $0x78] sm:$0xff]
        %v5299 = vld [vmem:[%s5282 + $0x80] sm:$0xff]
        %v5300 = vld [vmem:[%s5282 + $0x88] sm:$0xff]
        %v5301 = vld [vmem:[%s5282 + $0x90] sm:$0xff]
        %v5302 = vld [vmem:[%s5282 + $0x98] sm:$0xff]
        %v5303 = vld [vmem:[%s5282 + $0xa0] sm:$0xff]
        %v5304 = vld [vmem:[%s5282 + $0xa8] sm:$0xff]
        %v5305 = vld [vmem:[%s5282 + $0xb0] sm:$0xff]
        %v5306 = vld [vmem:[%s5282 + $0xb8] sm:$0xff]
        %v5307 = vld [vmem:[%s5282 + $0xc0] sm:$0xff]
        %v5308 = vld [vmem:[%s5282 + $0xc8] sm:$0xff]
        %v5309 = vld [vmem:[%s5282 + $0xd0] sm:$0xff]
        %v5310 = vld [vmem:[%s5282 + $0xd8] sm:$0xff]
        %v5311 = vld [vmem:[%s5282 + $0xe0] sm:$0xff]
        %v5312 = vld [vmem:[%s5282 + $0xe8] sm:$0xff]
        %v5313 = vld [vmem:[%s5282 + $0xf0] sm:$0xff]
        %v5314 = vld [vmem:[%s5282 + $0xf8] sm:$0xff]
        %v5315 = vld [vmem:[%s5282 + $0x100] sm:$0xff]
        %v5316 = vld [vmem:[%s5282 + $0x108] sm:$0xff]
        %v5317 = vld [vmem:[%s5282 + $0x110] sm:$0xff]
        %v5318 = vld [vmem:[%s5282 + $0x118] sm:$0xff]
        %v5319 = vld [vmem:[%s5282 + $0x120] sm:$0xff]
        %v5320 = vld [vmem:[%s5282 + $0x128] sm:$0xff]
        %v5321 = vld [vmem:[%s5282 + $0x130] sm:$0xff]
        %v5322 = vld [vmem:[%s5282 + $0x138] sm:$0xff]
        %v5323 = vld [vmem:[%s5282 + $0x140] sm:$0xff]
        %v5324 = vld [vmem:[%s5282 + $0x148] sm:$0xff]
        %v5325 = vld [vmem:[%s5282 + $0x150] sm:$0xff]
        %v5326 = vld [vmem:[%s5282 + $0x158] sm:$0xff]
        %v5327 = vld [vmem:[%s5282 + $0x160] sm:$0xff]
        %v5328 = vld [vmem:[%s5282 + $0x168] sm:$0xff]
        %v5329 = vld [vmem:[%s5282 + $0x170] sm:$0xff]
        %v5330 = vld [vmem:[%s5282 + $0x178] sm:$0xff]
        %v5331 = vld [vmem:[%s5282 + $0x180] sm:$0xff]
        %v5332 = vld [vmem:[%s5282 + $0x188] sm:$0xff]
        %v5333 = vld [vmem:[%s5282 + $0x190] sm:$0xff]
        %v5334 = vld [vmem:[%s5282 + $0x198] sm:$0xff]
        %v5335 = vld [vmem:[%s5282 + $0x1a0] sm:$0xff]
        %v5336 = vld [vmem:[%s5282 + $0x1a8] sm:$0xff]
        %v5337 = vld [vmem:[%s5282 + $0x1b0] sm:$0xff]
        %v5338 = vld [vmem:[%s5282 + $0x1b8] sm:$0xff]
        %v5339 = vld [vmem:[%s5282 + $0x1c0] sm:$0xff]
        %v5340 = vld [vmem:[%s5282 + $0x1c8] sm:$0xff]
        %v5341 = vld [vmem:[%s5282 + $0x1d0] sm:$0xff]
        %v5342 = vld [vmem:[%s5282 + $0x1d8] sm:$0xff]
        %v5343 = vld [vmem:[%s5282 + $0x1e0] sm:$0xff]
        %v5344 = vld [vmem:[%s5282 + $0x1e8] sm:$0xff]
        %v5345 = vld [vmem:[%s5282 + $0x1f0] sm:$0xff]
        %v5346 = vld [vmem:[%s5282 + $0x1f8] sm:$0xff]
        %v5347 = vld [vmem:[%s5282 + $0x200] sm:$0xff]
        %v5348 = vld [vmem:[%s5282 + $0x208] sm:$0xff]
        %v5349 = vld [vmem:[%s5282 + $0x210] sm:$0xff]
        %v5350 = vld [vmem:[%s5282 + $0x218] sm:$0xff]
        %v5351 = vld [vmem:[%s5282 + $0x220] sm:$0xff]
        %v5352 = vld [vmem:[%s5282 + $0x228] sm:$0xff]
        %v5353 = vld [vmem:[%s5282 + $0x230] sm:$0xff]
        %v5354 = vld [vmem:[%s5282 + $0x238] sm:$0xff]
        %v5355 = vld [vmem:[%s5282 + $0x240] sm:$0xff]
        %v5356 = vld [vmem:[%s5282 + $0x248] sm:$0xff]
        %v5357 = vld [vmem:[%s5282 + $0x250] sm:$0xff]
        %v5358 = vld [vmem:[%s5282 + $0x258] sm:$0xff]
        %v5359 = vld [vmem:[%s5282 + $0x260] sm:$0xff]
        %v5360 = vld [vmem:[%s5282 + $0x268] sm:$0xff]
        %v5361 = vld [vmem:[%s5282 + $0x270] sm:$0xff]
        %v5362 = vld [vmem:[%s5282 + $0x278] sm:$0xff]
        %v5363 = vld [vmem:[%s5282 + $0x280] sm:$0xff]
        %v5364 = vld [vmem:[%s5282 + $0x288] sm:$0xff]
        %v5365 = vld [vmem:[%s5282 + $0x290] sm:$0xff]
        %v5366 = vld [vmem:[%s5282 + $0x298] sm:$0xff]
        %v5367 = vld [vmem:[%s5282 + $0x2a0] sm:$0xff]
        %v5368 = vld [vmem:[%s5282 + $0x2a8] sm:$0xff]
        %v5369 = vld [vmem:[%s5282 + $0x2b0] sm:$0xff]
        %v5370 = vld [vmem:[%s5282 + $0x2b8] sm:$0xff]
        %v5371 = vld [vmem:[%s5282 + $0x2c0] sm:$0xff]
        %v5372 = vld [vmem:[%s5282 + $0x2c8] sm:$0xff]
        %v5373 = vld [vmem:[%s5282 + $0x2d0] sm:$0xff]
        %v5374 = vld [vmem:[%s5282 + $0x2d8] sm:$0xff]
        %v5375 = vld [vmem:[%s5282 + $0x2e0] sm:$0xff]
        %v5376 = vld [vmem:[%s5282 + $0x2e8] sm:$0xff]
        %v5377 = vld [vmem:[%s5282 + $0x2f0] sm:$0xff]
        %v5378 = vld [vmem:[%s5282 + $0x2f8] sm:$0xff]
        %v5379 = vld [vmem:[%s5282 + $0x300] sm:$0xff]
        %v5380 = vld [vmem:[%s5282 + $0x308] sm:$0xff]
        %v5381 = vld [vmem:[%s5282 + $0x310] sm:$0xff]
        %v5382 = vld [vmem:[%s5282 + $0x318] sm:$0xff]
        %v5383 = vld [vmem:[%s5282 + $0x320] sm:$0xff]
        %v5384 = vld [vmem:[%s5282 + $0x328] sm:$0xff]
        %v5385 = vld [vmem:[%s5282 + $0x330] sm:$0xff]
        %v5386 = vld [vmem:[%s5282 + $0x338] sm:$0xff]
        %v5387 = vld [vmem:[%s5282 + $0x340] sm:$0xff]
        %v5388 = vld [vmem:[%s5282 + $0x348] sm:$0xff]
        %v5389 = vld [vmem:[%s5282 + $0x350] sm:$0xff]
        %v5390 = vld [vmem:[%s5282 + $0x358] sm:$0xff]
        %v5391 = vld [vmem:[%s5282 + $0x360] sm:$0xff]
        %v5392 = vld [vmem:[%s5282 + $0x368] sm:$0xff]
        %v5393 = vld [vmem:[%s5282 + $0x370] sm:$0xff]
        %v5394 = vld [vmem:[%s5282 + $0x378] sm:$0xff]
        %v5395 = vld [vmem:[%s5282 + $0x380] sm:$0xff]
        %v5396 = vld [vmem:[%s5282 + $0x388] sm:$0xff]
        %v5397 = vld [vmem:[%s5282 + $0x390] sm:$0xff]
        %v5398 = vld [vmem:[%s5282 + $0x398] sm:$0xff]
        %v5399 = vld [vmem:[%s5282 + $0x3a0] sm:$0xff]
        %v5400 = vld [vmem:[%s5282 + $0x3a8] sm:$0xff]
        %v5401 = vld [vmem:[%s5282 + $0x3b0] sm:$0xff]
        %v5402 = vld [vmem:[%s5282 + $0x3b8] sm:$0xff]
        %v5403 = vld [vmem:[%s5282 + $0x3c0] sm:$0xff]
        %v5404 = vld [vmem:[%s5282 + $0x3c8] sm:$0xff]
        %v5405 = vld [vmem:[%s5282 + $0x3d0] sm:$0xff]
        %v5406 = vld [vmem:[%s5282 + $0x3d8] sm:$0xff]
        %v5407 = vld [vmem:[%s5282 + $0x3e0] sm:$0xff]
        %v5408 = vld [vmem:[%s5282 + $0x3e8] sm:$0xff]
        %v5409 = vld [vmem:[%s5282 + $0x3f0] sm:$0xff]
        %v5410 = vld [vmem:[%s5282 + $0x3f8] sm:$0xff]
        %v5411 = vrot.slane %v3617, 6
        %v5412 = vrot.slane %v3618, 6
        %5415 = vmatprep.subr.mxu0 %v5344
        %5416 = vmatpush1.msra.mxu0 %v5343
        %5417 = vmatprep.subr.mxu0 %v5340
        %5418 = vmatpush1.msra.mxu0 %v5339
        %5419 = vmatprep.subr.mxu0 %v5336
        %5420 = vmatpush1.msra.mxu0 %v5335
        %5421 = vmatprep.subr.mxu0 %v5332
        %5422 = vmatpush1.msra.mxu0 %v5331
        %5423 = vmatprep.subr.mxu0 %v5328
        %5424 = vmatpush1.msra.mxu0 %v5327
        %5425 = vmatprep.subr.mxu0 %v5324
        %5426 = vmatpush1.msra.mxu0 %v5323
        %5427 = vmatprep.subr.mxu0 %v5320
        %5428 = vmatpush1.msra.mxu0 %v5319
        %5429 = vmatprep.subr.mxu0 %v5316
        %5430 = vmatpush1.msra.mxu0 %v5315
        %5431 = vmatprep.subr.mxu0 %v5312
        %5432 = vmatpush1.msra.mxu0 %v5311
        %5433 = vmatprep.subr.mxu0 %v5308
        %5434 = vmatpush1.msra.mxu0 %v5307
        %5435 = vmatprep.subr.mxu0 %v5304
        %5436 = vmatpush1.msra.mxu0 %v5303
        %5437 = vmatprep.subr.mxu0 %v5300
        %5438 = vmatpush1.msra.mxu0 %v5299
        %5439 = vmatprep.subr.mxu0 %v5296
        %5440 = vmatpush1.msra.mxu0 %v5295
        %5441 = vmatprep.subr.mxu0 %v5292
        %5442 = vmatpush1.msra.mxu0 %v5291
        %5443 = vmatprep.subr.mxu0 %v5288
        %5444 = vmatpush1.msra.mxu0 %v5287
        %5445 = vmatprep.subr.mxu0 %v5284
        %5446 = vmatpush1.msra.mxu0 %v5283
        %5447 = vmatprep.subr.mxu0 %v5408
        %5448 = vmatpush2.msra.mxu0 %v5407
        %5449 = vmatprep.subr.mxu0 %v5404
        %5450 = vmatpush2.msra.mxu0 %v5403
        %5451 = vmatprep.subr.mxu0 %v5400
        %5452 = vmatpush2.msra.mxu0 %v5399
        %5453 = vmatprep.subr.mxu0 %v5396
        %5454 = vmatpush2.msra.mxu0 %v5395
        %5455 = vmatprep.subr.mxu0 %v5392
        %5456 = vmatpush2.msra.mxu0 %v5391
        %5457 = vmatprep.subr.mxu0 %v5388
        %5458 = vmatpush2.msra.mxu0 %v5387
        %5459 = vmatprep.subr.mxu0 %v5384
        %5460 = vmatpush2.msra.mxu0 %v5383
        %5461 = vmatprep.subr.mxu0 %v5380
        %5462 = vmatpush2.msra.mxu0 %v5379
        %5463 = vmatprep.subr.mxu0 %v5376
        %5464 = vmatpush2.msra.mxu0 %v5375
        %5465 = vmatprep.subr.mxu0 %v5372
        %5466 = vmatpush2.msra.mxu0 %v5371
        %5467 = vmatprep.subr.mxu0 %v5368
        %5468 = vmatpush2.msra.mxu0 %v5367
        %5469 = vmatprep.subr.mxu0 %v5364
        %5470 = vmatpush2.msra.mxu0 %v5363
        %5471 = vmatprep.subr.mxu0 %v5360
        %5472 = vmatpush2.msra.mxu0 %v5359
        %5473 = vmatprep.subr.mxu0 %v5356
        %5474 = vmatpush2.msra.mxu0 %v5355
        %5475 = vmatprep.subr.mxu0 %v5352
        %5476 = vmatpush2.msra.mxu0 %v5351
        %5477 = vmatprep.subr.mxu0 %v5348
        %5478 = vmatpush2.msra.mxu0 %v5347
        %5479 = vmatprep.mubr.f32.mxu0 %v5412
        %5480 = vmatmul.mubr.f32.gmra.mxu0 %v5411
        %v5481 = vpop.f32.mrf.mxu0
        %v5482 = vadd.f32 0.0, %v5481
        %v5483 = vpop.f32.mrf.mxu0
        %v5484 = vadd.f32 0.0, %v5483
        %5485 = vdwg.mxu0
        %5486 = vmatprep.subr.mxu0 %v5346
        %5487 = vmatpush1.msra.mxu0 %v5345
        %5488 = vmatprep.subr.mxu0 %v5342
        %5489 = vmatpush1.msra.mxu0 %v5341
        %5490 = vmatprep.subr.mxu0 %v5338
        %5491 = vmatpush1.msra.mxu0 %v5337
        %5492 = vmatprep.subr.mxu0 %v5334
        %5493 = vmatpush1.msra.mxu0 %v5333
        %5494 = vmatprep.subr.mxu0 %v5330
        %5495 = vmatpush1.msra.mxu0 %v5329
        %5496 = vmatprep.subr.mxu0 %v5326
        %5497 = vmatpush1.msra.mxu0 %v5325
        %5498 = vmatprep.subr.mxu0 %v5322
        %5499 = vmatpush1.msra.mxu0 %v5321
        %5500 = vmatprep.subr.mxu0 %v5318
        %5501 = vmatpush1.msra.mxu0 %v5317
        %5502 = vmatprep.subr.mxu0 %v5314
        %5503 = vmatpush1.msra.mxu0 %v5313
        %5504 = vmatprep.subr.mxu0 %v5310
        %5505 = vmatpush1.msra.mxu0 %v5309
        %5506 = vmatprep.subr.mxu0 %v5306
        %5507 = vmatpush1.msra.mxu0 %v5305
        %5508 = vmatprep.subr.mxu0 %v5302
        %5509 = vmatpush1.msra.mxu0 %v5301
        %5510 = vmatprep.subr.mxu0 %v5298
        %5511 = vmatpush1.msra.mxu0 %v5297
        %5512 = vmatprep.subr.mxu0 %v5294
        %5513 = vmatpush1.msra.mxu0 %v5293
        %5514 = vmatprep.subr.mxu0 %v5290
        %5515 = vmatpush1.msra.mxu0 %v5289
        %5516 = vmatprep.subr.mxu0 %v5286
        %5517 = vmatpush1.msra.mxu0 %v5285
        %5518 = vmatprep.subr.mxu0 %v5410
        %5519 = vmatpush2.msra.mxu0 %v5409
        %5520 = vmatprep.subr.mxu0 %v5406
        %5521 = vmatpush2.msra.mxu0 %v5405
        %5522 = vmatprep.subr.mxu0 %v5402
        %5523 = vmatpush2.msra.mxu0 %v5401
        %5524 = vmatprep.subr.mxu0 %v5398
        %5525 = vmatpush2.msra.mxu0 %v5397
        %5526 = vmatprep.subr.mxu0 %v5394
        %5527 = vmatpush2.msra.mxu0 %v5393
        %5528 = vmatprep.subr.mxu0 %v5390
        %5529 = vmatpush2.msra.mxu0 %v5389
        %5530 = vmatprep.subr.mxu0 %v5386
        %5531 = vmatpush2.msra.mxu0 %v5385
        %5532 = vmatprep.subr.mxu0 %v5382
        %5533 = vmatpush2.msra.mxu0 %v5381
        %5534 = vmatprep.subr.mxu0 %v5378
        %5535 = vmatpush2.msra.mxu0 %v5377
        %5536 = vmatprep.subr.mxu0 %v5374
        %5537 = vmatpush2.msra.mxu0 %v5373
        %5538 = vmatprep.subr.mxu0 %v5370
        %5539 = vmatpush2.msra.mxu0 %v5369
        %5540 = vmatprep.subr.mxu0 %v5366
        %5541 = vmatpush2.msra.mxu0 %v5365
        %5542 = vmatprep.subr.mxu0 %v5362
        %5543 = vmatpush2.msra.mxu0 %v5361
        %5544 = vmatprep.subr.mxu0 %v5358
        %5545 = vmatpush2.msra.mxu0 %v5357
        %5546 = vmatprep.subr.mxu0 %v5354
        %5547 = vmatpush2.msra.mxu0 %v5353
        %5548 = vmatprep.subr.mxu0 %v5350
        %5549 = vmatpush2.msra.mxu0 %v5349
        %5550 = vmatprep.mubr.f32.mxu0 %v5412
        %5551 = vmatmul.mubr.f32.gmra.mxu0 %v5411
        %v5552 = vpop.f32.mrf.mxu0
        %v5553 = vadd.f32 0.0, %v5552
        %v5554 = vpop.f32.mrf.mxu0
        %v5555 = vadd.f32 0.0, %v5554
        %5556 = vdwg.mxu0
        %v5557 = vadd.f32 %v5278, %v5482
        %v5558 = vadd.f32 %v5279, %v5484
        %v5559 = vadd.f32 %v5280, %v5553
        %v5560 = vadd.f32 %v5281, %v5555
        %s5561 = scalar_lea.vmem %s5, 7168
        %v5562 = vld [vmem:[%s5561] sm:$0xff]
        %v5563 = vld [vmem:[%s5561 + $0x8] sm:$0xff]
        %v5564 = vld [vmem:[%s5561 + $0x10] sm:$0xff]
        %v5565 = vld [vmem:[%s5561 + $0x18] sm:$0xff]
        %v5566 = vld [vmem:[%s5561 + $0x20] sm:$0xff]
        %v5567 = vld [vmem:[%s5561 + $0x28] sm:$0xff]
        %v5568 = vld [vmem:[%s5561 + $0x30] sm:$0xff]
        %v5569 = vld [vmem:[%s5561 + $0x38] sm:$0xff]
        %v5570 = vld [vmem:[%s5561 + $0x40] sm:$0xff]
        %v5571 = vld [vmem:[%s5561 + $0x48] sm:$0xff]
        %v5572 = vld [vmem:[%s5561 + $0x50] sm:$0xff]
        %v5573 = vld [vmem:[%s5561 + $0x58] sm:$0xff]
        %v5574 = vld [vmem:[%s5561 + $0x60] sm:$0xff]
        %v5575 = vld [vmem:[%s5561 + $0x68] sm:$0xff]
        %v5576 = vld [vmem:[%s5561 + $0x70] sm:$0xff]
        %v5577 = vld [vmem:[%s5561 + $0x78] sm:$0xff]
        %v5578 = vld [vmem:[%s5561 + $0x80] sm:$0xff]
        %v5579 = vld [vmem:[%s5561 + $0x88] sm:$0xff]
        %v5580 = vld [vmem:[%s5561 + $0x90] sm:$0xff]
        %v5581 = vld [vmem:[%s5561 + $0x98] sm:$0xff]
        %v5582 = vld [vmem:[%s5561 + $0xa0] sm:$0xff]
        %v5583 = vld [vmem:[%s5561 + $0xa8] sm:$0xff]
        %v5584 = vld [vmem:[%s5561 + $0xb0] sm:$0xff]
        %v5585 = vld [vmem:[%s5561 + $0xb8] sm:$0xff]
        %v5586 = vld [vmem:[%s5561 + $0xc0] sm:$0xff]
        %v5587 = vld [vmem:[%s5561 + $0xc8] sm:$0xff]
        %v5588 = vld [vmem:[%s5561 + $0xd0] sm:$0xff]
        %v5589 = vld [vmem:[%s5561 + $0xd8] sm:$0xff]
        %v5590 = vld [vmem:[%s5561 + $0xe0] sm:$0xff]
        %v5591 = vld [vmem:[%s5561 + $0xe8] sm:$0xff]
        %v5592 = vld [vmem:[%s5561 + $0xf0] sm:$0xff]
        %v5593 = vld [vmem:[%s5561 + $0xf8] sm:$0xff]
        %v5594 = vld [vmem:[%s5561 + $0x100] sm:$0xff]
        %v5595 = vld [vmem:[%s5561 + $0x108] sm:$0xff]
        %v5596 = vld [vmem:[%s5561 + $0x110] sm:$0xff]
        %v5597 = vld [vmem:[%s5561 + $0x118] sm:$0xff]
        %v5598 = vld [vmem:[%s5561 + $0x120] sm:$0xff]
        %v5599 = vld [vmem:[%s5561 + $0x128] sm:$0xff]
        %v5600 = vld [vmem:[%s5561 + $0x130] sm:$0xff]
        %v5601 = vld [vmem:[%s5561 + $0x138] sm:$0xff]
        %v5602 = vld [vmem:[%s5561 + $0x140] sm:$0xff]
        %v5603 = vld [vmem:[%s5561 + $0x148] sm:$0xff]
        %v5604 = vld [vmem:[%s5561 + $0x150] sm:$0xff]
        %v5605 = vld [vmem:[%s5561 + $0x158] sm:$0xff]
        %v5606 = vld [vmem:[%s5561 + $0x160] sm:$0xff]
        %v5607 = vld [vmem:[%s5561 + $0x168] sm:$0xff]
        %v5608 = vld [vmem:[%s5561 + $0x170] sm:$0xff]
        %v5609 = vld [vmem:[%s5561 + $0x178] sm:$0xff]
        %v5610 = vld [vmem:[%s5561 + $0x180] sm:$0xff]
        %v5611 = vld [vmem:[%s5561 + $0x188] sm:$0xff]
        %v5612 = vld [vmem:[%s5561 + $0x190] sm:$0xff]
        %v5613 = vld [vmem:[%s5561 + $0x198] sm:$0xff]
        %v5614 = vld [vmem:[%s5561 + $0x1a0] sm:$0xff]
        %v5615 = vld [vmem:[%s5561 + $0x1a8] sm:$0xff]
        %v5616 = vld [vmem:[%s5561 + $0x1b0] sm:$0xff]
        %v5617 = vld [vmem:[%s5561 + $0x1b8] sm:$0xff]
        %v5618 = vld [vmem:[%s5561 + $0x1c0] sm:$0xff]
        %v5619 = vld [vmem:[%s5561 + $0x1c8] sm:$0xff]
        %v5620 = vld [vmem:[%s5561 + $0x1d0] sm:$0xff]
        %v5621 = vld [vmem:[%s5561 + $0x1d8] sm:$0xff]
        %v5622 = vld [vmem:[%s5561 + $0x1e0] sm:$0xff]
        %v5623 = vld [vmem:[%s5561 + $0x1e8] sm:$0xff]
        %v5624 = vld [vmem:[%s5561 + $0x1f0] sm:$0xff]
        %v5625 = vld [vmem:[%s5561 + $0x1f8] sm:$0xff]
        %v5626 = vld [vmem:[%s5561 + $0x200] sm:$0xff]
        %v5627 = vld [vmem:[%s5561 + $0x208] sm:$0xff]
        %v5628 = vld [vmem:[%s5561 + $0x210] sm:$0xff]
        %v5629 = vld [vmem:[%s5561 + $0x218] sm:$0xff]
        %v5630 = vld [vmem:[%s5561 + $0x220] sm:$0xff]
        %v5631 = vld [vmem:[%s5561 + $0x228] sm:$0xff]
        %v5632 = vld [vmem:[%s5561 + $0x230] sm:$0xff]
        %v5633 = vld [vmem:[%s5561 + $0x238] sm:$0xff]
        %v5634 = vld [vmem:[%s5561 + $0x240] sm:$0xff]
        %v5635 = vld [vmem:[%s5561 + $0x248] sm:$0xff]
        %v5636 = vld [vmem:[%s5561 + $0x250] sm:$0xff]
        %v5637 = vld [vmem:[%s5561 + $0x258] sm:$0xff]
        %v5638 = vld [vmem:[%s5561 + $0x260] sm:$0xff]
        %v5639 = vld [vmem:[%s5561 + $0x268] sm:$0xff]
        %v5640 = vld [vmem:[%s5561 + $0x270] sm:$0xff]
        %v5641 = vld [vmem:[%s5561 + $0x278] sm:$0xff]
        %v5642 = vld [vmem:[%s5561 + $0x280] sm:$0xff]
        %v5643 = vld [vmem:[%s5561 + $0x288] sm:$0xff]
        %v5644 = vld [vmem:[%s5561 + $0x290] sm:$0xff]
        %v5645 = vld [vmem:[%s5561 + $0x298] sm:$0xff]
        %v5646 = vld [vmem:[%s5561 + $0x2a0] sm:$0xff]
        %v5647 = vld [vmem:[%s5561 + $0x2a8] sm:$0xff]
        %v5648 = vld [vmem:[%s5561 + $0x2b0] sm:$0xff]
        %v5649 = vld [vmem:[%s5561 + $0x2b8] sm:$0xff]
        %v5650 = vld [vmem:[%s5561 + $0x2c0] sm:$0xff]
        %v5651 = vld [vmem:[%s5561 + $0x2c8] sm:$0xff]
        %v5652 = vld [vmem:[%s5561 + $0x2d0] sm:$0xff]
        %v5653 = vld [vmem:[%s5561 + $0x2d8] sm:$0xff]
        %v5654 = vld [vmem:[%s5561 + $0x2e0] sm:$0xff]
        %v5655 = vld [vmem:[%s5561 + $0x2e8] sm:$0xff]
        %v5656 = vld [vmem:[%s5561 + $0x2f0] sm:$0xff]
        %v5657 = vld [vmem:[%s5561 + $0x2f8] sm:$0xff]
        %v5658 = vld [vmem:[%s5561 + $0x300] sm:$0xff]
        %v5659 = vld [vmem:[%s5561 + $0x308] sm:$0xff]
        %v5660 = vld [vmem:[%s5561 + $0x310] sm:$0xff]
        %v5661 = vld [vmem:[%s5561 + $0x318] sm:$0xff]
        %v5662 = vld [vmem:[%s5561 + $0x320] sm:$0xff]
        %v5663 = vld [vmem:[%s5561 + $0x328] sm:$0xff]
        %v5664 = vld [vmem:[%s5561 + $0x330] sm:$0xff]
        %v5665 = vld [vmem:[%s5561 + $0x338] sm:$0xff]
        %v5666 = vld [vmem:[%s5561 + $0x340] sm:$0xff]
        %v5667 = vld [vmem:[%s5561 + $0x348] sm:$0xff]
        %v5668 = vld [vmem:[%s5561 + $0x350] sm:$0xff]
        %v5669 = vld [vmem:[%s5561 + $0x358] sm:$0xff]
        %v5670 = vld [vmem:[%s5561 + $0x360] sm:$0xff]
        %v5671 = vld [vmem:[%s5561 + $0x368] sm:$0xff]
        %v5672 = vld [vmem:[%s5561 + $0x370] sm:$0xff]
        %v5673 = vld [vmem:[%s5561 + $0x378] sm:$0xff]
        %v5674 = vld [vmem:[%s5561 + $0x380] sm:$0xff]
        %v5675 = vld [vmem:[%s5561 + $0x388] sm:$0xff]
        %v5676 = vld [vmem:[%s5561 + $0x390] sm:$0xff]
        %v5677 = vld [vmem:[%s5561 + $0x398] sm:$0xff]
        %v5678 = vld [vmem:[%s5561 + $0x3a0] sm:$0xff]
        %v5679 = vld [vmem:[%s5561 + $0x3a8] sm:$0xff]
        %v5680 = vld [vmem:[%s5561 + $0x3b0] sm:$0xff]
        %v5681 = vld [vmem:[%s5561 + $0x3b8] sm:$0xff]
        %v5682 = vld [vmem:[%s5561 + $0x3c0] sm:$0xff]
        %v5683 = vld [vmem:[%s5561 + $0x3c8] sm:$0xff]
        %v5684 = vld [vmem:[%s5561 + $0x3d0] sm:$0xff]
        %v5685 = vld [vmem:[%s5561 + $0x3d8] sm:$0xff]
        %v5686 = vld [vmem:[%s5561 + $0x3e0] sm:$0xff]
        %v5687 = vld [vmem:[%s5561 + $0x3e8] sm:$0xff]
        %v5688 = vld [vmem:[%s5561 + $0x3f0] sm:$0xff]
        %v5689 = vld [vmem:[%s5561 + $0x3f8] sm:$0xff]
        %v5690 = vrot.slane %v3617, 7
        %v5691 = vrot.slane %v3618, 7
        %5694 = vmatprep.subr.mxu0 %v5623
        %5695 = vmatpush1.msra.mxu0 %v5622
        %5696 = vmatprep.subr.mxu0 %v5619
        %5697 = vmatpush1.msra.mxu0 %v5618
        %5698 = vmatprep.subr.mxu0 %v5615
        %5699 = vmatpush1.msra.mxu0 %v5614
        %5700 = vmatprep.subr.mxu0 %v5611
        %5701 = vmatpush1.msra.mxu0 %v5610
        %5702 = vmatprep.subr.mxu0 %v5607
        %5703 = vmatpush1.msra.mxu0 %v5606
        %5704 = vmatprep.subr.mxu0 %v5603
        %5705 = vmatpush1.msra.mxu0 %v5602
        %5706 = vmatprep.subr.mxu0 %v5599
        %5707 = vmatpush1.msra.mxu0 %v5598
        %5708 = vmatprep.subr.mxu0 %v5595
        %5709 = vmatpush1.msra.mxu0 %v5594
        %5710 = vmatprep.subr.mxu0 %v5591
        %5711 = vmatpush1.msra.mxu0 %v5590
        %5712 = vmatprep.subr.mxu0 %v5587
        %5713 = vmatpush1.msra.mxu0 %v5586
        %5714 = vmatprep.subr.mxu0 %v5583
        %5715 = vmatpush1.msra.mxu0 %v5582
        %5716 = vmatprep.subr.mxu0 %v5579
        %5717 = vmatpush1.msra.mxu0 %v5578
        %5718 = vmatprep.subr.mxu0 %v5575
        %5719 = vmatpush1.msra.mxu0 %v5574
        %5720 = vmatprep.subr.mxu0 %v5571
        %5721 = vmatpush1.msra.mxu0 %v5570
        %5722 = vmatprep.subr.mxu0 %v5567
        %5723 = vmatpush1.msra.mxu0 %v5566
        %5724 = vmatprep.subr.mxu0 %v5563
        %5725 = vmatpush1.msra.mxu0 %v5562
        %5726 = vmatprep.subr.mxu0 %v5687
        %5727 = vmatpush2.msra.mxu0 %v5686
        %5728 = vmatprep.subr.mxu0 %v5683
        %5729 = vmatpush2.msra.mxu0 %v5682
        %5730 = vmatprep.subr.mxu0 %v5679
        %5731 = vmatpush2.msra.mxu0 %v5678
        %5732 = vmatprep.subr.mxu0 %v5675
        %5733 = vmatpush2.msra.mxu0 %v5674
        %5734 = vmatprep.subr.mxu0 %v5671
        %5735 = vmatpush2.msra.mxu0 %v5670
        %5736 = vmatprep.subr.mxu0 %v5667
        %5737 = vmatpush2.msra.mxu0 %v5666
        %5738 = vmatprep.subr.mxu0 %v5663
        %5739 = vmatpush2.msra.mxu0 %v5662
        %5740 = vmatprep.subr.mxu0 %v5659
        %5741 = vmatpush2.msra.mxu0 %v5658
        %5742 = vmatprep.subr.mxu0 %v5655
        %5743 = vmatpush2.msra.mxu0 %v5654
        %5744 = vmatprep.subr.mxu0 %v5651
        %5745 = vmatpush2.msra.mxu0 %v5650
        %5746 = vmatprep.subr.mxu0 %v5647
        %5747 = vmatpush2.msra.mxu0 %v5646
        %5748 = vmatprep.subr.mxu0 %v5643
        %5749 = vmatpush2.msra.mxu0 %v5642
        %5750 = vmatprep.subr.mxu0 %v5639
        %5751 = vmatpush2.msra.mxu0 %v5638
        %5752 = vmatprep.subr.mxu0 %v5635
        %5753 = vmatpush2.msra.mxu0 %v5634
        %5754 = vmatprep.subr.mxu0 %v5631
        %5755 = vmatpush2.msra.mxu0 %v5630
        %5756 = vmatprep.subr.mxu0 %v5627
        %5757 = vmatpush2.msra.mxu0 %v5626
        %5758 = vmatprep.mubr.f32.mxu0 %v5691
        %5759 = vmatmul.mubr.f32.gmra.mxu0 %v5690
        %v5760 = vpop.f32.mrf.mxu0
        %v5761 = vadd.f32 0.0, %v5760
        %v5762 = vpop.f32.mrf.mxu0
        %v5763 = vadd.f32 0.0, %v5762
        %5764 = vdwg.mxu0
        %5765 = vmatprep.subr.mxu0 %v5625
        %5766 = vmatpush1.msra.mxu0 %v5624
        %5767 = vmatprep.subr.mxu0 %v5621
        %5768 = vmatpush1.msra.mxu0 %v5620
        %5769 = vmatprep.subr.mxu0 %v5617
        %5770 = vmatpush1.msra.mxu0 %v5616
        %5771 = vmatprep.subr.mxu0 %v5613
        %5772 = vmatpush1.msra.mxu0 %v5612
        %5773 = vmatprep.subr.mxu0 %v5609
        %5774 = vmatpush1.msra.mxu0 %v5608
        %5775 = vmatprep.subr.mxu0 %v5605
        %5776 = vmatpush1.msra.mxu0 %v5604
        %5777 = vmatprep.subr.mxu0 %v5601
        %5778 = vmatpush1.msra.mxu0 %v5600
        %5779 = vmatprep.subr.mxu0 %v5597
        %5780 = vmatpush1.msra.mxu0 %v5596
        %5781 = vmatprep.subr.mxu0 %v5593
        %5782 = vmatpush1.msra.mxu0 %v5592
        %5783 = vmatprep.subr.mxu0 %v5589
        %5784 = vmatpush1.msra.mxu0 %v5588
        %5785 = vmatprep.subr.mxu0 %v5585
        %5786 = vmatpush1.msra.mxu0 %v5584
        %5787 = vmatprep.subr.mxu0 %v5581
        %5788 = vmatpush1.msra.mxu0 %v5580
        %5789 = vmatprep.subr.mxu0 %v5577
        %5790 = vmatpush1.msra.mxu0 %v5576
        %5791 = vmatprep.subr.mxu0 %v5573
        %5792 = vmatpush1.msra.mxu0 %v5572
        %5793 = vmatprep.subr.mxu0 %v5569
        %5794 = vmatpush1.msra.mxu0 %v5568
        %5795 = vmatprep.subr.mxu0 %v5565
        %5796 = vmatpush1.msra.mxu0 %v5564
        %5797 = vmatprep.subr.mxu0 %v5689
        %5798 = vmatpush2.msra.mxu0 %v5688
        %5799 = vmatprep.subr.mxu0 %v5685
        %5800 = vmatpush2.msra.mxu0 %v5684
        %5801 = vmatprep.subr.mxu0 %v5681
        %5802 = vmatpush2.msra.mxu0 %v5680
        %5803 = vmatprep.subr.mxu0 %v5677
        %5804 = vmatpush2.msra.mxu0 %v5676
        %5805 = vmatprep.subr.mxu0 %v5673
        %5806 = vmatpush2.msra.mxu0 %v5672
        %5807 = vmatprep.subr.mxu0 %v5669
        %5808 = vmatpush2.msra.mxu0 %v5668
        %5809 = vmatprep.subr.mxu0 %v5665
        %5810 = vmatpush2.msra.mxu0 %v5664
        %5811 = vmatprep.subr.mxu0 %v5661
        %5812 = vmatpush2.msra.mxu0 %v5660
        %5813 = vmatprep.subr.mxu0 %v5657
        %5814 = vmatpush2.msra.mxu0 %v5656
        %5815 = vmatprep.subr.mxu0 %v5653
        %5816 = vmatpush2.msra.mxu0 %v5652
        %5817 = vmatprep.subr.mxu0 %v5649
        %5818 = vmatpush2.msra.mxu0 %v5648
        %5819 = vmatprep.subr.mxu0 %v5645
        %5820 = vmatpush2.msra.mxu0 %v5644
        %5821 = vmatprep.subr.mxu0 %v5641
        %5822 = vmatpush2.msra.mxu0 %v5640
        %5823 = vmatprep.subr.mxu0 %v5637
        %5824 = vmatpush2.msra.mxu0 %v5636
        %5825 = vmatprep.subr.mxu0 %v5633
        %5826 = vmatpush2.msra.mxu0 %v5632
        %5827 = vmatprep.subr.mxu0 %v5629
        %5828 = vmatpush2.msra.mxu0 %v5628
        %5829 = vmatprep.mubr.f32.mxu0 %v5691
        %5830 = vmatmul.mubr.f32.gmra.mxu0 %v5690
        %v5831 = vpop.f32.mrf.mxu0
        %v5832 = vadd.f32 0.0, %v5831
        %v5833 = vpop.f32.mrf.mxu0
        %v5834 = vadd.f32 0.0, %v5833
        %5835 = vdwg.mxu0
        %v5836 = vadd.f32 %v5557, %v5761
        %v5837 = vadd.f32 %v5558, %v5763
        %v5838 = vadd.f32 %v5559, %v5832
        %v5839 = vadd.f32 %v5560, %v5834
        %v5840 = vld [vmem:[%s6] sm:$0xf]
        %v5842 = vlaneseq
        %v5843 = vshrl.u32 %v5842, 7
        %v5844 = vsub.s32 0, %v5843
        %v5845 = vrot.slane %v5840, %v5844
        %v5846 = vlaneseq
        %v5847 = vshrl.u32 %v5846, 7
        %v5848 = vsub.s32 1, %v5847
        %v5849 = vrot.slane %v5840, %v5848
        %v5850 = vlaneseq
        %v5851 = vshrl.u32 %v5850, 7
        %v5852 = vsub.s32 2, %v5851
        %v5853 = vrot.slane %v5840, %v5852
        %v5854 = vlaneseq
        %v5855 = vshrl.u32 %v5854, 7
        %v5856 = vsub.s32 3, %v5855
        %v5857 = vrot.slane %v5840, %v5856
        %v5862 = vadd.f32 %v5836, %v5845
        %v5863 = vadd.f32 %v5837, %v5849
        %v5864 = vadd.f32 %v5838, %v5853
        %v5865 = vadd.f32 %v5839, %v5857
        %v5866 = vmax.f32 %v5862, 0.0
        %v5867 = vmax.f32 %v5863, 0.0
        %v5868 = vmax.f32 %v5864, 0.0
        %v5869 = vmax.f32 %v5865, 0.0
        %v5870 = vld [vmem:[%s7] sm:$0xff]
        %v5871 = vld [vmem:[%s7 + $0x8] sm:$0xff]
        %v5872 = vld [vmem:[%s7 + $0x10] sm:$0xff]
        %v5873 = vld [vmem:[%s7 + $0x18] sm:$0xff]
        %v5874 = vld [vmem:[%s7 + $0x20] sm:$0xff]
        %v5875 = vld [vmem:[%s7 + $0x28] sm:$0xff]
        %v5876 = vld [vmem:[%s7 + $0x30] sm:$0xff]
        %v5877 = vld [vmem:[%s7 + $0x38] sm:$0xff]
        %v5878 = vld [vmem:[%s7 + $0x40] sm:$0xff]
        %v5879 = vld [vmem:[%s7 + $0x48] sm:$0xff]
        %v5880 = vld [vmem:[%s7 + $0x50] sm:$0xff]
        %v5881 = vld [vmem:[%s7 + $0x58] sm:$0xff]
        %v5882 = vld [vmem:[%s7 + $0x60] sm:$0xff]
        %v5883 = vld [vmem:[%s7 + $0x68] sm:$0xff]
        %v5884 = vld [vmem:[%s7 + $0x70] sm:$0xff]
        %v5885 = vld [vmem:[%s7 + $0x78] sm:$0xff]
        %v5886 = vld [vmem:[%s7 + $0x80] sm:$0xff]
        %v5887 = vld [vmem:[%s7 + $0x88] sm:$0xff]
        %v5888 = vld [vmem:[%s7 + $0x90] sm:$0xff]
        %v5889 = vld [vmem:[%s7 + $0x98] sm:$0xff]
        %v5890 = vld [vmem:[%s7 + $0xa0] sm:$0xff]
        %v5891 = vld [vmem:[%s7 + $0xa8] sm:$0xff]
        %v5892 = vld [vmem:[%s7 + $0xb0] sm:$0xff]
        %v5893 = vld [vmem:[%s7 + $0xb8] sm:$0xff]
        %v5894 = vld [vmem:[%s7 + $0xc0] sm:$0xff]
        %v5895 = vld [vmem:[%s7 + $0xc8] sm:$0xff]
        %v5896 = vld [vmem:[%s7 + $0xd0] sm:$0xff]
        %v5897 = vld [vmem:[%s7 + $0xd8] sm:$0xff]
        %v5898 = vld [vmem:[%s7 + $0xe0] sm:$0xff]
        %v5899 = vld [vmem:[%s7 + $0xe8] sm:$0xff]
        %v5900 = vld [vmem:[%s7 + $0xf0] sm:$0xff]
        %v5901 = vld [vmem:[%s7 + $0xf8] sm:$0xff]
        %v5902 = vld [vmem:[%s7 + $0x100] sm:$0xff]
        %v5903 = vld [vmem:[%s7 + $0x108] sm:$0xff]
        %v5904 = vld [vmem:[%s7 + $0x110] sm:$0xff]
        %v5905 = vld [vmem:[%s7 + $0x118] sm:$0xff]
        %v5906 = vld [vmem:[%s7 + $0x120] sm:$0xff]
        %v5907 = vld [vmem:[%s7 + $0x128] sm:$0xff]
        %v5908 = vld [vmem:[%s7 + $0x130] sm:$0xff]
        %v5909 = vld [vmem:[%s7 + $0x138] sm:$0xff]
        %v5910 = vld [vmem:[%s7 + $0x140] sm:$0xff]
        %v5911 = vld [vmem:[%s7 + $0x148] sm:$0xff]
        %v5912 = vld [vmem:[%s7 + $0x150] sm:$0xff]
        %v5913 = vld [vmem:[%s7 + $0x158] sm:$0xff]
        %v5914 = vld [vmem:[%s7 + $0x160] sm:$0xff]
        %v5915 = vld [vmem:[%s7 + $0x168] sm:$0xff]
        %v5916 = vld [vmem:[%s7 + $0x170] sm:$0xff]
        %v5917 = vld [vmem:[%s7 + $0x178] sm:$0xff]
        %v5918 = vld [vmem:[%s7 + $0x180] sm:$0xff]
        %v5919 = vld [vmem:[%s7 + $0x188] sm:$0xff]
        %v5920 = vld [vmem:[%s7 + $0x190] sm:$0xff]
        %v5921 = vld [vmem:[%s7 + $0x198] sm:$0xff]
        %v5922 = vld [vmem:[%s7 + $0x1a0] sm:$0xff]
        %v5923 = vld [vmem:[%s7 + $0x1a8] sm:$0xff]
        %v5924 = vld [vmem:[%s7 + $0x1b0] sm:$0xff]
        %v5925 = vld [vmem:[%s7 + $0x1b8] sm:$0xff]
        %v5926 = vld [vmem:[%s7 + $0x1c0] sm:$0xff]
        %v5927 = vld [vmem:[%s7 + $0x1c8] sm:$0xff]
        %v5928 = vld [vmem:[%s7 + $0x1d0] sm:$0xff]
        %v5929 = vld [vmem:[%s7 + $0x1d8] sm:$0xff]
        %v5930 = vld [vmem:[%s7 + $0x1e0] sm:$0xff]
        %v5931 = vld [vmem:[%s7 + $0x1e8] sm:$0xff]
        %v5932 = vld [vmem:[%s7 + $0x1f0] sm:$0xf]
        %v5933 = vld [vmem:[%s8] sm:$0x1]
        %vm5934 = vcmask 949248
        %v5936 = vsel %vm5934, %v5869, 0
        %v5939 = vsel %vm382, %v5932, 0
        %5941 = vmatprep.subr.mxu0 0.0
        %5942 = vmatpush1.msra.mxu0 %v5885
        %5943 = vmatprep.subr.mxu0 0.0
        %5944 = vmatpush1.msra.mxu0 %v5884
        %5945 = vmatprep.subr.mxu0 0.0
        %5946 = vmatpush1.msra.mxu0 %v5883
        %5947 = vmatprep.subr.mxu0 0.0
        %5948 = vmatpush1.msra.mxu0 %v5882
        %5949 = vmatprep.subr.mxu0 0.0
        %5950 = vmatpush1.msra.mxu0 %v5881
        %5951 = vmatprep.subr.mxu0 0.0
        %5952 = vmatpush1.msra.mxu0 %v5880
        %5953 = vmatprep.subr.mxu0 0.0
        %5954 = vmatpush1.msra.mxu0 %v5879
        %5955 = vmatprep.subr.mxu0 0.0
        %5956 = vmatpush1.msra.mxu0 %v5878
        %5957 = vmatprep.subr.mxu0 0.0
        %5958 = vmatpush1.msra.mxu0 %v5877
        %5959 = vmatprep.subr.mxu0 0.0
        %5960 = vmatpush1.msra.mxu0 %v5876
        %5961 = vmatprep.subr.mxu0 0.0
        %5962 = vmatpush1.msra.mxu0 %v5875
        %5963 = vmatprep.subr.mxu0 0.0
        %5964 = vmatpush1.msra.mxu0 %v5874
        %5965 = vmatprep.subr.mxu0 0.0
        %5966 = vmatpush1.msra.mxu0 %v5873
        %5967 = vmatprep.subr.mxu0 0.0
        %5968 = vmatpush1.msra.mxu0 %v5872
        %5969 = vmatprep.subr.mxu0 0.0
        %5970 = vmatpush1.msra.mxu0 %v5871
        %5971 = vmatprep.subr.mxu0 0.0
        %5972 = vmatpush1.msra.mxu0 %v5870
        %5973 = vmatprep.subr.mxu0 0.0
        %5974 = vmatpush2.msra.mxu0 %v5901
        %5975 = vmatprep.subr.mxu0 0.0
        %5976 = vmatpush2.msra.mxu0 %v5900
        %5977 = vmatprep.subr.mxu0 0.0
        %5978 = vmatpush2.msra.mxu0 %v5899
        %5979 = vmatprep.subr.mxu0 0.0
        %5980 = vmatpush2.msra.mxu0 %v5898
        %5981 = vmatprep.subr.mxu0 0.0
        %5982 = vmatpush2.msra.mxu0 %v5897
        %5983 = vmatprep.subr.mxu0 0.0
        %5984 = vmatpush2.msra.mxu0 %v5896
        %5985 = vmatprep.subr.mxu0 0.0
        %5986 = vmatpush2.msra.mxu0 %v5895
        %5987 = vmatprep.subr.mxu0 0.0
        %5988 = vmatpush2.msra.mxu0 %v5894
        %5989 = vmatprep.subr.mxu0 0.0
        %5990 = vmatpush2.msra.mxu0 %v5893
        %5991 = vmatprep.subr.mxu0 0.0
        %5992 = vmatpush2.msra.mxu0 %v5892
        %5993 = vmatprep.subr.mxu0 0.0
        %5994 = vmatpush2.msra.mxu0 %v5891
        %5995 = vmatprep.subr.mxu0 0.0
        %5996 = vmatpush2.msra.mxu0 %v5890
        %5997 = vmatprep.subr.mxu0 0.0
        %5998 = vmatpush2.msra.mxu0 %v5889
        %5999 = vmatprep.subr.mxu0 0.0
        %6000 = vmatpush2.msra.mxu0 %v5888
        %6001 = vmatprep.subr.mxu0 0.0
        %6002 = vmatpush2.msra.mxu0 %v5887
        %6003 = vmatprep.subr.mxu0 0.0
        %6004 = vmatpush2.msra.mxu0 %v5886
        %6005 = vmatprep.mubr.f32.mxu0 %v5867
        %6006 = vmatmul.mubr.f32.gmra.mxu0 %v5866
        %v6007 = vpop.f32.mrf.mxu0
        %v6008 = vadd.f32 %v5933, %v6007
        %v6009 = vpop.f32.mrf.mxu0
        %6010 = vdwg.mxu0
        %6011 = vmatprep.subr.mxu0 0.0
        %6012 = vmatpush1.msra.mxu0 %v5917
        %6013 = vmatprep.subr.mxu0 0.0
        %6014 = vmatpush1.msra.mxu0 %v5916
        %6015 = vmatprep.subr.mxu0 0.0
        %6016 = vmatpush1.msra.mxu0 %v5915
        %6017 = vmatprep.subr.mxu0 0.0
        %6018 = vmatpush1.msra.mxu0 %v5914
        %6019 = vmatprep.subr.mxu0 0.0
        %6020 = vmatpush1.msra.mxu0 %v5913
        %6021 = vmatprep.subr.mxu0 0.0
        %6022 = vmatpush1.msra.mxu0 %v5912
        %6023 = vmatprep.subr.mxu0 0.0
        %6024 = vmatpush1.msra.mxu0 %v5911
        %6025 = vmatprep.subr.mxu0 0.0
        %6026 = vmatpush1.msra.mxu0 %v5910
        %6027 = vmatprep.subr.mxu0 0.0
        %6028 = vmatpush1.msra.mxu0 %v5909
        %6029 = vmatprep.subr.mxu0 0.0
        %6030 = vmatpush1.msra.mxu0 %v5908
        %6031 = vmatprep.subr.mxu0 0.0
        %6032 = vmatpush1.msra.mxu0 %v5907
        %6033 = vmatprep.subr.mxu0 0.0
        %6034 = vmatpush1.msra.mxu0 %v5906
        %6035 = vmatprep.subr.mxu0 0.0
        %6036 = vmatpush1.msra.mxu0 %v5905
        %6037 = vmatprep.subr.mxu0 0.0
        %6038 = vmatpush1.msra.mxu0 %v5904
        %6039 = vmatprep.subr.mxu0 0.0
        %6040 = vmatpush1.msra.mxu0 %v5903
        %6041 = vmatprep.subr.mxu0 0.0
        %6042 = vmatpush1.msra.mxu0 %v5902
        %6043 = vmatprep.subr.mxu0 0.0
        %6044 = vmatpush2.msra.mxu0 0.0
        %6045 = vmatprep.subr.mxu0 0.0
        %6046 = vmatpush2.msra.mxu0 %v5939
        %6047 = vmatprep.subr.mxu0 0.0
        %6048 = vmatpush2.msra.mxu0 %v5931
        %6049 = vmatprep.subr.mxu0 0.0
        %6050 = vmatpush2.msra.mxu0 %v5930
        %6051 = vmatprep.subr.mxu0 0.0
        %6052 = vmatpush2.msra.mxu0 %v5929
        %6053 = vmatprep.subr.mxu0 0.0
        %6054 = vmatpush2.msra.mxu0 %v5928
        %6055 = vmatprep.subr.mxu0 0.0
        %6056 = vmatpush2.msra.mxu0 %v5927
        %6057 = vmatprep.subr.mxu0 0.0
        %6058 = vmatpush2.msra.mxu0 %v5926
        %6059 = vmatprep.subr.mxu0 0.0
        %6060 = vmatpush2.msra.mxu0 %v5925
        %6061 = vmatprep.subr.mxu0 0.0
        %6062 = vmatpush2.msra.mxu0 %v5924
        %6063 = vmatprep.subr.mxu0 0.0
        %6064 = vmatpush2.msra.mxu0 %v5923
        %6065 = vmatprep.subr.mxu0 0.0
        %6066 = vmatpush2.msra.mxu0 %v5922
        %6067 = vmatprep.subr.mxu0 0.0
        %6068 = vmatpush2.msra.mxu0 %v5921
        %6069 = vmatprep.subr.mxu0 0.0
        %6070 = vmatpush2.msra.mxu0 %v5920
        %6071 = vmatprep.subr.mxu0 0.0
        %6072 = vmatpush2.msra.mxu0 %v5919
        %6073 = vmatprep.subr.mxu0 0.0
        %6074 = vmatpush2.msra.mxu0 %v5918
        %6075 = vmatprep.mubr.f32.mxu0 %v5936
        %6076 = vmatmul.mubr.f32.gmra.mxu0 %v5868
        %v6077 = vpop.f32.mrf.mxu0
        %v6078 = vadd.f32 %v6008, %v6077
        %v6079 = vpop.f32.mrf.mxu0
        %6080 = vdwg.mxu0
        %6081 = vst [vmem:[%s324] sm:$0x1] %v6078
        %s6082 = sand.u32 %s225, 1
        %s6083 = scalar_lea.sflag [#allocation3], %s6082
        %s6084 = sand.u32 %s225, 1
        %s6085 = scalar_lea.vmem [#allocation2], %s6084
        // Predicated region
        $region57: #{lenet_forward.1} parent=55 // pred_check
          %p6086 = pneg %p235
        $region58: #{lenet_forward.1} parent=55 // pred_check_branch
          %6088 = sbr.rel (%p6086) target = $region60
        $region59: #{lenet_forward.1} parent=55 // pred_region
          %s6090 = ssub.s32 16, 16
          %6091 = vsyncadd %s6083, %s6090
          %s6092 = smul.addr %s23, 16
          %s6093 = scalar_lea.hbm %s9, %s6092
          %s6095 = sshll.u32 %s6085, 4
          %s6096 = int_to_ptr.vmem [resolvable:$true] %s6095
          %6098 = dma.vmem_to_hbm [thread:$0]  %s6096, 16, %s6093, %s6083
        $region60: #{lenet_forward.1} parent=55 // pred_fallthru
          _
      $region56: #{lenet_forward.1} parent=5 // pred_fallthru
        _
      %p6099 = scmp.le.s32.totalorder 2, %s18
      // Predicated region
      $region61: #{lenet_forward.1} parent=5 // pred_check
        %p6100 = pneg %p6099
      $region62: #{lenet_forward.1} parent=5 // pred_check_branch
        %6102 = sbr.rel (%p6100) target = $region64
      $region63: #{lenet_forward.1} parent=5 // pred_region
        %s6103 = ssub.s32 %s18, 2
        // Predicated region
        $region65: #{lenet_forward.1} parent=63 // pred_check
          %p6104 = pneg %p241
        $region66: #{lenet_forward.1} parent=63 // pred_check_branch
          %6106 = sbr.rel (%p6104) target = $region68
        $region67: #{lenet_forward.1} parent=63 // pred_region
          %s6107 = sand.u32 %s226, 1
          %s6108 = scalar_lea.sflag [#allocation3], %s6107
          %s6109 = sand.u32 %s226, 1
          %s6110 = scalar_lea.vmem [#allocation2], %s6109
          %6111 = dma.done %s6108, 16
        $region68: #{lenet_forward.1} parent=63 // pred_fallthru
          _
      $region64: #{lenet_forward.1} parent=5 // pred_fallthru
        _
    $region6: #{lenet_forward.1} parent=1 // loop_footer
      %s22 = sadd.s32 1, %s18
    $region7: #{lenet_forward.1} parent=1 // loop_footer_branch
      %17 = sbr.rel target = $region3
    $region8: #{lenet_forward.1} parent=1 // loop_exit
      _
    %6112 = vsyncpa [#allocation3], 1
    %s6113 = scalar_lea.sflag [#allocation3], 1
    %6114 = vsyncpa %s6113, 1

</llo_original>
